<compile_context>
chip_gen: v7x
topology: tpu7x:2x2x1
jax: 0.10.0
libtpu: 0.0.40
codegen_flags: <defaults>
</compile_context>

<pallas_src>
import math

import jax
import jax.numpy as jnp
import numpy as np
from jax.experimental import pallas as pl
from jax.experimental.pallas import tpu as pltpu


# ----------------------------------------------------------------------------
# Pallas kernels
# ----------------------------------------------------------------------------
def _vmem():
    return pl.BlockSpec(memory_space=pltpu.MemorySpace.VMEM)


def _conv3_same(h, sl, sr, w, b):
    """'same' Conv1d(k=3, s=1, p=1) with BN folded into w/b.

    h  : (R, C) f32 activations, rows ordered (sequence, time).
    sl : (R, R) bf16 0/1 matrix producing the t-1 neighbour (zero at edges).
    sr : (R, R) bf16 0/1 matrix producing the t+1 neighbour (zero at edges).
    w  : (3C, Cout) bf16 weight, tap-major rows; b: (1, Cout) f32 bias.
    """
    C = h.shape[1]
    hb = h.astype(jnp.bfloat16)
    left = jnp.dot(sl, hb, preferred_element_type=jnp.float32).astype(jnp.bfloat16)
    right = jnp.dot(sr, hb, preferred_element_type=jnp.float32).astype(jnp.bfloat16)
    y = jnp.dot(left, w[0 * C:1 * C], preferred_element_type=jnp.float32)
    y = y + jnp.dot(hb, w[1 * C:2 * C], preferred_element_type=jnp.float32)
    y = y + jnp.dot(right, w[2 * C:3 * C], preferred_element_type=jnp.float32)
    return y + b


def _trunk_a_kernel(xp_ref, win_ref, bin_ref, p0_ref, p1_ref, p2_ref,
                    sl_ref, sr_ref, w1_ref, b1_ref, w2_ref, b2_ref, o_ref):
    """in_conv(k7,s2,p3)+BN+ReLU + MaxPool(3,2,1) + group-1 BasicBlock."""
    c1 = jnp.dot(xp_ref[...].astype(jnp.bfloat16), win_ref[...],
                 preferred_element_type=jnp.float32) + bin_ref[...]
    c1 = jnp.maximum(c1, 0.0)                                   # (M*L1, 64)
    # MaxPool1d(3,2,1): taps via 0/1 row-selection matmuls.  Padding rows are
    # zero, which is exact because c1 >= 0 after the ReLU.
    t0 = jnp.dot(p0_ref[...], c1, preferred_element_type=jnp.float32)
    t1 = jnp.dot(p1_ref[...], c1, preferred_element_type=jnp.float32)
    t2 = jnp.dot(p2_ref[...], c1, preferred_element_type=jnp.float32)
    x = jnp.maximum(jnp.maximum(t0, t1), t2)                    # (M*L2, 64)
    # BasicBlock1D(64->64, stride 1): conv-bn-relu, conv-bn, +identity, relu
    sl = sl_ref[...]
    sr = sr_ref[...]
    h = jnp.maximum(_conv3_same(x, sl, sr, w1_ref[...], b1_ref[...]), 0.0)
    y = _conv3_same(h, sl, sr, w2_ref[...], b2_ref[...]) + x
    o_ref[...] = jnp.maximum(y, 0.0)


def _trunk_b_kernel(p21_ref, xds_ref, sl_ref, sr_ref, w1_ref, b1_ref,
                    w2_ref, b2_ref, wd_ref, bd_ref, wp_ref, bp_ref, o_ref):
    """group-2 BasicBlock (stride 2, 1x1 downsample) + merged FC-head preps."""
    # 1x1 stride-2 downsample conv + folded BN (identity path, stays in VMEM)
    identity = jnp.dot(xds_ref[...].astype(jnp.bfloat16), wd_ref[...],
                       preferred_element_type=jnp.float32) + bd_ref[...]
    # conv1 (k3,s2,p1) + BN + ReLU on host-built im2col patches
    h = jnp.dot(p21_ref[...].astype(jnp.bfloat16), w1_ref[...],
                preferred_element_type=jnp.float32) + b1_ref[...]
    h = jnp.maximum(h, 0.0)
    # conv2 (k3,s1,p1) + BN, + identity, ReLU
    y = _conv3_same(h, sl_ref[...], sr_ref[...], w2_ref[...], b2_ref[...]) + identity
    y = jnp.maximum(y, 0.0)
    # both FC heads' 1x1 "prep" convs (+BN) merged -> lane-dense (., 256)
    o_ref[...] = jnp.dot(y.astype(jnp.bfloat16), wp_ref[...],
                         preferred_element_type=jnp.float32) + bp_ref[...]


def _fc_heads_kernel(x_ref, w1_ref, b1_ref, w2_ref, b2_ref, w3_ref, b3_ref, o_ref):
    """One grid step per FC head (out1/out2).  Eval-mode Dropout = identity."""
    h = jnp.dot(x_ref[0].astype(jnp.bfloat16), w1_ref[0],
                preferred_element_type=jnp.float32) + b1_ref[0]
    h = jnp.maximum(h, 0.0)
    h = jnp.dot(h.astype(jnp.bfloat16), w2_ref[0],
                preferred_element_type=jnp.float32) + b2_ref[0]
    h = jnp.maximum(h, 0.0)
    o_ref[0] = jnp.dot(h.astype(jnp.bfloat16), w3_ref[0],
                       preferred_element_type=jnp.float32) + b3_ref[0]


# ----------------------------------------------------------------------------
# Wrapper-side glue: weight folding, index plumbing (all O(KB))
# ----------------------------------------------------------------------------
def _fold_conv_bn(w_oik, bn, eps=1e-5):
    """Conv1d(bias=False)+BatchNorm1d(eval): fold BN scale into the weight."""
    scale = bn["gamma"] / jnp.sqrt(bn["var"] + eps)
    bias = bn["beta"] - bn["mean"] * scale
    c_out, c_in, k = w_oik.shape
    w2 = jnp.transpose(w_oik, (2, 1, 0)).reshape(k * c_in, c_out)   # rows: t*Cin + c
    w2 = w2 * scale[None, :]
    return w2.astype(jnp.bfloat16), bias.reshape(1, c_out).astype(jnp.float32)


def _im2col_strided(x_mlc, k, stride, pad):
    """(M, L, C) -> (M, L_out, k*C) patches (tap-major channel order)."""
    M, L, C = x_mlc.shape
    L_out = (L + 2 * pad - k) // stride + 1
    xp = jnp.pad(x_mlc, ((0, 0), (pad, pad), (0, 0))) if pad > 0 else x_mlc
    taps = [xp[:, t:t + stride * (L_out - 1) + 1:stride, :] for t in range(k)]
    return jnp.concatenate(taps, axis=-1)


def _pool_select_mats(Mb, L_in, L_out):
    """MaxPool1d(k=3,s=2,p=1) tap-selection matrices (zero rows = padding)."""
    mats = []
    for t in range(3):
        sel = np.zeros((Mb * L_out, Mb * L_in), np.float32)
        for m in range(Mb):
            for j in range(L_out):
                src = 2 * j + t - 1
                if 0 <= src < L_in:
                    sel[m * L_out + j, m * L_in + src] = 1.0
        mats.append(jnp.asarray(sel))
    return mats


def _shift_mats(Mb, L):
    """0/1 matrices shifting rows by -1/+1 inside each length-L sequence."""
    R = Mb * L
    sl = np.zeros((R, R), np.float32)
    sr = np.zeros((R, R), np.float32)
    for r in range(R):
        if r % L != 0:
            sl[r, r - 1] = 1.0
        if r % L != L - 1:
            sr[r, r + 1] = 1.0
    return jnp.asarray(sl, jnp.bfloat16), jnp.asarray(sr, jnp.bfloat16)


def _stack_fc_heads(p1, p2, pad_out=8):
    """Stack the two FC heads along a leading axis (grid dim of kernel C)."""
    P = max(pad_out, p1["fc3_w"].shape[0], p2["fc3_w"].shape[0])

    def padw3(w):   # (out, F) -> (F, P)
        wt = jnp.transpose(w)
        return jnp.pad(wt, ((0, 0), (0, P - wt.shape[1])))

    def padb3(b):   # (out,) -> (1, P)
        return jnp.pad(b, (0, P - b.shape[0])).reshape(1, P)

    W1 = jnp.stack([jnp.transpose(p1["fc1_w"]),
                    jnp.transpose(p2["fc1_w"])]).astype(jnp.bfloat16)
    B1 = jnp.stack([p1["fc1_b"].reshape(1, -1),
                    p2["fc1_b"].reshape(1, -1)]).astype(jnp.float32)
    W2 = jnp.stack([jnp.transpose(p1["fc2_w"]),
                    jnp.transpose(p2["fc2_w"])]).astype(jnp.bfloat16)
    B2 = jnp.stack([p1["fc2_b"].reshape(1, -1),
                    p2["fc2_b"].reshape(1, -1)]).astype(jnp.float32)
    W3 = jnp.stack([padw3(p1["fc3_w"]), padw3(p2["fc3_w"])]).astype(jnp.bfloat16)
    B3 = jnp.stack([padb3(p1["fc3_b"]), padb3(p2["fc3_b"])]).astype(jnp.float32)
    return W1, B1, W2, B2, W3, B3


# ----------------------------------------------------------------------------
# Batched ResNet1D(BasicBlock1D, depths=(1,1)) forward in 3 Pallas calls
# ----------------------------------------------------------------------------
def tlio_resnet1d(x, params):
    """x: (M, N, 6) channels-last, M = 4*batch (the four PCA frames stacked)."""
    M, N, _ = x.shape
    out_dim = params["out1"]["fc3_w"].shape[0]
    cov_dim = params["out2"]["fc3_w"].shape[0]

    # trunk temporal lengths
    L1 = (N + 2 * 3 - 7) // 2 + 1          # after in_conv  (k7 s2 p3)
    L2 = (L1 + 2 * 1 - 3) // 2 + 1         # after maxpool  (k3 s2 p1)
    L3 = (L2 + 2 * 1 - 3) // 2 + 1         # after group 2  (k3 s2 p1)

    # --- fold BN into conv weights (bf16), biases stay f32 ---
    w_in, b_in = _fold_conv_bn(params["in_conv_w"], params["in_bn"])
    g1 = params["g1b1"]
    w11, b11 = _fold_conv_bn(g1["conv1_w"], g1["bn1"])
    w12, b12 = _fold_conv_bn(g1["conv2_w"], g1["bn2"])
    g2 = params["g2b1"]
    w21, b21 = _fold_conv_bn(g2["conv1_w"], g2["bn1"])
    w22, b22 = _fold_conv_bn(g2["conv2_w"], g2["bn2"])
    wdn, bdn = _fold_conv_bn(g2["down_w"], g2["down_bn"])
    wp1, bp1 = _fold_conv_bn(params["out1"]["prep_w"], params["out1"]["prep_bn"])
    wp2, bp2 = _fold_conv_bn(params["out2"]["prep_w"], params["out2"]["prep_bn"])
    wpr = jnp.concatenate([wp1, wp2], axis=1)    # (128, 256) merged prep convs
    bpr = jnp.concatenate([bp1, bp2], axis=1)    # (1, 256)
    W1, B1, W2, B2, W3, B3 = _stack_fc_heads(params["out1"], params["out2"])

    # --- static 0/1 selection / shift matrices (index plumbing on the MXU) ---
    p0, p1s, p2s = _pool_select_mats(M, L1, L2)
    sl2, sr2 = _shift_mats(M, L2)
    sl3, sr3 = _shift_mats(M, L3)

    # --- stage A: in_conv + maxpool + group-1 BasicBlock (one kernel) ---
    patches_in = _im2col_strided(x, k=7, stride=2, pad=3).reshape(M * L1, -1)
    y2 = pl.pallas_call(
        _trunk_a_kernel,
        out_shape=jax.ShapeDtypeStruct((M * L2, 64), jnp.float32),
        in_specs=[_vmem() for _ in range(12)],
        out_specs=_vmem(),
    )(patches_in, w_in, b_in, p0, p1s, p2s, sl2, sr2, w11, b11, w12, b12)

    # --- stage B: group-2 BasicBlock + merged prep convs (one kernel) ---
    y2r = y2.reshape(M, L2, 64)
    p21 = _im2col_strided(y2r, k=3, stride=2, pad=1).reshape(M * L3, -1)
    xds = y2r[:, 0::2, :].reshape(M * L3, 64)
    y3 = pl.pallas_call(
        _trunk_b_kernel,
        out_shape=jax.ShapeDtypeStruct((M * L3, 256), jnp.float32),
        in_specs=[_vmem() for _ in range(12)],
        out_specs=_vmem(),
    )(p21, xds, sl3, sr3, w21, b21, w22, b22, wdn, bdn, wpr, bpr)

    # --- stage C: both FC heads, grid=(2,) (parallel -> one head per TC on v7x)
    # PyTorch's FcBlock flattens (B, C, L) channel-major: index = c*L + l.
    y3r = y3.reshape(M, L3, 256)
    h1 = jnp.transpose(y3r[:, :, :128], (0, 2, 1)).reshape(M, 128 * L3)
    h2 = jnp.transpose(y3r[:, :, 128:], (0, 2, 1)).reshape(M, 128 * L3)
    x_heads = jnp.stack([h1, h2], axis=0)                  # (2, M, 128*L3) f32

    K1 = 128 * L3
    F = W1.shape[2]
    P = W3.shape[2]
    spec3 = lambda s: pl.BlockSpec((1,) + s, lambda h: (h, 0, 0))
    out = pl.pallas_call(
        _fc_heads_kernel,
        out_shape=jax.ShapeDtypeStruct((2, M, P), jnp.float32),
        grid=(2,),
        in_specs=[spec3((M, K1)), spec3((K1, F)), spec3((1, F)),
                  spec3((F, F)), spec3((1, F)), spec3((F, P)), spec3((1, P))],
        out_specs=spec3((M, P)),
        compiler_params=pltpu.CompilerParams(dimension_semantics=("parallel",)),
    )(x_heads, W1, B1, W2, B2, W3, B3)

    return out[0, :, :out_dim], out[1, :, :cov_dim]


# ----------------------------------------------------------------------------
# Eq_Motion_Model forward
# ----------------------------------------------------------------------------
def eq_motion_forward(inp, params):
    """inp: (B, 6, N) float32 (channels: gx, gy, gz, ax, ay, az)."""
    B = inp.shape[0]
    N = inp.shape[2]
    xt = jnp.transpose(inp, (0, 2, 1))                                  # (B, N, 6)
    original_scalars = jnp.stack([xt[:, :, 5], xt[:, :, 2]], axis=-1)   # (B, N, 2)
    g_xy = xt[:, :, 0:2]
    a_xy = xt[:, :, 3:5]
    vector = jnp.stack([g_xy, a_xy], axis=-2)                           # (B, N, 2, 2)

    # PCA frame (exact 2x2 eigendecomposition of the centered covariance).
    vpca = jnp.concatenate([g_xy, a_xy], axis=1)                        # (B, 2N, 2)
    vc = vpca - jnp.mean(vpca, axis=1, keepdims=True)
    cov2 = jnp.einsum("bni,bnj->bij", vc, vc)
    a = cov2[:, 0, 0]
    bb = cov2[:, 0, 1]
    d = cov2[:, 1, 1]
    lam1 = (a + d) / 2.0 + jnp.sqrt(((a - d) / 2.0) ** 2 + bb ** 2)
    c1 = jnp.stack([lam1 - d, bb], axis=-1)
    c2 = jnp.stack([bb, lam1 - a], axis=-1)
    n1 = jnp.linalg.norm(c1, axis=-1, keepdims=True)
    n2 = jnp.linalg.norm(c2, axis=-1, keepdims=True)
    e1 = jnp.where(n1 >= n2, c1, c2)
    fb = jnp.where((a >= d)[:, None], jnp.array([1.0, 0.0]), jnp.array([0.0, 1.0]))
    e1 = jnp.where(jnp.maximum(n1, n2) < 1e-12, fb, e1)
    v1 = e1 / jnp.clip(jnp.linalg.norm(e1, axis=-1, keepdims=True), 1e-8)
    v2 = jnp.stack([-v1[:, 1], v1[:, 0]], axis=-1)   # orthonormal, sign-ambiguous

    # All 4 sign frames batched along a leading frame axis (rows = basis vecs).
    frames = jnp.stack(
        [jnp.stack([v1, v2], axis=1),
         jnp.stack([-v1, v2], axis=1),
         jnp.stack([v1, -v2], axis=1),
         jnp.stack([-v1, -v2], axis=1)], axis=0)                        # (4, B, 2, 2)

    v_rot = jnp.einsum("fbij,bnjk->fbnik", frames, vector)              # (4,B,N,2,2)
    feat = v_rot.reshape(4, B, N, 4)
    scal = jnp.broadcast_to(original_scalars[None], (4, B, N, 2))
    x_all = jnp.concatenate([feat, scal], axis=-1).reshape(4 * B, N, 6)

    disp_all, cov_all = tlio_resnet1d(x_all, params)                    # (4B,·)

    out_dim = disp_all.shape[1]
    disp_all = disp_all.reshape(4, B, out_dim)
    cov_all = cov_all.reshape(4, B, -1)
    # rotate the planar part of each displacement back: frame^T @ disp[:, :2]
    disp_xy = jnp.einsum("fbji,fbj->fbi", frames, disp_all[..., :2])
    disp_all = jnp.concatenate([disp_xy, disp_all[..., -1:]], axis=-1)
    disp = jnp.mean(disp_all, axis=0)
    cov = jnp.mean(cov_all, axis=0)
    return frames[0], disp, cov


# ----------------------------------------------------------------------------
# Deterministic parameter initialization (ResNet1D/FcBlock shapes:
# base_plane=64, planes=(64,128), prep_channel=128, fc_dim=512, depths=(1,1))
# ----------------------------------------------------------------------------
def init_params(key, in_dim, out_dim, cov_dim, inter_dim):
    it = iter(jax.random.split(key, 64))

    def nk():
        return next(it)

    def w_conv(c_out, c_in, k):
        return (1.0 / math.sqrt(c_in * k)) * jax.random.normal(
            nk(), (c_out, c_in, k), jnp.float32)

    def w_lin(c_out, c_in):
        return (1.0 / math.sqrt(c_in)) * jax.random.normal(
            nk(), (c_out, c_in), jnp.float32)

    def b_lin(c_out):
        return 0.05 * jax.random.normal(nk(), (c_out,), jnp.float32)

    def bn(c):
        return dict(
            gamma=1.0 + 0.1 * jax.random.normal(nk(), (c,), jnp.float32),
            beta=0.1 * jax.random.normal(nk(), (c,), jnp.float32),
            mean=0.1 * jax.random.normal(nk(), (c,), jnp.float32),
            var=0.5 + jax.random.uniform(nk(), (c,), jnp.float32),
        )

    params = dict(
        in_conv_w=w_conv(64, in_dim, 7),
        in_bn=bn(64),
        g1b1=dict(
            conv1_w=w_conv(64, 64, 3), bn1=bn(64),
            conv2_w=w_conv(64, 64, 3), bn2=bn(64),
        ),
        g2b1=dict(
            conv1_w=w_conv(128, 64, 3), bn1=bn(128),
            conv2_w=w_conv(128, 128, 3), bn2=bn(128),
            down_w=w_conv(128, 64, 1), down_bn=bn(128),
        ),
    )

    def fcb(out_c):
        return dict(
            prep_w=w_conv(128, 128, 1), prep_bn=bn(128),
            fc1_w=w_lin(512, 128 * inter_dim), fc1_b=b_lin(512),
            fc2_w=w_lin(512, 512), fc2_b=b_lin(512),
            fc3_w=w_lin(out_c, 512), fc3_b=b_lin(out_c),
        )

    params["out1"] = fcb(out_dim)
    params["out2"] = fcb(cov_dim)
    return params


# ----------------------------------------------------------------------------
if __name__ == "__main__":
    key = jax.random.PRNGKey(0)
    kx, kp = jax.random.split(key)

    B, N = 2, 64                 # batch, IMU window length
    TLIO_IN_DIM = 6              # gx, gy, gz, ax, ay, az
    TLIO_OUT_DIM = 3             # 3-D displacement
    TLIO_COV_DIM = 2             # n_scalars == 2 branch

    # temporal length after the trunk (conv s2 -> maxpool s2 -> group2 s2)
    def out_len(L, k, s, p):
        return (L + 2 * p - k) // s + 1

    inter_dim = out_len(out_len(out_len(out_len(N, 7, 2, 3), 3, 2, 1), 3, 1, 1),
                        3, 2, 1)

    x = jax.random.normal(kx, (B, TLIO_IN_DIM, N), jnp.float32)
    params = init_params(kp, TLIO_IN_DIM, TLIO_OUT_DIM, TLIO_COV_DIM, inter_dim)

    fwd = jax.jit(eq_motion_forward)
    frame1, disp, cov = fwd(x, params)
    jax.block_until_ready((frame1, disp, cov))

    assert frame1.shape == (B, 2, 2)
    assert disp.shape == (B, TLIO_OUT_DIM)
    assert cov.shape == (B, TLIO_COV_DIM)
    assert bool(jnp.all(jnp.isfinite(frame1)))
    assert bool(jnp.all(jnp.isfinite(disp)))
    assert bool(jnp.all(jnp.isfinite(cov)))
    print("KERNEL_OK")
</pallas_src>

<mosaic_0001>
module attributes {stable_mosaic.version = 11 : i64} {
  func.func @_trunk_a_kernel(%arg0: memref<256x42xf32, #tpu.memory_space<vmem>>, %arg1: memref<42x64xbf16, #tpu.memory_space<vmem>>, %arg2: memref<1x64xf32, #tpu.memory_space<vmem>>, %arg3: memref<128x256xf32, #tpu.memory_space<vmem>>, %arg4: memref<128x256xf32, #tpu.memory_space<vmem>>, %arg5: memref<128x256xf32, #tpu.memory_space<vmem>>, %arg6: memref<128x128xbf16, #tpu.memory_space<vmem>>, %arg7: memref<128x128xbf16, #tpu.memory_space<vmem>>, %arg8: memref<192x64xbf16, #tpu.memory_space<vmem>>, %arg9: memref<1x64xf32, #tpu.memory_space<vmem>>, %arg10: memref<192x64xbf16, #tpu.memory_space<vmem>>, %arg11: memref<1x64xf32, #tpu.memory_space<vmem>>, %arg12: memref<128x64xf32, #tpu.memory_space<vmem>>) attributes {dimension_semantics = [], scalar_prefetch = 0 : i64, scratch_operands = 0 : i64, tpu.core_type = #tpu.core_type<tc>} {
    %c0 = arith.constant 0 : index
    %c0_0 = arith.constant 0 : index
    %0 = vector.load %arg0[%c0, %c0_0] : memref<256x42xf32, #tpu.memory_space<vmem>>, vector<256x42xf32>
    %1 = arith.truncf %0 : vector<256x42xf32> to vector<256x42xbf16>
    %c0_1 = arith.constant 0 : index
    %c0_2 = arith.constant 0 : index
    %2 = vector.load %arg1[%c0_1, %c0_2] : memref<42x64xbf16, #tpu.memory_space<vmem>>, vector<42x64xbf16>
    %cst = arith.constant dense<0.000000e+00> : vector<256x64xf32>
    %3 = tpu.matmul %1, %2, %cst {dimension_numbers = #tpu.dot_dimension_numbers<[1], [0], [0], [1], [0, 0, 1, 1], [], []>} : vector<256x42xbf16>, vector<42x64xbf16>, vector<256x64xf32> -> vector<256x64xf32>
    %c0_3 = arith.constant 0 : index
    %c0_4 = arith.constant 0 : index
    %4 = vector.load %arg2[%c0_3, %c0_4] : memref<1x64xf32, #tpu.memory_space<vmem>>, vector<1x64xf32>
    %5 = vector.broadcast %4 : vector<1x64xf32> to vector<256x64xf32>
    %6 = arith.addf %3, %5 : vector<256x64xf32>
    %cst_5 = arith.constant 0.000000e+00 : f32
    %7 = vector.broadcast %cst_5 : f32 to vector<256x64xf32>
    %8 = arith.maximumf %6, %7 : vector<256x64xf32>
    %c0_6 = arith.constant 0 : index
    %c0_7 = arith.constant 0 : index
    %9 = vector.load %arg3[%c0_6, %c0_7] : memref<128x256xf32, #tpu.memory_space<vmem>>, vector<128x256xf32>
    %cst_8 = arith.constant dense<0.000000e+00> : vector<128x64xf32>
    %10 = tpu.matmul %9, %8, %cst_8 {dimension_numbers = #tpu.dot_dimension_numbers<[1], [0], [0], [1], [0, 0, 1, 1], [], []>} : vector<128x256xf32>, vector<256x64xf32>, vector<128x64xf32> -> vector<128x64xf32>
    %c0_9 = arith.constant 0 : index
    %c0_10 = arith.constant 0 : index
    %11 = vector.load %arg4[%c0_9, %c0_10] : memref<128x256xf32, #tpu.memory_space<vmem>>, vector<128x256xf32>
    %cst_11 = arith.constant dense<0.000000e+00> : vector<128x64xf32>
    %12 = tpu.matmul %11, %8, %cst_11 {dimension_numbers = #tpu.dot_dimension_numbers<[1], [0], [0], [1], [0, 0, 1, 1], [], []>} : vector<128x256xf32>, vector<256x64xf32>, vector<128x64xf32> -> vector<128x64xf32>
    %c0_12 = arith.constant 0 : index
    %c0_13 = arith.constant 0 : index
    %13 = vector.load %arg5[%c0_12, %c0_13] : memref<128x256xf32, #tpu.memory_space<vmem>>, vector<128x256xf32>
    %cst_14 = arith.constant dense<0.000000e+00> : vector<128x64xf32>
    %14 = tpu.matmul %13, %8, %cst_14 {dimension_numbers = #tpu.dot_dimension_numbers<[1], [0], [0], [1], [0, 0, 1, 1], [], []>} : vector<128x256xf32>, vector<256x64xf32>, vector<128x64xf32> -> vector<128x64xf32>
    %15 = arith.maximumf %10, %12 : vector<128x64xf32>
    %16 = arith.maximumf %15, %14 : vector<128x64xf32>
    %c0_15 = arith.constant 0 : index
    %c0_16 = arith.constant 0 : index
    %17 = vector.load %arg6[%c0_15, %c0_16] : memref<128x128xbf16, #tpu.memory_space<vmem>>, vector<128x128xbf16>
    %c0_17 = arith.constant 0 : index
    %c0_18 = arith.constant 0 : index
    %18 = vector.load %arg7[%c0_17, %c0_18] : memref<128x128xbf16, #tpu.memory_space<vmem>>, vector<128x128xbf16>
    %c0_19 = arith.constant 0 : index
    %c0_20 = arith.constant 0 : index
    %19 = vector.load %arg8[%c0_19, %c0_20] : memref<192x64xbf16, #tpu.memory_space<vmem>>, vector<192x64xbf16>
    %c0_21 = arith.constant 0 : index
    %c0_22 = arith.constant 0 : index
    %20 = vector.load %arg9[%c0_21, %c0_22] : memref<1x64xf32, #tpu.memory_space<vmem>>, vector<1x64xf32>
    %21 = arith.truncf %16 : vector<128x64xf32> to vector<128x64xbf16>
    %cst_23 = arith.constant dense<0.000000e+00> : vector<128x64xf32>
    %22 = tpu.matmul %17, %21, %cst_23 {dimension_numbers = #tpu.dot_dimension_numbers<[1], [0], [0], [1], [0, 0, 1, 1], [], []>} : vector<128x128xbf16>, vector<128x64xbf16>, vector<128x64xf32> -> vector<128x64xf32>
    %23 = arith.truncf %22 : vector<128x64xf32> to vector<128x64xbf16>
    %cst_24 = arith.constant dense<0.000000e+00> : vector<128x64xf32>
    %24 = tpu.matmul %18, %21, %cst_24 {dimension_numbers = #tpu.dot_dimension_numbers<[1], [0], [0], [1], [0, 0, 1, 1], [], []>} : vector<128x128xbf16>, vector<128x64xbf16>, vector<128x64xf32> -> vector<128x64xf32>
    %25 = arith.truncf %24 : vector<128x64xf32> to vector<128x64xbf16>
    %26 = vector.extract_strided_slice %19 {offsets = [0, 0], sizes = [64, 64], strides = [1, 1]} : vector<192x64xbf16> to vector<64x64xbf16>
    %cst_25 = arith.constant dense<0.000000e+00> : vector<128x64xf32>
    %27 = tpu.matmul %23, %26, %cst_25 {dimension_numbers = #tpu.dot_dimension_numbers<[1], [0], [0], [1], [0, 0, 1, 1], [], []>} : vector<128x64xbf16>, vector<64x64xbf16>, vector<128x64xf32> -> vector<128x64xf32>
    %28 = vector.extract_strided_slice %19 {offsets = [64, 0], sizes = [64, 64], strides = [1, 1]} : vector<192x64xbf16> to vector<64x64xbf16>
    %cst_26 = arith.constant dense<0.000000e+00> : vector<128x64xf32>
    %29 = tpu.matmul %21, %28, %cst_26 {dimension_numbers = #tpu.dot_dimension_numbers<[1], [0], [0], [1], [0, 0, 1, 1], [], []>} : vector<128x64xbf16>, vector<64x64xbf16>, vector<128x64xf32> -> vector<128x64xf32>
    %30 = arith.addf %27, %29 : vector<128x64xf32>
    %31 = vector.extract_strided_slice %19 {offsets = [128, 0], sizes = [64, 64], strides = [1, 1]} : vector<192x64xbf16> to vector<64x64xbf16>
    %cst_27 = arith.constant dense<0.000000e+00> : vector<128x64xf32>
    %32 = tpu.matmul %25, %31, %cst_27 {dimension_numbers = #tpu.dot_dimension_numbers<[1], [0], [0], [1], [0, 0, 1, 1], [], []>} : vector<128x64xbf16>, vector<64x64xbf16>, vector<128x64xf32> -> vector<128x64xf32>
    %33 = arith.addf %30, %32 : vector<128x64xf32>
    %34 = vector.broadcast %20 : vector<1x64xf32> to vector<128x64xf32>
    %35 = arith.addf %33, %34 : vector<128x64xf32>
    %cst_28 = arith.constant 0.000000e+00 : f32
    %36 = vector.broadcast %cst_28 : f32 to vector<128x64xf32>
    %37 = arith.maximumf %35, %36 : vector<128x64xf32>
    %c0_29 = arith.constant 0 : index
    %c0_30 = arith.constant 0 : index
    %38 = vector.load %arg10[%c0_29, %c0_30] : memref<192x64xbf16, #tpu.memory_space<vmem>>, vector<192x64xbf16>
    %c0_31 = arith.constant 0 : index
    %c0_32 = arith.constant 0 : index
    %39 = vector.load %arg11[%c0_31, %c0_32] : memref<1x64xf32, #tpu.memory_space<vmem>>, vector<1x64xf32>
    %40 = arith.truncf %37 : vector<128x64xf32> to vector<128x64xbf16>
    %cst_33 = arith.constant dense<0.000000e+00> : vector<128x64xf32>
    %41 = tpu.matmul %17, %40, %cst_33 {dimension_numbers = #tpu.dot_dimension_numbers<[1], [0], [0], [1], [0, 0, 1, 1], [], []>} : vector<128x128xbf16>, vector<128x64xbf16>, vector<128x64xf32> -> vector<128x64xf32>
    %42 = arith.truncf %41 : vector<128x64xf32> to vector<128x64xbf16>
    %cst_34 = arith.constant dense<0.000000e+00> : vector<128x64xf32>
    %43 = tpu.matmul %18, %40, %cst_34 {dimension_numbers = #tpu.dot_dimension_numbers<[1], [0], [0], [1], [0, 0, 1, 1], [], []>} : vector<128x128xbf16>, vector<128x64xbf16>, vector<128x64xf32> -> vector<128x64xf32>
    %44 = arith.truncf %43 : vector<128x64xf32> to vector<128x64xbf16>
    %45 = vector.extract_strided_slice %38 {offsets = [0, 0], sizes = [64, 64], strides = [1, 1]} : vector<192x64xbf16> to vector<64x64xbf16>
    %cst_35 = arith.constant dense<0.000000e+00> : vector<128x64xf32>
    %46 = tpu.matmul %42, %45, %cst_35 {dimension_numbers = #tpu.dot_dimension_numbers<[1], [0], [0], [1], [0, 0, 1, 1], [], []>} : vector<128x64xbf16>, vector<64x64xbf16>, vector<128x64xf32> -> vector<128x64xf32>
    %47 = vector.extract_strided_slice %38 {offsets = [64, 0], sizes = [64, 64], strides = [1, 1]} : vector<192x64xbf16> to vector<64x64xbf16>
    %cst_36 = arith.constant dense<0.000000e+00> : vector<128x64xf32>
    %48 = tpu.matmul %40, %47, %cst_36 {dimension_numbers = #tpu.dot_dimension_numbers<[1], [0], [0], [1], [0, 0, 1, 1], [], []>} : vector<128x64xbf16>, vector<64x64xbf16>, vector<128x64xf32> -> vector<128x64xf32>
    %49 = arith.addf %46, %48 : vector<128x64xf32>
    %50 = vector.extract_strided_slice %38 {offsets = [128, 0], sizes = [64, 64], strides = [1, 1]} : vector<192x64xbf16> to vector<64x64xbf16>
    %cst_37 = arith.constant dense<0.000000e+00> : vector<128x64xf32>
    %51 = tpu.matmul %44, %50, %cst_37 {dimension_numbers = #tpu.dot_dimension_numbers<[1], [0], [0], [1], [0, 0, 1, 1], [], []>} : vector<128x64xbf16>, vector<64x64xbf16>, vector<128x64xf32> -> vector<128x64xf32>
    %52 = arith.addf %49, %51 : vector<128x64xf32>
    %53 = vector.broadcast %39 : vector<1x64xf32> to vector<128x64xf32>
    %54 = arith.addf %52, %53 : vector<128x64xf32>
    %55 = arith.addf %54, %16 : vector<128x64xf32>
    %cst_38 = arith.constant 0.000000e+00 : f32
    %56 = vector.broadcast %cst_38 : f32 to vector<128x64xf32>
    %57 = arith.maximumf %55, %56 : vector<128x64xf32>
    %c0_39 = arith.constant 0 : index
    %c0_40 = arith.constant 0 : index
    %58 = vector.load %arg12[%c0_39, %c0_40] : memref<128x64xf32, #tpu.memory_space<vmem>>, vector<128x64xf32>
    tpu.vector_store %arg12[%c0_39, %c0_40], %57 {strides = array<i32>} : memref<128x64xf32, #tpu.memory_space<vmem>>, vector<128x64xf32>,
    return
  }
}

module attributes {stable_mosaic.version = 11 : i64} {
  func.func @_trunk_b_kernel(%arg0: memref<64x192xf32, #tpu.memory_space<vmem>>, %arg1: memref<64x64xf32, #tpu.memory_space<vmem>>, %arg2: memref<64x64xbf16, #tpu.memory_space<vmem>>, %arg3: memref<64x64xbf16, #tpu.memory_space<vmem>>, %arg4: memref<192x128xbf16, #tpu.memory_space<vmem>>, %arg5: memref<1x128xf32, #tpu.memory_space<vmem>>, %arg6: memref<384x128xbf16, #tpu.memory_space<vmem>>, %arg7: memref<1x128xf32, #tpu.memory_space<vmem>>, %arg8: memref<64x128xbf16, #tpu.memory_space<vmem>>, %arg9: memref<1x128xf32, #tpu.memory_space<vmem>>, %arg10: memref<128x256xbf16, #tpu.memory_space<vmem>>, %arg11: memref<1x256xf32, #tpu.memory_space<vmem>>, %arg12: memref<64x256xf32, #tpu.memory_space<vmem>>) attributes {dimension_semantics = [], scalar_prefetch = 0 : i64, scratch_operands = 0 : i64, tpu.core_type = #tpu.core_type<tc>} {
    %c0 = arith.constant 0 : index
    %c0_0 = arith.constant 0 : index
    %0 = vector.load %arg1[%c0, %c0_0] : memref<64x64xf32, #tpu.memory_space<vmem>>, vector<64x64xf32>
    %1 = arith.truncf %0 : vector<64x64xf32> to vector<64x64xbf16>
    %c0_1 = arith.constant 0 : index
    %c0_2 = arith.constant 0 : index
    %2 = vector.load %arg8[%c0_1, %c0_2] : memref<64x128xbf16, #tpu.memory_space<vmem>>, vector<64x128xbf16>
    %cst = arith.constant dense<0.000000e+00> : vector<64x128xf32>
    %3 = tpu.matmul %1, %2, %cst {dimension_numbers = #tpu.dot_dimension_numbers<[1], [0], [0], [1], [0, 0, 1, 1], [], []>} : vector<64x64xbf16>, vector<64x128xbf16>, vector<64x128xf32> -> vector<64x128xf32>
    %c0_3 = arith.constant 0 : index
    %c0_4 = arith.constant 0 : index
    %4 = vector.load %arg9[%c0_3, %c0_4] : memref<1x128xf32, #tpu.memory_space<vmem>>, vector<1x128xf32>
    %5 = vector.broadcast %4 : vector<1x128xf32> to vector<64x128xf32>
    %6 = arith.addf %3, %5 : vector<64x128xf32>
    %c0_5 = arith.constant 0 : index
    %c0_6 = arith.constant 0 : index
    %7 = vector.load %arg0[%c0_5, %c0_6] : memref<64x192xf32, #tpu.memory_space<vmem>>, vector<64x192xf32>
    %8 = arith.truncf %7 : vector<64x192xf32> to vector<64x192xbf16>
    %c0_7 = arith.constant 0 : index
    %c0_8 = arith.constant 0 : index
    %9 = vector.load %arg4[%c0_7, %c0_8] : memref<192x128xbf16, #tpu.memory_space<vmem>>, vector<192x128xbf16>
    %cst_9 = arith.constant dense<0.000000e+00> : vector<64x128xf32>
    %10 = tpu.matmul %8, %9, %cst_9 {dimension_numbers = #tpu.dot_dimension_numbers<[1], [0], [0], [1], [0, 0, 1, 1], [], []>} : vector<64x192xbf16>, vector<192x128xbf16>, vector<64x128xf32> -> vector<64x128xf32>
    %c0_10 = arith.constant 0 : index
    %c0_11 = arith.constant 0 : index
    %11 = vector.load %arg5[%c0_10, %c0_11] : memref<1x128xf32, #tpu.memory_space<vmem>>, vector<1x128xf32>
    %12 = vector.broadcast %11 : vector<1x128xf32> to vector<64x128xf32>
    %13 = arith.addf %10, %12 : vector<64x128xf32>
    %cst_12 = arith.constant 0.000000e+00 : f32
    %14 = vector.broadcast %cst_12 : f32 to vector<64x128xf32>
    %15 = arith.maximumf %13, %14 : vector<64x128xf32>
    %c0_13 = arith.constant 0 : index
    %c0_14 = arith.constant 0 : index
    %16 = vector.load %arg2[%c0_13, %c0_14] : memref<64x64xbf16, #tpu.memory_space<vmem>>, vector<64x64xbf16>
    %c0_15 = arith.constant 0 : index
    %c0_16 = arith.constant 0 : index
    %17 = vector.load %arg3[%c0_15, %c0_16] : memref<64x64xbf16, #tpu.memory_space<vmem>>, vector<64x64xbf16>
    %c0_17 = arith.constant 0 : index
    %c0_18 = arith.constant 0 : index
    %18 = vector.load %arg6[%c0_17, %c0_18] : memref<384x128xbf16, #tpu.memory_space<vmem>>, vector<384x128xbf16>
    %c0_19 = arith.constant 0 : index
    %c0_20 = arith.constant 0 : index
    %19 = vector.load %arg7[%c0_19, %c0_20] : memref<1x128xf32, #tpu.memory_space<vmem>>, vector<1x128xf32>
    %20 = arith.truncf %15 : vector<64x128xf32> to vector<64x128xbf16>
    %cst_21 = arith.constant dense<0.000000e+00> : vector<64x128xf32>
    %21 = tpu.matmul %16, %20, %cst_21 {dimension_numbers = #tpu.dot_dimension_numbers<[1], [0], [0], [1], [0, 0, 1, 1], [], []>} : vector<64x64xbf16>, vector<64x128xbf16>, vector<64x128xf32> -> vector<64x128xf32>
    %22 = arith.truncf %21 : vector<64x128xf32> to vector<64x128xbf16>
    %cst_22 = arith.constant dense<0.000000e+00> : vector<64x128xf32>
    %23 = tpu.matmul %17, %20, %cst_22 {dimension_numbers = #tpu.dot_dimension_numbers<[1], [0], [0], [1], [0, 0, 1, 1], [], []>} : vector<64x64xbf16>, vector<64x128xbf16>, vector<64x128xf32> -> vector<64x128xf32>
    %24 = arith.truncf %23 : vector<64x128xf32> to vector<64x128xbf16>
    %25 = vector.extract_strided_slice %18 {offsets = [0, 0], sizes = [128, 128], strides = [1, 1]} : vector<384x128xbf16> to vector<128x128xbf16>
    %cst_23 = arith.constant dense<0.000000e+00> : vector<64x128xf32>
    %26 = tpu.matmul %22, %25, %cst_23 {dimension_numbers = #tpu.dot_dimension_numbers<[1], [0], [0], [1], [0, 0, 1, 1], [], []>} : vector<64x128xbf16>, vector<128x128xbf16>, vector<64x128xf32> -> vector<64x128xf32>
    %27 = vector.extract_strided_slice %18 {offsets = [128, 0], sizes = [128, 128], strides = [1, 1]} : vector<384x128xbf16> to vector<128x128xbf16>
    %cst_24 = arith.constant dense<0.000000e+00> : vector<64x128xf32>
    %28 = tpu.matmul %20, %27, %cst_24 {dimension_numbers = #tpu.dot_dimension_numbers<[1], [0], [0], [1], [0, 0, 1, 1], [], []>} : vector<64x128xbf16>, vector<128x128xbf16>, vector<64x128xf32> -> vector<64x128xf32>
    %29 = arith.addf %26, %28 : vector<64x128xf32>
    %30 = vector.extract_strided_slice %18 {offsets = [256, 0], sizes = [128, 128], strides = [1, 1]} : vector<384x128xbf16> to vector<128x128xbf16>
    %cst_25 = arith.constant dense<0.000000e+00> : vector<64x128xf32>
    %31 = tpu.matmul %24, %30, %cst_25 {dimension_numbers = #tpu.dot_dimension_numbers<[1], [0], [0], [1], [0, 0, 1, 1], [], []>} : vector<64x128xbf16>, vector<128x128xbf16>, vector<64x128xf32> -> vector<64x128xf32>
    %32 = arith.addf %29, %31 : vector<64x128xf32>
    %33 = vector.broadcast %19 : vector<1x128xf32> to vector<64x128xf32>
    %34 = arith.addf %32, %33 : vector<64x128xf32>
    %35 = arith.addf %34, %6 : vector<64x128xf32>
    %cst_26 = arith.constant 0.000000e+00 : f32
    %36 = vector.broadcast %cst_26 : f32 to vector<64x128xf32>
    %37 = arith.maximumf %35, %36 : vector<64x128xf32>
    %38 = arith.truncf %37 : vector<64x128xf32> to vector<64x128xbf16>
    %c0_27 = arith.constant 0 : index
    %c0_28 = arith.constant 0 : index
    %39 = vector.load %arg10[%c0_27, %c0_28] : memref<128x256xbf16, #tpu.memory_space<vmem>>, vector<128x256xbf16>
    %cst_29 = arith.constant dense<0.000000e+00> : vector<64x256xf32>
    %40 = tpu.matmul %38, %39, %cst_29 {dimension_numbers = #tpu.dot_dimension_numbers<[1], [0], [0], [1], [0, 0, 1, 1], [], []>} : vector<64x128xbf16>, vector<128x256xbf16>, vector<64x256xf32> -> vector<64x256xf32>
    %c0_30 = arith.constant 0 : index
    %c0_31 = arith.constant 0 : index
    %41 = vector.load %arg11[%c0_30, %c0_31] : memref<1x256xf32, #tpu.memory_space<vmem>>, vector<1x256xf32>
    %42 = vector.broadcast %41 : vector<1x256xf32> to vector<64x256xf32>
    %43 = arith.addf %40, %42 : vector<64x256xf32>
    %c0_32 = arith.constant 0 : index
    %c0_33 = arith.constant 0 : index
    %44 = vector.load %arg12[%c0_32, %c0_33] : memref<64x256xf32, #tpu.memory_space<vmem>>, vector<64x256xf32>
    tpu.vector_store %arg12[%c0_32, %c0_33], %43 {strides = array<i32>} : memref<64x256xf32, #tpu.memory_space<vmem>>, vector<64x256xf32>,
    return
  }
}

module attributes {stable_mosaic.version = 11 : i64} {
  func.func @_fc_heads_kernel(%arg0: i32, %arg1: memref<1x8x1024xf32, #tpu.memory_space<vmem>>, %arg2: memref<1x1024x512xbf16, #tpu.memory_space<vmem>>, %arg3: memref<1x1x512xf32, #tpu.memory_space<vmem>>, %arg4: memref<1x512x512xbf16, #tpu.memory_space<vmem>>, %arg5: memref<1x1x512xf32, #tpu.memory_space<vmem>>, %arg6: memref<1x512x8xbf16, #tpu.memory_space<vmem>>, %arg7: memref<1x1x8xf32, #tpu.memory_space<vmem>>, %arg8: memref<1x8x8xf32, #tpu.memory_space<vmem>>) attributes {dimension_semantics = [#tpu.dimension_semantics<parallel>], iteration_bounds = array<i64: 2>, scalar_prefetch = 0 : i64, scratch_operands = 0 : i64, tpu.core_type = #tpu.core_type<tc>, window_params = [{transform_indices = @transform_0, window_bounds = array<i64: 1, 8, 1024>}, {transform_indices = @transform_1, window_bounds = array<i64: 1, 1024, 512>}, {transform_indices = @transform_2, window_bounds = array<i64: 1, 1, 512>}, {transform_indices = @transform_3, window_bounds = array<i64: 1, 512, 512>}, {transform_indices = @transform_4, window_bounds = array<i64: 1, 1, 512>}, {transform_indices = @transform_5, window_bounds = array<i64: 1, 512, 8>}, {transform_indices = @transform_6, window_bounds = array<i64: 1, 1, 8>}, {transform_indices = @transform_7, window_bounds = array<i64: 1, 8, 8>}]} {
    %c0 = arith.constant 0 : index
    %c0_0 = arith.constant 0 : index
    %c0_1 = arith.constant 0 : index
    %0 = vector.load %arg1[%c0, %c0_0, %c0_1] : memref<1x8x1024xf32, #tpu.memory_space<vmem>>, vector<1x8x1024xf32>
    %1 = vector.shape_cast %0 : vector<1x8x1024xf32> to vector<8x1024xf32>
    %2 = arith.truncf %1 : vector<8x1024xf32> to vector<8x1024xbf16>
    %c0_2 = arith.constant 0 : index
    %c0_3 = arith.constant 0 : index
    %c0_4 = arith.constant 0 : index
    %3 = vector.load %arg2[%c0_2, %c0_3, %c0_4] : memref<1x1024x512xbf16, #tpu.memory_space<vmem>>, vector<1x1024x512xbf16>
    %4 = vector.shape_cast %3 : vector<1x1024x512xbf16> to vector<1024x512xbf16>
    %cst = arith.constant dense<0.000000e+00> : vector<8x512xf32>
    %5 = tpu.matmul %2, %4, %cst {dimension_numbers = #tpu.dot_dimension_numbers<[1], [0], [0], [1], [0, 0, 1, 1], [], []>} : vector<8x1024xbf16>, vector<1024x512xbf16>, vector<8x512xf32> -> vector<8x512xf32>
    %c0_5 = arith.constant 0 : index
    %c0_6 = arith.constant 0 : index
    %c0_7 = arith.constant 0 : index
    %6 = vector.load %arg3[%c0_5, %c0_6, %c0_7] : memref<1x1x512xf32, #tpu.memory_space<vmem>>, vector<1x1x512xf32>
    %7 = vector.shape_cast %6 : vector<1x1x512xf32> to vector<1x512xf32>
    %8 = vector.broadcast %7 : vector<1x512xf32> to vector<8x512xf32>
    %9 = arith.addf %5, %8 : vector<8x512xf32>
    %cst_8 = arith.constant 0.000000e+00 : f32
    %10 = vector.broadcast %cst_8 : f32 to vector<8x512xf32>
    %11 = arith.maximumf %9, %10 : vector<8x512xf32>
    %12 = arith.truncf %11 : vector<8x512xf32> to vector<8x512xbf16>
    %c0_9 = arith.constant 0 : index
    %c0_10 = arith.constant 0 : index
    %c0_11 = arith.constant 0 : index
    %13 = vector.load %arg4[%c0_9, %c0_10, %c0_11] : memref<1x512x512xbf16, #tpu.memory_space<vmem>>, vector<1x512x512xbf16>
    %14 = vector.shape_cast %13 : vector<1x512x512xbf16> to vector<512x512xbf16>
    %cst_12 = arith.constant dense<0.000000e+00> : vector<8x512xf32>
    %15 = tpu.matmul %12, %14, %cst_12 {dimension_numbers = #tpu.dot_dimension_numbers<[1], [0], [0], [1], [0, 0, 1, 1], [], []>} : vector<8x512xbf16>, vector<512x512xbf16>, vector<8x512xf32> -> vector<8x512xf32>
    %c0_13 = arith.constant 0 : index
    %c0_14 = arith.constant 0 : index
    %c0_15 = arith.constant 0 : index
    %16 = vector.load %arg5[%c0_13, %c0_14, %c0_15] : memref<1x1x512xf32, #tpu.memory_space<vmem>>, vector<1x1x512xf32>
    %17 = vector.shape_cast %16 : vector<1x1x512xf32> to vector<1x512xf32>
    %18 = vector.broadcast %17 : vector<1x512xf32> to vector<8x512xf32>
    %19 = arith.addf %15, %18 : vector<8x512xf32>
    %cst_16 = arith.constant 0.000000e+00 : f32
    %20 = vector.broadcast %cst_16 : f32 to vector<8x512xf32>
    %21 = arith.maximumf %19, %20 : vector<8x512xf32>
    %22 = arith.truncf %21 : vector<8x512xf32> to vector<8x512xbf16>
    %c0_17 = arith.constant 0 : index
    %c0_18 = arith.constant 0 : index
    %c0_19 = arith.constant 0 : index
    %23 = vector.load %arg6[%c0_17, %c0_18, %c0_19] : memref<1x512x8xbf16, #tpu.memory_space<vmem>>, vector<1x512x8xbf16>
    %24 = vector.shape_cast %23 : vector<1x512x8xbf16> to vector<512x8xbf16>
    %cst_20 = arith.constant dense<0.000000e+00> : vector<8x8xf32>
    %25 = tpu.matmul %22, %24, %cst_20 {dimension_numbers = #tpu.dot_dimension_numbers<[1], [0], [0], [1], [0, 0, 1, 1], [], []>} : vector<8x512xbf16>, vector<512x8xbf16>, vector<8x8xf32> -> vector<8x8xf32>
    %c0_21 = arith.constant 0 : index
    %c0_22 = arith.constant 0 : index
    %c0_23 = arith.constant 0 : index
    %26 = vector.load %arg7[%c0_21, %c0_22, %c0_23] : memref<1x1x8xf32, #tpu.memory_space<vmem>>, vector<1x1x8xf32>
    %27 = vector.shape_cast %26 : vector<1x1x8xf32> to vector<1x8xf32>
    %28 = vector.broadcast %27 : vector<1x8xf32> to vector<8x8xf32>
    %29 = arith.addf %25, %28 : vector<8x8xf32>
    %c0_24 = arith.constant 0 : index
    %c0_25 = arith.constant 0 : index
    %c0_26 = arith.constant 0 : index
    %30 = vector.load %arg8[%c0_24, %c0_25, %c0_26] : memref<1x8x8xf32, #tpu.memory_space<vmem>>, vector<1x8x8xf32>
    %31 = vector.shape_cast %30 : vector<1x8x8xf32> to vector<8x8xf32>
    %32 = vector.shape_cast %29 : vector<8x8xf32> to vector<1x8x8xf32>
    tpu.vector_store %arg8[%c0_24, %c0_25, %c0_26], %32 {strides = array<i32>} : memref<1x8x8xf32, #tpu.memory_space<vmem>>, vector<1x8x8xf32>,
    return
  }
  func.func @transform_0(%arg0: i32) -> (i32, i32, i32) {
    %c0_i32 = arith.constant 0 : i32
    %c0_i32_0 = arith.constant 0 : i32
    %c0_i32_1 = arith.constant 0 : i32
    return %arg0, %c0_i32, %c0_i32_0 : i32, i32, i32
  }
  func.func @transform_1(%arg0: i32) -> (i32, i32, i32) {
    %c0_i32 = arith.constant 0 : i32
    %c0_i32_0 = arith.constant 0 : i32
    %c0_i32_1 = arith.constant 0 : i32
    return %arg0, %c0_i32, %c0_i32_0 : i32, i32, i32
  }
  func.func @transform_2(%arg0: i32) -> (i32, i32, i32) {
    %c0_i32 = arith.constant 0 : i32
    %c0_i32_0 = arith.constant 0 : i32
    %c0_i32_1 = arith.constant 0 : i32
    return %arg0, %c0_i32, %c0_i32_0 : i32, i32, i32
  }
  func.func @transform_3(%arg0: i32) -> (i32, i32, i32) {
    %c0_i32 = arith.constant 0 : i32
    %c0_i32_0 = arith.constant 0 : i32
    %c0_i32_1 = arith.constant 0 : i32
    return %arg0, %c0_i32, %c0_i32_0 : i32, i32, i32
  }
  func.func @transform_4(%arg0: i32) -> (i32, i32, i32) {
    %c0_i32 = arith.constant 0 : i32
    %c0_i32_0 = arith.constant 0 : i32
    %c0_i32_1 = arith.constant 0 : i32
    return %arg0, %c0_i32, %c0_i32_0 : i32, i32, i32
  }
  func.func @transform_5(%arg0: i32) -> (i32, i32, i32) {
    %c0_i32 = arith.constant 0 : i32
    %c0_i32_0 = arith.constant 0 : i32
    %c0_i32_1 = arith.constant 0 : i32
    return %arg0, %c0_i32, %c0_i32_0 : i32, i32, i32
  }
  func.func @transform_6(%arg0: i32) -> (i32, i32, i32) {
    %c0_i32 = arith.constant 0 : i32
    %c0_i32_0 = arith.constant 0 : i32
    %c0_i32_1 = arith.constant 0 : i32
    return %arg0, %c0_i32, %c0_i32_0 : i32, i32, i32
  }
  func.func @transform_7(%arg0: i32) -> (i32, i32, i32) {
    %c0_i32 = arith.constant 0 : i32
    %c0_i32_0 = arith.constant 0 : i32
    %c0_i32_1 = arith.constant 0 : i32
    return %arg0, %c0_i32, %c0_i32_0 : i32, i32, i32
  }
}

</mosaic_0001>

<llo_original>
// kernel: eq_motion_forward.4
$region0: #{eq_motion_forward.4}
  #allocation0 [shape = 'u32[]', space=smem, size = 0x4, offset = 0x4, fixed_abs, tag = 'smem constant byte address 0x4 - core index']
  #allocation1 [shape = 'u32[144,128]{1,0:T(1,128)}', space=vmem, size = 0x12000, scoped, tag = 'internal scratch']
  %s0 = inlined_call_operand.vmem [shape: f32[64,192], index: 0, kind: input, shape index: {}]
  %s1 = inlined_call_operand.vmem [shape: f32[64,64], index: 1, kind: input, shape index: {}]
  %s2 = inlined_call_operand.vmem [shape: bf16[64,64], index: 2, kind: input, shape index: {}]
  %s3 = inlined_call_operand.vmem [shape: bf16[64,64], index: 3, kind: input, shape index: {}]
  %s4 = inlined_call_operand.vmem [shape: bf16[192,128], index: 4, kind: input, shape index: {}]
  %s5 = inlined_call_operand.vmem [shape: f32[1,128], index: 5, kind: input, shape index: {}]
  %s6 = inlined_call_operand.vmem [shape: bf16[384,128], index: 6, kind: input, shape index: {}]
  %s7 = inlined_call_operand.vmem [shape: f32[1,128], index: 7, kind: input, shape index: {}]
  %s8 = inlined_call_operand.vmem [shape: bf16[64,128], index: 8, kind: input, shape index: {}]
  %s9 = inlined_call_operand.vmem [shape: f32[1,128], index: 9, kind: input, shape index: {}]
  %s10 = inlined_call_operand.vmem [shape: bf16[128,256], index: 10, kind: input, shape index: {}]
  %s11 = inlined_call_operand.vmem [shape: f32[1,256], index: 11, kind: input, shape index: {}]
  %s12 = inlined_call_operand.vmem [shape: f32[64,256], index: 12, kind: output, shape index: {}]
  %s13 = sld [smem:[#allocation0]]
  $region58: #{eq_motion_forward.4} parent=0
    _
  %s15 = ssub.s32 1, %s13
  %s16 = scalar_select 0, %s15, %s13
  // Predicated region
  $region2: #{eq_motion_forward.4} parent=0 // pred_check
    _
  $region3: #{eq_motion_forward.4} parent=0 // pred_check_branch
    %18 = sbr.rel (0) target = $region5
  $region4: #{eq_motion_forward.4} parent=0 // pred_region
    _
  $region5: #{eq_motion_forward.4} parent=0 // pred_fallthru
    _
  // Predicated region
  $region6: #{eq_motion_forward.4} parent=0 // pred_check
    _
  $region7: #{eq_motion_forward.4} parent=0 // pred_check_branch
    %20 = sbr.rel (0) target = $region9
  $region8: #{eq_motion_forward.4} parent=0 // pred_region
    _
  $region9: #{eq_motion_forward.4} parent=0 // pred_fallthru
    _
  // Predicated region
  $region10: #{eq_motion_forward.4} parent=0 // pred_check
    _
  $region11: #{eq_motion_forward.4} parent=0 // pred_check_branch
    %22 = sbr.rel (0) target = $region13
  $region12: #{eq_motion_forward.4} parent=0 // pred_region
    _
  $region13: #{eq_motion_forward.4} parent=0 // pred_fallthru
    _
  // Predicated region
  $region14: #{eq_motion_forward.4} parent=0 // pred_check
    _
  $region15: #{eq_motion_forward.4} parent=0 // pred_check_branch
    %24 = sbr.rel (0) target = $region17
  $region16: #{eq_motion_forward.4} parent=0 // pred_region
    _
  $region17: #{eq_motion_forward.4} parent=0 // pred_fallthru
    _
  // Predicated region
  $region18: #{eq_motion_forward.4} parent=0 // pred_check
    _
  $region19: #{eq_motion_forward.4} parent=0 // pred_check_branch
    %26 = sbr.rel (0) target = $region21
  $region20: #{eq_motion_forward.4} parent=0 // pred_region
    _
  $region21: #{eq_motion_forward.4} parent=0 // pred_fallthru
    _
  // Predicated region
  $region22: #{eq_motion_forward.4} parent=0 // pred_check
    _
  $region23: #{eq_motion_forward.4} parent=0 // pred_check_branch
    %28 = sbr.rel (0) target = $region25
  $region24: #{eq_motion_forward.4} parent=0 // pred_region
    _
  $region25: #{eq_motion_forward.4} parent=0 // pred_fallthru
    _
  // Predicated region
  $region26: #{eq_motion_forward.4} parent=0 // pred_check
    _
  $region27: #{eq_motion_forward.4} parent=0 // pred_check_branch
    %30 = sbr.rel (0) target = $region29
  $region28: #{eq_motion_forward.4} parent=0 // pred_region
    _
  $region29: #{eq_motion_forward.4} parent=0 // pred_fallthru
    _
  // Predicated region
  $region30: #{eq_motion_forward.4} parent=0 // pred_check
    _
  $region31: #{eq_motion_forward.4} parent=0 // pred_check_branch
    %32 = sbr.rel (0) target = $region33
  $region32: #{eq_motion_forward.4} parent=0 // pred_region
    _
  $region33: #{eq_motion_forward.4} parent=0 // pred_fallthru
    _
  // Predicated region
  $region34: #{eq_motion_forward.4} parent=0 // pred_check
    _
  $region35: #{eq_motion_forward.4} parent=0 // pred_check_branch
    %34 = sbr.rel (0) target = $region37
  $region36: #{eq_motion_forward.4} parent=0 // pred_region
    _
  $region37: #{eq_motion_forward.4} parent=0 // pred_fallthru
    _
  // Predicated region
  $region38: #{eq_motion_forward.4} parent=0 // pred_check
    _
  $region39: #{eq_motion_forward.4} parent=0 // pred_check_branch
    %36 = sbr.rel (0) target = $region41
  $region40: #{eq_motion_forward.4} parent=0 // pred_region
    _
  $region41: #{eq_motion_forward.4} parent=0 // pred_fallthru
    _
  // Predicated region
  $region42: #{eq_motion_forward.4} parent=0 // pred_check
    _
  $region43: #{eq_motion_forward.4} parent=0 // pred_check_branch
    %38 = sbr.rel (0) target = $region45
  $region44: #{eq_motion_forward.4} parent=0 // pred_region
    _
  $region45: #{eq_motion_forward.4} parent=0 // pred_fallthru
    _
  // Predicated region
  $region46: #{eq_motion_forward.4} parent=0 // pred_check
    _
  $region47: #{eq_motion_forward.4} parent=0 // pred_check_branch
    %40 = sbr.rel (0) target = $region49
  $region48: #{eq_motion_forward.4} parent=0 // pred_region
    _
  $region49: #{eq_motion_forward.4} parent=0 // pred_fallthru
    _
  %v42 = vld [vmem:[%s1] sm:$0xff]
  %v43 = vld [vmem:[%s1 + $0x8] sm:$0xff]
  %v44 = vld [vmem:[%s1 + $0x10] sm:$0xff]
  %v45 = vld [vmem:[%s1 + $0x18] sm:$0xff]
  %v46 = vld [vmem:[%s1 + $0x20] sm:$0xff]
  %v47 = vld [vmem:[%s1 + $0x28] sm:$0xff]
  %v48 = vld [vmem:[%s1 + $0x30] sm:$0xff]
  %v49 = vld [vmem:[%s1 + $0x38] sm:$0xff]
  %v50 = vpack.c.bf16 %v43, %v42
  %v51 = vpack.c.bf16 %v45, %v44
  %v52 = vpack.c.bf16 %v47, %v46
  %v53 = vpack.c.bf16 %v49, %v48
  %v54 = vld [vmem:[%s8] sm:$0xf]
  %v55 = vld [vmem:[%s8 + $0x4] sm:$0xf]
  %v56 = vld [vmem:[%s8 + $0x8] sm:$0xf]
  %v57 = vld [vmem:[%s8 + $0xc] sm:$0xf]
  %v58 = vld [vmem:[%s8 + $0x10] sm:$0xf]
  %v59 = vld [vmem:[%s8 + $0x14] sm:$0xf]
  %v60 = vld [vmem:[%s8 + $0x18] sm:$0xf]
  %v61 = vld [vmem:[%s8 + $0x1c] sm:$0xf]
  %v62 = vld [vmem:[%s9] sm:$0x1]
  %v64 = vlaneseq
  %v65 = vshrl.u32 %v64, 7
  %v66 = vsub.s32 0, %v65
  %v67 = vrot.slane %v62, %v66
  %v77 = vunpack.c.l.b16 %v54
  %v78 = vunpack.c.l.b16 %v55
  %v79 = vunpack.c.l.b16 %v56
  %v80 = vunpack.c.l.b16 %v57
  %v81 = vunpack.c.l.b16 %v58
  %v82 = vunpack.c.l.b16 %v59
  %v83 = vunpack.c.l.b16 %v60
  %v84 = vunpack.c.l.b16 %v61
  %v85 = vpack.c.b16 %v78, %v77
  %v86 = vpack.c.b16 %v80, %v79
  %v87 = vpack.c.b16 %v82, %v81
  %v88 = vpack.c.b16 %v84, %v83
  %vm93 = vcmask 523264
  %v95 = vsel %vm93, %v50, 0
  %v98 = vsel %vm93, %v51, 0
  %v101 = vsel %vm93, %v52, 0
  %v104 = vsel %vm93, %v53, 0
  %106 = vmatprep.subr.bf16.mxu0 0
  %107 = vmatpush1.bf16.msra.mxu0 %v85
  %108 = vmatprep.subr.bf16.mxu0 0
  %109 = vmatpush1.bf16.msra.mxu0 %v86
  %110 = vmatprep.subr.bf16.mxu0 0
  %111 = vmatpush1.bf16.msra.mxu0 %v87
  %112 = vmatprep.subr.bf16.mxu0 0
  %113 = vmatpush1.bf16.msra.mxu0 %v88
  %114 = vmatprep.subr.bf16.mxu0 0
  %115 = vmatpush1.bf16.msra.mxu0 0
  %116 = vmatprep.subr.bf16.mxu0 0
  %117 = vmatpush1.bf16.msra.mxu0 0
  %118 = vmatprep.subr.bf16.mxu0 0
  %119 = vmatpush1.bf16.msra.mxu0 0
  %120 = vmatprep.subr.bf16.mxu0 0
  %121 = vmatpush1.bf16.msra.mxu0 0
  %122 = vmatprep.subr.bf16.mxu0 0
  %123 = vmatpush1.bf16.msra.mxu0 0
  %124 = vmatprep.subr.bf16.mxu0 0
  %125 = vmatpush1.bf16.msra.mxu0 0
  %126 = vmatprep.subr.bf16.mxu0 0
  %127 = vmatpush1.bf16.msra.mxu0 0
  %128 = vmatprep.subr.bf16.mxu0 0
  %129 = vmatpush1.bf16.msra.mxu0 0
  %130 = vmatprep.subr.bf16.mxu0 0
  %131 = vmatpush1.bf16.msra.mxu0 0
  %132 = vmatprep.subr.bf16.mxu0 0
  %133 = vmatpush1.bf16.msra.mxu0 0
  %134 = vmatprep.subr.bf16.mxu0 0
  %135 = vmatpush1.bf16.msra.mxu0 0
  %136 = vmatprep.subr.bf16.mxu0 0
  %137 = vmatpush1.bf16.msra.mxu0 0
  %138 = vmatprep.mubr.bf16.mxu0 0
  %139 = vmatmul.mubr.bf16.gmra.mrb[0].mxu0 %v95
  %v140 = vpop.f32.mrb[0].mxu0
  %v141 = vadd.f32 %v67, %v140
  %v142 = vpop.f32.mrb[0].mxu0
  %v143 = vpop.f32.mrb[0].mxu0
  %v144 = vadd.f32 %v67, %v143
  %v145 = vpop.f32.mrb[0].mxu0
  %146 = vmatprep.mubr.bf16.mxu0 0
  %147 = vmatmul.mubr.bf16.gmra.mrb[0].mxu0 %v98
  %v148 = vpop.f32.mrb[0].mxu0
  %v149 = vadd.f32 %v67, %v148
  %v150 = vpop.f32.mrb[0].mxu0
  %v151 = vpop.f32.mrb[0].mxu0
  %v152 = vadd.f32 %v67, %v151
  %v153 = vpop.f32.mrb[0].mxu0
  %154 = vmatprep.mubr.bf16.mxu0 0
  %155 = vmatmul.mubr.bf16.gmra.mrb[0].mxu0 %v101
  %v156 = vpop.f32.mrb[0].mxu0
  %v157 = vadd.f32 %v67, %v156
  %v158 = vpop.f32.mrb[0].mxu0
  %v159 = vpop.f32.mrb[0].mxu0
  %v160 = vadd.f32 %v67, %v159
  %v161 = vpop.f32.mrb[0].mxu0
  %162 = vmatprep.mubr.bf16.mxu0 0
  %163 = vmatmul.mubr.bf16.gmra.mrb[0].mxu0 %v104
  %v164 = vpop.f32.mrb[0].mxu0
  %v165 = vadd.f32 %v67, %v164
  %v166 = vpop.f32.mrb[0].mxu0
  %v167 = vpop.f32.mrb[0].mxu0
  %v168 = vadd.f32 %v67, %v167
  %v169 = vpop.f32.mrb[0].mxu0
  %170 = vdwg.mxu0
  %v171 = vld [vmem:[%s0] sm:$0xff]
  %v172 = vld [vmem:[%s0 + $0x8] sm:$0xff]
  %v173 = vld [vmem:[%s0 + $0x10] sm:$0xff]
  %v174 = vld [vmem:[%s0 + $0x18] sm:$0xff]
  %v175 = vld [vmem:[%s0 + $0x20] sm:$0xff]
  %v176 = vld [vmem:[%s0 + $0x28] sm:$0xff]
  %v177 = vld [vmem:[%s0 + $0x30] sm:$0xff]
  %v178 = vld [vmem:[%s0 + $0x38] sm:$0xff]
  %v179 = vld [vmem:[%s0 + $0x40] sm:$0xff]
  %v180 = vld [vmem:[%s0 + $0x48] sm:$0xff]
  %v181 = vld [vmem:[%s0 + $0x50] sm:$0xff]
  %v182 = vld [vmem:[%s0 + $0x58] sm:$0xff]
  %v183 = vld [vmem:[%s0 + $0x60] sm:$0xff]
  %v184 = vld [vmem:[%s0 + $0x68] sm:$0xff]
  %v185 = vld [vmem:[%s0 + $0x70] sm:$0xff]
  %v186 = vld [vmem:[%s0 + $0x78] sm:$0xff]
  %v187 = vpack.c.bf16 %v173, %v171
  %v188 = vpack.c.bf16 %v174, %v172
  %v189 = vpack.c.bf16 %v177, %v175
  %v190 = vpack.c.bf16 %v178, %v176
  %v191 = vpack.c.bf16 %v181, %v179
  %v192 = vpack.c.bf16 %v182, %v180
  %v193 = vpack.c.bf16 %v185, %v183
  %v194 = vpack.c.bf16 %v186, %v184
  %v195 = vld [vmem:[%s4] sm:$0xf]
  %v196 = vld [vmem:[%s4 + $0x4] sm:$0xf]
  %v197 = vld [vmem:[%s4 + $0x8] sm:$0xf]
  %v198 = vld [vmem:[%s4 + $0xc] sm:$0xf]
  %v199 = vld [vmem:[%s4 + $0x10] sm:$0xf]
  %v200 = vld [vmem:[%s4 + $0x14] sm:$0xf]
  %v201 = vld [vmem:[%s4 + $0x18] sm:$0xf]
  %v202 = vld [vmem:[%s4 + $0x1c] sm:$0xf]
  %v203 = vld [vmem:[%s4 + $0x20] sm:$0xf]
  %v204 = vld [vmem:[%s4 + $0x24] sm:$0xf]
  %v205 = vld [vmem:[%s4 + $0x28] sm:$0xf]
  %v206 = vld [vmem:[%s4 + $0x2c] sm:$0xf]
  %v207 = vld [vmem:[%s4 + $0x30] sm:$0xf]
  %v208 = vld [vmem:[%s4 + $0x34] sm:$0xf]
  %v209 = vld [vmem:[%s4 + $0x38] sm:$0xf]
  %v210 = vld [vmem:[%s4 + $0x3c] sm:$0xf]
  %v211 = vld [vmem:[%s4 + $0x40] sm:$0xf]
  %v212 = vld [vmem:[%s4 + $0x44] sm:$0xf]
  %v213 = vld [vmem:[%s4 + $0x48] sm:$0xf]
  %v214 = vld [vmem:[%s4 + $0x4c] sm:$0xf]
  %v215 = vld [vmem:[%s4 + $0x50] sm:$0xf]
  %v216 = vld [vmem:[%s4 + $0x54] sm:$0xf]
  %v217 = vld [vmem:[%s4 + $0x58] sm:$0xf]
  %v218 = vld [vmem:[%s4 + $0x5c] sm:$0xf]
  %v219 = vld [vmem:[%s5] sm:$0x1]
  %v221 = vlaneseq
  %v222 = vshrl.u32 %v221, 7
  %v223 = vsub.s32 0, %v222
  %v224 = vrot.slane %v219, %v223
  %v250 = vunpack.c.l.b16 %v195
  %v251 = vunpack.c.l.b16 %v196
  %v252 = vunpack.c.l.b16 %v197
  %v253 = vunpack.c.l.b16 %v198
  %v254 = vunpack.c.l.b16 %v199
  %v255 = vunpack.c.l.b16 %v200
  %v256 = vunpack.c.l.b16 %v201
  %v257 = vunpack.c.l.b16 %v202
  %v258 = vunpack.c.l.b16 %v203
  %v259 = vunpack.c.l.b16 %v204
  %v260 = vunpack.c.l.b16 %v205
  %v261 = vunpack.c.l.b16 %v206
  %v262 = vunpack.c.l.b16 %v207
  %v263 = vunpack.c.l.b16 %v208
  %v264 = vunpack.c.l.b16 %v209
  %v265 = vunpack.c.l.b16 %v210
  %v266 = vunpack.c.l.b16 %v211
  %v267 = vunpack.c.l.b16 %v212
  %v268 = vunpack.c.l.b16 %v213
  %v269 = vunpack.c.l.b16 %v214
  %v270 = vunpack.c.l.b16 %v215
  %v271 = vunpack.c.l.b16 %v216
  %v272 = vunpack.c.l.b16 %v217
  %v273 = vunpack.c.l.b16 %v218
  %v274 = vpack.c.b16 %v251, %v250
  %v275 = vpack.c.b16 %v253, %v252
  %v276 = vpack.c.b16 %v255, %v254
  %v277 = vpack.c.b16 %v257, %v256
  %v278 = vpack.c.b16 %v259, %v258
  %v279 = vpack.c.b16 %v261, %v260
  %v280 = vpack.c.b16 %v263, %v262
  %v281 = vpack.c.b16 %v265, %v264
  %v282 = vpack.c.b16 %v267, %v266
  %v283 = vpack.c.b16 %v269, %v268
  %v284 = vpack.c.b16 %v271, %v270
  %v285 = vpack.c.b16 %v273, %v272
  %v299 = vsel %vm93, %v188, 0
  %v302 = vsel %vm93, %v190, 0
  %v305 = vsel %vm93, %v192, 0
  %v308 = vsel %vm93, %v194, 0
  %310 = vmatprep.subr.bf16.mxu0 0
  %311 = vmatpush1.bf16.msra.mxu0 %v274
  %312 = vmatprep.subr.bf16.mxu0 0
  %313 = vmatpush1.bf16.msra.mxu0 %v275
  %314 = vmatprep.subr.bf16.mxu0 0
  %315 = vmatpush1.bf16.msra.mxu0 %v276
  %316 = vmatprep.subr.bf16.mxu0 0
  %317 = vmatpush1.bf16.msra.mxu0 %v277
  %318 = vmatprep.subr.bf16.mxu0 0
  %319 = vmatpush1.bf16.msra.mxu0 %v278
  %320 = vmatprep.subr.bf16.mxu0 0
  %321 = vmatpush1.bf16.msra.mxu0 %v279
  %322 = vmatprep.subr.bf16.mxu0 0
  %323 = vmatpush1.bf16.msra.mxu0 %v280
  %324 = vmatprep.subr.bf16.mxu0 0
  %325 = vmatpush1.bf16.msra.mxu0 %v281
  %326 = vmatprep.subr.bf16.mxu0 0
  %327 = vmatpush1.bf16.msra.mxu0 %v282
  %328 = vmatprep.subr.bf16.mxu0 0
  %329 = vmatpush1.bf16.msra.mxu0 %v283
  %330 = vmatprep.subr.bf16.mxu0 0
  %331 = vmatpush1.bf16.msra.mxu0 %v284
  %332 = vmatprep.subr.bf16.mxu0 0
  %333 = vmatpush1.bf16.msra.mxu0 %v285
  %334 = vmatprep.subr.bf16.mxu0 0
  %335 = vmatpush1.bf16.msra.mxu0 0
  %336 = vmatprep.subr.bf16.mxu0 0
  %337 = vmatpush1.bf16.msra.mxu0 0
  %338 = vmatprep.subr.bf16.mxu0 0
  %339 = vmatpush1.bf16.msra.mxu0 0
  %340 = vmatprep.subr.bf16.mxu0 0
  %341 = vmatpush1.bf16.msra.mxu0 0
  %342 = vmatprep.mubr.bf16.mxu0 %v299
  %343 = vmatmul.mubr.bf16.gmra.mrb[0].mxu0 %v187
  %v344 = vpop.f32.mrb[0].mxu0
  %v345 = vadd.f32 %v224, %v344
  %v346 = vpop.f32.mrb[0].mxu0
  %v347 = vpop.f32.mrb[0].mxu0
  %v348 = vadd.f32 %v224, %v347
  %v349 = vpop.f32.mrb[0].mxu0
  %350 = vmatprep.mubr.bf16.mxu0 %v302
  %351 = vmatmul.mubr.bf16.gmra.mrb[0].mxu0 %v189
  %v352 = vpop.f32.mrb[0].mxu0
  %v353 = vadd.f32 %v224, %v352
  %v354 = vpop.f32.mrb[0].mxu0
  %v355 = vpop.f32.mrb[0].mxu0
  %v356 = vadd.f32 %v224, %v355
  %v357 = vpop.f32.mrb[0].mxu0
  %358 = vmatprep.mubr.bf16.mxu0 %v305
  %359 = vmatmul.mubr.bf16.gmra.mrb[0].mxu0 %v191
  %v360 = vpop.f32.mrb[0].mxu0
  %v361 = vadd.f32 %v224, %v360
  %v362 = vpop.f32.mrb[0].mxu0
  %v363 = vpop.f32.mrb[0].mxu0
  %v364 = vadd.f32 %v224, %v363
  %v365 = vpop.f32.mrb[0].mxu0
  %366 = vmatprep.mubr.bf16.mxu0 %v308
  %367 = vmatmul.mubr.bf16.gmra.mrb[0].mxu0 %v193
  %v368 = vpop.f32.mrb[0].mxu0
  %v369 = vadd.f32 %v224, %v368
  %v370 = vpop.f32.mrb[0].mxu0
  %v371 = vpop.f32.mrb[0].mxu0
  %v372 = vadd.f32 %v224, %v371
  %v373 = vpop.f32.mrb[0].mxu0
  %374 = vdwg.mxu0
  %v375 = vmax.f32 %v345, 0.0
  %v376 = vmax.f32 %v348, 0.0
  %v377 = vmax.f32 %v353, 0.0
  %v378 = vmax.f32 %v356, 0.0
  %v379 = vmax.f32 %v361, 0.0
  %v380 = vmax.f32 %v364, 0.0
  %v381 = vmax.f32 %v369, 0.0
  %v382 = vmax.f32 %v372, 0.0
  %v383 = vld [vmem:[%s2] sm:$0xf]
  %v384 = vld [vmem:[%s2 + $0x4] sm:$0xf]
  %v385 = vld [vmem:[%s2 + $0x8] sm:$0xf]
  %v386 = vld [vmem:[%s2 + $0xc] sm:$0xf]
  %v387 = vld [vmem:[%s2 + $0x10] sm:$0xf]
  %v388 = vld [vmem:[%s2 + $0x14] sm:$0xf]
  %v389 = vld [vmem:[%s2 + $0x18] sm:$0xf]
  %v390 = vld [vmem:[%s2 + $0x1c] sm:$0xf]
  %v391 = vld [vmem:[%s3] sm:$0xf]
  %v392 = vld [vmem:[%s3 + $0x4] sm:$0xf]
  %v393 = vld [vmem:[%s3 + $0x8] sm:$0xf]
  %v394 = vld [vmem:[%s3 + $0xc] sm:$0xf]
  %v395 = vld [vmem:[%s3 + $0x10] sm:$0xf]
  %v396 = vld [vmem:[%s3 + $0x14] sm:$0xf]
  %v397 = vld [vmem:[%s3 + $0x18] sm:$0xf]
  %v398 = vld [vmem:[%s3 + $0x1c] sm:$0xf]
  %v399 = vld [vmem:[%s6] sm:$0xf]
  %v400 = vld [vmem:[%s6 + $0x4] sm:$0xf]
  %v401 = vld [vmem:[%s6 + $0x8] sm:$0xf]
  %v402 = vld [vmem:[%s6 + $0xc] sm:$0xf]
  %v403 = vld [vmem:[%s6 + $0x10] sm:$0xf]
  %v404 = vld [vmem:[%s6 + $0x14] sm:$0xf]
  %v405 = vld [vmem:[%s6 + $0x18] sm:$0xf]
  %v406 = vld [vmem:[%s6 + $0x1c] sm:$0xf]
  %v407 = vld [vmem:[%s6 + $0x20] sm:$0xf]
  %v408 = vld [vmem:[%s6 + $0x24] sm:$0xf]
  %v409 = vld [vmem:[%s6 + $0x28] sm:$0xf]
  %v410 = vld [vmem:[%s6 + $0x2c] sm:$0xf]
  %v411 = vld [vmem:[%s6 + $0x30] sm:$0xf]
  %v412 = vld [vmem:[%s6 + $0x34] sm:$0xf]
  %v413 = vld [vmem:[%s6 + $0x38] sm:$0xf]
  %v414 = vld [vmem:[%s6 + $0x3c] sm:$0xf]
  %v415 = vld [vmem:[%s6 + $0x40] sm:$0xf]
  %v416 = vld [vmem:[%s6 + $0x44] sm:$0xf]
  %v417 = vld [vmem:[%s6 + $0x48] sm:$0xf]
  %v418 = vld [vmem:[%s6 + $0x4c] sm:$0xf]
  %v419 = vld [vmem:[%s6 + $0x50] sm:$0xf]
  %v420 = vld [vmem:[%s6 + $0x54] sm:$0xf]
  %v421 = vld [vmem:[%s6 + $0x58] sm:$0xf]
  %v422 = vld [vmem:[%s6 + $0x5c] sm:$0xf]
  %v423 = vld [vmem:[%s6 + $0x60] sm:$0xf]
  %v424 = vld [vmem:[%s6 + $0x64] sm:$0xf]
  %v425 = vld [vmem:[%s6 + $0x68] sm:$0xf]
  %v426 = vld [vmem:[%s6 + $0x6c] sm:$0xf]
  %v427 = vld [vmem:[%s6 + $0x70] sm:$0xf]
  %v428 = vld [vmem:[%s6 + $0x74] sm:$0xf]
  %v429 = vld [vmem:[%s6 + $0x78] sm:$0xf]
  %v430 = vld [vmem:[%s6 + $0x7c] sm:$0xf]
  %v431 = vld [vmem:[%s6 + $0x80] sm:$0xf]
  %v432 = vld [vmem:[%s6 + $0x84] sm:$0xf]
  %v433 = vld [vmem:[%s6 + $0x88] sm:$0xf]
  %v434 = vld [vmem:[%s6 + $0x8c] sm:$0xf]
  %v435 = vld [vmem:[%s6 + $0x90] sm:$0xf]
  %v436 = vld [vmem:[%s6 + $0x94] sm:$0xf]
  %v437 = vld [vmem:[%s6 + $0x98] sm:$0xf]
  %v438 = vld [vmem:[%s6 + $0x9c] sm:$0xf]
  %v439 = vld [vmem:[%s6 + $0xa0] sm:$0xf]
  %v440 = vld [vmem:[%s6 + $0xa4] sm:$0xf]
  %v441 = vld [vmem:[%s6 + $0xa8] sm:$0xf]
  %v442 = vld [vmem:[%s6 + $0xac] sm:$0xf]
  %v443 = vld [vmem:[%s6 + $0xb0] sm:$0xf]
  %v444 = vld [vmem:[%s6 + $0xb4] sm:$0xf]
  %v445 = vld [vmem:[%s6 + $0xb8] sm:$0xf]
  %v446 = vld [vmem:[%s6 + $0xbc] sm:$0xf]
  %v447 = vld [vmem:[%s7] sm:$0x1]
  %v448 = vpack.c.bf16 %v376, %v375
  %v449 = vpack.c.bf16 %v378, %v377
  %v450 = vpack.c.bf16 %v380, %v379
  %v451 = vpack.c.bf16 %v382, %v381
  %v460 = vunpack.c.l.b16 %v383
  %v461 = vunpack.c.l.b16 %v384
  %v462 = vunpack.c.l.b16 %v385
  %v463 = vunpack.c.l.b16 %v386
  %v464 = vunpack.c.l.b16 %v387
  %v465 = vunpack.c.l.b16 %v388
  %v466 = vunpack.c.l.b16 %v389
  %v467 = vunpack.c.l.b16 %v390
  %v468 = vpack.c.b16 %v461, %v460
  %v469 = vpack.c.b16 %v463, %v462
  %v470 = vpack.c.b16 %v465, %v464
  %v471 = vpack.c.b16 %v467, %v466
  %v473 = vsel %vm93, %v468, 0
  %v476 = vsel %vm93, %v469, 0
  %v479 = vsel %vm93, %v470, 0
  %v482 = vsel %vm93, %v471, 0
  %484 = vmatprep.subr.bf16.mxu0 0
  %485 = vmatpush1.bf16.msra.mxu0 %v448
  %486 = vmatprep.subr.bf16.mxu0 0
  %487 = vmatpush1.bf16.msra.mxu0 %v449
  %488 = vmatprep.subr.bf16.mxu0 0
  %489 = vmatpush1.bf16.msra.mxu0 %v450
  %490 = vmatprep.subr.bf16.mxu0 0
  %491 = vmatpush1.bf16.msra.mxu0 %v451
  %492 = vmatprep.subr.bf16.mxu0 0
  %493 = vmatpush1.bf16.msra.mxu0 0
  %494 = vmatprep.subr.bf16.mxu0 0
  %495 = vmatpush1.bf16.msra.mxu0 0
  %496 = vmatprep.subr.bf16.mxu0 0
  %497 = vmatpush1.bf16.msra.mxu0 0
  %498 = vmatprep.subr.bf16.mxu0 0
  %499 = vmatpush1.bf16.msra.mxu0 0
  %500 = vmatprep.subr.bf16.mxu0 0
  %501 = vmatpush1.bf16.msra.mxu0 0
  %502 = vmatprep.subr.bf16.mxu0 0
  %503 = vmatpush1.bf16.msra.mxu0 0
  %504 = vmatprep.subr.bf16.mxu0 0
  %505 = vmatpush1.bf16.msra.mxu0 0
  %506 = vmatprep.subr.bf16.mxu0 0
  %507 = vmatpush1.bf16.msra.mxu0 0
  %508 = vmatprep.subr.bf16.mxu0 0
  %509 = vmatpush1.bf16.msra.mxu0 0
  %510 = vmatprep.subr.bf16.mxu0 0
  %511 = vmatpush1.bf16.msra.mxu0 0
  %512 = vmatprep.subr.bf16.mxu0 0
  %513 = vmatpush1.bf16.msra.mxu0 0
  %514 = vmatprep.subr.bf16.mxu0 0
  %515 = vmatpush1.bf16.msra.mxu0 0
  %516 = vmatprep.mubr.bf16.mxu0 0
  %517 = vmatmul.mubr.bf16.gmra.mrb[0].mxu0 %v473
  %v518 = vpop.f32.mrb[0].mxu0
  %v519 = vadd.f32 0.0, %v518
  %v520 = vpop.f32.mrb[0].mxu0
  %v521 = vpop.f32.mrb[0].mxu0
  %v522 = vadd.f32 0.0, %v521
  %v523 = vpop.f32.mrb[0].mxu0
  %524 = vmatprep.mubr.bf16.mxu0 0
  %525 = vmatmul.mubr.bf16.gmra.mrb[0].mxu0 %v476
  %v526 = vpop.f32.mrb[0].mxu0
  %v527 = vadd.f32 0.0, %v526
  %v528 = vpop.f32.mrb[0].mxu0
  %v529 = vpop.f32.mrb[0].mxu0
  %v530 = vadd.f32 0.0, %v529
  %v531 = vpop.f32.mrb[0].mxu0
  %532 = vmatprep.mubr.bf16.mxu0 0
  %533 = vmatmul.mubr.bf16.gmra.mrb[0].mxu0 %v479
  %v534 = vpop.f32.mrb[0].mxu0
  %v535 = vadd.f32 0.0, %v534
  %v536 = vpop.f32.mrb[0].mxu0
  %v537 = vpop.f32.mrb[0].mxu0
  %v538 = vadd.f32 0.0, %v537
  %v539 = vpop.f32.mrb[0].mxu0
  %540 = vmatprep.mubr.bf16.mxu0 0
  %541 = vmatmul.mubr.bf16.gmra.mrb[0].mxu0 %v482
  %v542 = vpop.f32.mrb[0].mxu0
  %v543 = vadd.f32 0.0, %v542
  %v544 = vpop.f32.mrb[0].mxu0
  %v545 = vpop.f32.mrb[0].mxu0
  %v546 = vadd.f32 0.0, %v545
  %v547 = vpop.f32.mrb[0].mxu0
  %548 = vdwg.mxu0
  %v549 = vpack.c.bf16 %v522, %v519
  %v550 = vpack.c.bf16 %v530, %v527
  %v551 = vpack.c.bf16 %v538, %v535
  %v552 = vpack.c.bf16 %v546, %v543
  %v561 = vunpack.c.l.b16 %v391
  %v562 = vunpack.c.l.b16 %v392
  %v563 = vunpack.c.l.b16 %v393
  %v564 = vunpack.c.l.b16 %v394
  %v565 = vunpack.c.l.b16 %v395
  %v566 = vunpack.c.l.b16 %v396
  %v567 = vunpack.c.l.b16 %v397
  %v568 = vunpack.c.l.b16 %v398
  %v569 = vpack.c.b16 %v562, %v561
  %v570 = vpack.c.b16 %v564, %v563
  %v571 = vpack.c.b16 %v566, %v565
  %v572 = vpack.c.b16 %v568, %v567
  %v574 = vsel %vm93, %v569, 0
  %v577 = vsel %vm93, %v570, 0
  %v580 = vsel %vm93, %v571, 0
  %v583 = vsel %vm93, %v572, 0
  %585 = vmatprep.subr.bf16.mxu0 0
  %586 = vmatpush1.bf16.msra.mxu0 %v448
  %587 = vmatprep.subr.bf16.mxu0 0
  %588 = vmatpush1.bf16.msra.mxu0 %v449
  %589 = vmatprep.subr.bf16.mxu0 0
  %590 = vmatpush1.bf16.msra.mxu0 %v450
  %591 = vmatprep.subr.bf16.mxu0 0
  %592 = vmatpush1.bf16.msra.mxu0 %v451
  %593 = vmatprep.subr.bf16.mxu0 0
  %594 = vmatpush1.bf16.msra.mxu0 0
  %595 = vmatprep.subr.bf16.mxu0 0
  %596 = vmatpush1.bf16.msra.mxu0 0
  %597 = vmatprep.subr.bf16.mxu0 0
  %598 = vmatpush1.bf16.msra.mxu0 0
  %599 = vmatprep.subr.bf16.mxu0 0
  %600 = vmatpush1.bf16.msra.mxu0 0
  %601 = vmatprep.subr.bf16.mxu0 0
  %602 = vmatpush1.bf16.msra.mxu0 0
  %603 = vmatprep.subr.bf16.mxu0 0
  %604 = vmatpush1.bf16.msra.mxu0 0
  %605 = vmatprep.subr.bf16.mxu0 0
  %606 = vmatpush1.bf16.msra.mxu0 0
  %607 = vmatprep.subr.bf16.mxu0 0
  %608 = vmatpush1.bf16.msra.mxu0 0
  %609 = vmatprep.subr.bf16.mxu0 0
  %610 = vmatpush1.bf16.msra.mxu0 0
  %611 = vmatprep.subr.bf16.mxu0 0
  %612 = vmatpush1.bf16.msra.mxu0 0
  %613 = vmatprep.subr.bf16.mxu0 0
  %614 = vmatpush1.bf16.msra.mxu0 0
  %615 = vmatprep.subr.bf16.mxu0 0
  %616 = vmatpush1.bf16.msra.mxu0 0
  %617 = vmatprep.mubr.bf16.mxu0 0
  %618 = vmatmul.mubr.bf16.gmra.mrb[0].mxu0 %v574
  %v619 = vpop.f32.mrb[0].mxu0
  %v620 = vadd.f32 0.0, %v619
  %v621 = vpop.f32.mrb[0].mxu0
  %v622 = vpop.f32.mrb[0].mxu0
  %v623 = vadd.f32 0.0, %v622
  %v624 = vpop.f32.mrb[0].mxu0
  %625 = vmatprep.mubr.bf16.mxu0 0
  %626 = vmatmul.mubr.bf16.gmra.mrb[0].mxu0 %v577
  %v627 = vpop.f32.mrb[0].mxu0
  %v628 = vadd.f32 0.0, %v627
  %v629 = vpop.f32.mrb[0].mxu0
  %v630 = vpop.f32.mrb[0].mxu0
  %v631 = vadd.f32 0.0, %v630
  %v632 = vpop.f32.mrb[0].mxu0
  %633 = vmatprep.mubr.bf16.mxu0 0
  %634 = vmatmul.mubr.bf16.gmra.mrb[0].mxu0 %v580
  %v635 = vpop.f32.mrb[0].mxu0
  %v636 = vadd.f32 0.0, %v635
  %v637 = vpop.f32.mrb[0].mxu0
  %v638 = vpop.f32.mrb[0].mxu0
  %v639 = vadd.f32 0.0, %v638
  %v640 = vpop.f32.mrb[0].mxu0
  %641 = vmatprep.mubr.bf16.mxu0 0
  %642 = vmatmul.mubr.bf16.gmra.mrb[0].mxu0 %v583
  %v643 = vpop.f32.mrb[0].mxu0
  %v644 = vadd.f32 0.0, %v643
  %v645 = vpop.f32.mrb[0].mxu0
  %v646 = vpop.f32.mrb[0].mxu0
  %v647 = vadd.f32 0.0, %v646
  %v648 = vpop.f32.mrb[0].mxu0
  %649 = vdwg.mxu0
  %v650 = vpack.c.bf16 %v623, %v620
  %v651 = vpack.c.bf16 %v631, %v628
  %v652 = vpack.c.bf16 %v639, %v636
  %v653 = vpack.c.bf16 %v647, %v644
  %v670 = vunpack.c.l.b16 %v415
  %v671 = vunpack.c.l.b16 %v416
  %v672 = vunpack.c.l.b16 %v417
  %v673 = vunpack.c.l.b16 %v418
  %v674 = vunpack.c.l.b16 %v419
  %v675 = vunpack.c.l.b16 %v420
  %v676 = vunpack.c.l.b16 %v421
  %v677 = vunpack.c.l.b16 %v422
  %v678 = vunpack.c.l.b16 %v423
  %v679 = vunpack.c.l.b16 %v424
  %v680 = vunpack.c.l.b16 %v425
  %v681 = vunpack.c.l.b16 %v426
  %v682 = vunpack.c.l.b16 %v427
  %v683 = vunpack.c.l.b16 %v428
  %v684 = vunpack.c.l.b16 %v429
  %v685 = vunpack.c.l.b16 %v430
  %v686 = vpack.c.b16 %v671, %v670
  %v687 = vpack.c.b16 %v673, %v672
  %v688 = vpack.c.b16 %v675, %v674
  %v689 = vpack.c.b16 %v677, %v676
  %v690 = vpack.c.b16 %v679, %v678
  %v691 = vpack.c.b16 %v681, %v680
  %v692 = vpack.c.b16 %v683, %v682
  %v693 = vpack.c.b16 %v685, %v684
  %702 = vmatprep.subr.bf16.mxu0 0
  %703 = vmatpush1.bf16.msra.mxu0 %v686
  %704 = vmatprep.subr.bf16.mxu0 0
  %705 = vmatpush1.bf16.msra.mxu0 %v687
  %706 = vmatprep.subr.bf16.mxu0 0
  %707 = vmatpush1.bf16.msra.mxu0 %v688
  %708 = vmatprep.subr.bf16.mxu0 0
  %709 = vmatpush1.bf16.msra.mxu0 %v689
  %710 = vmatprep.subr.bf16.mxu0 0
  %711 = vmatpush1.bf16.msra.mxu0 %v690
  %712 = vmatprep.subr.bf16.mxu0 0
  %713 = vmatpush1.bf16.msra.mxu0 %v691
  %714 = vmatprep.subr.bf16.mxu0 0
  %715 = vmatpush1.bf16.msra.mxu0 %v692
  %716 = vmatprep.subr.bf16.mxu0 0
  %717 = vmatpush1.bf16.msra.mxu0 %v693
  %718 = vmatprep.subr.bf16.mxu0 0
  %719 = vmatpush1.bf16.msra.mxu0 0
  %720 = vmatprep.subr.bf16.mxu0 0
  %721 = vmatpush1.bf16.msra.mxu0 0
  %722 = vmatprep.subr.bf16.mxu0 0
  %723 = vmatpush1.bf16.msra.mxu0 0
  %724 = vmatprep.subr.bf16.mxu0 0
  %725 = vmatpush1.bf16.msra.mxu0 0
  %726 = vmatprep.subr.bf16.mxu0 0
  %727 = vmatpush1.bf16.msra.mxu0 0
  %728 = vmatprep.subr.bf16.mxu0 0
  %729 = vmatpush1.bf16.msra.mxu0 0
  %730 = vmatprep.subr.bf16.mxu0 0
  %731 = vmatpush1.bf16.msra.mxu0 0
  %732 = vmatprep.subr.bf16.mxu0 0
  %733 = vmatpush1.bf16.msra.mxu0 0
  %734 = vmatprep.mubr.bf16.mxu0 0
  %735 = vmatmul.mubr.bf16.gmra.mrb[0].mxu0 %v448
  %v736 = vpop.f32.mrb[0].mxu0
  %v737 = vadd.f32 0.0, %v736
  %v738 = vpop.f32.mrb[0].mxu0
  %v739 = vpop.f32.mrb[0].mxu0
  %v740 = vadd.f32 0.0, %v739
  %v741 = vpop.f32.mrb[0].mxu0
  %742 = vmatprep.mubr.bf16.mxu0 0
  %743 = vmatmul.mubr.bf16.gmra.mrb[0].mxu0 %v449
  %v744 = vpop.f32.mrb[0].mxu0
  %v745 = vadd.f32 0.0, %v744
  %v746 = vpop.f32.mrb[0].mxu0
  %v747 = vpop.f32.mrb[0].mxu0
  %v748 = vadd.f32 0.0, %v747
  %v749 = vpop.f32.mrb[0].mxu0
  %750 = vmatprep.mubr.bf16.mxu0 0
  %751 = vmatmul.mubr.bf16.gmra.mrb[0].mxu0 %v450
  %v752 = vpop.f32.mrb[0].mxu0
  %v753 = vadd.f32 0.0, %v752
  %v754 = vpop.f32.mrb[0].mxu0
  %v755 = vpop.f32.mrb[0].mxu0
  %v756 = vadd.f32 0.0, %v755
  %v757 = vpop.f32.mrb[0].mxu0
  %758 = vmatprep.mubr.bf16.mxu0 0
  %759 = vmatmul.mubr.bf16.gmra.mrb[0].mxu0 %v451
  %v760 = vpop.f32.mrb[0].mxu0
  %v761 = vadd.f32 0.0, %v760
  %v762 = vpop.f32.mrb[0].mxu0
  %v763 = vpop.f32.mrb[0].mxu0
  %v764 = vadd.f32 0.0, %v763
  %v765 = vpop.f32.mrb[0].mxu0
  %766 = vdwg.mxu0
  %v783 = vunpack.c.l.b16 %v399
  %v784 = vunpack.c.l.b16 %v400
  %v785 = vunpack.c.l.b16 %v401
  %v786 = vunpack.c.l.b16 %v402
  %v787 = vunpack.c.l.b16 %v403
  %v788 = vunpack.c.l.b16 %v404
  %v789 = vunpack.c.l.b16 %v405
  %v790 = vunpack.c.l.b16 %v406
  %v791 = vunpack.c.l.b16 %v407
  %v792 = vunpack.c.l.b16 %v408
  %v793 = vunpack.c.l.b16 %v409
  %v794 = vunpack.c.l.b16 %v410
  %v795 = vunpack.c.l.b16 %v411
  %v796 = vunpack.c.l.b16 %v412
  %v797 = vunpack.c.l.b16 %v413
  %v798 = vunpack.c.l.b16 %v414
  %v799 = vpack.c.b16 %v784, %v783
  %v800 = vpack.c.b16 %v786, %v785
  %v801 = vpack.c.b16 %v788, %v787
  %v802 = vpack.c.b16 %v790, %v789
  %v803 = vpack.c.b16 %v792, %v791
  %v804 = vpack.c.b16 %v794, %v793
  %v805 = vpack.c.b16 %v796, %v795
  %v806 = vpack.c.b16 %v798, %v797
  %815 = vmatprep.subr.bf16.mxu0 0
  %816 = vmatpush1.bf16.msra.mxu0 %v799
  %817 = vmatprep.subr.bf16.mxu0 0
  %818 = vmatpush1.bf16.msra.mxu0 %v800
  %819 = vmatprep.subr.bf16.mxu0 0
  %820 = vmatpush1.bf16.msra.mxu0 %v801
  %821 = vmatprep.subr.bf16.mxu0 0
  %822 = vmatpush1.bf16.msra.mxu0 %v802
  %823 = vmatprep.subr.bf16.mxu0 0
  %824 = vmatpush1.bf16.msra.mxu0 %v803
  %825 = vmatprep.subr.bf16.mxu0 0
  %826 = vmatpush1.bf16.msra.mxu0 %v804
  %827 = vmatprep.subr.bf16.mxu0 0
  %828 = vmatpush1.bf16.msra.mxu0 %v805
  %829 = vmatprep.subr.bf16.mxu0 0
  %830 = vmatpush1.bf16.msra.mxu0 %v806
  %831 = vmatprep.subr.bf16.mxu0 0
  %832 = vmatpush1.bf16.msra.mxu0 0
  %833 = vmatprep.subr.bf16.mxu0 0
  %834 = vmatpush1.bf16.msra.mxu0 0
  %835 = vmatprep.subr.bf16.mxu0 0
  %836 = vmatpush1.bf16.msra.mxu0 0
  %837 = vmatprep.subr.bf16.mxu0 0
  %838 = vmatpush1.bf16.msra.mxu0 0
  %839 = vmatprep.subr.bf16.mxu0 0
  %840 = vmatpush1.bf16.msra.mxu0 0
  %841 = vmatprep.subr.bf16.mxu0 0
  %842 = vmatpush1.bf16.msra.mxu0 0
  %843 = vmatprep.subr.bf16.mxu0 0
  %844 = vmatpush1.bf16.msra.mxu0 0
  %845 = vmatprep.subr.bf16.mxu0 0
  %846 = vmatpush1.bf16.msra.mxu0 0
  %847 = vmatprep.mubr.bf16.mxu0 0
  %848 = vmatmul.mubr.bf16.gmra.mrb[0].mxu0 %v549
  %v849 = vpop.f32.mrb[0].mxu0
  %v850 = vadd.f32 %v737, %v849
  %v851 = vpop.f32.mrb[0].mxu0
  %v852 = vpop.f32.mrb[0].mxu0
  %v853 = vadd.f32 %v740, %v852
  %v854 = vpop.f32.mrb[0].mxu0
  %855 = vmatprep.mubr.bf16.mxu0 0
  %856 = vmatmul.mubr.bf16.gmra.mrb[0].mxu0 %v550
  %v857 = vpop.f32.mrb[0].mxu0
  %v858 = vadd.f32 %v745, %v857
  %v859 = vpop.f32.mrb[0].mxu0
  %v860 = vpop.f32.mrb[0].mxu0
  %v861 = vadd.f32 %v748, %v860
  %v862 = vpop.f32.mrb[0].mxu0
  %863 = vmatprep.mubr.bf16.mxu0 0
  %864 = vmatmul.mubr.bf16.gmra.mrb[0].mxu0 %v551
  %v865 = vpop.f32.mrb[0].mxu0
  %v866 = vadd.f32 %v753, %v865
  %v867 = vpop.f32.mrb[0].mxu0
  %v868 = vpop.f32.mrb[0].mxu0
  %v869 = vadd.f32 %v756, %v868
  %v870 = vpop.f32.mrb[0].mxu0
  %871 = vmatprep.mubr.bf16.mxu0 0
  %872 = vmatmul.mubr.bf16.gmra.mrb[0].mxu0 %v552
  %v873 = vpop.f32.mrb[0].mxu0
  %v874 = vadd.f32 %v761, %v873
  %v875 = vpop.f32.mrb[0].mxu0
  %v876 = vpop.f32.mrb[0].mxu0
  %v877 = vadd.f32 %v764, %v876
  %v878 = vpop.f32.mrb[0].mxu0
  %879 = vdwg.mxu0
  %v896 = vunpack.c.l.b16 %v431
  %v897 = vunpack.c.l.b16 %v432
  %v898 = vunpack.c.l.b16 %v433
  %v899 = vunpack.c.l.b16 %v434
  %v900 = vunpack.c.l.b16 %v435
  %v901 = vunpack.c.l.b16 %v436
  %v902 = vunpack.c.l.b16 %v437
  %v903 = vunpack.c.l.b16 %v438
  %v904 = vunpack.c.l.b16 %v439
  %v905 = vunpack.c.l.b16 %v440
  %v906 = vunpack.c.l.b16 %v441
  %v907 = vunpack.c.l.b16 %v442
  %v908 = vunpack.c.l.b16 %v443
  %v909 = vunpack.c.l.b16 %v444
  %v910 = vunpack.c.l.b16 %v445
  %v911 = vunpack.c.l.b16 %v446
  %v912 = vpack.c.b16 %v897, %v896
  %v913 = vpack.c.b16 %v899, %v898
  %v914 = vpack.c.b16 %v901, %v900
  %v915 = vpack.c.b16 %v903, %v902
  %v916 = vpack.c.b16 %v905, %v904
  %v917 = vpack.c.b16 %v907, %v906
  %v918 = vpack.c.b16 %v909, %v908
  %v919 = vpack.c.b16 %v911, %v910
  %928 = vmatprep.subr.bf16.mxu0 0
  %929 = vmatpush1.bf16.msra.mxu0 %v912
  %930 = vmatprep.subr.bf16.mxu0 0
  %931 = vmatpush1.bf16.msra.mxu0 %v913
  %932 = vmatprep.subr.bf16.mxu0 0
  %933 = vmatpush1.bf16.msra.mxu0 %v914
  %934 = vmatprep.subr.bf16.mxu0 0
  %935 = vmatpush1.bf16.msra.mxu0 %v915
  %936 = vmatprep.subr.bf16.mxu0 0
  %937 = vmatpush1.bf16.msra.mxu0 %v916
  %938 = vmatprep.subr.bf16.mxu0 0
  %939 = vmatpush1.bf16.msra.mxu0 %v917
  %940 = vmatprep.subr.bf16.mxu0 0
  %941 = vmatpush1.bf16.msra.mxu0 %v918
  %942 = vmatprep.subr.bf16.mxu0 0
  %943 = vmatpush1.bf16.msra.mxu0 %v919
  %944 = vmatprep.subr.bf16.mxu0 0
  %945 = vmatpush1.bf16.msra.mxu0 0
  %946 = vmatprep.subr.bf16.mxu0 0
  %947 = vmatpush1.bf16.msra.mxu0 0
  %948 = vmatprep.subr.bf16.mxu0 0
  %949 = vmatpush1.bf16.msra.mxu0 0
  %950 = vmatprep.subr.bf16.mxu0 0
  %951 = vmatpush1.bf16.msra.mxu0 0
  %952 = vmatprep.subr.bf16.mxu0 0
  %953 = vmatpush1.bf16.msra.mxu0 0
  %954 = vmatprep.subr.bf16.mxu0 0
  %955 = vmatpush1.bf16.msra.mxu0 0
  %956 = vmatprep.subr.bf16.mxu0 0
  %957 = vmatpush1.bf16.msra.mxu0 0
  %958 = vmatprep.subr.bf16.mxu0 0
  %959 = vmatpush1.bf16.msra.mxu0 0
  %960 = vmatprep.mubr.bf16.mxu0 0
  %961 = vmatmul.mubr.bf16.gmra.mrb[0].mxu0 %v650
  %v962 = vpop.f32.mrb[0].mxu0
  %v963 = vadd.f32 0.0, %v962
  %v964 = vpop.f32.mrb[0].mxu0
  %v965 = vpop.f32.mrb[0].mxu0
  %v966 = vadd.f32 0.0, %v965
  %v967 = vpop.f32.mrb[0].mxu0
  %968 = vmatprep.mubr.bf16.mxu0 0
  %969 = vmatmul.mubr.bf16.gmra.mrb[0].mxu0 %v651
  %v970 = vpop.f32.mrb[0].mxu0
  %v971 = vadd.f32 0.0, %v970
  %v972 = vpop.f32.mrb[0].mxu0
  %v973 = vpop.f32.mrb[0].mxu0
  %v974 = vadd.f32 0.0, %v973
  %v975 = vpop.f32.mrb[0].mxu0
  %976 = vmatprep.mubr.bf16.mxu0 0
  %977 = vmatmul.mubr.bf16.gmra.mrb[0].mxu0 %v652
  %v978 = vpop.f32.mrb[0].mxu0
  %v979 = vadd.f32 0.0, %v978
  %v980 = vpop.f32.mrb[0].mxu0
  %v981 = vpop.f32.mrb[0].mxu0
  %v982 = vadd.f32 0.0, %v981
  %v983 = vpop.f32.mrb[0].mxu0
  %984 = vmatprep.mubr.bf16.mxu0 0
  %985 = vmatmul.mubr.bf16.gmra.mrb[0].mxu0 %v653
  %v986 = vpop.f32.mrb[0].mxu0
  %v987 = vadd.f32 0.0, %v986
  %v988 = vpop.f32.mrb[0].mxu0
  %v989 = vpop.f32.mrb[0].mxu0
  %v990 = vadd.f32 0.0, %v989
  %v991 = vpop.f32.mrb[0].mxu0
  %992 = vdwg.mxu0
  %v993 = vadd.f32 %v850, %v963
  %v994 = vadd.f32 %v853, %v966
  %v995 = vadd.f32 %v858, %v971
  %v996 = vadd.f32 %v861, %v974
  %v997 = vadd.f32 %v866, %v979
  %v998 = vadd.f32 %v869, %v982
  %v999 = vadd.f32 %v874, %v987
  %v1000 = vadd.f32 %v877, %v990
  %v1002 = vlaneseq
  %v1003 = vshrl.u32 %v1002, 7
  %v1004 = vsub.s32 0, %v1003
  %v1005 = vrot.slane %v447, %v1004
  %v1007 = vadd.f32 %v993, %v1005
  %v1008 = vadd.f32 %v994, %v1005
  %v1009 = vadd.f32 %v995, %v1005
  %v1010 = vadd.f32 %v996, %v1005
  %v1011 = vadd.f32 %v997, %v1005
  %v1012 = vadd.f32 %v998, %v1005
  %v1013 = vadd.f32 %v999, %v1005
  %v1014 = vadd.f32 %v1000, %v1005
  %v1015 = vadd.f32 %v1007, %v141
  %v1016 = vadd.f32 %v1008, %v144
  %v1017 = vadd.f32 %v1009, %v149
  %v1018 = vadd.f32 %v1010, %v152
  %v1019 = vadd.f32 %v1011, %v157
  %v1020 = vadd.f32 %v1012, %v160
  %v1021 = vadd.f32 %v1013, %v165
  %v1022 = vadd.f32 %v1014, %v168
  %v1023 = vmax.f32 %v1015, 0.0
  %v1024 = vmax.f32 %v1016, 0.0
  %v1025 = vmax.f32 %v1017, 0.0
  %v1026 = vmax.f32 %v1018, 0.0
  %v1027 = vmax.f32 %v1019, 0.0
  %v1028 = vmax.f32 %v1020, 0.0
  %v1029 = vmax.f32 %v1021, 0.0
  %v1030 = vmax.f32 %v1022, 0.0
  %v1031 = vpack.c.bf16 %v1024, %v1023
  %v1032 = vpack.c.bf16 %v1026, %v1025
  %v1033 = vpack.c.bf16 %v1028, %v1027
  %v1034 = vpack.c.bf16 %v1030, %v1029
  %v1035 = vld [vmem:[%s10] sm:$0xff]
  %v1036 = vld [vmem:[%s10 + $0x8] sm:$0xff]
  %v1037 = vld [vmem:[%s10 + $0x10] sm:$0xff]
  %v1038 = vld [vmem:[%s10 + $0x18] sm:$0xff]
  %v1039 = vld [vmem:[%s10 + $0x20] sm:$0xff]
  %v1040 = vld [vmem:[%s10 + $0x28] sm:$0xff]
  %v1041 = vld [vmem:[%s10 + $0x30] sm:$0xff]
  %v1042 = vld [vmem:[%s10 + $0x38] sm:$0xff]
  %v1043 = vld [vmem:[%s10 + $0x40] sm:$0xff]
  %v1044 = vld [vmem:[%s10 + $0x48] sm:$0xff]
  %v1045 = vld [vmem:[%s10 + $0x50] sm:$0xff]
  %v1046 = vld [vmem:[%s10 + $0x58] sm:$0xff]
  %v1047 = vld [vmem:[%s10 + $0x60] sm:$0xff]
  %v1048 = vld [vmem:[%s10 + $0x68] sm:$0xff]
  %v1049 = vld [vmem:[%s10 + $0x70] sm:$0xff]
  %v1050 = vld [vmem:[%s10 + $0x78] sm:$0xff]
  %v1051 = vld [vmem:[%s11] sm:$0x3]
  %v1053 = vlaneseq
  %v1054 = vshrl.u32 %v1053, 7
  %v1055 = vsub.s32 0, %v1054
  %v1056 = vrot.slane %v1051, %v1055
  %v1057 = vlaneseq
  %v1058 = vshrl.u32 %v1057, 7
  %v1059 = vsub.s32 1, %v1058
  %v1060 = vrot.slane %v1051, %v1059
  %v1079 = vunpack.c.l.b16 %v1035
  %v1080 = vunpack.c.h.b16 %v1035
  %v1081 = vunpack.c.l.b16 %v1036
  %v1082 = vunpack.c.h.b16 %v1036
  %v1083 = vunpack.c.l.b16 %v1037
  %v1084 = vunpack.c.h.b16 %v1037
  %v1085 = vunpack.c.l.b16 %v1038
  %v1086 = vunpack.c.h.b16 %v1038
  %v1087 = vunpack.c.l.b16 %v1039
  %v1088 = vunpack.c.h.b16 %v1039
  %v1089 = vunpack.c.l.b16 %v1040
  %v1090 = vunpack.c.h.b16 %v1040
  %v1091 = vunpack.c.l.b16 %v1041
  %v1092 = vunpack.c.h.b16 %v1041
  %v1093 = vunpack.c.l.b16 %v1042
  %v1094 = vunpack.c.h.b16 %v1042
  %v1095 = vunpack.c.l.b16 %v1043
  %v1096 = vunpack.c.h.b16 %v1043
  %v1097 = vunpack.c.l.b16 %v1044
  %v1098 = vunpack.c.h.b16 %v1044
  %v1099 = vunpack.c.l.b16 %v1045
  %v1100 = vunpack.c.h.b16 %v1045
  %v1101 = vunpack.c.l.b16 %v1046
  %v1102 = vunpack.c.h.b16 %v1046
  %v1103 = vunpack.c.l.b16 %v1047
  %v1104 = vunpack.c.h.b16 %v1047
  %v1105 = vunpack.c.l.b16 %v1048
  %v1106 = vunpack.c.h.b16 %v1048
  %v1107 = vunpack.c.l.b16 %v1049
  %v1108 = vunpack.c.h.b16 %v1049
  %v1109 = vunpack.c.l.b16 %v1050
  %v1110 = vunpack.c.h.b16 %v1050
  %v1111 = vpack.c.b16 %v1081, %v1079
  %v1112 = vpack.c.b16 %v1082, %v1080
  %v1113 = vpack.c.b16 %v1085, %v1083
  %v1114 = vpack.c.b16 %v1086, %v1084
  %v1115 = vpack.c.b16 %v1089, %v1087
  %v1116 = vpack.c.b16 %v1090, %v1088
  %v1117 = vpack.c.b16 %v1093, %v1091
  %v1118 = vpack.c.b16 %v1094, %v1092
  %v1119 = vpack.c.b16 %v1097, %v1095
  %v1120 = vpack.c.b16 %v1098, %v1096
  %v1121 = vpack.c.b16 %v1101, %v1099
  %v1122 = vpack.c.b16 %v1102, %v1100
  %v1123 = vpack.c.b16 %v1105, %v1103
  %v1124 = vpack.c.b16 %v1106, %v1104
  %v1125 = vpack.c.b16 %v1109, %v1107
  %v1126 = vpack.c.b16 %v1110, %v1108
  %1143 = vmatprep.subr.bf16.mxu0 %v1112
  %1144 = vmatpush1.bf16.msra.mxu0 %v1111
  %1145 = vmatprep.subr.bf16.mxu0 %v1114
  %1146 = vmatpush1.bf16.msra.mxu0 %v1113
  %1147 = vmatprep.subr.bf16.mxu0 %v1116
  %1148 = vmatpush1.bf16.msra.mxu0 %v1115
  %1149 = vmatprep.subr.bf16.mxu0 %v1118
  %1150 = vmatpush1.bf16.msra.mxu0 %v1117
  %1151 = vmatprep.subr.bf16.mxu0 %v1120
  %1152 = vmatpush1.bf16.msra.mxu0 %v1119
  %1153 = vmatprep.subr.bf16.mxu0 %v1122
  %1154 = vmatpush1.bf16.msra.mxu0 %v1121
  %1155 = vmatprep.subr.bf16.mxu0 %v1124
  %1156 = vmatpush1.bf16.msra.mxu0 %v1123
  %1157 = vmatprep.subr.bf16.mxu0 %v1126
  %1158 = vmatpush1.bf16.msra.mxu0 %v1125
  %1159 = vmatprep.subr.bf16.mxu0 0
  %1160 = vmatpush1.bf16.msra.mxu0 0
  %1161 = vmatprep.subr.bf16.mxu0 0
  %1162 = vmatpush1.bf16.msra.mxu0 0
  %1163 = vmatprep.subr.bf16.mxu0 0
  %1164 = vmatpush1.bf16.msra.mxu0 0
  %1165 = vmatprep.subr.bf16.mxu0 0
  %1166 = vmatpush1.bf16.msra.mxu0 0
  %1167 = vmatprep.subr.bf16.mxu0 0
  %1168 = vmatpush1.bf16.msra.mxu0 0
  %1169 = vmatprep.subr.bf16.mxu0 0
  %1170 = vmatpush1.bf16.msra.mxu0 0
  %1171 = vmatprep.subr.bf16.mxu0 0
  %1172 = vmatpush1.bf16.msra.mxu0 0
  %1173 = vmatprep.subr.bf16.mxu0 0
  %1174 = vmatpush1.bf16.msra.mxu0 0
  %1175 = vmatprep.mubr.bf16.mxu0 0
  %1176 = vmatmul.mubr.bf16.gmra.mrb[0].mxu0 %v1031
  %v1177 = vpop.f32.mrb[0].mxu0
  %v1178 = vadd.f32 %v1056, %v1177
  %v1179 = vpop.f32.mrb[0].mxu0
  %v1180 = vadd.f32 %v1060, %v1179
  %v1181 = vpop.f32.mrb[0].mxu0
  %v1182 = vadd.f32 %v1056, %v1181
  %v1183 = vpop.f32.mrb[0].mxu0
  %v1184 = vadd.f32 %v1060, %v1183
  %1185 = vmatprep.mubr.bf16.mxu0 0
  %1186 = vmatmul.mubr.bf16.gmra.mrb[0].mxu0 %v1032
  %v1187 = vpop.f32.mrb[0].mxu0
  %v1188 = vadd.f32 %v1056, %v1187
  %v1189 = vpop.f32.mrb[0].mxu0
  %v1190 = vadd.f32 %v1060, %v1189
  %v1191 = vpop.f32.mrb[0].mxu0
  %v1192 = vadd.f32 %v1056, %v1191
  %v1193 = vpop.f32.mrb[0].mxu0
  %v1194 = vadd.f32 %v1060, %v1193
  %1195 = vmatprep.mubr.bf16.mxu0 0
  %1196 = vmatmul.mubr.bf16.gmra.mrb[0].mxu0 %v1033
  %v1197 = vpop.f32.mrb[0].mxu0
  %v1198 = vadd.f32 %v1056, %v1197
  %v1199 = vpop.f32.mrb[0].mxu0
  %v1200 = vadd.f32 %v1060, %v1199
  %v1201 = vpop.f32.mrb[0].mxu0
  %v1202 = vadd.f32 %v1056, %v1201
  %v1203 = vpop.f32.mrb[0].mxu0
  %v1204 = vadd.f32 %v1060, %v1203
  %1205 = vmatprep.mubr.bf16.mxu0 0
  %1206 = vmatmul.mubr.bf16.gmra.mrb[0].mxu0 %v1034
  %v1207 = vpop.f32.mrb[0].mxu0
  %v1208 = vadd.f32 %v1056, %v1207
  %v1209 = vpop.f32.mrb[0].mxu0
  %v1210 = vadd.f32 %v1060, %v1209
  %v1211 = vpop.f32.mrb[0].mxu0
  %v1212 = vadd.f32 %v1056, %v1211
  %v1213 = vpop.f32.mrb[0].mxu0
  %v1214 = vadd.f32 %v1060, %v1213
  %1215 = vdwg.mxu0
  %1216 = vst [vmem:[%s12] sm:$0xff] %v1178
  %1217 = vst [vmem:[%s12 + $0x8] sm:$0xff] %v1180
  %1218 = vst [vmem:[%s12 + $0x10] sm:$0xff] %v1182
  %1219 = vst [vmem:[%s12 + $0x18] sm:$0xff] %v1184
  %1220 = vst [vmem:[%s12 + $0x20] sm:$0xff] %v1188
  %1221 = vst [vmem:[%s12 + $0x28] sm:$0xff] %v1190
  %1222 = vst [vmem:[%s12 + $0x30] sm:$0xff] %v1192
  %1223 = vst [vmem:[%s12 + $0x38] sm:$0xff] %v1194
  %1224 = vst [vmem:[%s12 + $0x40] sm:$0xff] %v1198
  %1225 = vst [vmem:[%s12 + $0x48] sm:$0xff] %v1200
  %1226 = vst [vmem:[%s12 + $0x50] sm:$0xff] %v1202
  %1227 = vst [vmem:[%s12 + $0x58] sm:$0xff] %v1204
  %1228 = vst [vmem:[%s12 + $0x60] sm:$0xff] %v1208
  %1229 = vst [vmem:[%s12 + $0x68] sm:$0xff] %v1210
  %1230 = vst [vmem:[%s12 + $0x70] sm:$0xff] %v1212
  %1231 = vst [vmem:[%s12 + $0x78] sm:$0xff] %v1214
  // Predicated region
  $region50: #{eq_motion_forward.4} parent=0 // pred_check
    _
  $region51: #{eq_motion_forward.4} parent=0 // pred_check_branch
    %1233 = sbr.rel (0) target = $region53
  $region52: #{eq_motion_forward.4} parent=0 // pred_region
    _
  $region53: #{eq_motion_forward.4} parent=0 // pred_fallthru
    _
  // Predicated region
  $region54: #{eq_motion_forward.4} parent=0 // pred_check
    _
  $region55: #{eq_motion_forward.4} parent=0 // pred_check_branch
    %1235 = sbr.rel (0) target = $region57
  $region56: #{eq_motion_forward.4} parent=0 // pred_region
    _
  $region57: #{eq_motion_forward.4} parent=0 // pred_fallthru
    _

// kernel: eq_motion_forward.3
$region0: #{eq_motion_forward.3}
  #allocation0 [shape = 'u32[]', space=smem, size = 0x4, offset = 0x4, fixed_abs, tag = 'smem constant byte address 0x4 - core index']
  #allocation1 [shape = 'u32[144,128]{1,0:T(1,128)}', space=vmem, size = 0x12000, scoped, tag = 'internal scratch']
  %s0 = inlined_call_operand.vmem [shape: f32[256,42], index: 0, kind: input, shape index: {}]
  %s1 = inlined_call_operand.vmem [shape: bf16[42,64], index: 1, kind: input, shape index: {}]
  %s2 = inlined_call_operand.vmem [shape: f32[1,64], index: 2, kind: input, shape index: {}]
  %s3 = inlined_call_operand.vmem [shape: f32[128,256], index: 3, kind: input, shape index: {}]
  %s4 = inlined_call_operand.vmem [shape: f32[128,256], index: 4, kind: input, shape index: {}]
  %s5 = inlined_call_operand.vmem [shape: f32[128,256], index: 5, kind: input, shape index: {}]
  %s6 = inlined_call_operand.vmem [shape: bf16[128,128], index: 6, kind: input, shape index: {}]
  %s7 = inlined_call_operand.vmem [shape: bf16[128,128], index: 7, kind: input, shape index: {}]
  %s8 = inlined_call_operand.vmem [shape: bf16[192,64], index: 8, kind: input, shape index: {}]
  %s9 = inlined_call_operand.vmem [shape: f32[1,64], index: 9, kind: input, shape index: {}]
  %s10 = inlined_call_operand.vmem [shape: bf16[192,64], index: 10, kind: input, shape index: {}]
  %s11 = inlined_call_operand.vmem [shape: f32[1,64], index: 11, kind: input, shape index: {}]
  %s12 = inlined_call_operand.vmem [shape: f32[128,64], index: 12, kind: output, shape index: {}]
  %s13 = sld [smem:[#allocation0]]
  $region58: #{eq_motion_forward.3} parent=0
    _
  %s15 = ssub.s32 1, %s13
  %s16 = scalar_select 0, %s15, %s13
  // Predicated region
  $region2: #{eq_motion_forward.3} parent=0 // pred_check
    _
  $region3: #{eq_motion_forward.3} parent=0 // pred_check_branch
    %18 = sbr.rel (0) target = $region5
  $region4: #{eq_motion_forward.3} parent=0 // pred_region
    _
  $region5: #{eq_motion_forward.3} parent=0 // pred_fallthru
    _
  // Predicated region
  $region6: #{eq_motion_forward.3} parent=0 // pred_check
    _
  $region7: #{eq_motion_forward.3} parent=0 // pred_check_branch
    %20 = sbr.rel (0) target = $region9
  $region8: #{eq_motion_forward.3} parent=0 // pred_region
    _
  $region9: #{eq_motion_forward.3} parent=0 // pred_fallthru
    _
  // Predicated region
  $region10: #{eq_motion_forward.3} parent=0 // pred_check
    _
  $region11: #{eq_motion_forward.3} parent=0 // pred_check_branch
    %22 = sbr.rel (0) target = $region13
  $region12: #{eq_motion_forward.3} parent=0 // pred_region
    _
  $region13: #{eq_motion_forward.3} parent=0 // pred_fallthru
    _
  // Predicated region
  $region14: #{eq_motion_forward.3} parent=0 // pred_check
    _
  $region15: #{eq_motion_forward.3} parent=0 // pred_check_branch
    %24 = sbr.rel (0) target = $region17
  $region16: #{eq_motion_forward.3} parent=0 // pred_region
    _
  $region17: #{eq_motion_forward.3} parent=0 // pred_fallthru
    _
  // Predicated region
  $region18: #{eq_motion_forward.3} parent=0 // pred_check
    _
  $region19: #{eq_motion_forward.3} parent=0 // pred_check_branch
    %26 = sbr.rel (0) target = $region21
  $region20: #{eq_motion_forward.3} parent=0 // pred_region
    _
  $region21: #{eq_motion_forward.3} parent=0 // pred_fallthru
    _
  // Predicated region
  $region22: #{eq_motion_forward.3} parent=0 // pred_check
    _
  $region23: #{eq_motion_forward.3} parent=0 // pred_check_branch
    %28 = sbr.rel (0) target = $region25
  $region24: #{eq_motion_forward.3} parent=0 // pred_region
    _
  $region25: #{eq_motion_forward.3} parent=0 // pred_fallthru
    _
  // Predicated region
  $region26: #{eq_motion_forward.3} parent=0 // pred_check
    _
  $region27: #{eq_motion_forward.3} parent=0 // pred_check_branch
    %30 = sbr.rel (0) target = $region29
  $region28: #{eq_motion_forward.3} parent=0 // pred_region
    _
  $region29: #{eq_motion_forward.3} parent=0 // pred_fallthru
    _
  // Predicated region
  $region30: #{eq_motion_forward.3} parent=0 // pred_check
    _
  $region31: #{eq_motion_forward.3} parent=0 // pred_check_branch
    %32 = sbr.rel (0) target = $region33
  $region32: #{eq_motion_forward.3} parent=0 // pred_region
    _
  $region33: #{eq_motion_forward.3} parent=0 // pred_fallthru
    _
  // Predicated region
  $region34: #{eq_motion_forward.3} parent=0 // pred_check
    _
  $region35: #{eq_motion_forward.3} parent=0 // pred_check_branch
    %34 = sbr.rel (0) target = $region37
  $region36: #{eq_motion_forward.3} parent=0 // pred_region
    _
  $region37: #{eq_motion_forward.3} parent=0 // pred_fallthru
    _
  // Predicated region
  $region38: #{eq_motion_forward.3} parent=0 // pred_check
    _
  $region39: #{eq_motion_forward.3} parent=0 // pred_check_branch
    %36 = sbr.rel (0) target = $region41
  $region40: #{eq_motion_forward.3} parent=0 // pred_region
    _
  $region41: #{eq_motion_forward.3} parent=0 // pred_fallthru
    _
  // Predicated region
  $region42: #{eq_motion_forward.3} parent=0 // pred_check
    _
  $region43: #{eq_motion_forward.3} parent=0 // pred_check_branch
    %38 = sbr.rel (0) target = $region45
  $region44: #{eq_motion_forward.3} parent=0 // pred_region
    _
  $region45: #{eq_motion_forward.3} parent=0 // pred_fallthru
    _
  // Predicated region
  $region46: #{eq_motion_forward.3} parent=0 // pred_check
    _
  $region47: #{eq_motion_forward.3} parent=0 // pred_check_branch
    %40 = sbr.rel (0) target = $region49
  $region48: #{eq_motion_forward.3} parent=0 // pred_region
    _
  $region49: #{eq_motion_forward.3} parent=0 // pred_fallthru
    _
  %v42 = vld [vmem:[%s0] sm:$0xff]
  %v43 = vld [vmem:[%s0 + $0x8] sm:$0xff]
  %v44 = vld [vmem:[%s0 + $0x10] sm:$0xff]
  %v45 = vld [vmem:[%s0 + $0x18] sm:$0xff]
  %v46 = vld [vmem:[%s0 + $0x20] sm:$0xff]
  %v47 = vld [vmem:[%s0 + $0x28] sm:$0xff]
  %v48 = vld [vmem:[%s0 + $0x30] sm:$0xff]
  %v49 = vld [vmem:[%s0 + $0x38] sm:$0xff]
  %v50 = vld [vmem:[%s0 + $0x40] sm:$0xff]
  %v51 = vld [vmem:[%s0 + $0x48] sm:$0xff]
  %v52 = vld [vmem:[%s0 + $0x50] sm:$0xff]
  %v53 = vld [vmem:[%s0 + $0x58] sm:$0xff]
  %v54 = vld [vmem:[%s0 + $0x60] sm:$0xff]
  %v55 = vld [vmem:[%s0 + $0x68] sm:$0xff]
  %v56 = vld [vmem:[%s0 + $0x70] sm:$0xff]
  %v57 = vld [vmem:[%s0 + $0x78] sm:$0xff]
  %v58 = vld [vmem:[%s0 + $0x80] sm:$0xff]
  %v59 = vld [vmem:[%s0 + $0x88] sm:$0xff]
  %v60 = vld [vmem:[%s0 + $0x90] sm:$0xff]
  %v61 = vld [vmem:[%s0 + $0x98] sm:$0xff]
  %v62 = vld [vmem:[%s0 + $0xa0] sm:$0xff]
  %v63 = vld [vmem:[%s0 + $0xa8] sm:$0xff]
  %v64 = vld [vmem:[%s0 + $0xb0] sm:$0xff]
  %v65 = vld [vmem:[%s0 + $0xb8] sm:$0xff]
  %v66 = vld [vmem:[%s0 + $0xc0] sm:$0xff]
  %v67 = vld [vmem:[%s0 + $0xc8] sm:$0xff]
  %v68 = vld [vmem:[%s0 + $0xd0] sm:$0xff]
  %v69 = vld [vmem:[%s0 + $0xd8] sm:$0xff]
  %v70 = vld [vmem:[%s0 + $0xe0] sm:$0xff]
  %v71 = vld [vmem:[%s0 + $0xe8] sm:$0xff]
  %v72 = vld [vmem:[%s0 + $0xf0] sm:$0xff]
  %v73 = vld [vmem:[%s0 + $0xf8] sm:$0xff]
  %v74 = vpack.c.bf16 %v43, %v42
  %v75 = vpack.c.bf16 %v45, %v44
  %v76 = vpack.c.bf16 %v47, %v46
  %v77 = vpack.c.bf16 %v49, %v48
  %v78 = vpack.c.bf16 %v51, %v50
  %v79 = vpack.c.bf16 %v53, %v52
  %v80 = vpack.c.bf16 %v55, %v54
  %v81 = vpack.c.bf16 %v57, %v56
  %v82 = vpack.c.bf16 %v59, %v58
  %v83 = vpack.c.bf16 %v61, %v60
  %v84 = vpack.c.bf16 %v63, %v62
  %v85 = vpack.c.bf16 %v65, %v64
  %v86 = vpack.c.bf16 %v67, %v66
  %v87 = vpack.c.bf16 %v69, %v68
  %v88 = vpack.c.bf16 %v71, %v70
  %v89 = vpack.c.bf16 %v73, %v72
  %v90 = vld [vmem:[%s1] sm:$0xf]
  %v91 = vld [vmem:[%s1 + $0x4] sm:$0xf]
  %v92 = vld [vmem:[%s1 + $0x8] sm:$0xf]
  %v93 = vld [vmem:[%s1 + $0xc] sm:$0xf]
  %v94 = vld [vmem:[%s1 + $0x10] sm:$0xf]
  %v95 = vld [vmem:[%s1 + $0x14] sm:$0x1]
  %v96 = vld [vmem:[%s2] sm:$0x1]
  %v98 = vlaneseq
  %v99 = vshrl.u32 %v98, 7
  %v100 = vsub.s32 0, %v99
  %v101 = vrot.slane %v96, %v100
  %v109 = vunpack.c.l.b16 %v90
  %v110 = vunpack.c.l.b16 %v91
  %v111 = vunpack.c.l.b16 %v92
  %v112 = vunpack.c.l.b16 %v93
  %v113 = vunpack.c.l.b16 %v94
  %v114 = vunpack.c.l.b16 %v95
  %v115 = vpack.c.b16 %v110, %v109
  %v116 = vpack.c.b16 %v112, %v111
  %v117 = vpack.c.b16 %v114, %v113
  %vm120 = vcmask 343040
  %v122 = vsel %vm120, %v74, 0
  %v125 = vsel %vm120, %v75, 0
  %v128 = vsel %vm120, %v76, 0
  %v131 = vsel %vm120, %v77, 0
  %v134 = vsel %vm120, %v78, 0
  %v137 = vsel %vm120, %v79, 0
  %v140 = vsel %vm120, %v80, 0
  %v143 = vsel %vm120, %v81, 0
  %v146 = vsel %vm120, %v82, 0
  %v149 = vsel %vm120, %v83, 0
  %v152 = vsel %vm120, %v84, 0
  %v155 = vsel %vm120, %v85, 0
  %v158 = vsel %vm120, %v86, 0
  %v161 = vsel %vm120, %v87, 0
  %v164 = vsel %vm120, %v88, 0
  %v167 = vsel %vm120, %v89, 0
  %vm169 = vcmask 1044480
  %v171 = vsel %vm169, %v117, 0
  %173 = vmatprep.subr.bf16.mxu0 0
  %174 = vmatpush1.bf16.msra.mxu0 %v115
  %175 = vmatprep.subr.bf16.mxu0 0
  %176 = vmatpush1.bf16.msra.mxu0 %v116
  %177 = vmatprep.subr.bf16.mxu0 0
  %178 = vmatpush1.bf16.msra.mxu0 %v171
  %179 = vmatprep.subr.bf16.mxu0 0
  %180 = vmatpush1.bf16.msra.mxu0 0
  %181 = vmatprep.subr.bf16.mxu0 0
  %182 = vmatpush1.bf16.msra.mxu0 0
  %183 = vmatprep.subr.bf16.mxu0 0
  %184 = vmatpush1.bf16.msra.mxu0 0
  %185 = vmatprep.subr.bf16.mxu0 0
  %186 = vmatpush1.bf16.msra.mxu0 0
  %187 = vmatprep.subr.bf16.mxu0 0
  %188 = vmatpush1.bf16.msra.mxu0 0
  %189 = vmatprep.subr.bf16.mxu0 0
  %190 = vmatpush1.bf16.msra.mxu0 0
  %191 = vmatprep.subr.bf16.mxu0 0
  %192 = vmatpush1.bf16.msra.mxu0 0
  %193 = vmatprep.subr.bf16.mxu0 0
  %194 = vmatpush1.bf16.msra.mxu0 0
  %195 = vmatprep.subr.bf16.mxu0 0
  %196 = vmatpush1.bf16.msra.mxu0 0
  %197 = vmatprep.subr.bf16.mxu0 0
  %198 = vmatpush1.bf16.msra.mxu0 0
  %199 = vmatprep.subr.bf16.mxu0 0
  %200 = vmatpush1.bf16.msra.mxu0 0
  %201 = vmatprep.subr.bf16.mxu0 0
  %202 = vmatpush1.bf16.msra.mxu0 0
  %203 = vmatprep.subr.bf16.mxu0 0
  %204 = vmatpush1.bf16.msra.mxu0 0
  %205 = vmatprep.mubr.bf16.mxu0 0
  %206 = vmatmul.mubr.bf16.gmra.mrb[0].mxu0 %v122
  %v207 = vpop.f32.mrb[0].mxu0
  %v208 = vadd.f32 %v101, %v207
  %v209 = vpop.f32.mrb[0].mxu0
  %v210 = vpop.f32.mrb[0].mxu0
  %v211 = vadd.f32 %v101, %v210
  %v212 = vpop.f32.mrb[0].mxu0
  %213 = vmatprep.mubr.bf16.mxu0 0
  %214 = vmatmul.mubr.bf16.gmra.mrb[0].mxu0 %v125
  %v215 = vpop.f32.mrb[0].mxu0
  %v216 = vadd.f32 %v101, %v215
  %v217 = vpop.f32.mrb[0].mxu0
  %v218 = vpop.f32.mrb[0].mxu0
  %v219 = vadd.f32 %v101, %v218
  %v220 = vpop.f32.mrb[0].mxu0
  %221 = vmatprep.mubr.bf16.mxu0 0
  %222 = vmatmul.mubr.bf16.gmra.mrb[0].mxu0 %v128
  %v223 = vpop.f32.mrb[0].mxu0
  %v224 = vadd.f32 %v101, %v223
  %v225 = vpop.f32.mrb[0].mxu0
  %v226 = vpop.f32.mrb[0].mxu0
  %v227 = vadd.f32 %v101, %v226
  %v228 = vpop.f32.mrb[0].mxu0
  %229 = vmatprep.mubr.bf16.mxu0 0
  %230 = vmatmul.mubr.bf16.gmra.mrb[0].mxu0 %v131
  %v231 = vpop.f32.mrb[0].mxu0
  %v232 = vadd.f32 %v101, %v231
  %v233 = vpop.f32.mrb[0].mxu0
  %v234 = vpop.f32.mrb[0].mxu0
  %v235 = vadd.f32 %v101, %v234
  %v236 = vpop.f32.mrb[0].mxu0
  %237 = vmatprep.mubr.bf16.mxu0 0
  %238 = vmatmul.mubr.bf16.gmra.mrb[0].mxu0 %v134
  %v239 = vpop.f32.mrb[0].mxu0
  %v240 = vadd.f32 %v101, %v239
  %v241 = vpop.f32.mrb[0].mxu0
  %v242 = vpop.f32.mrb[0].mxu0
  %v243 = vadd.f32 %v101, %v242
  %v244 = vpop.f32.mrb[0].mxu0
  %245 = vmatprep.mubr.bf16.mxu0 0
  %246 = vmatmul.mubr.bf16.gmra.mrb[0].mxu0 %v137
  %v247 = vpop.f32.mrb[0].mxu0
  %v248 = vadd.f32 %v101, %v247
  %v249 = vpop.f32.mrb[0].mxu0
  %v250 = vpop.f32.mrb[0].mxu0
  %v251 = vadd.f32 %v101, %v250
  %v252 = vpop.f32.mrb[0].mxu0
  %253 = vmatprep.mubr.bf16.mxu0 0
  %254 = vmatmul.mubr.bf16.gmra.mrb[0].mxu0 %v140
  %v255 = vpop.f32.mrb[0].mxu0
  %v256 = vadd.f32 %v101, %v255
  %v257 = vpop.f32.mrb[0].mxu0
  %v258 = vpop.f32.mrb[0].mxu0
  %v259 = vadd.f32 %v101, %v258
  %v260 = vpop.f32.mrb[0].mxu0
  %261 = vmatprep.mubr.bf16.mxu0 0
  %262 = vmatmul.mubr.bf16.gmra.mrb[0].mxu0 %v143
  %v263 = vpop.f32.mrb[0].mxu0
  %v264 = vadd.f32 %v101, %v263
  %v265 = vpop.f32.mrb[0].mxu0
  %v266 = vpop.f32.mrb[0].mxu0
  %v267 = vadd.f32 %v101, %v266
  %v268 = vpop.f32.mrb[0].mxu0
  %269 = vmatprep.mubr.bf16.mxu0 0
  %270 = vmatmul.mubr.bf16.gmra.mrb[0].mxu0 %v146
  %v271 = vpop.f32.mrb[0].mxu0
  %v272 = vadd.f32 %v101, %v271
  %v273 = vpop.f32.mrb[0].mxu0
  %v274 = vpop.f32.mrb[0].mxu0
  %v275 = vadd.f32 %v101, %v274
  %v276 = vpop.f32.mrb[0].mxu0
  %277 = vmatprep.mubr.bf16.mxu0 0
  %278 = vmatmul.mubr.bf16.gmra.mrb[0].mxu0 %v149
  %v279 = vpop.f32.mrb[0].mxu0
  %v280 = vadd.f32 %v101, %v279
  %v281 = vpop.f32.mrb[0].mxu0
  %v282 = vpop.f32.mrb[0].mxu0
  %v283 = vadd.f32 %v101, %v282
  %v284 = vpop.f32.mrb[0].mxu0
  %285 = vmatprep.mubr.bf16.mxu0 0
  %286 = vmatmul.mubr.bf16.gmra.mrb[0].mxu0 %v152
  %v287 = vpop.f32.mrb[0].mxu0
  %v288 = vadd.f32 %v101, %v287
  %v289 = vpop.f32.mrb[0].mxu0
  %v290 = vpop.f32.mrb[0].mxu0
  %v291 = vadd.f32 %v101, %v290
  %v292 = vpop.f32.mrb[0].mxu0
  %293 = vmatprep.mubr.bf16.mxu0 0
  %294 = vmatmul.mubr.bf16.gmra.mrb[0].mxu0 %v155
  %v295 = vpop.f32.mrb[0].mxu0
  %v296 = vadd.f32 %v101, %v295
  %v297 = vpop.f32.mrb[0].mxu0
  %v298 = vpop.f32.mrb[0].mxu0
  %v299 = vadd.f32 %v101, %v298
  %v300 = vpop.f32.mrb[0].mxu0
  %301 = vmatprep.mubr.bf16.mxu0 0
  %302 = vmatmul.mubr.bf16.gmra.mrb[0].mxu0 %v158
  %v303 = vpop.f32.mrb[0].mxu0
  %v304 = vadd.f32 %v101, %v303
  %v305 = vpop.f32.mrb[0].mxu0
  %v306 = vpop.f32.mrb[0].mxu0
  %v307 = vadd.f32 %v101, %v306
  %v308 = vpop.f32.mrb[0].mxu0
  %309 = vmatprep.mubr.bf16.mxu0 0
  %310 = vmatmul.mubr.bf16.gmra.mrb[0].mxu0 %v161
  %v311 = vpop.f32.mrb[0].mxu0
  %v312 = vadd.f32 %v101, %v311
  %v313 = vpop.f32.mrb[0].mxu0
  %v314 = vpop.f32.mrb[0].mxu0
  %v315 = vadd.f32 %v101, %v314
  %v316 = vpop.f32.mrb[0].mxu0
  %317 = vmatprep.mubr.bf16.mxu0 0
  %318 = vmatmul.mubr.bf16.gmra.mrb[0].mxu0 %v164
  %v319 = vpop.f32.mrb[0].mxu0
  %v320 = vadd.f32 %v101, %v319
  %v321 = vpop.f32.mrb[0].mxu0
  %v322 = vpop.f32.mrb[0].mxu0
  %v323 = vadd.f32 %v101, %v322
  %v324 = vpop.f32.mrb[0].mxu0
  %325 = vmatprep.mubr.bf16.mxu0 0
  %326 = vmatmul.mubr.bf16.gmra.mrb[0].mxu0 %v167
  %v327 = vpop.f32.mrb[0].mxu0
  %v328 = vadd.f32 %v101, %v327
  %v329 = vpop.f32.mrb[0].mxu0
  %v330 = vpop.f32.mrb[0].mxu0
  %v331 = vadd.f32 %v101, %v330
  %v332 = vpop.f32.mrb[0].mxu0
  %333 = vdwg.mxu0
  %v334 = vmax.f32 %v208, 0.0
  %v335 = vmax.f32 %v211, 0.0
  %v336 = vmax.f32 %v216, 0.0
  %v337 = vmax.f32 %v219, 0.0
  %v338 = vmax.f32 %v224, 0.0
  %v339 = vmax.f32 %v227, 0.0
  %v340 = vmax.f32 %v232, 0.0
  %v341 = vmax.f32 %v235, 0.0
  %v342 = vmax.f32 %v240, 0.0
  %v343 = vmax.f32 %v243, 0.0
  %v344 = vmax.f32 %v248, 0.0
  %v345 = vmax.f32 %v251, 0.0
  %v346 = vmax.f32 %v256, 0.0
  %v347 = vmax.f32 %v259, 0.0
  %v348 = vmax.f32 %v264, 0.0
  %v349 = vmax.f32 %v267, 0.0
  %v350 = vmax.f32 %v272, 0.0
  %v351 = vmax.f32 %v275, 0.0
  %v352 = vmax.f32 %v280, 0.0
  %v353 = vmax.f32 %v283, 0.0
  %v354 = vmax.f32 %v288, 0.0
  %v355 = vmax.f32 %v291, 0.0
  %v356 = vmax.f32 %v296, 0.0
  %v357 = vmax.f32 %v299, 0.0
  %v358 = vmax.f32 %v304, 0.0
  %v359 = vmax.f32 %v307, 0.0
  %v360 = vmax.f32 %v312, 0.0
  %v361 = vmax.f32 %v315, 0.0
  %v362 = vmax.f32 %v320, 0.0
  %v363 = vmax.f32 %v323, 0.0
  %v364 = vmax.f32 %v328, 0.0
  %v365 = vmax.f32 %v331, 0.0
  %v366 = vld [vmem:[%s3] sm:$0xff]
  %v367 = vld [vmem:[%s3 + $0x8] sm:$0xff]
  %v368 = vld [vmem:[%s3 + $0x10] sm:$0xff]
  %v369 = vld [vmem:[%s3 + $0x18] sm:$0xff]
  %v370 = vld [vmem:[%s3 + $0x20] sm:$0xff]
  %v371 = vld [vmem:[%s3 + $0x28] sm:$0xff]
  %v372 = vld [vmem:[%s3 + $0x30] sm:$0xff]
  %v373 = vld [vmem:[%s3 + $0x38] sm:$0xff]
  %v374 = vld [vmem:[%s3 + $0x40] sm:$0xff]
  %v375 = vld [vmem:[%s3 + $0x48] sm:$0xff]
  %v376 = vld [vmem:[%s3 + $0x50] sm:$0xff]
  %v377 = vld [vmem:[%s3 + $0x58] sm:$0xff]
  %v378 = vld [vmem:[%s3 + $0x60] sm:$0xff]
  %v379 = vld [vmem:[%s3 + $0x68] sm:$0xff]
  %v380 = vld [vmem:[%s3 + $0x70] sm:$0xff]
  %v381 = vld [vmem:[%s3 + $0x78] sm:$0xff]
  %v382 = vld [vmem:[%s3 + $0x80] sm:$0xff]
  %v383 = vld [vmem:[%s3 + $0x88] sm:$0xff]
  %v384 = vld [vmem:[%s3 + $0x90] sm:$0xff]
  %v385 = vld [vmem:[%s3 + $0x98] sm:$0xff]
  %v386 = vld [vmem:[%s3 + $0xa0] sm:$0xff]
  %v387 = vld [vmem:[%s3 + $0xa8] sm:$0xff]
  %v388 = vld [vmem:[%s3 + $0xb0] sm:$0xff]
  %v389 = vld [vmem:[%s3 + $0xb8] sm:$0xff]
  %v390 = vld [vmem:[%s3 + $0xc0] sm:$0xff]
  %v391 = vld [vmem:[%s3 + $0xc8] sm:$0xff]
  %v392 = vld [vmem:[%s3 + $0xd0] sm:$0xff]
  %v393 = vld [vmem:[%s3 + $0xd8] sm:$0xff]
  %v394 = vld [vmem:[%s3 + $0xe0] sm:$0xff]
  %v395 = vld [vmem:[%s3 + $0xe8] sm:$0xff]
  %v396 = vld [vmem:[%s3 + $0xf0] sm:$0xff]
  %v397 = vld [vmem:[%s3 + $0xf8] sm:$0xff]
  %398 = vmatprep.subr.mxu0 0.0
  %399 = vmatpush1.msra.mxu0 %v334
  %400 = vmatprep.subr.mxu0 0.0
  %401 = vmatpush1.msra.mxu0 %v335
  %402 = vmatprep.subr.mxu0 0.0
  %403 = vmatpush1.msra.mxu0 %v336
  %404 = vmatprep.subr.mxu0 0.0
  %405 = vmatpush1.msra.mxu0 %v337
  %406 = vmatprep.subr.mxu0 0.0
  %407 = vmatpush1.msra.mxu0 %v338
  %408 = vmatprep.subr.mxu0 0.0
  %409 = vmatpush1.msra.mxu0 %v339
  %410 = vmatprep.subr.mxu0 0.0
  %411 = vmatpush1.msra.mxu0 %v340
  %412 = vmatprep.subr.mxu0 0.0
  %413 = vmatpush1.msra.mxu0 %v341
  %414 = vmatprep.subr.mxu0 0.0
  %415 = vmatpush1.msra.mxu0 %v342
  %416 = vmatprep.subr.mxu0 0.0
  %417 = vmatpush1.msra.mxu0 %v343
  %418 = vmatprep.subr.mxu0 0.0
  %419 = vmatpush1.msra.mxu0 %v344
  %420 = vmatprep.subr.mxu0 0.0
  %421 = vmatpush1.msra.mxu0 %v345
  %422 = vmatprep.subr.mxu0 0.0
  %423 = vmatpush1.msra.mxu0 %v346
  %424 = vmatprep.subr.mxu0 0.0
  %425 = vmatpush1.msra.mxu0 %v347
  %426 = vmatprep.subr.mxu0 0.0
  %427 = vmatpush1.msra.mxu0 %v348
  %428 = vmatprep.subr.mxu0 0.0
  %429 = vmatpush1.msra.mxu0 %v349
  %430 = vmatprep.subr.mxu0 0.0
  %431 = vmatpush1.msra.mxu0 %v350
  %432 = vmatprep.subr.mxu0 0.0
  %433 = vmatpush1.msra.mxu0 %v351
  %434 = vmatprep.subr.mxu0 0.0
  %435 = vmatpush1.msra.mxu0 %v352
  %436 = vmatprep.subr.mxu0 0.0
  %437 = vmatpush1.msra.mxu0 %v353
  %438 = vmatprep.subr.mxu0 0.0
  %439 = vmatpush1.msra.mxu0 %v354
  %440 = vmatprep.subr.mxu0 0.0
  %441 = vmatpush1.msra.mxu0 %v355
  %442 = vmatprep.subr.mxu0 0.0
  %443 = vmatpush1.msra.mxu0 %v356
  %444 = vmatprep.subr.mxu0 0.0
  %445 = vmatpush1.msra.mxu0 %v357
  %446 = vmatprep.subr.mxu0 0.0
  %447 = vmatpush1.msra.mxu0 %v358
  %448 = vmatprep.subr.mxu0 0.0
  %449 = vmatpush1.msra.mxu0 %v359
  %450 = vmatprep.subr.mxu0 0.0
  %451 = vmatpush1.msra.mxu0 %v360
  %452 = vmatprep.subr.mxu0 0.0
  %453 = vmatpush1.msra.mxu0 %v361
  %454 = vmatprep.subr.mxu0 0.0
  %455 = vmatpush1.msra.mxu0 %v362
  %456 = vmatprep.subr.mxu0 0.0
  %457 = vmatpush1.msra.mxu0 %v363
  %458 = vmatprep.subr.mxu0 0.0
  %459 = vmatpush1.msra.mxu0 %v364
  %460 = vmatprep.subr.mxu0 0.0
  %461 = vmatpush1.msra.mxu0 %v365
  %462 = vmatprep.mubr.f32.mxu0 %v367
  %463 = vmatmul.mubr.f32.gmra.mrb[0].mxu0 %v366
  %v464 = vpop.f32.mrb[0].mxu0
  %v465 = vadd.f32 0.0, %v464
  %v466 = vpop.f32.mrb[0].mxu0
  %467 = vmatprep.mubr.f32.mxu0 %v369
  %468 = vmatmul.mubr.f32.gmra.mrb[0].mxu0 %v368
  %v469 = vpop.f32.mrb[0].mxu0
  %v470 = vadd.f32 0.0, %v469
  %v471 = vpop.f32.mrb[0].mxu0
  %472 = vmatprep.mubr.f32.mxu0 %v371
  %473 = vmatmul.mubr.f32.gmra.mrb[0].mxu0 %v370
  %v474 = vpop.f32.mrb[0].mxu0
  %v475 = vadd.f32 0.0, %v474
  %v476 = vpop.f32.mrb[0].mxu0
  %477 = vmatprep.mubr.f32.mxu0 %v373
  %478 = vmatmul.mubr.f32.gmra.mrb[0].mxu0 %v372
  %v479 = vpop.f32.mrb[0].mxu0
  %v480 = vadd.f32 0.0, %v479
  %v481 = vpop.f32.mrb[0].mxu0
  %482 = vmatprep.mubr.f32.mxu0 %v375
  %483 = vmatmul.mubr.f32.gmra.mrb[0].mxu0 %v374
  %v484 = vpop.f32.mrb[0].mxu0
  %v485 = vadd.f32 0.0, %v484
  %v486 = vpop.f32.mrb[0].mxu0
  %487 = vmatprep.mubr.f32.mxu0 %v377
  %488 = vmatmul.mubr.f32.gmra.mrb[0].mxu0 %v376
  %v489 = vpop.f32.mrb[0].mxu0
  %v490 = vadd.f32 0.0, %v489
  %v491 = vpop.f32.mrb[0].mxu0
  %492 = vmatprep.mubr.f32.mxu0 %v379
  %493 = vmatmul.mubr.f32.gmra.mrb[0].mxu0 %v378
  %v494 = vpop.f32.mrb[0].mxu0
  %v495 = vadd.f32 0.0, %v494
  %v496 = vpop.f32.mrb[0].mxu0
  %497 = vmatprep.mubr.f32.mxu0 %v381
  %498 = vmatmul.mubr.f32.gmra.mrb[0].mxu0 %v380
  %v499 = vpop.f32.mrb[0].mxu0
  %v500 = vadd.f32 0.0, %v499
  %v501 = vpop.f32.mrb[0].mxu0
  %502 = vmatprep.mubr.f32.mxu0 %v383
  %503 = vmatmul.mubr.f32.gmra.mrb[0].mxu0 %v382
  %v504 = vpop.f32.mrb[0].mxu0
  %v505 = vadd.f32 0.0, %v504
  %v506 = vpop.f32.mrb[0].mxu0
  %507 = vmatprep.mubr.f32.mxu0 %v385
  %508 = vmatmul.mubr.f32.gmra.mrb[0].mxu0 %v384
  %v509 = vpop.f32.mrb[0].mxu0
  %v510 = vadd.f32 0.0, %v509
  %v511 = vpop.f32.mrb[0].mxu0
  %512 = vmatprep.mubr.f32.mxu0 %v387
  %513 = vmatmul.mubr.f32.gmra.mrb[0].mxu0 %v386
  %v514 = vpop.f32.mrb[0].mxu0
  %v515 = vadd.f32 0.0, %v514
  %v516 = vpop.f32.mrb[0].mxu0
  %517 = vmatprep.mubr.f32.mxu0 %v389
  %518 = vmatmul.mubr.f32.gmra.mrb[0].mxu0 %v388
  %v519 = vpop.f32.mrb[0].mxu0
  %v520 = vadd.f32 0.0, %v519
  %v521 = vpop.f32.mrb[0].mxu0
  %522 = vmatprep.mubr.f32.mxu0 %v391
  %523 = vmatmul.mubr.f32.gmra.mrb[0].mxu0 %v390
  %v524 = vpop.f32.mrb[0].mxu0
  %v525 = vadd.f32 0.0, %v524
  %v526 = vpop.f32.mrb[0].mxu0
  %527 = vmatprep.mubr.f32.mxu0 %v393
  %528 = vmatmul.mubr.f32.gmra.mrb[0].mxu0 %v392
  %v529 = vpop.f32.mrb[0].mxu0
  %v530 = vadd.f32 0.0, %v529
  %v531 = vpop.f32.mrb[0].mxu0
  %532 = vmatprep.mubr.f32.mxu0 %v395
  %533 = vmatmul.mubr.f32.gmra.mrb[0].mxu0 %v394
  %v534 = vpop.f32.mrb[0].mxu0
  %v535 = vadd.f32 0.0, %v534
  %v536 = vpop.f32.mrb[0].mxu0
  %537 = vmatprep.mubr.f32.mxu0 %v397
  %538 = vmatmul.mubr.f32.gmra.mrb[0].mxu0 %v396
  %v539 = vpop.f32.mrb[0].mxu0
  %v540 = vadd.f32 0.0, %v539
  %v541 = vpop.f32.mrb[0].mxu0
  %542 = vdwg.mxu0
  %v543 = vld [vmem:[%s4] sm:$0xff]
  %v544 = vld [vmem:[%s4 + $0x8] sm:$0xff]
  %v545 = vld [vmem:[%s4 + $0x10] sm:$0xff]
  %v546 = vld [vmem:[%s4 + $0x18] sm:$0xff]
  %v547 = vld [vmem:[%s4 + $0x20] sm:$0xff]
  %v548 = vld [vmem:[%s4 + $0x28] sm:$0xff]
  %v549 = vld [vmem:[%s4 + $0x30] sm:$0xff]
  %v550 = vld [vmem:[%s4 + $0x38] sm:$0xff]
  %v551 = vld [vmem:[%s4 + $0x40] sm:$0xff]
  %v552 = vld [vmem:[%s4 + $0x48] sm:$0xff]
  %v553 = vld [vmem:[%s4 + $0x50] sm:$0xff]
  %v554 = vld [vmem:[%s4 + $0x58] sm:$0xff]
  %v555 = vld [vmem:[%s4 + $0x60] sm:$0xff]
  %v556 = vld [vmem:[%s4 + $0x68] sm:$0xff]
  %v557 = vld [vmem:[%s4 + $0x70] sm:$0xff]
  %v558 = vld [vmem:[%s4 + $0x78] sm:$0xff]
  %v559 = vld [vmem:[%s4 + $0x80] sm:$0xff]
  %v560 = vld [vmem:[%s4 + $0x88] sm:$0xff]
  %v561 = vld [vmem:[%s4 + $0x90] sm:$0xff]
  %v562 = vld [vmem:[%s4 + $0x98] sm:$0xff]
  %v563 = vld [vmem:[%s4 + $0xa0] sm:$0xff]
  %v564 = vld [vmem:[%s4 + $0xa8] sm:$0xff]
  %v565 = vld [vmem:[%s4 + $0xb0] sm:$0xff]
  %v566 = vld [vmem:[%s4 + $0xb8] sm:$0xff]
  %v567 = vld [vmem:[%s4 + $0xc0] sm:$0xff]
  %v568 = vld [vmem:[%s4 + $0xc8] sm:$0xff]
  %v569 = vld [vmem:[%s4 + $0xd0] sm:$0xff]
  %v570 = vld [vmem:[%s4 + $0xd8] sm:$0xff]
  %v571 = vld [vmem:[%s4 + $0xe0] sm:$0xff]
  %v572 = vld [vmem:[%s4 + $0xe8] sm:$0xff]
  %v573 = vld [vmem:[%s4 + $0xf0] sm:$0xff]
  %v574 = vld [vmem:[%s4 + $0xf8] sm:$0xff]
  %575 = vmatprep.subr.mxu0 0.0
  %576 = vmatpush1.msra.mxu0 %v334
  %577 = vmatprep.subr.mxu0 0.0
  %578 = vmatpush1.msra.mxu0 %v335
  %579 = vmatprep.subr.mxu0 0.0
  %580 = vmatpush1.msra.mxu0 %v336
  %581 = vmatprep.subr.mxu0 0.0
  %582 = vmatpush1.msra.mxu0 %v337
  %583 = vmatprep.subr.mxu0 0.0
  %584 = vmatpush1.msra.mxu0 %v338
  %585 = vmatprep.subr.mxu0 0.0
  %586 = vmatpush1.msra.mxu0 %v339
  %587 = vmatprep.subr.mxu0 0.0
  %588 = vmatpush1.msra.mxu0 %v340
  %589 = vmatprep.subr.mxu0 0.0
  %590 = vmatpush1.msra.mxu0 %v341
  %591 = vmatprep.subr.mxu0 0.0
  %592 = vmatpush1.msra.mxu0 %v342
  %593 = vmatprep.subr.mxu0 0.0
  %594 = vmatpush1.msra.mxu0 %v343
  %595 = vmatprep.subr.mxu0 0.0
  %596 = vmatpush1.msra.mxu0 %v344
  %597 = vmatprep.subr.mxu0 0.0
  %598 = vmatpush1.msra.mxu0 %v345
  %599 = vmatprep.subr.mxu0 0.0
  %600 = vmatpush1.msra.mxu0 %v346
  %601 = vmatprep.subr.mxu0 0.0
  %602 = vmatpush1.msra.mxu0 %v347
  %603 = vmatprep.subr.mxu0 0.0
  %604 = vmatpush1.msra.mxu0 %v348
  %605 = vmatprep.subr.mxu0 0.0
  %606 = vmatpush1.msra.mxu0 %v349
  %607 = vmatprep.subr.mxu0 0.0
  %608 = vmatpush1.msra.mxu0 %v350
  %609 = vmatprep.subr.mxu0 0.0
  %610 = vmatpush1.msra.mxu0 %v351
  %611 = vmatprep.subr.mxu0 0.0
  %612 = vmatpush1.msra.mxu0 %v352
  %613 = vmatprep.subr.mxu0 0.0
  %614 = vmatpush1.msra.mxu0 %v353
  %615 = vmatprep.subr.mxu0 0.0
  %616 = vmatpush1.msra.mxu0 %v354
  %617 = vmatprep.subr.mxu0 0.0
  %618 = vmatpush1.msra.mxu0 %v355
  %619 = vmatprep.subr.mxu0 0.0
  %620 = vmatpush1.msra.mxu0 %v356
  %621 = vmatprep.subr.mxu0 0.0
  %622 = vmatpush1.msra.mxu0 %v357
  %623 = vmatprep.subr.mxu0 0.0
  %624 = vmatpush1.msra.mxu0 %v358
  %625 = vmatprep.subr.mxu0 0.0
  %626 = vmatpush1.msra.mxu0 %v359
  %627 = vmatprep.subr.mxu0 0.0
  %628 = vmatpush1.msra.mxu0 %v360
  %629 = vmatprep.subr.mxu0 0.0
  %630 = vmatpush1.msra.mxu0 %v361
  %631 = vmatprep.subr.mxu0 0.0
  %632 = vmatpush1.msra.mxu0 %v362
  %633 = vmatprep.subr.mxu0 0.0
  %634 = vmatpush1.msra.mxu0 %v363
  %635 = vmatprep.subr.mxu0 0.0
  %636 = vmatpush1.msra.mxu0 %v364
  %637 = vmatprep.subr.mxu0 0.0
  %638 = vmatpush1.msra.mxu0 %v365
  %639 = vmatprep.mubr.f32.mxu0 %v544
  %640 = vmatmul.mubr.f32.gmra.mrb[0].mxu0 %v543
  %v641 = vpop.f32.mrb[0].mxu0
  %v642 = vadd.f32 0.0, %v641
  %v643 = vpop.f32.mrb[0].mxu0
  %644 = vmatprep.mubr.f32.mxu0 %v546
  %645 = vmatmul.mubr.f32.gmra.mrb[0].mxu0 %v545
  %v646 = vpop.f32.mrb[0].mxu0
  %v647 = vadd.f32 0.0, %v646
  %v648 = vpop.f32.mrb[0].mxu0
  %649 = vmatprep.mubr.f32.mxu0 %v548
  %650 = vmatmul.mubr.f32.gmra.mrb[0].mxu0 %v547
  %v651 = vpop.f32.mrb[0].mxu0
  %v652 = vadd.f32 0.0, %v651
  %v653 = vpop.f32.mrb[0].mxu0
  %654 = vmatprep.mubr.f32.mxu0 %v550
  %655 = vmatmul.mubr.f32.gmra.mrb[0].mxu0 %v549
  %v656 = vpop.f32.mrb[0].mxu0
  %v657 = vadd.f32 0.0, %v656
  %v658 = vpop.f32.mrb[0].mxu0
  %659 = vmatprep.mubr.f32.mxu0 %v552
  %660 = vmatmul.mubr.f32.gmra.mrb[0].mxu0 %v551
  %v661 = vpop.f32.mrb[0].mxu0
  %v662 = vadd.f32 0.0, %v661
  %v663 = vpop.f32.mrb[0].mxu0
  %664 = vmatprep.mubr.f32.mxu0 %v554
  %665 = vmatmul.mubr.f32.gmra.mrb[0].mxu0 %v553
  %v666 = vpop.f32.mrb[0].mxu0
  %v667 = vadd.f32 0.0, %v666
  %v668 = vpop.f32.mrb[0].mxu0
  %669 = vmatprep.mubr.f32.mxu0 %v556
  %670 = vmatmul.mubr.f32.gmra.mrb[0].mxu0 %v555
  %v671 = vpop.f32.mrb[0].mxu0
  %v672 = vadd.f32 0.0, %v671
  %v673 = vpop.f32.mrb[0].mxu0
  %674 = vmatprep.mubr.f32.mxu0 %v558
  %675 = vmatmul.mubr.f32.gmra.mrb[0].mxu0 %v557
  %v676 = vpop.f32.mrb[0].mxu0
  %v677 = vadd.f32 0.0, %v676
  %v678 = vpop.f32.mrb[0].mxu0
  %679 = vmatprep.mubr.f32.mxu0 %v560
  %680 = vmatmul.mubr.f32.gmra.mrb[0].mxu0 %v559
  %v681 = vpop.f32.mrb[0].mxu0
  %v682 = vadd.f32 0.0, %v681
  %v683 = vpop.f32.mrb[0].mxu0
  %684 = vmatprep.mubr.f32.mxu0 %v562
  %685 = vmatmul.mubr.f32.gmra.mrb[0].mxu0 %v561
  %v686 = vpop.f32.mrb[0].mxu0
  %v687 = vadd.f32 0.0, %v686
  %v688 = vpop.f32.mrb[0].mxu0
  %689 = vmatprep.mubr.f32.mxu0 %v564
  %690 = vmatmul.mubr.f32.gmra.mrb[0].mxu0 %v563
  %v691 = vpop.f32.mrb[0].mxu0
  %v692 = vadd.f32 0.0, %v691
  %v693 = vpop.f32.mrb[0].mxu0
  %694 = vmatprep.mubr.f32.mxu0 %v566
  %695 = vmatmul.mubr.f32.gmra.mrb[0].mxu0 %v565
  %v696 = vpop.f32.mrb[0].mxu0
  %v697 = vadd.f32 0.0, %v696
  %v698 = vpop.f32.mrb[0].mxu0
  %699 = vmatprep.mubr.f32.mxu0 %v568
  %700 = vmatmul.mubr.f32.gmra.mrb[0].mxu0 %v567
  %v701 = vpop.f32.mrb[0].mxu0
  %v702 = vadd.f32 0.0, %v701
  %v703 = vpop.f32.mrb[0].mxu0
  %704 = vmatprep.mubr.f32.mxu0 %v570
  %705 = vmatmul.mubr.f32.gmra.mrb[0].mxu0 %v569
  %v706 = vpop.f32.mrb[0].mxu0
  %v707 = vadd.f32 0.0, %v706
  %v708 = vpop.f32.mrb[0].mxu0
  %709 = vmatprep.mubr.f32.mxu0 %v572
  %710 = vmatmul.mubr.f32.gmra.mrb[0].mxu0 %v571
  %v711 = vpop.f32.mrb[0].mxu0
  %v712 = vadd.f32 0.0, %v711
  %v713 = vpop.f32.mrb[0].mxu0
  %714 = vmatprep.mubr.f32.mxu0 %v574
  %715 = vmatmul.mubr.f32.gmra.mrb[0].mxu0 %v573
  %v716 = vpop.f32.mrb[0].mxu0
  %v717 = vadd.f32 0.0, %v716
  %v718 = vpop.f32.mrb[0].mxu0
  %719 = vdwg.mxu0
  %v720 = vld [vmem:[%s5] sm:$0xff]
  %v721 = vld [vmem:[%s5 + $0x8] sm:$0xff]
  %v722 = vld [vmem:[%s5 + $0x10] sm:$0xff]
  %v723 = vld [vmem:[%s5 + $0x18] sm:$0xff]
  %v724 = vld [vmem:[%s5 + $0x20] sm:$0xff]
  %v725 = vld [vmem:[%s5 + $0x28] sm:$0xff]
  %v726 = vld [vmem:[%s5 + $0x30] sm:$0xff]
  %v727 = vld [vmem:[%s5 + $0x38] sm:$0xff]
  %v728 = vld [vmem:[%s5 + $0x40] sm:$0xff]
  %v729 = vld [vmem:[%s5 + $0x48] sm:$0xff]
  %v730 = vld [vmem:[%s5 + $0x50] sm:$0xff]
  %v731 = vld [vmem:[%s5 + $0x58] sm:$0xff]
  %v732 = vld [vmem:[%s5 + $0x60] sm:$0xff]
  %v733 = vld [vmem:[%s5 + $0x68] sm:$0xff]
  %v734 = vld [vmem:[%s5 + $0x70] sm:$0xff]
  %v735 = vld [vmem:[%s5 + $0x78] sm:$0xff]
  %v736 = vld [vmem:[%s5 + $0x80] sm:$0xff]
  %v737 = vld [vmem:[%s5 + $0x88] sm:$0xff]
  %v738 = vld [vmem:[%s5 + $0x90] sm:$0xff]
  %v739 = vld [vmem:[%s5 + $0x98] sm:$0xff]
  %v740 = vld [vmem:[%s5 + $0xa0] sm:$0xff]
  %v741 = vld [vmem:[%s5 + $0xa8] sm:$0xff]
  %v742 = vld [vmem:[%s5 + $0xb0] sm:$0xff]
  %v743 = vld [vmem:[%s5 + $0xb8] sm:$0xff]
  %v744 = vld [vmem:[%s5 + $0xc0] sm:$0xff]
  %v745 = vld [vmem:[%s5 + $0xc8] sm:$0xff]
  %v746 = vld [vmem:[%s5 + $0xd0] sm:$0xff]
  %v747 = vld [vmem:[%s5 + $0xd8] sm:$0xff]
  %v748 = vld [vmem:[%s5 + $0xe0] sm:$0xff]
  %v749 = vld [vmem:[%s5 + $0xe8] sm:$0xff]
  %v750 = vld [vmem:[%s5 + $0xf0] sm:$0xff]
  %v751 = vld [vmem:[%s5 + $0xf8] sm:$0xff]
  %752 = vmatprep.subr.mxu0 0.0
  %753 = vmatpush1.msra.mxu0 %v334
  %754 = vmatprep.subr.mxu0 0.0
  %755 = vmatpush1.msra.mxu0 %v335
  %756 = vmatprep.subr.mxu0 0.0
  %757 = vmatpush1.msra.mxu0 %v336
  %758 = vmatprep.subr.mxu0 0.0
  %759 = vmatpush1.msra.mxu0 %v337
  %760 = vmatprep.subr.mxu0 0.0
  %761 = vmatpush1.msra.mxu0 %v338
  %762 = vmatprep.subr.mxu0 0.0
  %763 = vmatpush1.msra.mxu0 %v339
  %764 = vmatprep.subr.mxu0 0.0
  %765 = vmatpush1.msra.mxu0 %v340
  %766 = vmatprep.subr.mxu0 0.0
  %767 = vmatpush1.msra.mxu0 %v341
  %768 = vmatprep.subr.mxu0 0.0
  %769 = vmatpush1.msra.mxu0 %v342
  %770 = vmatprep.subr.mxu0 0.0
  %771 = vmatpush1.msra.mxu0 %v343
  %772 = vmatprep.subr.mxu0 0.0
  %773 = vmatpush1.msra.mxu0 %v344
  %774 = vmatprep.subr.mxu0 0.0
  %775 = vmatpush1.msra.mxu0 %v345
  %776 = vmatprep.subr.mxu0 0.0
  %777 = vmatpush1.msra.mxu0 %v346
  %778 = vmatprep.subr.mxu0 0.0
  %779 = vmatpush1.msra.mxu0 %v347
  %780 = vmatprep.subr.mxu0 0.0
  %781 = vmatpush1.msra.mxu0 %v348
  %782 = vmatprep.subr.mxu0 0.0
  %783 = vmatpush1.msra.mxu0 %v349
  %784 = vmatprep.subr.mxu0 0.0
  %785 = vmatpush1.msra.mxu0 %v350
  %786 = vmatprep.subr.mxu0 0.0
  %787 = vmatpush1.msra.mxu0 %v351
  %788 = vmatprep.subr.mxu0 0.0
  %789 = vmatpush1.msra.mxu0 %v352
  %790 = vmatprep.subr.mxu0 0.0
  %791 = vmatpush1.msra.mxu0 %v353
  %792 = vmatprep.subr.mxu0 0.0
  %793 = vmatpush1.msra.mxu0 %v354
  %794 = vmatprep.subr.mxu0 0.0
  %795 = vmatpush1.msra.mxu0 %v355
  %796 = vmatprep.subr.mxu0 0.0
  %797 = vmatpush1.msra.mxu0 %v356
  %798 = vmatprep.subr.mxu0 0.0
  %799 = vmatpush1.msra.mxu0 %v357
  %800 = vmatprep.subr.mxu0 0.0
  %801 = vmatpush1.msra.mxu0 %v358
  %802 = vmatprep.subr.mxu0 0.0
  %803 = vmatpush1.msra.mxu0 %v359
  %804 = vmatprep.subr.mxu0 0.0
  %805 = vmatpush1.msra.mxu0 %v360
  %806 = vmatprep.subr.mxu0 0.0
  %807 = vmatpush1.msra.mxu0 %v361
  %808 = vmatprep.subr.mxu0 0.0
  %809 = vmatpush1.msra.mxu0 %v362
  %810 = vmatprep.subr.mxu0 0.0
  %811 = vmatpush1.msra.mxu0 %v363
  %812 = vmatprep.subr.mxu0 0.0
  %813 = vmatpush1.msra.mxu0 %v364
  %814 = vmatprep.subr.mxu0 0.0
  %815 = vmatpush1.msra.mxu0 %v365
  %816 = vmatprep.mubr.f32.mxu0 %v721
  %817 = vmatmul.mubr.f32.gmra.mrb[0].mxu0 %v720
  %v818 = vpop.f32.mrb[0].mxu0
  %v819 = vadd.f32 0.0, %v818
  %v820 = vpop.f32.mrb[0].mxu0
  %821 = vmatprep.mubr.f32.mxu0 %v723
  %822 = vmatmul.mubr.f32.gmra.mrb[0].mxu0 %v722
  %v823 = vpop.f32.mrb[0].mxu0
  %v824 = vadd.f32 0.0, %v823
  %v825 = vpop.f32.mrb[0].mxu0
  %826 = vmatprep.mubr.f32.mxu0 %v725
  %827 = vmatmul.mubr.f32.gmra.mrb[0].mxu0 %v724
  %v828 = vpop.f32.mrb[0].mxu0
  %v829 = vadd.f32 0.0, %v828
  %v830 = vpop.f32.mrb[0].mxu0
  %831 = vmatprep.mubr.f32.mxu0 %v727
  %832 = vmatmul.mubr.f32.gmra.mrb[0].mxu0 %v726
  %v833 = vpop.f32.mrb[0].mxu0
  %v834 = vadd.f32 0.0, %v833
  %v835 = vpop.f32.mrb[0].mxu0
  %836 = vmatprep.mubr.f32.mxu0 %v729
  %837 = vmatmul.mubr.f32.gmra.mrb[0].mxu0 %v728
  %v838 = vpop.f32.mrb[0].mxu0
  %v839 = vadd.f32 0.0, %v838
  %v840 = vpop.f32.mrb[0].mxu0
  %841 = vmatprep.mubr.f32.mxu0 %v731
  %842 = vmatmul.mubr.f32.gmra.mrb[0].mxu0 %v730
  %v843 = vpop.f32.mrb[0].mxu0
  %v844 = vadd.f32 0.0, %v843
  %v845 = vpop.f32.mrb[0].mxu0
  %846 = vmatprep.mubr.f32.mxu0 %v733
  %847 = vmatmul.mubr.f32.gmra.mrb[0].mxu0 %v732
  %v848 = vpop.f32.mrb[0].mxu0
  %v849 = vadd.f32 0.0, %v848
  %v850 = vpop.f32.mrb[0].mxu0
  %851 = vmatprep.mubr.f32.mxu0 %v735
  %852 = vmatmul.mubr.f32.gmra.mrb[0].mxu0 %v734
  %v853 = vpop.f32.mrb[0].mxu0
  %v854 = vadd.f32 0.0, %v853
  %v855 = vpop.f32.mrb[0].mxu0
  %856 = vmatprep.mubr.f32.mxu0 %v737
  %857 = vmatmul.mubr.f32.gmra.mrb[0].mxu0 %v736
  %v858 = vpop.f32.mrb[0].mxu0
  %v859 = vadd.f32 0.0, %v858
  %v860 = vpop.f32.mrb[0].mxu0
  %861 = vmatprep.mubr.f32.mxu0 %v739
  %862 = vmatmul.mubr.f32.gmra.mrb[0].mxu0 %v738
  %v863 = vpop.f32.mrb[0].mxu0
  %v864 = vadd.f32 0.0, %v863
  %v865 = vpop.f32.mrb[0].mxu0
  %866 = vmatprep.mubr.f32.mxu0 %v741
  %867 = vmatmul.mubr.f32.gmra.mrb[0].mxu0 %v740
  %v868 = vpop.f32.mrb[0].mxu0
  %v869 = vadd.f32 0.0, %v868
  %v870 = vpop.f32.mrb[0].mxu0
  %871 = vmatprep.mubr.f32.mxu0 %v743
  %872 = vmatmul.mubr.f32.gmra.mrb[0].mxu0 %v742
  %v873 = vpop.f32.mrb[0].mxu0
  %v874 = vadd.f32 0.0, %v873
  %v875 = vpop.f32.mrb[0].mxu0
  %876 = vmatprep.mubr.f32.mxu0 %v745
  %877 = vmatmul.mubr.f32.gmra.mrb[0].mxu0 %v744
  %v878 = vpop.f32.mrb[0].mxu0
  %v879 = vadd.f32 0.0, %v878
  %v880 = vpop.f32.mrb[0].mxu0
  %881 = vmatprep.mubr.f32.mxu0 %v747
  %882 = vmatmul.mubr.f32.gmra.mrb[0].mxu0 %v746
  %v883 = vpop.f32.mrb[0].mxu0
  %v884 = vadd.f32 0.0, %v883
  %v885 = vpop.f32.mrb[0].mxu0
  %886 = vmatprep.mubr.f32.mxu0 %v749
  %887 = vmatmul.mubr.f32.gmra.mrb[0].mxu0 %v748
  %v888 = vpop.f32.mrb[0].mxu0
  %v889 = vadd.f32 0.0, %v888
  %v890 = vpop.f32.mrb[0].mxu0
  %891 = vmatprep.mubr.f32.mxu0 %v751
  %892 = vmatmul.mubr.f32.gmra.mrb[0].mxu0 %v750
  %v893 = vpop.f32.mrb[0].mxu0
  %v894 = vadd.f32 0.0, %v893
  %v895 = vpop.f32.mrb[0].mxu0
  %896 = vdwg.mxu0
  %v897 = vmax.f32 %v465, %v642
  %v898 = vmax.f32 %v470, %v647
  %v899 = vmax.f32 %v475, %v652
  %v900 = vmax.f32 %v480, %v657
  %v901 = vmax.f32 %v485, %v662
  %v902 = vmax.f32 %v490, %v667
  %v903 = vmax.f32 %v495, %v672
  %v904 = vmax.f32 %v500, %v677
  %v905 = vmax.f32 %v505, %v682
  %v906 = vmax.f32 %v510, %v687
  %v907 = vmax.f32 %v515, %v692
  %v908 = vmax.f32 %v520, %v697
  %v909 = vmax.f32 %v525, %v702
  %v910 = vmax.f32 %v530, %v707
  %v911 = vmax.f32 %v535, %v712
  %v912 = vmax.f32 %v540, %v717
  %v913 = vmax.f32 %v897, %v819
  %v914 = vmax.f32 %v898, %v824
  %v915 = vmax.f32 %v899, %v829
  %v916 = vmax.f32 %v900, %v834
  %v917 = vmax.f32 %v901, %v839
  %v918 = vmax.f32 %v902, %v844
  %v919 = vmax.f32 %v903, %v849
  %v920 = vmax.f32 %v904, %v854
  %v921 = vmax.f32 %v905, %v859
  %v922 = vmax.f32 %v906, %v864
  %v923 = vmax.f32 %v907, %v869
  %v924 = vmax.f32 %v908, %v874
  %v925 = vmax.f32 %v909, %v879
  %v926 = vmax.f32 %v910, %v884
  %v927 = vmax.f32 %v911, %v889
  %v928 = vmax.f32 %v912, %v894
  %v929 = vld [vmem:[%s6] sm:$0xf]
  %v930 = vld [vmem:[%s6 + $0x4] sm:$0xf]
  %v931 = vld [vmem:[%s6 + $0x8] sm:$0xf]
  %v932 = vld [vmem:[%s6 + $0xc] sm:$0xf]
  %v933 = vld [vmem:[%s6 + $0x10] sm:$0xf]
  %v934 = vld [vmem:[%s6 + $0x14] sm:$0xf]
  %v935 = vld [vmem:[%s6 + $0x18] sm:$0xf]
  %v936 = vld [vmem:[%s6 + $0x1c] sm:$0xf]
  %v937 = vld [vmem:[%s6 + $0x20] sm:$0xf]
  %v938 = vld [vmem:[%s6 + $0x24] sm:$0xf]
  %v939 = vld [vmem:[%s6 + $0x28] sm:$0xf]
  %v940 = vld [vmem:[%s6 + $0x2c] sm:$0xf]
  %v941 = vld [vmem:[%s6 + $0x30] sm:$0xf]
  %v942 = vld [vmem:[%s6 + $0x34] sm:$0xf]
  %v943 = vld [vmem:[%s6 + $0x38] sm:$0xf]
  %v944 = vld [vmem:[%s6 + $0x3c] sm:$0xf]
  %v945 = vld [vmem:[%s7] sm:$0xf]
  %v946 = vld [vmem:[%s7 + $0x4] sm:$0xf]
  %v947 = vld [vmem:[%s7 + $0x8] sm:$0xf]
  %v948 = vld [vmem:[%s7 + $0xc] sm:$0xf]
  %v949 = vld [vmem:[%s7 + $0x10] sm:$0xf]
  %v950 = vld [vmem:[%s7 + $0x14] sm:$0xf]
  %v951 = vld [vmem:[%s7 + $0x18] sm:$0xf]
  %v952 = vld [vmem:[%s7 + $0x1c] sm:$0xf]
  %v953 = vld [vmem:[%s7 + $0x20] sm:$0xf]
  %v954 = vld [vmem:[%s7 + $0x24] sm:$0xf]
  %v955 = vld [vmem:[%s7 + $0x28] sm:$0xf]
  %v956 = vld [vmem:[%s7 + $0x2c] sm:$0xf]
  %v957 = vld [vmem:[%s7 + $0x30] sm:$0xf]
  %v958 = vld [vmem:[%s7 + $0x34] sm:$0xf]
  %v959 = vld [vmem:[%s7 + $0x38] sm:$0xf]
  %v960 = vld [vmem:[%s7 + $0x3c] sm:$0xf]
  %v961 = vld [vmem:[%s8] sm:$0xf]
  %v962 = vld [vmem:[%s8 + $0x4] sm:$0xf]
  %v963 = vld [vmem:[%s8 + $0x8] sm:$0xf]
  %v964 = vld [vmem:[%s8 + $0xc] sm:$0xf]
  %v965 = vld [vmem:[%s8 + $0x10] sm:$0xf]
  %v966 = vld [vmem:[%s8 + $0x14] sm:$0xf]
  %v967 = vld [vmem:[%s8 + $0x18] sm:$0xf]
  %v968 = vld [vmem:[%s8 + $0x1c] sm:$0xf]
  %v969 = vld [vmem:[%s8 + $0x20] sm:$0xf]
  %v970 = vld [vmem:[%s8 + $0x24] sm:$0xf]
  %v971 = vld [vmem:[%s8 + $0x28] sm:$0xf]
  %v972 = vld [vmem:[%s8 + $0x2c] sm:$0xf]
  %v973 = vld [vmem:[%s8 + $0x30] sm:$0xf]
  %v974 = vld [vmem:[%s8 + $0x34] sm:$0xf]
  %v975 = vld [vmem:[%s8 + $0x38] sm:$0xf]
  %v976 = vld [vmem:[%s8 + $0x3c] sm:$0xf]
  %v977 = vld [vmem:[%s8 + $0x40] sm:$0xf]
  %v978 = vld [vmem:[%s8 + $0x44] sm:$0xf]
  %v979 = vld [vmem:[%s8 + $0x48] sm:$0xf]
  %v980 = vld [vmem:[%s8 + $0x4c] sm:$0xf]
  %v981 = vld [vmem:[%s8 + $0x50] sm:$0xf]
  %v982 = vld [vmem:[%s8 + $0x54] sm:$0xf]
  %v983 = vld [vmem:[%s8 + $0x58] sm:$0xf]
  %v984 = vld [vmem:[%s8 + $0x5c] sm:$0xf]
  %v985 = vld [vmem:[%s9] sm:$0x1]
  %v986 = vpack.c.bf16 %v914, %v913
  %v987 = vpack.c.bf16 %v916, %v915
  %v988 = vpack.c.bf16 %v918, %v917
  %v989 = vpack.c.bf16 %v920, %v919
  %v990 = vpack.c.bf16 %v922, %v921
  %v991 = vpack.c.bf16 %v924, %v923
  %v992 = vpack.c.bf16 %v926, %v925
  %v993 = vpack.c.bf16 %v928, %v927
  %v1010 = vunpack.c.l.b16 %v929
  %v1011 = vunpack.c.l.b16 %v930
  %v1012 = vunpack.c.l.b16 %v931
  %v1013 = vunpack.c.l.b16 %v932
  %v1014 = vunpack.c.l.b16 %v933
  %v1015 = vunpack.c.l.b16 %v934
  %v1016 = vunpack.c.l.b16 %v935
  %v1017 = vunpack.c.l.b16 %v936
  %v1018 = vunpack.c.l.b16 %v937
  %v1019 = vunpack.c.l.b16 %v938
  %v1020 = vunpack.c.l.b16 %v939
  %v1021 = vunpack.c.l.b16 %v940
  %v1022 = vunpack.c.l.b16 %v941
  %v1023 = vunpack.c.l.b16 %v942
  %v1024 = vunpack.c.l.b16 %v943
  %v1025 = vunpack.c.l.b16 %v944
  %v1026 = vpack.c.b16 %v1011, %v1010
  %v1027 = vpack.c.b16 %v1013, %v1012
  %v1028 = vpack.c.b16 %v1015, %v1014
  %v1029 = vpack.c.b16 %v1017, %v1016
  %v1030 = vpack.c.b16 %v1019, %v1018
  %v1031 = vpack.c.b16 %v1021, %v1020
  %v1032 = vpack.c.b16 %v1023, %v1022
  %v1033 = vpack.c.b16 %v1025, %v1024
  %1042 = vmatprep.subr.bf16.mxu0 0
  %1043 = vmatpush1.bf16.msra.mxu0 %v986
  %1044 = vmatprep.subr.bf16.mxu0 0
  %1045 = vmatpush1.bf16.msra.mxu0 %v987
  %1046 = vmatprep.subr.bf16.mxu0 0
  %1047 = vmatpush1.bf16.msra.mxu0 %v988
  %1048 = vmatprep.subr.bf16.mxu0 0
  %1049 = vmatpush1.bf16.msra.mxu0 %v989
  %1050 = vmatprep.subr.bf16.mxu0 0
  %1051 = vmatpush1.bf16.msra.mxu0 %v990
  %1052 = vmatprep.subr.bf16.mxu0 0
  %1053 = vmatpush1.bf16.msra.mxu0 %v991
  %1054 = vmatprep.subr.bf16.mxu0 0
  %1055 = vmatpush1.bf16.msra.mxu0 %v992
  %1056 = vmatprep.subr.bf16.mxu0 0
  %1057 = vmatpush1.bf16.msra.mxu0 %v993
  %1058 = vmatprep.subr.bf16.mxu0 0
  %1059 = vmatpush1.bf16.msra.mxu0 0
  %1060 = vmatprep.subr.bf16.mxu0 0
  %1061 = vmatpush1.bf16.msra.mxu0 0
  %1062 = vmatprep.subr.bf16.mxu0 0
  %1063 = vmatpush1.bf16.msra.mxu0 0
  %1064 = vmatprep.subr.bf16.mxu0 0
  %1065 = vmatpush1.bf16.msra.mxu0 0
  %1066 = vmatprep.subr.bf16.mxu0 0
  %1067 = vmatpush1.bf16.msra.mxu0 0
  %1068 = vmatprep.subr.bf16.mxu0 0
  %1069 = vmatpush1.bf16.msra.mxu0 0
  %1070 = vmatprep.subr.bf16.mxu0 0
  %1071 = vmatpush1.bf16.msra.mxu0 0
  %1072 = vmatprep.subr.bf16.mxu0 0
  %1073 = vmatpush1.bf16.msra.mxu0 0
  %1074 = vmatprep.mubr.bf16.mxu0 0
  %1075 = vmatmul.mubr.bf16.gmra.mrb[0].mxu0 %v1026
  %v1076 = vpop.f32.mrb[0].mxu0
  %v1077 = vadd.f32 0.0, %v1076
  %v1078 = vpop.f32.mrb[0].mxu0
  %v1079 = vpop.f32.mrb[0].mxu0
  %v1080 = vadd.f32 0.0, %v1079
  %v1081 = vpop.f32.mrb[0].mxu0
  %1082 = vmatprep.mubr.bf16.mxu0 0
  %1083 = vmatmul.mubr.bf16.gmra.mrb[0].mxu0 %v1027
  %v1084 = vpop.f32.mrb[0].mxu0
  %v1085 = vadd.f32 0.0, %v1084
  %v1086 = vpop.f32.mrb[0].mxu0
  %v1087 = vpop.f32.mrb[0].mxu0
  %v1088 = vadd.f32 0.0, %v1087
  %v1089 = vpop.f32.mrb[0].mxu0
  %1090 = vmatprep.mubr.bf16.mxu0 0
  %1091 = vmatmul.mubr.bf16.gmra.mrb[0].mxu0 %v1028
  %v1092 = vpop.f32.mrb[0].mxu0
  %v1093 = vadd.f32 0.0, %v1092
  %v1094 = vpop.f32.mrb[0].mxu0
  %v1095 = vpop.f32.mrb[0].mxu0
  %v1096 = vadd.f32 0.0, %v1095
  %v1097 = vpop.f32.mrb[0].mxu0
  %1098 = vmatprep.mubr.bf16.mxu0 0
  %1099 = vmatmul.mubr.bf16.gmra.mrb[0].mxu0 %v1029
  %v1100 = vpop.f32.mrb[0].mxu0
  %v1101 = vadd.f32 0.0, %v1100
  %v1102 = vpop.f32.mrb[0].mxu0
  %v1103 = vpop.f32.mrb[0].mxu0
  %v1104 = vadd.f32 0.0, %v1103
  %v1105 = vpop.f32.mrb[0].mxu0
  %1106 = vmatprep.mubr.bf16.mxu0 0
  %1107 = vmatmul.mubr.bf16.gmra.mrb[0].mxu0 %v1030
  %v1108 = vpop.f32.mrb[0].mxu0
  %v1109 = vadd.f32 0.0, %v1108
  %v1110 = vpop.f32.mrb[0].mxu0
  %v1111 = vpop.f32.mrb[0].mxu0
  %v1112 = vadd.f32 0.0, %v1111
  %v1113 = vpop.f32.mrb[0].mxu0
  %1114 = vmatprep.mubr.bf16.mxu0 0
  %1115 = vmatmul.mubr.bf16.gmra.mrb[0].mxu0 %v1031
  %v1116 = vpop.f32.mrb[0].mxu0
  %v1117 = vadd.f32 0.0, %v1116
  %v1118 = vpop.f32.mrb[0].mxu0
  %v1119 = vpop.f32.mrb[0].mxu0
  %v1120 = vadd.f32 0.0, %v1119
  %v1121 = vpop.f32.mrb[0].mxu0
  %1122 = vmatprep.mubr.bf16.mxu0 0
  %1123 = vmatmul.mubr.bf16.gmra.mrb[0].mxu0 %v1032
  %v1124 = vpop.f32.mrb[0].mxu0
  %v1125 = vadd.f32 0.0, %v1124
  %v1126 = vpop.f32.mrb[0].mxu0
  %v1127 = vpop.f32.mrb[0].mxu0
  %v1128 = vadd.f32 0.0, %v1127
  %v1129 = vpop.f32.mrb[0].mxu0
  %1130 = vmatprep.mubr.bf16.mxu0 0
  %1131 = vmatmul.mubr.bf16.gmra.mrb[0].mxu0 %v1033
  %v1132 = vpop.f32.mrb[0].mxu0
  %v1133 = vadd.f32 0.0, %v1132
  %v1134 = vpop.f32.mrb[0].mxu0
  %v1135 = vpop.f32.mrb[0].mxu0
  %v1136 = vadd.f32 0.0, %v1135
  %v1137 = vpop.f32.mrb[0].mxu0
  %1138 = vdwg.mxu0
  %v1139 = vpack.c.bf16 %v1080, %v1077
  %v1140 = vpack.c.bf16 %v1088, %v1085
  %v1141 = vpack.c.bf16 %v1096, %v1093
  %v1142 = vpack.c.bf16 %v1104, %v1101
  %v1143 = vpack.c.bf16 %v1112, %v1109
  %v1144 = vpack.c.bf16 %v1120, %v1117
  %v1145 = vpack.c.bf16 %v1128, %v1125
  %v1146 = vpack.c.bf16 %v1136, %v1133
  %v1163 = vunpack.c.l.b16 %v945
  %v1164 = vunpack.c.l.b16 %v946
  %v1165 = vunpack.c.l.b16 %v947
  %v1166 = vunpack.c.l.b16 %v948
  %v1167 = vunpack.c.l.b16 %v949
  %v1168 = vunpack.c.l.b16 %v950
  %v1169 = vunpack.c.l.b16 %v951
  %v1170 = vunpack.c.l.b16 %v952
  %v1171 = vunpack.c.l.b16 %v953
  %v1172 = vunpack.c.l.b16 %v954
  %v1173 = vunpack.c.l.b16 %v955
  %v1174 = vunpack.c.l.b16 %v956
  %v1175 = vunpack.c.l.b16 %v957
  %v1176 = vunpack.c.l.b16 %v958
  %v1177 = vunpack.c.l.b16 %v959
  %v1178 = vunpack.c.l.b16 %v960
  %v1179 = vpack.c.b16 %v1164, %v1163
  %v1180 = vpack.c.b16 %v1166, %v1165
  %v1181 = vpack.c.b16 %v1168, %v1167
  %v1182 = vpack.c.b16 %v1170, %v1169
  %v1183 = vpack.c.b16 %v1172, %v1171
  %v1184 = vpack.c.b16 %v1174, %v1173
  %v1185 = vpack.c.b16 %v1176, %v1175
  %v1186 = vpack.c.b16 %v1178, %v1177
  %1195 = vmatprep.subr.bf16.mxu0 0
  %1196 = vmatpush1.bf16.msra.mxu0 %v986
  %1197 = vmatprep.subr.bf16.mxu0 0
  %1198 = vmatpush1.bf16.msra.mxu0 %v987
  %1199 = vmatprep.subr.bf16.mxu0 0
  %1200 = vmatpush1.bf16.msra.mxu0 %v988
  %1201 = vmatprep.subr.bf16.mxu0 0
  %1202 = vmatpush1.bf16.msra.mxu0 %v989
  %1203 = vmatprep.subr.bf16.mxu0 0
  %1204 = vmatpush1.bf16.msra.mxu0 %v990
  %1205 = vmatprep.subr.bf16.mxu0 0
  %1206 = vmatpush1.bf16.msra.mxu0 %v991
  %1207 = vmatprep.subr.bf16.mxu0 0
  %1208 = vmatpush1.bf16.msra.mxu0 %v992
  %1209 = vmatprep.subr.bf16.mxu0 0
  %1210 = vmatpush1.bf16.msra.mxu0 %v993
  %1211 = vmatprep.subr.bf16.mxu0 0
  %1212 = vmatpush1.bf16.msra.mxu0 0
  %1213 = vmatprep.subr.bf16.mxu0 0
  %1214 = vmatpush1.bf16.msra.mxu0 0
  %1215 = vmatprep.subr.bf16.mxu0 0
  %1216 = vmatpush1.bf16.msra.mxu0 0
  %1217 = vmatprep.subr.bf16.mxu0 0
  %1218 = vmatpush1.bf16.msra.mxu0 0
  %1219 = vmatprep.subr.bf16.mxu0 0
  %1220 = vmatpush1.bf16.msra.mxu0 0
  %1221 = vmatprep.subr.bf16.mxu0 0
  %1222 = vmatpush1.bf16.msra.mxu0 0
  %1223 = vmatprep.subr.bf16.mxu0 0
  %1224 = vmatpush1.bf16.msra.mxu0 0
  %1225 = vmatprep.subr.bf16.mxu0 0
  %1226 = vmatpush1.bf16.msra.mxu0 0
  %1227 = vmatprep.mubr.bf16.mxu0 0
  %1228 = vmatmul.mubr.bf16.gmra.mrb[0].mxu0 %v1179
  %v1229 = vpop.f32.mrb[0].mxu0
  %v1230 = vadd.f32 0.0, %v1229
  %v1231 = vpop.f32.mrb[0].mxu0
  %v1232 = vpop.f32.mrb[0].mxu0
  %v1233 = vadd.f32 0.0, %v1232
  %v1234 = vpop.f32.mrb[0].mxu0
  %1235 = vmatprep.mubr.bf16.mxu0 0
  %1236 = vmatmul.mubr.bf16.gmra.mrb[0].mxu0 %v1180
  %v1237 = vpop.f32.mrb[0].mxu0
  %v1238 = vadd.f32 0.0, %v1237
  %v1239 = vpop.f32.mrb[0].mxu0
  %v1240 = vpop.f32.mrb[0].mxu0
  %v1241 = vadd.f32 0.0, %v1240
  %v1242 = vpop.f32.mrb[0].mxu0
  %1243 = vmatprep.mubr.bf16.mxu0 0
  %1244 = vmatmul.mubr.bf16.gmra.mrb[0].mxu0 %v1181
  %v1245 = vpop.f32.mrb[0].mxu0
  %v1246 = vadd.f32 0.0, %v1245
  %v1247 = vpop.f32.mrb[0].mxu0
  %v1248 = vpop.f32.mrb[0].mxu0
  %v1249 = vadd.f32 0.0, %v1248
  %v1250 = vpop.f32.mrb[0].mxu0
  %1251 = vmatprep.mubr.bf16.mxu0 0
  %1252 = vmatmul.mubr.bf16.gmra.mrb[0].mxu0 %v1182
  %v1253 = vpop.f32.mrb[0].mxu0
  %v1254 = vadd.f32 0.0, %v1253
  %v1255 = vpop.f32.mrb[0].mxu0
  %v1256 = vpop.f32.mrb[0].mxu0
  %v1257 = vadd.f32 0.0, %v1256
  %v1258 = vpop.f32.mrb[0].mxu0
  %1259 = vmatprep.mubr.bf16.mxu0 0
  %1260 = vmatmul.mubr.bf16.gmra.mrb[0].mxu0 %v1183
  %v1261 = vpop.f32.mrb[0].mxu0
  %v1262 = vadd.f32 0.0, %v1261
  %v1263 = vpop.f32.mrb[0].mxu0
  %v1264 = vpop.f32.mrb[0].mxu0
  %v1265 = vadd.f32 0.0, %v1264
  %v1266 = vpop.f32.mrb[0].mxu0
  %1267 = vmatprep.mubr.bf16.mxu0 0
  %1268 = vmatmul.mubr.bf16.gmra.mrb[0].mxu0 %v1184
  %v1269 = vpop.f32.mrb[0].mxu0
  %v1270 = vadd.f32 0.0, %v1269
  %v1271 = vpop.f32.mrb[0].mxu0
  %v1272 = vpop.f32.mrb[0].mxu0
  %v1273 = vadd.f32 0.0, %v1272
  %v1274 = vpop.f32.mrb[0].mxu0
  %1275 = vmatprep.mubr.bf16.mxu0 0
  %1276 = vmatmul.mubr.bf16.gmra.mrb[0].mxu0 %v1185
  %v1277 = vpop.f32.mrb[0].mxu0
  %v1278 = vadd.f32 0.0, %v1277
  %v1279 = vpop.f32.mrb[0].mxu0
  %v1280 = vpop.f32.mrb[0].mxu0
  %v1281 = vadd.f32 0.0, %v1280
  %v1282 = vpop.f32.mrb[0].mxu0
  %1283 = vmatprep.mubr.bf16.mxu0 0
  %1284 = vmatmul.mubr.bf16.gmra.mrb[0].mxu0 %v1186
  %v1285 = vpop.f32.mrb[0].mxu0
  %v1286 = vadd.f32 0.0, %v1285
  %v1287 = vpop.f32.mrb[0].mxu0
  %v1288 = vpop.f32.mrb[0].mxu0
  %v1289 = vadd.f32 0.0, %v1288
  %v1290 = vpop.f32.mrb[0].mxu0
  %1291 = vdwg.mxu0
  %v1292 = vpack.c.bf16 %v1233, %v1230
  %v1293 = vpack.c.bf16 %v1241, %v1238
  %v1294 = vpack.c.bf16 %v1249, %v1246
  %v1295 = vpack.c.bf16 %v1257, %v1254
  %v1296 = vpack.c.bf16 %v1265, %v1262
  %v1297 = vpack.c.bf16 %v1273, %v1270
  %v1298 = vpack.c.bf16 %v1281, %v1278
  %v1299 = vpack.c.bf16 %v1289, %v1286
  %v1308 = vunpack.c.l.b16 %v969
  %v1309 = vunpack.c.l.b16 %v970
  %v1310 = vunpack.c.l.b16 %v971
  %v1311 = vunpack.c.l.b16 %v972
  %v1312 = vunpack.c.l.b16 %v973
  %v1313 = vunpack.c.l.b16 %v974
  %v1314 = vunpack.c.l.b16 %v975
  %v1315 = vunpack.c.l.b16 %v976
  %v1316 = vpack.c.b16 %v1309, %v1308
  %v1317 = vpack.c.b16 %v1311, %v1310
  %v1318 = vpack.c.b16 %v1313, %v1312
  %v1319 = vpack.c.b16 %v1315, %v1314
  %vm1324 = vcmask 523264
  %v1326 = vsel %vm1324, %v986, 0
  %v1329 = vsel %vm1324, %v987, 0
  %v1332 = vsel %vm1324, %v988, 0
  %v1335 = vsel %vm1324, %v989, 0
  %v1338 = vsel %vm1324, %v990, 0
  %v1341 = vsel %vm1324, %v991, 0
  %v1344 = vsel %vm1324, %v992, 0
  %v1347 = vsel %vm1324, %v993, 0
  %1349 = vmatprep.subr.bf16.mxu0 0
  %1350 = vmatpush1.bf16.msra.mxu0 %v1316
  %1351 = vmatprep.subr.bf16.mxu0 0
  %1352 = vmatpush1.bf16.msra.mxu0 %v1317
  %1353 = vmatprep.subr.bf16.mxu0 0
  %1354 = vmatpush1.bf16.msra.mxu0 %v1318
  %1355 = vmatprep.subr.bf16.mxu0 0
  %1356 = vmatpush1.bf16.msra.mxu0 %v1319
  %1357 = vmatprep.subr.bf16.mxu0 0
  %1358 = vmatpush1.bf16.msra.mxu0 0
  %1359 = vmatprep.subr.bf16.mxu0 0
  %1360 = vmatpush1.bf16.msra.mxu0 0
  %1361 = vmatprep.subr.bf16.mxu0 0
  %1362 = vmatpush1.bf16.msra.mxu0 0
  %1363 = vmatprep.subr.bf16.mxu0 0
  %1364 = vmatpush1.bf16.msra.mxu0 0
  %1365 = vmatprep.subr.bf16.mxu0 0
  %1366 = vmatpush1.bf16.msra.mxu0 0
  %1367 = vmatprep.subr.bf16.mxu0 0
  %1368 = vmatpush1.bf16.msra.mxu0 0
  %1369 = vmatprep.subr.bf16.mxu0 0
  %1370 = vmatpush1.bf16.msra.mxu0 0
  %1371 = vmatprep.subr.bf16.mxu0 0
  %1372 = vmatpush1.bf16.msra.mxu0 0
  %1373 = vmatprep.subr.bf16.mxu0 0
  %1374 = vmatpush1.bf16.msra.mxu0 0
  %1375 = vmatprep.subr.bf16.mxu0 0
  %1376 = vmatpush1.bf16.msra.mxu0 0
  %1377 = vmatprep.subr.bf16.mxu0 0
  %1378 = vmatpush1.bf16.msra.mxu0 0
  %1379 = vmatprep.subr.bf16.mxu0 0
  %1380 = vmatpush1.bf16.msra.mxu0 0
  %1381 = vmatprep.mubr.bf16.mxu0 0
  %1382 = vmatmul.mubr.bf16.gmra.mrb[0].mxu0 %v1326
  %v1383 = vpop.f32.mrb[0].mxu0
  %v1384 = vadd.f32 0.0, %v1383
  %v1385 = vpop.f32.mrb[0].mxu0
  %v1386 = vpop.f32.mrb[0].mxu0
  %v1387 = vadd.f32 0.0, %v1386
  %v1388 = vpop.f32.mrb[0].mxu0
  %1389 = vmatprep.mubr.bf16.mxu0 0
  %1390 = vmatmul.mubr.bf16.gmra.mrb[0].mxu0 %v1329
  %v1391 = vpop.f32.mrb[0].mxu0
  %v1392 = vadd.f32 0.0, %v1391
  %v1393 = vpop.f32.mrb[0].mxu0
  %v1394 = vpop.f32.mrb[0].mxu0
  %v1395 = vadd.f32 0.0, %v1394
  %v1396 = vpop.f32.mrb[0].mxu0
  %1397 = vmatprep.mubr.bf16.mxu0 0
  %1398 = vmatmul.mubr.bf16.gmra.mrb[0].mxu0 %v1332
  %v1399 = vpop.f32.mrb[0].mxu0
  %v1400 = vadd.f32 0.0, %v1399
  %v1401 = vpop.f32.mrb[0].mxu0
  %v1402 = vpop.f32.mrb[0].mxu0
  %v1403 = vadd.f32 0.0, %v1402
  %v1404 = vpop.f32.mrb[0].mxu0
  %1405 = vmatprep.mubr.bf16.mxu0 0
  %1406 = vmatmul.mubr.bf16.gmra.mrb[0].mxu0 %v1335
  %v1407 = vpop.f32.mrb[0].mxu0
  %v1408 = vadd.f32 0.0, %v1407
  %v1409 = vpop.f32.mrb[0].mxu0
  %v1410 = vpop.f32.mrb[0].mxu0
  %v1411 = vadd.f32 0.0, %v1410
  %v1412 = vpop.f32.mrb[0].mxu0
  %1413 = vmatprep.mubr.bf16.mxu0 0
  %1414 = vmatmul.mubr.bf16.gmra.mrb[0].mxu0 %v1338
  %v1415 = vpop.f32.mrb[0].mxu0
  %v1416 = vadd.f32 0.0, %v1415
  %v1417 = vpop.f32.mrb[0].mxu0
  %v1418 = vpop.f32.mrb[0].mxu0
  %v1419 = vadd.f32 0.0, %v1418
  %v1420 = vpop.f32.mrb[0].mxu0
  %1421 = vmatprep.mubr.bf16.mxu0 0
  %1422 = vmatmul.mubr.bf16.gmra.mrb[0].mxu0 %v1341
  %v1423 = vpop.f32.mrb[0].mxu0
  %v1424 = vadd.f32 0.0, %v1423
  %v1425 = vpop.f32.mrb[0].mxu0
  %v1426 = vpop.f32.mrb[0].mxu0
  %v1427 = vadd.f32 0.0, %v1426
  %v1428 = vpop.f32.mrb[0].mxu0
  %1429 = vmatprep.mubr.bf16.mxu0 0
  %1430 = vmatmul.mubr.bf16.gmra.mrb[0].mxu0 %v1344
  %v1431 = vpop.f32.mrb[0].mxu0
  %v1432 = vadd.f32 0.0, %v1431
  %v1433 = vpop.f32.mrb[0].mxu0
  %v1434 = vpop.f32.mrb[0].mxu0
  %v1435 = vadd.f32 0.0, %v1434
  %v1436 = vpop.f32.mrb[0].mxu0
  %1437 = vmatprep.mubr.bf16.mxu0 0
  %1438 = vmatmul.mubr.bf16.gmra.mrb[0].mxu0 %v1347
  %v1439 = vpop.f32.mrb[0].mxu0
  %v1440 = vadd.f32 0.0, %v1439
  %v1441 = vpop.f32.mrb[0].mxu0
  %v1442 = vpop.f32.mrb[0].mxu0
  %v1443 = vadd.f32 0.0, %v1442
  %v1444 = vpop.f32.mrb[0].mxu0
  %1445 = vdwg.mxu0
  %v1454 = vunpack.c.l.b16 %v961
  %v1455 = vunpack.c.l.b16 %v962
  %v1456 = vunpack.c.l.b16 %v963
  %v1457 = vunpack.c.l.b16 %v964
  %v1458 = vunpack.c.l.b16 %v965
  %v1459 = vunpack.c.l.b16 %v966
  %v1460 = vunpack.c.l.b16 %v967
  %v1461 = vunpack.c.l.b16 %v968
  %v1462 = vpack.c.b16 %v1455, %v1454
  %v1463 = vpack.c.b16 %v1457, %v1456
  %v1464 = vpack.c.b16 %v1459, %v1458
  %v1465 = vpack.c.b16 %v1461, %v1460
  %v1471 = vsel %vm1324, %v1139, 0
  %v1474 = vsel %vm1324, %v1140, 0
  %v1477 = vsel %vm1324, %v1141, 0
  %v1480 = vsel %vm1324, %v1142, 0
  %v1483 = vsel %vm1324, %v1143, 0
  %v1486 = vsel %vm1324, %v1144, 0
  %v1489 = vsel %vm1324, %v1145, 0
  %v1492 = vsel %vm1324, %v1146, 0
  %1494 = vmatprep.subr.bf16.mxu0 0
  %1495 = vmatpush1.bf16.msra.mxu0 %v1462
  %1496 = vmatprep.subr.bf16.mxu0 0
  %1497 = vmatpush1.bf16.msra.mxu0 %v1463
  %1498 = vmatprep.subr.bf16.mxu0 0
  %1499 = vmatpush1.bf16.msra.mxu0 %v1464
  %1500 = vmatprep.subr.bf16.mxu0 0
  %1501 = vmatpush1.bf16.msra.mxu0 %v1465
  %1502 = vmatprep.subr.bf16.mxu0 0
  %1503 = vmatpush1.bf16.msra.mxu0 0
  %1504 = vmatprep.subr.bf16.mxu0 0
  %1505 = vmatpush1.bf16.msra.mxu0 0
  %1506 = vmatprep.subr.bf16.mxu0 0
  %1507 = vmatpush1.bf16.msra.mxu0 0
  %1508 = vmatprep.subr.bf16.mxu0 0
  %1509 = vmatpush1.bf16.msra.mxu0 0
  %1510 = vmatprep.subr.bf16.mxu0 0
  %1511 = vmatpush1.bf16.msra.mxu0 0
  %1512 = vmatprep.subr.bf16.mxu0 0
  %1513 = vmatpush1.bf16.msra.mxu0 0
  %1514 = vmatprep.subr.bf16.mxu0 0
  %1515 = vmatpush1.bf16.msra.mxu0 0
  %1516 = vmatprep.subr.bf16.mxu0 0
  %1517 = vmatpush1.bf16.msra.mxu0 0
  %1518 = vmatprep.subr.bf16.mxu0 0
  %1519 = vmatpush1.bf16.msra.mxu0 0
  %1520 = vmatprep.subr.bf16.mxu0 0
  %1521 = vmatpush1.bf16.msra.mxu0 0
  %1522 = vmatprep.subr.bf16.mxu0 0
  %1523 = vmatpush1.bf16.msra.mxu0 0
  %1524 = vmatprep.subr.bf16.mxu0 0
  %1525 = vmatpush1.bf16.msra.mxu0 0
  %1526 = vmatprep.mubr.bf16.mxu0 0
  %1527 = vmatmul.mubr.bf16.gmra.mrb[0].mxu0 %v1471
  %v1528 = vpop.f32.mrb[0].mxu0
  %v1529 = vadd.f32 %v1384, %v1528
  %v1530 = vpop.f32.mrb[0].mxu0
  %v1531 = vpop.f32.mrb[0].mxu0
  %v1532 = vadd.f32 %v1387, %v1531
  %v1533 = vpop.f32.mrb[0].mxu0
  %1534 = vmatprep.mubr.bf16.mxu0 0
  %1535 = vmatmul.mubr.bf16.gmra.mrb[0].mxu0 %v1474
  %v1536 = vpop.f32.mrb[0].mxu0
  %v1537 = vadd.f32 %v1392, %v1536
  %v1538 = vpop.f32.mrb[0].mxu0
  %v1539 = vpop.f32.mrb[0].mxu0
  %v1540 = vadd.f32 %v1395, %v1539
  %v1541 = vpop.f32.mrb[0].mxu0
  %1542 = vmatprep.mubr.bf16.mxu0 0
  %1543 = vmatmul.mubr.bf16.gmra.mrb[0].mxu0 %v1477
  %v1544 = vpop.f32.mrb[0].mxu0
  %v1545 = vadd.f32 %v1400, %v1544
  %v1546 = vpop.f32.mrb[0].mxu0
  %v1547 = vpop.f32.mrb[0].mxu0
  %v1548 = vadd.f32 %v1403, %v1547
  %v1549 = vpop.f32.mrb[0].mxu0
  %1550 = vmatprep.mubr.bf16.mxu0 0
  %1551 = vmatmul.mubr.bf16.gmra.mrb[0].mxu0 %v1480
  %v1552 = vpop.f32.mrb[0].mxu0
  %v1553 = vadd.f32 %v1408, %v1552
  %v1554 = vpop.f32.mrb[0].mxu0
  %v1555 = vpop.f32.mrb[0].mxu0
  %v1556 = vadd.f32 %v1411, %v1555
  %v1557 = vpop.f32.mrb[0].mxu0
  %1558 = vmatprep.mubr.bf16.mxu0 0
  %1559 = vmatmul.mubr.bf16.gmra.mrb[0].mxu0 %v1483
  %v1560 = vpop.f32.mrb[0].mxu0
  %v1561 = vadd.f32 %v1416, %v1560
  %v1562 = vpop.f32.mrb[0].mxu0
  %v1563 = vpop.f32.mrb[0].mxu0
  %v1564 = vadd.f32 %v1419, %v1563
  %v1565 = vpop.f32.mrb[0].mxu0
  %1566 = vmatprep.mubr.bf16.mxu0 0
  %1567 = vmatmul.mubr.bf16.gmra.mrb[0].mxu0 %v1486
  %v1568 = vpop.f32.mrb[0].mxu0
  %v1569 = vadd.f32 %v1424, %v1568
  %v1570 = vpop.f32.mrb[0].mxu0
  %v1571 = vpop.f32.mrb[0].mxu0
  %v1572 = vadd.f32 %v1427, %v1571
  %v1573 = vpop.f32.mrb[0].mxu0
  %1574 = vmatprep.mubr.bf16.mxu0 0
  %1575 = vmatmul.mubr.bf16.gmra.mrb[0].mxu0 %v1489
  %v1576 = vpop.f32.mrb[0].mxu0
  %v1577 = vadd.f32 %v1432, %v1576
  %v1578 = vpop.f32.mrb[0].mxu0
  %v1579 = vpop.f32.mrb[0].mxu0
  %v1580 = vadd.f32 %v1435, %v1579
  %v1581 = vpop.f32.mrb[0].mxu0
  %1582 = vmatprep.mubr.bf16.mxu0 0
  %1583 = vmatmul.mubr.bf16.gmra.mrb[0].mxu0 %v1492
  %v1584 = vpop.f32.mrb[0].mxu0
  %v1585 = vadd.f32 %v1440, %v1584
  %v1586 = vpop.f32.mrb[0].mxu0
  %v1587 = vpop.f32.mrb[0].mxu0
  %v1588 = vadd.f32 %v1443, %v1587
  %v1589 = vpop.f32.mrb[0].mxu0
  %1590 = vdwg.mxu0
  %v1599 = vunpack.c.l.b16 %v977
  %v1600 = vunpack.c.l.b16 %v978
  %v1601 = vunpack.c.l.b16 %v979
  %v1602 = vunpack.c.l.b16 %v980
  %v1603 = vunpack.c.l.b16 %v981
  %v1604 = vunpack.c.l.b16 %v982
  %v1605 = vunpack.c.l.b16 %v983
  %v1606 = vunpack.c.l.b16 %v984
  %v1607 = vpack.c.b16 %v1600, %v1599
  %v1608 = vpack.c.b16 %v1602, %v1601
  %v1609 = vpack.c.b16 %v1604, %v1603
  %v1610 = vpack.c.b16 %v1606, %v1605
  %v1616 = vsel %vm1324, %v1292, 0
  %v1619 = vsel %vm1324, %v1293, 0
  %v1622 = vsel %vm1324, %v1294, 0
  %v1625 = vsel %vm1324, %v1295, 0
  %v1628 = vsel %vm1324, %v1296, 0
  %v1631 = vsel %vm1324, %v1297, 0
  %v1634 = vsel %vm1324, %v1298, 0
  %v1637 = vsel %vm1324, %v1299, 0
  %1639 = vmatprep.subr.bf16.mxu0 0
  %1640 = vmatpush1.bf16.msra.mxu0 %v1607
  %1641 = vmatprep.subr.bf16.mxu0 0
  %1642 = vmatpush1.bf16.msra.mxu0 %v1608
  %1643 = vmatprep.subr.bf16.mxu0 0
  %1644 = vmatpush1.bf16.msra.mxu0 %v1609
  %1645 = vmatprep.subr.bf16.mxu0 0
  %1646 = vmatpush1.bf16.msra.mxu0 %v1610
  %1647 = vmatprep.subr.bf16.mxu0 0
  %1648 = vmatpush1.bf16.msra.mxu0 0
  %1649 = vmatprep.subr.bf16.mxu0 0
  %1650 = vmatpush1.bf16.msra.mxu0 0
  %1651 = vmatprep.subr.bf16.mxu0 0
  %1652 = vmatpush1.bf16.msra.mxu0 0
  %1653 = vmatprep.subr.bf16.mxu0 0
  %1654 = vmatpush1.bf16.msra.mxu0 0
  %1655 = vmatprep.subr.bf16.mxu0 0
  %1656 = vmatpush1.bf16.msra.mxu0 0
  %1657 = vmatprep.subr.bf16.mxu0 0
  %1658 = vmatpush1.bf16.msra.mxu0 0
  %1659 = vmatprep.subr.bf16.mxu0 0
  %1660 = vmatpush1.bf16.msra.mxu0 0
  %1661 = vmatprep.subr.bf16.mxu0 0
  %1662 = vmatpush1.bf16.msra.mxu0 0
  %1663 = vmatprep.subr.bf16.mxu0 0
  %1664 = vmatpush1.bf16.msra.mxu0 0
  %1665 = vmatprep.subr.bf16.mxu0 0
  %1666 = vmatpush1.bf16.msra.mxu0 0
  %1667 = vmatprep.subr.bf16.mxu0 0
  %1668 = vmatpush1.bf16.msra.mxu0 0
  %1669 = vmatprep.subr.bf16.mxu0 0
  %1670 = vmatpush1.bf16.msra.mxu0 0
  %1671 = vmatprep.mubr.bf16.mxu0 0
  %1672 = vmatmul.mubr.bf16.gmra.mrb[0].mxu0 %v1616
  %v1673 = vpop.f32.mrb[0].mxu0
  %v1674 = vadd.f32 0.0, %v1673
  %v1675 = vpop.f32.mrb[0].mxu0
  %v1676 = vpop.f32.mrb[0].mxu0
  %v1677 = vadd.f32 0.0, %v1676
  %v1678 = vpop.f32.mrb[0].mxu0
  %1679 = vmatprep.mubr.bf16.mxu0 0
  %1680 = vmatmul.mubr.bf16.gmra.mrb[0].mxu0 %v1619
  %v1681 = vpop.f32.mrb[0].mxu0
  %v1682 = vadd.f32 0.0, %v1681
  %v1683 = vpop.f32.mrb[0].mxu0
  %v1684 = vpop.f32.mrb[0].mxu0
  %v1685 = vadd.f32 0.0, %v1684
  %v1686 = vpop.f32.mrb[0].mxu0
  %1687 = vmatprep.mubr.bf16.mxu0 0
  %1688 = vmatmul.mubr.bf16.gmra.mrb[0].mxu0 %v1622
  %v1689 = vpop.f32.mrb[0].mxu0
  %v1690 = vadd.f32 0.0, %v1689
  %v1691 = vpop.f32.mrb[0].mxu0
  %v1692 = vpop.f32.mrb[0].mxu0
  %v1693 = vadd.f32 0.0, %v1692
  %v1694 = vpop.f32.mrb[0].mxu0
  %1695 = vmatprep.mubr.bf16.mxu0 0
  %1696 = vmatmul.mubr.bf16.gmra.mrb[0].mxu0 %v1625
  %v1697 = vpop.f32.mrb[0].mxu0
  %v1698 = vadd.f32 0.0, %v1697
  %v1699 = vpop.f32.mrb[0].mxu0
  %v1700 = vpop.f32.mrb[0].mxu0
  %v1701 = vadd.f32 0.0, %v1700
  %v1702 = vpop.f32.mrb[0].mxu0
  %1703 = vmatprep.mubr.bf16.mxu0 0
  %1704 = vmatmul.mubr.bf16.gmra.mrb[0].mxu0 %v1628
  %v1705 = vpop.f32.mrb[0].mxu0
  %v1706 = vadd.f32 0.0, %v1705
  %v1707 = vpop.f32.mrb[0].mxu0
  %v1708 = vpop.f32.mrb[0].mxu0
  %v1709 = vadd.f32 0.0, %v1708
  %v1710 = vpop.f32.mrb[0].mxu0
  %1711 = vmatprep.mubr.bf16.mxu0 0
  %1712 = vmatmul.mubr.bf16.gmra.mrb[0].mxu0 %v1631
  %v1713 = vpop.f32.mrb[0].mxu0
  %v1714 = vadd.f32 0.0, %v1713
  %v1715 = vpop.f32.mrb[0].mxu0
  %v1716 = vpop.f32.mrb[0].mxu0
  %v1717 = vadd.f32 0.0, %v1716
  %v1718 = vpop.f32.mrb[0].mxu0
  %1719 = vmatprep.mubr.bf16.mxu0 0
  %1720 = vmatmul.mubr.bf16.gmra.mrb[0].mxu0 %v1634
  %v1721 = vpop.f32.mrb[0].mxu0
  %v1722 = vadd.f32 0.0, %v1721
  %v1723 = vpop.f32.mrb[0].mxu0
  %v1724 = vpop.f32.mrb[0].mxu0
  %v1725 = vadd.f32 0.0, %v1724
  %v1726 = vpop.f32.mrb[0].mxu0
  %1727 = vmatprep.mubr.bf16.mxu0 0
  %1728 = vmatmul.mubr.bf16.gmra.mrb[0].mxu0 %v1637
  %v1729 = vpop.f32.mrb[0].mxu0
  %v1730 = vadd.f32 0.0, %v1729
  %v1731 = vpop.f32.mrb[0].mxu0
  %v1732 = vpop.f32.mrb[0].mxu0
  %v1733 = vadd.f32 0.0, %v1732
  %v1734 = vpop.f32.mrb[0].mxu0
  %1735 = vdwg.mxu0
  %v1736 = vadd.f32 %v1529, %v1674
  %v1737 = vadd.f32 %v1532, %v1677
  %v1738 = vadd.f32 %v1537, %v1682
  %v1739 = vadd.f32 %v1540, %v1685
  %v1740 = vadd.f32 %v1545, %v1690
  %v1741 = vadd.f32 %v1548, %v1693
  %v1742 = vadd.f32 %v1553, %v1698
  %v1743 = vadd.f32 %v1556, %v1701
  %v1744 = vadd.f32 %v1561, %v1706
  %v1745 = vadd.f32 %v1564, %v1709
  %v1746 = vadd.f32 %v1569, %v1714
  %v1747 = vadd.f32 %v1572, %v1717
  %v1748 = vadd.f32 %v1577, %v1722
  %v1749 = vadd.f32 %v1580, %v1725
  %v1750 = vadd.f32 %v1585, %v1730
  %v1751 = vadd.f32 %v1588, %v1733
  %v1753 = vlaneseq
  %v1754 = vshrl.u32 %v1753, 7
  %v1755 = vsub.s32 0, %v1754
  %v1756 = vrot.slane %v985, %v1755
  %v1758 = vadd.f32 %v1736, %v1756
  %v1759 = vadd.f32 %v1737, %v1756
  %v1760 = vadd.f32 %v1738, %v1756
  %v1761 = vadd.f32 %v1739, %v1756
  %v1762 = vadd.f32 %v1740, %v1756
  %v1763 = vadd.f32 %v1741, %v1756
  %v1764 = vadd.f32 %v1742, %v1756
  %v1765 = vadd.f32 %v1743, %v1756
  %v1766 = vadd.f32 %v1744, %v1756
  %v1767 = vadd.f32 %v1745, %v1756
  %v1768 = vadd.f32 %v1746, %v1756
  %v1769 = vadd.f32 %v1747, %v1756
  %v1770 = vadd.f32 %v1748, %v1756
  %v1771 = vadd.f32 %v1749, %v1756
  %v1772 = vadd.f32 %v1750, %v1756
  %v1773 = vadd.f32 %v1751, %v1756
  %v1774 = vmax.f32 %v1758, 0.0
  %v1775 = vmax.f32 %v1759, 0.0
  %v1776 = vmax.f32 %v1760, 0.0
  %v1777 = vmax.f32 %v1761, 0.0
  %v1778 = vmax.f32 %v1762, 0.0
  %v1779 = vmax.f32 %v1763, 0.0
  %v1780 = vmax.f32 %v1764, 0.0
  %v1781 = vmax.f32 %v1765, 0.0
  %v1782 = vmax.f32 %v1766, 0.0
  %v1783 = vmax.f32 %v1767, 0.0
  %v1784 = vmax.f32 %v1768, 0.0
  %v1785 = vmax.f32 %v1769, 0.0
  %v1786 = vmax.f32 %v1770, 0.0
  %v1787 = vmax.f32 %v1771, 0.0
  %v1788 = vmax.f32 %v1772, 0.0
  %v1789 = vmax.f32 %v1773, 0.0
  %v1790 = vld [vmem:[%s10] sm:$0xf]
  %v1791 = vld [vmem:[%s10 + $0x4] sm:$0xf]
  %v1792 = vld [vmem:[%s10 + $0x8] sm:$0xf]
  %v1793 = vld [vmem:[%s10 + $0xc] sm:$0xf]
  %v1794 = vld [vmem:[%s10 + $0x10] sm:$0xf]
  %v1795 = vld [vmem:[%s10 + $0x14] sm:$0xf]
  %v1796 = vld [vmem:[%s10 + $0x18] sm:$0xf]
  %v1797 = vld [vmem:[%s10 + $0x1c] sm:$0xf]
  %v1798 = vld [vmem:[%s10 + $0x20] sm:$0xf]
  %v1799 = vld [vmem:[%s10 + $0x24] sm:$0xf]
  %v1800 = vld [vmem:[%s10 + $0x28] sm:$0xf]
  %v1801 = vld [vmem:[%s10 + $0x2c] sm:$0xf]
  %v1802 = vld [vmem:[%s10 + $0x30] sm:$0xf]
  %v1803 = vld [vmem:[%s10 + $0x34] sm:$0xf]
  %v1804 = vld [vmem:[%s10 + $0x38] sm:$0xf]
  %v1805 = vld [vmem:[%s10 + $0x3c] sm:$0xf]
  %v1806 = vld [vmem:[%s10 + $0x40] sm:$0xf]
  %v1807 = vld [vmem:[%s10 + $0x44] sm:$0xf]
  %v1808 = vld [vmem:[%s10 + $0x48] sm:$0xf]
  %v1809 = vld [vmem:[%s10 + $0x4c] sm:$0xf]
  %v1810 = vld [vmem:[%s10 + $0x50] sm:$0xf]
  %v1811 = vld [vmem:[%s10 + $0x54] sm:$0xf]
  %v1812 = vld [vmem:[%s10 + $0x58] sm:$0xf]
  %v1813 = vld [vmem:[%s10 + $0x5c] sm:$0xf]
  %v1814 = vld [vmem:[%s11] sm:$0x1]
  %v1815 = vpack.c.bf16 %v1775, %v1774
  %v1816 = vpack.c.bf16 %v1777, %v1776
  %v1817 = vpack.c.bf16 %v1779, %v1778
  %v1818 = vpack.c.bf16 %v1781, %v1780
  %v1819 = vpack.c.bf16 %v1783, %v1782
  %v1820 = vpack.c.bf16 %v1785, %v1784
  %v1821 = vpack.c.bf16 %v1787, %v1786
  %v1822 = vpack.c.bf16 %v1789, %v1788
  %1823 = vmatprep.subr.bf16.mxu0 0
  %1824 = vmatpush1.bf16.msra.mxu0 %v1815
  %1825 = vmatprep.subr.bf16.mxu0 0
  %1826 = vmatpush1.bf16.msra.mxu0 %v1816
  %1827 = vmatprep.subr.bf16.mxu0 0
  %1828 = vmatpush1.bf16.msra.mxu0 %v1817
  %1829 = vmatprep.subr.bf16.mxu0 0
  %1830 = vmatpush1.bf16.msra.mxu0 %v1818
  %1831 = vmatprep.subr.bf16.mxu0 0
  %1832 = vmatpush1.bf16.msra.mxu0 %v1819
  %1833 = vmatprep.subr.bf16.mxu0 0
  %1834 = vmatpush1.bf16.msra.mxu0 %v1820
  %1835 = vmatprep.subr.bf16.mxu0 0
  %1836 = vmatpush1.bf16.msra.mxu0 %v1821
  %1837 = vmatprep.subr.bf16.mxu0 0
  %1838 = vmatpush1.bf16.msra.mxu0 %v1822
  %1839 = vmatprep.subr.bf16.mxu0 0
  %1840 = vmatpush1.bf16.msra.mxu0 0
  %1841 = vmatprep.subr.bf16.mxu0 0
  %1842 = vmatpush1.bf16.msra.mxu0 0
  %1843 = vmatprep.subr.bf16.mxu0 0
  %1844 = vmatpush1.bf16.msra.mxu0 0
  %1845 = vmatprep.subr.bf16.mxu0 0
  %1846 = vmatpush1.bf16.msra.mxu0 0
  %1847 = vmatprep.subr.bf16.mxu0 0
  %1848 = vmatpush1.bf16.msra.mxu0 0
  %1849 = vmatprep.subr.bf16.mxu0 0
  %1850 = vmatpush1.bf16.msra.mxu0 0
  %1851 = vmatprep.subr.bf16.mxu0 0
  %1852 = vmatpush1.bf16.msra.mxu0 0
  %1853 = vmatprep.subr.bf16.mxu0 0
  %1854 = vmatpush1.bf16.msra.mxu0 0
  %1855 = vmatprep.mubr.bf16.mxu0 0
  %1856 = vmatmul.mubr.bf16.gmra.mrb[0].mxu0 %v1026
  %v1857 = vpop.f32.mrb[0].mxu0
  %v1858 = vadd.f32 0.0, %v1857
  %v1859 = vpop.f32.mrb[0].mxu0
  %v1860 = vpop.f32.mrb[0].mxu0
  %v1861 = vadd.f32 0.0, %v1860
  %v1862 = vpop.f32.mrb[0].mxu0
  %1863 = vmatprep.mubr.bf16.mxu0 0
  %1864 = vmatmul.mubr.bf16.gmra.mrb[0].mxu0 %v1027
  %v1865 = vpop.f32.mrb[0].mxu0
  %v1866 = vadd.f32 0.0, %v1865
  %v1867 = vpop.f32.mrb[0].mxu0
  %v1868 = vpop.f32.mrb[0].mxu0
  %v1869 = vadd.f32 0.0, %v1868
  %v1870 = vpop.f32.mrb[0].mxu0
  %1871 = vmatprep.mubr.bf16.mxu0 0
  %1872 = vmatmul.mubr.bf16.gmra.mrb[0].mxu0 %v1028
  %v1873 = vpop.f32.mrb[0].mxu0
  %v1874 = vadd.f32 0.0, %v1873
  %v1875 = vpop.f32.mrb[0].mxu0
  %v1876 = vpop.f32.mrb[0].mxu0
  %v1877 = vadd.f32 0.0, %v1876
  %v1878 = vpop.f32.mrb[0].mxu0
  %1879 = vmatprep.mubr.bf16.mxu0 0
  %1880 = vmatmul.mubr.bf16.gmra.mrb[0].mxu0 %v1029
  %v1881 = vpop.f32.mrb[0].mxu0
  %v1882 = vadd.f32 0.0, %v1881
  %v1883 = vpop.f32.mrb[0].mxu0
  %v1884 = vpop.f32.mrb[0].mxu0
  %v1885 = vadd.f32 0.0, %v1884
  %v1886 = vpop.f32.mrb[0].mxu0
  %1887 = vmatprep.mubr.bf16.mxu0 0
  %1888 = vmatmul.mubr.bf16.gmra.mrb[0].mxu0 %v1030
  %v1889 = vpop.f32.mrb[0].mxu0
  %v1890 = vadd.f32 0.0, %v1889
  %v1891 = vpop.f32.mrb[0].mxu0
  %v1892 = vpop.f32.mrb[0].mxu0
  %v1893 = vadd.f32 0.0, %v1892
  %v1894 = vpop.f32.mrb[0].mxu0
  %1895 = vmatprep.mubr.bf16.mxu0 0
  %1896 = vmatmul.mubr.bf16.gmra.mrb[0].mxu0 %v1031
  %v1897 = vpop.f32.mrb[0].mxu0
  %v1898 = vadd.f32 0.0, %v1897
  %v1899 = vpop.f32.mrb[0].mxu0
  %v1900 = vpop.f32.mrb[0].mxu0
  %v1901 = vadd.f32 0.0, %v1900
  %v1902 = vpop.f32.mrb[0].mxu0
  %1903 = vmatprep.mubr.bf16.mxu0 0
  %1904 = vmatmul.mubr.bf16.gmra.mrb[0].mxu0 %v1032
  %v1905 = vpop.f32.mrb[0].mxu0
  %v1906 = vadd.f32 0.0, %v1905
  %v1907 = vpop.f32.mrb[0].mxu0
  %v1908 = vpop.f32.mrb[0].mxu0
  %v1909 = vadd.f32 0.0, %v1908
  %v1910 = vpop.f32.mrb[0].mxu0
  %1911 = vmatprep.mubr.bf16.mxu0 0
  %1912 = vmatmul.mubr.bf16.gmra.mrb[0].mxu0 %v1033
  %v1913 = vpop.f32.mrb[0].mxu0
  %v1914 = vadd.f32 0.0, %v1913
  %v1915 = vpop.f32.mrb[0].mxu0
  %v1916 = vpop.f32.mrb[0].mxu0
  %v1917 = vadd.f32 0.0, %v1916
  %v1918 = vpop.f32.mrb[0].mxu0
  %1919 = vdwg.mxu0
  %v1920 = vpack.c.bf16 %v1861, %v1858
  %v1921 = vpack.c.bf16 %v1869, %v1866
  %v1922 = vpack.c.bf16 %v1877, %v1874
  %v1923 = vpack.c.bf16 %v1885, %v1882
  %v1924 = vpack.c.bf16 %v1893, %v1890
  %v1925 = vpack.c.bf16 %v1901, %v1898
  %v1926 = vpack.c.bf16 %v1909, %v1906
  %v1927 = vpack.c.bf16 %v1917, %v1914
  %1928 = vmatprep.subr.bf16.mxu0 0
  %1929 = vmatpush1.bf16.msra.mxu0 %v1815
  %1930 = vmatprep.subr.bf16.mxu0 0
  %1931 = vmatpush1.bf16.msra.mxu0 %v1816
  %1932 = vmatprep.subr.bf16.mxu0 0
  %1933 = vmatpush1.bf16.msra.mxu0 %v1817
  %1934 = vmatprep.subr.bf16.mxu0 0
  %1935 = vmatpush1.bf16.msra.mxu0 %v1818
  %1936 = vmatprep.subr.bf16.mxu0 0
  %1937 = vmatpush1.bf16.msra.mxu0 %v1819
  %1938 = vmatprep.subr.bf16.mxu0 0
  %1939 = vmatpush1.bf16.msra.mxu0 %v1820
  %1940 = vmatprep.subr.bf16.mxu0 0
  %1941 = vmatpush1.bf16.msra.mxu0 %v1821
  %1942 = vmatprep.subr.bf16.mxu0 0
  %1943 = vmatpush1.bf16.msra.mxu0 %v1822
  %1944 = vmatprep.subr.bf16.mxu0 0
  %1945 = vmatpush1.bf16.msra.mxu0 0
  %1946 = vmatprep.subr.bf16.mxu0 0
  %1947 = vmatpush1.bf16.msra.mxu0 0
  %1948 = vmatprep.subr.bf16.mxu0 0
  %1949 = vmatpush1.bf16.msra.mxu0 0
  %1950 = vmatprep.subr.bf16.mxu0 0
  %1951 = vmatpush1.bf16.msra.mxu0 0
  %1952 = vmatprep.subr.bf16.mxu0 0
  %1953 = vmatpush1.bf16.msra.mxu0 0
  %1954 = vmatprep.subr.bf16.mxu0 0
  %1955 = vmatpush1.bf16.msra.mxu0 0
  %1956 = vmatprep.subr.bf16.mxu0 0
  %1957 = vmatpush1.bf16.msra.mxu0 0
  %1958 = vmatprep.subr.bf16.mxu0 0
  %1959 = vmatpush1.bf16.msra.mxu0 0
  %1960 = vmatprep.mubr.bf16.mxu0 0
  %1961 = vmatmul.mubr.bf16.gmra.mrb[0].mxu0 %v1179
  %v1962 = vpop.f32.mrb[0].mxu0
  %v1963 = vadd.f32 0.0, %v1962
  %v1964 = vpop.f32.mrb[0].mxu0
  %v1965 = vpop.f32.mrb[0].mxu0
  %v1966 = vadd.f32 0.0, %v1965
  %v1967 = vpop.f32.mrb[0].mxu0
  %1968 = vmatprep.mubr.bf16.mxu0 0
  %1969 = vmatmul.mubr.bf16.gmra.mrb[0].mxu0 %v1180
  %v1970 = vpop.f32.mrb[0].mxu0
  %v1971 = vadd.f32 0.0, %v1970
  %v1972 = vpop.f32.mrb[0].mxu0
  %v1973 = vpop.f32.mrb[0].mxu0
  %v1974 = vadd.f32 0.0, %v1973
  %v1975 = vpop.f32.mrb[0].mxu0
  %1976 = vmatprep.mubr.bf16.mxu0 0
  %1977 = vmatmul.mubr.bf16.gmra.mrb[0].mxu0 %v1181
  %v1978 = vpop.f32.mrb[0].mxu0
  %v1979 = vadd.f32 0.0, %v1978
  %v1980 = vpop.f32.mrb[0].mxu0
  %v1981 = vpop.f32.mrb[0].mxu0
  %v1982 = vadd.f32 0.0, %v1981
  %v1983 = vpop.f32.mrb[0].mxu0
  %1984 = vmatprep.mubr.bf16.mxu0 0
  %1985 = vmatmul.mubr.bf16.gmra.mrb[0].mxu0 %v1182
  %v1986 = vpop.f32.mrb[0].mxu0
  %v1987 = vadd.f32 0.0, %v1986
  %v1988 = vpop.f32.mrb[0].mxu0
  %v1989 = vpop.f32.mrb[0].mxu0
  %v1990 = vadd.f32 0.0, %v1989
  %v1991 = vpop.f32.mrb[0].mxu0
  %1992 = vmatprep.mubr.bf16.mxu0 0
  %1993 = vmatmul.mubr.bf16.gmra.mrb[0].mxu0 %v1183
  %v1994 = vpop.f32.mrb[0].mxu0
  %v1995 = vadd.f32 0.0, %v1994
  %v1996 = vpop.f32.mrb[0].mxu0
  %v1997 = vpop.f32.mrb[0].mxu0
  %v1998 = vadd.f32 0.0, %v1997
  %v1999 = vpop.f32.mrb[0].mxu0
  %2000 = vmatprep.mubr.bf16.mxu0 0
  %2001 = vmatmul.mubr.bf16.gmra.mrb[0].mxu0 %v1184
  %v2002 = vpop.f32.mrb[0].mxu0
  %v2003 = vadd.f32 0.0, %v2002
  %v2004 = vpop.f32.mrb[0].mxu0
  %v2005 = vpop.f32.mrb[0].mxu0
  %v2006 = vadd.f32 0.0, %v2005
  %v2007 = vpop.f32.mrb[0].mxu0
  %2008 = vmatprep.mubr.bf16.mxu0 0
  %2009 = vmatmul.mubr.bf16.gmra.mrb[0].mxu0 %v1185
  %v2010 = vpop.f32.mrb[0].mxu0
  %v2011 = vadd.f32 0.0, %v2010
  %v2012 = vpop.f32.mrb[0].mxu0
  %v2013 = vpop.f32.mrb[0].mxu0
  %v2014 = vadd.f32 0.0, %v2013
  %v2015 = vpop.f32.mrb[0].mxu0
  %2016 = vmatprep.mubr.bf16.mxu0 0
  %2017 = vmatmul.mubr.bf16.gmra.mrb[0].mxu0 %v1186
  %v2018 = vpop.f32.mrb[0].mxu0
  %v2019 = vadd.f32 0.0, %v2018
  %v2020 = vpop.f32.mrb[0].mxu0
  %v2021 = vpop.f32.mrb[0].mxu0
  %v2022 = vadd.f32 0.0, %v2021
  %v2023 = vpop.f32.mrb[0].mxu0
  %2024 = vdwg.mxu0
  %v2025 = vpack.c.bf16 %v1966, %v1963
  %v2026 = vpack.c.bf16 %v1974, %v1971
  %v2027 = vpack.c.bf16 %v1982, %v1979
  %v2028 = vpack.c.bf16 %v1990, %v1987
  %v2029 = vpack.c.bf16 %v1998, %v1995
  %v2030 = vpack.c.bf16 %v2006, %v2003
  %v2031 = vpack.c.bf16 %v2014, %v2011
  %v2032 = vpack.c.bf16 %v2022, %v2019
  %v2041 = vunpack.c.l.b16 %v1798
  %v2042 = vunpack.c.l.b16 %v1799
  %v2043 = vunpack.c.l.b16 %v1800
  %v2044 = vunpack.c.l.b16 %v1801
  %v2045 = vunpack.c.l.b16 %v1802
  %v2046 = vunpack.c.l.b16 %v1803
  %v2047 = vunpack.c.l.b16 %v1804
  %v2048 = vunpack.c.l.b16 %v1805
  %v2049 = vpack.c.b16 %v2042, %v2041
  %v2050 = vpack.c.b16 %v2044, %v2043
  %v2051 = vpack.c.b16 %v2046, %v2045
  %v2052 = vpack.c.b16 %v2048, %v2047
  %v2058 = vsel %vm1324, %v1815, 0
  %v2061 = vsel %vm1324, %v1816, 0
  %v2064 = vsel %vm1324, %v1817, 0
  %v2067 = vsel %vm1324, %v1818, 0
  %v2070 = vsel %vm1324, %v1819, 0
  %v2073 = vsel %vm1324, %v1820, 0
  %v2076 = vsel %vm1324, %v1821, 0
  %v2079 = vsel %vm1324, %v1822, 0
  %2081 = vmatprep.subr.bf16.mxu0 0
  %2082 = vmatpush1.bf16.msra.mxu0 %v2049
  %2083 = vmatprep.subr.bf16.mxu0 0
  %2084 = vmatpush1.bf16.msra.mxu0 %v2050
  %2085 = vmatprep.subr.bf16.mxu0 0
  %2086 = vmatpush1.bf16.msra.mxu0 %v2051
  %2087 = vmatprep.subr.bf16.mxu0 0
  %2088 = vmatpush1.bf16.msra.mxu0 %v2052
  %2089 = vmatprep.subr.bf16.mxu0 0
  %2090 = vmatpush1.bf16.msra.mxu0 0
  %2091 = vmatprep.subr.bf16.mxu0 0
  %2092 = vmatpush1.bf16.msra.mxu0 0
  %2093 = vmatprep.subr.bf16.mxu0 0
  %2094 = vmatpush1.bf16.msra.mxu0 0
  %2095 = vmatprep.subr.bf16.mxu0 0
  %2096 = vmatpush1.bf16.msra.mxu0 0
  %2097 = vmatprep.subr.bf16.mxu0 0
  %2098 = vmatpush1.bf16.msra.mxu0 0
  %2099 = vmatprep.subr.bf16.mxu0 0
  %2100 = vmatpush1.bf16.msra.mxu0 0
  %2101 = vmatprep.subr.bf16.mxu0 0
  %2102 = vmatpush1.bf16.msra.mxu0 0
  %2103 = vmatprep.subr.bf16.mxu0 0
  %2104 = vmatpush1.bf16.msra.mxu0 0
  %2105 = vmatprep.subr.bf16.mxu0 0
  %2106 = vmatpush1.bf16.msra.mxu0 0
  %2107 = vmatprep.subr.bf16.mxu0 0
  %2108 = vmatpush1.bf16.msra.mxu0 0
  %2109 = vmatprep.subr.bf16.mxu0 0
  %2110 = vmatpush1.bf16.msra.mxu0 0
  %2111 = vmatprep.subr.bf16.mxu0 0
  %2112 = vmatpush1.bf16.msra.mxu0 0
  %2113 = vmatprep.mubr.bf16.mxu0 0
  %2114 = vmatmul.mubr.bf16.gmra.mrb[0].mxu0 %v2058
  %v2115 = vpop.f32.mrb[0].mxu0
  %v2116 = vadd.f32 0.0, %v2115
  %v2117 = vpop.f32.mrb[0].mxu0
  %v2118 = vpop.f32.mrb[0].mxu0
  %v2119 = vadd.f32 0.0, %v2118
  %v2120 = vpop.f32.mrb[0].mxu0
  %2121 = vmatprep.mubr.bf16.mxu0 0
  %2122 = vmatmul.mubr.bf16.gmra.mrb[0].mxu0 %v2061
  %v2123 = vpop.f32.mrb[0].mxu0
  %v2124 = vadd.f32 0.0, %v2123
  %v2125 = vpop.f32.mrb[0].mxu0
  %v2126 = vpop.f32.mrb[0].mxu0
  %v2127 = vadd.f32 0.0, %v2126
  %v2128 = vpop.f32.mrb[0].mxu0
  %2129 = vmatprep.mubr.bf16.mxu0 0
  %2130 = vmatmul.mubr.bf16.gmra.mrb[0].mxu0 %v2064
  %v2131 = vpop.f32.mrb[0].mxu0
  %v2132 = vadd.f32 0.0, %v2131
  %v2133 = vpop.f32.mrb[0].mxu0
  %v2134 = vpop.f32.mrb[0].mxu0
  %v2135 = vadd.f32 0.0, %v2134
  %v2136 = vpop.f32.mrb[0].mxu0
  %2137 = vmatprep.mubr.bf16.mxu0 0
  %2138 = vmatmul.mubr.bf16.gmra.mrb[0].mxu0 %v2067
  %v2139 = vpop.f32.mrb[0].mxu0
  %v2140 = vadd.f32 0.0, %v2139
  %v2141 = vpop.f32.mrb[0].mxu0
  %v2142 = vpop.f32.mrb[0].mxu0
  %v2143 = vadd.f32 0.0, %v2142
  %v2144 = vpop.f32.mrb[0].mxu0
  %2145 = vmatprep.mubr.bf16.mxu0 0
  %2146 = vmatmul.mubr.bf16.gmra.mrb[0].mxu0 %v2070
  %v2147 = vpop.f32.mrb[0].mxu0
  %v2148 = vadd.f32 0.0, %v2147
  %v2149 = vpop.f32.mrb[0].mxu0
  %v2150 = vpop.f32.mrb[0].mxu0
  %v2151 = vadd.f32 0.0, %v2150
  %v2152 = vpop.f32.mrb[0].mxu0
  %2153 = vmatprep.mubr.bf16.mxu0 0
  %2154 = vmatmul.mubr.bf16.gmra.mrb[0].mxu0 %v2073
  %v2155 = vpop.f32.mrb[0].mxu0
  %v2156 = vadd.f32 0.0, %v2155
  %v2157 = vpop.f32.mrb[0].mxu0
  %v2158 = vpop.f32.mrb[0].mxu0
  %v2159 = vadd.f32 0.0, %v2158
  %v2160 = vpop.f32.mrb[0].mxu0
  %2161 = vmatprep.mubr.bf16.mxu0 0
  %2162 = vmatmul.mubr.bf16.gmra.mrb[0].mxu0 %v2076
  %v2163 = vpop.f32.mrb[0].mxu0
  %v2164 = vadd.f32 0.0, %v2163
  %v2165 = vpop.f32.mrb[0].mxu0
  %v2166 = vpop.f32.mrb[0].mxu0
  %v2167 = vadd.f32 0.0, %v2166
  %v2168 = vpop.f32.mrb[0].mxu0
  %2169 = vmatprep.mubr.bf16.mxu0 0
  %2170 = vmatmul.mubr.bf16.gmra.mrb[0].mxu0 %v2079
  %v2171 = vpop.f32.mrb[0].mxu0
  %v2172 = vadd.f32 0.0, %v2171
  %v2173 = vpop.f32.mrb[0].mxu0
  %v2174 = vpop.f32.mrb[0].mxu0
  %v2175 = vadd.f32 0.0, %v2174
  %v2176 = vpop.f32.mrb[0].mxu0
  %2177 = vdwg.mxu0
  %v2186 = vunpack.c.l.b16 %v1790
  %v2187 = vunpack.c.l.b16 %v1791
  %v2188 = vunpack.c.l.b16 %v1792
  %v2189 = vunpack.c.l.b16 %v1793
  %v2190 = vunpack.c.l.b16 %v1794
  %v2191 = vunpack.c.l.b16 %v1795
  %v2192 = vunpack.c.l.b16 %v1796
  %v2193 = vunpack.c.l.b16 %v1797
  %v2194 = vpack.c.b16 %v2187, %v2186
  %v2195 = vpack.c.b16 %v2189, %v2188
  %v2196 = vpack.c.b16 %v2191, %v2190
  %v2197 = vpack.c.b16 %v2193, %v2192
  %v2203 = vsel %vm1324, %v1920, 0
  %v2206 = vsel %vm1324, %v1921, 0
  %v2209 = vsel %vm1324, %v1922, 0
  %v2212 = vsel %vm1324, %v1923, 0
  %v2215 = vsel %vm1324, %v1924, 0
  %v2218 = vsel %vm1324, %v1925, 0
  %v2221 = vsel %vm1324, %v1926, 0
  %v2224 = vsel %vm1324, %v1927, 0
  %2226 = vmatprep.subr.bf16.mxu0 0
  %2227 = vmatpush1.bf16.msra.mxu0 %v2194
  %2228 = vmatprep.subr.bf16.mxu0 0
  %2229 = vmatpush1.bf16.msra.mxu0 %v2195
  %2230 = vmatprep.subr.bf16.mxu0 0
  %2231 = vmatpush1.bf16.msra.mxu0 %v2196
  %2232 = vmatprep.subr.bf16.mxu0 0
  %2233 = vmatpush1.bf16.msra.mxu0 %v2197
  %2234 = vmatprep.subr.bf16.mxu0 0
  %2235 = vmatpush1.bf16.msra.mxu0 0
  %2236 = vmatprep.subr.bf16.mxu0 0
  %2237 = vmatpush1.bf16.msra.mxu0 0
  %2238 = vmatprep.subr.bf16.mxu0 0
  %2239 = vmatpush1.bf16.msra.mxu0 0
  %2240 = vmatprep.subr.bf16.mxu0 0
  %2241 = vmatpush1.bf16.msra.mxu0 0
  %2242 = vmatprep.subr.bf16.mxu0 0
  %2243 = vmatpush1.bf16.msra.mxu0 0
  %2244 = vmatprep.subr.bf16.mxu0 0
  %2245 = vmatpush1.bf16.msra.mxu0 0
  %2246 = vmatprep.subr.bf16.mxu0 0
  %2247 = vmatpush1.bf16.msra.mxu0 0
  %2248 = vmatprep.subr.bf16.mxu0 0
  %2249 = vmatpush1.bf16.msra.mxu0 0
  %2250 = vmatprep.subr.bf16.mxu0 0
  %2251 = vmatpush1.bf16.msra.mxu0 0
  %2252 = vmatprep.subr.bf16.mxu0 0
  %2253 = vmatpush1.bf16.msra.mxu0 0
  %2254 = vmatprep.subr.bf16.mxu0 0
  %2255 = vmatpush1.bf16.msra.mxu0 0
  %2256 = vmatprep.subr.bf16.mxu0 0
  %2257 = vmatpush1.bf16.msra.mxu0 0
  %2258 = vmatprep.mubr.bf16.mxu0 0
  %2259 = vmatmul.mubr.bf16.gmra.mrb[0].mxu0 %v2203
  %v2260 = vpop.f32.mrb[0].mxu0
  %v2261 = vadd.f32 %v2116, %v2260
  %v2262 = vpop.f32.mrb[0].mxu0
  %v2263 = vpop.f32.mrb[0].mxu0
  %v2264 = vadd.f32 %v2119, %v2263
  %v2265 = vpop.f32.mrb[0].mxu0
  %2266 = vmatprep.mubr.bf16.mxu0 0
  %2267 = vmatmul.mubr.bf16.gmra.mrb[0].mxu0 %v2206
  %v2268 = vpop.f32.mrb[0].mxu0
  %v2269 = vadd.f32 %v2124, %v2268
  %v2270 = vpop.f32.mrb[0].mxu0
  %v2271 = vpop.f32.mrb[0].mxu0
  %v2272 = vadd.f32 %v2127, %v2271
  %v2273 = vpop.f32.mrb[0].mxu0
  %2274 = vmatprep.mubr.bf16.mxu0 0
  %2275 = vmatmul.mubr.bf16.gmra.mrb[0].mxu0 %v2209
  %v2276 = vpop.f32.mrb[0].mxu0
  %v2277 = vadd.f32 %v2132, %v2276
  %v2278 = vpop.f32.mrb[0].mxu0
  %v2279 = vpop.f32.mrb[0].mxu0
  %v2280 = vadd.f32 %v2135, %v2279
  %v2281 = vpop.f32.mrb[0].mxu0
  %2282 = vmatprep.mubr.bf16.mxu0 0
  %2283 = vmatmul.mubr.bf16.gmra.mrb[0].mxu0 %v2212
  %v2284 = vpop.f32.mrb[0].mxu0
  %v2285 = vadd.f32 %v2140, %v2284
  %v2286 = vpop.f32.mrb[0].mxu0
  %v2287 = vpop.f32.mrb[0].mxu0
  %v2288 = vadd.f32 %v2143, %v2287
  %v2289 = vpop.f32.mrb[0].mxu0
  %2290 = vmatprep.mubr.bf16.mxu0 0
  %2291 = vmatmul.mubr.bf16.gmra.mrb[0].mxu0 %v2215
  %v2292 = vpop.f32.mrb[0].mxu0
  %v2293 = vadd.f32 %v2148, %v2292
  %v2294 = vpop.f32.mrb[0].mxu0
  %v2295 = vpop.f32.mrb[0].mxu0
  %v2296 = vadd.f32 %v2151, %v2295
  %v2297 = vpop.f32.mrb[0].mxu0
  %2298 = vmatprep.mubr.bf16.mxu0 0
  %2299 = vmatmul.mubr.bf16.gmra.mrb[0].mxu0 %v2218
  %v2300 = vpop.f32.mrb[0].mxu0
  %v2301 = vadd.f32 %v2156, %v2300
  %v2302 = vpop.f32.mrb[0].mxu0
  %v2303 = vpop.f32.mrb[0].mxu0
  %v2304 = vadd.f32 %v2159, %v2303
  %v2305 = vpop.f32.mrb[0].mxu0
  %2306 = vmatprep.mubr.bf16.mxu0 0
  %2307 = vmatmul.mubr.bf16.gmra.mrb[0].mxu0 %v2221
  %v2308 = vpop.f32.mrb[0].mxu0
  %v2309 = vadd.f32 %v2164, %v2308
  %v2310 = vpop.f32.mrb[0].mxu0
  %v2311 = vpop.f32.mrb[0].mxu0
  %v2312 = vadd.f32 %v2167, %v2311
  %v2313 = vpop.f32.mrb[0].mxu0
  %2314 = vmatprep.mubr.bf16.mxu0 0
  %2315 = vmatmul.mubr.bf16.gmra.mrb[0].mxu0 %v2224
  %v2316 = vpop.f32.mrb[0].mxu0
  %v2317 = vadd.f32 %v2172, %v2316
  %v2318 = vpop.f32.mrb[0].mxu0
  %v2319 = vpop.f32.mrb[0].mxu0
  %v2320 = vadd.f32 %v2175, %v2319
  %v2321 = vpop.f32.mrb[0].mxu0
  %2322 = vdwg.mxu0
  %v2331 = vunpack.c.l.b16 %v1806
  %v2332 = vunpack.c.l.b16 %v1807
  %v2333 = vunpack.c.l.b16 %v1808
  %v2334 = vunpack.c.l.b16 %v1809
  %v2335 = vunpack.c.l.b16 %v1810
  %v2336 = vunpack.c.l.b16 %v1811
  %v2337 = vunpack.c.l.b16 %v1812
  %v2338 = vunpack.c.l.b16 %v1813
  %v2339 = vpack.c.b16 %v2332, %v2331
  %v2340 = vpack.c.b16 %v2334, %v2333
  %v2341 = vpack.c.b16 %v2336, %v2335
  %v2342 = vpack.c.b16 %v2338, %v2337
  %v2348 = vsel %vm1324, %v2025, 0
  %v2351 = vsel %vm1324, %v2026, 0
  %v2354 = vsel %vm1324, %v2027, 0
  %v2357 = vsel %vm1324, %v2028, 0
  %v2360 = vsel %vm1324, %v2029, 0
  %v2363 = vsel %vm1324, %v2030, 0
  %v2366 = vsel %vm1324, %v2031, 0
  %v2369 = vsel %vm1324, %v2032, 0
  %2371 = vmatprep.subr.bf16.mxu0 0
  %2372 = vmatpush1.bf16.msra.mxu0 %v2339
  %2373 = vmatprep.subr.bf16.mxu0 0
  %2374 = vmatpush1.bf16.msra.mxu0 %v2340
  %2375 = vmatprep.subr.bf16.mxu0 0
  %2376 = vmatpush1.bf16.msra.mxu0 %v2341
  %2377 = vmatprep.subr.bf16.mxu0 0
  %2378 = vmatpush1.bf16.msra.mxu0 %v2342
  %2379 = vmatprep.subr.bf16.mxu0 0
  %2380 = vmatpush1.bf16.msra.mxu0 0
  %2381 = vmatprep.subr.bf16.mxu0 0
  %2382 = vmatpush1.bf16.msra.mxu0 0
  %2383 = vmatprep.subr.bf16.mxu0 0
  %2384 = vmatpush1.bf16.msra.mxu0 0
  %2385 = vmatprep.subr.bf16.mxu0 0
  %2386 = vmatpush1.bf16.msra.mxu0 0
  %2387 = vmatprep.subr.bf16.mxu0 0
  %2388 = vmatpush1.bf16.msra.mxu0 0
  %2389 = vmatprep.subr.bf16.mxu0 0
  %2390 = vmatpush1.bf16.msra.mxu0 0
  %2391 = vmatprep.subr.bf16.mxu0 0
  %2392 = vmatpush1.bf16.msra.mxu0 0
  %2393 = vmatprep.subr.bf16.mxu0 0
  %2394 = vmatpush1.bf16.msra.mxu0 0
  %2395 = vmatprep.subr.bf16.mxu0 0
  %2396 = vmatpush1.bf16.msra.mxu0 0
  %2397 = vmatprep.subr.bf16.mxu0 0
  %2398 = vmatpush1.bf16.msra.mxu0 0
  %2399 = vmatprep.subr.bf16.mxu0 0
  %2400 = vmatpush1.bf16.msra.mxu0 0
  %2401 = vmatprep.subr.bf16.mxu0 0
  %2402 = vmatpush1.bf16.msra.mxu0 0
  %2403 = vmatprep.mubr.bf16.mxu0 0
  %2404 = vmatmul.mubr.bf16.gmra.mrb[0].mxu0 %v2348
  %v2405 = vpop.f32.mrb[0].mxu0
  %v2406 = vadd.f32 0.0, %v2405
  %v2407 = vpop.f32.mrb[0].mxu0
  %v2408 = vpop.f32.mrb[0].mxu0
  %v2409 = vadd.f32 0.0, %v2408
  %v2410 = vpop.f32.mrb[0].mxu0
  %2411 = vmatprep.mubr.bf16.mxu0 0
  %2412 = vmatmul.mubr.bf16.gmra.mrb[0].mxu0 %v2351
  %v2413 = vpop.f32.mrb[0].mxu0
  %v2414 = vadd.f32 0.0, %v2413
  %v2415 = vpop.f32.mrb[0].mxu0
  %v2416 = vpop.f32.mrb[0].mxu0
  %v2417 = vadd.f32 0.0, %v2416
  %v2418 = vpop.f32.mrb[0].mxu0
  %2419 = vmatprep.mubr.bf16.mxu0 0
  %2420 = vmatmul.mubr.bf16.gmra.mrb[0].mxu0 %v2354
  %v2421 = vpop.f32.mrb[0].mxu0
  %v2422 = vadd.f32 0.0, %v2421
  %v2423 = vpop.f32.mrb[0].mxu0
  %v2424 = vpop.f32.mrb[0].mxu0
  %v2425 = vadd.f32 0.0, %v2424
  %v2426 = vpop.f32.mrb[0].mxu0
  %2427 = vmatprep.mubr.bf16.mxu0 0
  %2428 = vmatmul.mubr.bf16.gmra.mrb[0].mxu0 %v2357
  %v2429 = vpop.f32.mrb[0].mxu0
  %v2430 = vadd.f32 0.0, %v2429
  %v2431 = vpop.f32.mrb[0].mxu0
  %v2432 = vpop.f32.mrb[0].mxu0
  %v2433 = vadd.f32 0.0, %v2432
  %v2434 = vpop.f32.mrb[0].mxu0
  %2435 = vmatprep.mubr.bf16.mxu0 0
  %2436 = vmatmul.mubr.bf16.gmra.mrb[0].mxu0 %v2360
  %v2437 = vpop.f32.mrb[0].mxu0
  %v2438 = vadd.f32 0.0, %v2437
  %v2439 = vpop.f32.mrb[0].mxu0
  %v2440 = vpop.f32.mrb[0].mxu0
  %v2441 = vadd.f32 0.0, %v2440
  %v2442 = vpop.f32.mrb[0].mxu0
  %2443 = vmatprep.mubr.bf16.mxu0 0
  %2444 = vmatmul.mubr.bf16.gmra.mrb[0].mxu0 %v2363
  %v2445 = vpop.f32.mrb[0].mxu0
  %v2446 = vadd.f32 0.0, %v2445
  %v2447 = vpop.f32.mrb[0].mxu0
  %v2448 = vpop.f32.mrb[0].mxu0
  %v2449 = vadd.f32 0.0, %v2448
  %v2450 = vpop.f32.mrb[0].mxu0
  %2451 = vmatprep.mubr.bf16.mxu0 0
  %2452 = vmatmul.mubr.bf16.gmra.mrb[0].mxu0 %v2366
  %v2453 = vpop.f32.mrb[0].mxu0
  %v2454 = vadd.f32 0.0, %v2453
  %v2455 = vpop.f32.mrb[0].mxu0
  %v2456 = vpop.f32.mrb[0].mxu0
  %v2457 = vadd.f32 0.0, %v2456
  %v2458 = vpop.f32.mrb[0].mxu0
  %2459 = vmatprep.mubr.bf16.mxu0 0
  %2460 = vmatmul.mubr.bf16.gmra.mrb[0].mxu0 %v2369
  %v2461 = vpop.f32.mrb[0].mxu0
  %v2462 = vadd.f32 0.0, %v2461
  %v2463 = vpop.f32.mrb[0].mxu0
  %v2464 = vpop.f32.mrb[0].mxu0
  %v2465 = vadd.f32 0.0, %v2464
  %v2466 = vpop.f32.mrb[0].mxu0
  %2467 = vdwg.mxu0
  %v2468 = vadd.f32 %v2261, %v2406
  %v2469 = vadd.f32 %v2264, %v2409
  %v2470 = vadd.f32 %v2269, %v2414
  %v2471 = vadd.f32 %v2272, %v2417
  %v2472 = vadd.f32 %v2277, %v2422
  %v2473 = vadd.f32 %v2280, %v2425
  %v2474 = vadd.f32 %v2285, %v2430
  %v2475 = vadd.f32 %v2288, %v2433
  %v2476 = vadd.f32 %v2293, %v2438
  %v2477 = vadd.f32 %v2296, %v2441
  %v2478 = vadd.f32 %v2301, %v2446
  %v2479 = vadd.f32 %v2304, %v2449
  %v2480 = vadd.f32 %v2309, %v2454
  %v2481 = vadd.f32 %v2312, %v2457
  %v2482 = vadd.f32 %v2317, %v2462
  %v2483 = vadd.f32 %v2320, %v2465
  %v2485 = vlaneseq
  %v2486 = vshrl.u32 %v2485, 7
  %v2487 = vsub.s32 0, %v2486
  %v2488 = vrot.slane %v1814, %v2487
  %v2490 = vadd.f32 %v2468, %v2488
  %v2491 = vadd.f32 %v2469, %v2488
  %v2492 = vadd.f32 %v2470, %v2488
  %v2493 = vadd.f32 %v2471, %v2488
  %v2494 = vadd.f32 %v2472, %v2488
  %v2495 = vadd.f32 %v2473, %v2488
  %v2496 = vadd.f32 %v2474, %v2488
  %v2497 = vadd.f32 %v2475, %v2488
  %v2498 = vadd.f32 %v2476, %v2488
  %v2499 = vadd.f32 %v2477, %v2488
  %v2500 = vadd.f32 %v2478, %v2488
  %v2501 = vadd.f32 %v2479, %v2488
  %v2502 = vadd.f32 %v2480, %v2488
  %v2503 = vadd.f32 %v2481, %v2488
  %v2504 = vadd.f32 %v2482, %v2488
  %v2505 = vadd.f32 %v2483, %v2488
  %v2506 = vadd.f32 %v2490, %v913
  %v2507 = vadd.f32 %v2491, %v914
  %v2508 = vadd.f32 %v2492, %v915
  %v2509 = vadd.f32 %v2493, %v916
  %v2510 = vadd.f32 %v2494, %v917
  %v2511 = vadd.f32 %v2495, %v918
  %v2512 = vadd.f32 %v2496, %v919
  %v2513 = vadd.f32 %v2497, %v920
  %v2514 = vadd.f32 %v2498, %v921
  %v2515 = vadd.f32 %v2499, %v922
  %v2516 = vadd.f32 %v2500, %v923
  %v2517 = vadd.f32 %v2501, %v924
  %v2518 = vadd.f32 %v2502, %v925
  %v2519 = vadd.f32 %v2503, %v926
  %v2520 = vadd.f32 %v2504, %v927
  %v2521 = vadd.f32 %v2505, %v928
  %v2522 = vmax.f32 %v2506, 0.0
  %v2523 = vmax.f32 %v2507, 0.0
  %v2524 = vmax.f32 %v2508, 0.0
  %v2525 = vmax.f32 %v2509, 0.0
  %v2526 = vmax.f32 %v2510, 0.0
  %v2527 = vmax.f32 %v2511, 0.0
  %v2528 = vmax.f32 %v2512, 0.0
  %v2529 = vmax.f32 %v2513, 0.0
  %v2530 = vmax.f32 %v2514, 0.0
  %v2531 = vmax.f32 %v2515, 0.0
  %v2532 = vmax.f32 %v2516, 0.0
  %v2533 = vmax.f32 %v2517, 0.0
  %v2534 = vmax.f32 %v2518, 0.0
  %v2535 = vmax.f32 %v2519, 0.0
  %v2536 = vmax.f32 %v2520, 0.0
  %v2537 = vmax.f32 %v2521, 0.0
  %2538 = vst.msk [vmem:[%s12] sm:$0xff] %vm1324, %v2522
  %2539 = vst.msk [vmem:[%s12 + $0x8] sm:$0xff] %vm1324, %v2523
  %2540 = vst.msk [vmem:[%s12 + $0x10] sm:$0xff] %vm1324, %v2524
  %2541 = vst.msk [vmem:[%s12 + $0x18] sm:$0xff] %vm1324, %v2525
  %2542 = vst.msk [vmem:[%s12 + $0x20] sm:$0xff] %vm1324, %v2526
  %2543 = vst.msk [vmem:[%s12 + $0x28] sm:$0xff] %vm1324, %v2527
  %2544 = vst.msk [vmem:[%s12 + $0x30] sm:$0xff] %vm1324, %v2528
  %2545 = vst.msk [vmem:[%s12 + $0x38] sm:$0xff] %vm1324, %v2529
  %2546 = vst.msk [vmem:[%s12 + $0x40] sm:$0xff] %vm1324, %v2530
  %2547 = vst.msk [vmem:[%s12 + $0x48] sm:$0xff] %vm1324, %v2531
  %2548 = vst.msk [vmem:[%s12 + $0x50] sm:$0xff] %vm1324, %v2532
  %2549 = vst.msk [vmem:[%s12 + $0x58] sm:$0xff] %vm1324, %v2533
  %2550 = vst.msk [vmem:[%s12 + $0x60] sm:$0xff] %vm1324, %v2534
  %2551 = vst.msk [vmem:[%s12 + $0x68] sm:$0xff] %vm1324, %v2535
  %2552 = vst.msk [vmem:[%s12 + $0x70] sm:$0xff] %vm1324, %v2536
  %2553 = vst.msk [vmem:[%s12 + $0x78] sm:$0xff] %vm1324, %v2537
  // Predicated region
  $region50: #{eq_motion_forward.3} parent=0 // pred_check
    _
  $region51: #{eq_motion_forward.3} parent=0 // pred_check_branch
    %2555 = sbr.rel (0) target = $region53
  $region52: #{eq_motion_forward.3} parent=0 // pred_region
    _
  $region53: #{eq_motion_forward.3} parent=0 // pred_fallthru
    _
  // Predicated region
  $region54: #{eq_motion_forward.3} parent=0 // pred_check
    _
  $region55: #{eq_motion_forward.3} parent=0 // pred_check_branch
    %2557 = sbr.rel (0) target = $region57
  $region56: #{eq_motion_forward.3} parent=0 // pred_region
    _
  $region57: #{eq_motion_forward.3} parent=0 // pred_fallthru
    _

// kernel: eq_motion_forward.5
$region0: #{eq_motion_forward.5}
  #allocation0 [shape = 'u32[]', space=smem, size = 0x4, offset = 0x4, fixed_abs, tag = 'smem constant byte address 0x4 - core index']
  #allocation1 [shape = 'u32[144,128]{1,0:T(1,128)}', space=vmem, size = 0x12000, scoped, tag = 'internal scratch']
  %s0 = inlined_call_operand.vmem [shape: f32[2,8,1024], index: 0, kind: input, shape index: {}]
  %s1 = inlined_call_operand.vmem [shape: bf16[2,1024,512], index: 1, kind: input, shape index: {}]
  %s2 = inlined_call_operand.vmem [shape: f32[2,1,512], index: 2, kind: input, shape index: {}]
  %s3 = inlined_call_operand.vmem [shape: bf16[2,512,512], index: 3, kind: input, shape index: {}]
  %s4 = inlined_call_operand.vmem [shape: f32[2,1,512], index: 4, kind: input, shape index: {}]
  %s5 = inlined_call_operand.vmem [shape: bf16[2,512,8], index: 5, kind: input, shape index: {}]
  %s6 = inlined_call_operand.vmem [shape: f32[2,1,8], index: 6, kind: input, shape index: {}]
  %s7 = inlined_call_operand.vmem [shape: f32[2,8,8], index: 7, kind: output, shape index: {}]
  %s8 = sld [smem:[#allocation0]]
  $region61: #{eq_motion_forward.5} parent=0
    _
  %s10 = ssub.s32 1, %s8
  %s11 = scalar_select 0, %s10, %s8
  loop: start=0, step=1, limit=4
  $region2: #{eq_motion_forward.5} parent=0 // loop_pre_header
    _
  $region3: #{eq_motion_forward.5} parent=0 // loop_header
    %s13 = sphi 0, %s17
    %p14 = scmp.ge.s32.totalorder %s13, 4
    %s23 = sphi 0, %s25
    %s26 = sphi 0, %s23
    %s27 = sphi 0, %s26
    %s43 = sphi 0, %s27
    %s49 = sphi 0, %s51
    %s52 = sphi 0, %s49
    %s53 = sphi 0, %s52
    %s69 = sphi 0, %s53
    %s75 = sphi 0, %s77
    %s78 = sphi 0, %s75
    %s79 = sphi 0, %s78
    %s95 = sphi 0, %s79
    %s101 = sphi 0, %s103
    %s104 = sphi 0, %s101
    %s105 = sphi 0, %s104
    %s121 = sphi 0, %s105
    %s127 = sphi 0, %s129
    %s130 = sphi 0, %s127
    %s131 = sphi 0, %s130
    %s147 = sphi 0, %s131
    %s153 = sphi 0, %s155
    %s156 = sphi 0, %s153
    %s157 = sphi 0, %s156
    %s173 = sphi 0, %s157
    %s179 = sphi 0, %s181
    %s182 = sphi 0, %s179
    %s183 = sphi 0, %s182
    %s199 = sphi 0, %s183
    %s205 = sphi 0, %s207
    %s208 = sphi 0, %s205
    %s209 = sphi 0, %s208
    %s225 = sphi 0, %s209
  $region4: #{eq_motion_forward.5} parent=0 // loop_header_branch
    %16 = sbr.rel (%p14) target = $region8
  $region5: #{eq_motion_forward.5} parent=0 // loop_body
    %s18 = ssub.s32 %s13, 1
    %s19 = ssub.s32 %s13, 2
    %s20 = sadd.s32 %s13, 1
    %s21 = ssub.s32 %s13, %s20
    %p22 = scmp.eq.s32.totalorder %s21, 0
    %s24 = sadd.s32 %s23, 1
    %s25 = scalar_select %p22, %s23, %s24
    %p28 = pneg %p22
    %p29 = scmp.eq.s32.totalorder %s13, 1
    %p30 = por %p28, %p29
    %p31 = scmp.ne.s32.totalorder %s23, %s26
    %p32 = scmp.eq.s32.totalorder %s13, 0
    %p33 = por %p31, %p32
    %p34 = scmp.ne.s32.totalorder %s23, %s26
    %p35 = scmp.eq.s32.totalorder %s18, 1
    %p36 = por %p34, %p35
    %p37 = scmp.ne.s32.totalorder %s26, %s27
    %p38 = scmp.eq.s32.totalorder %s18, 0
    %p39 = por %p37, %p38
    %p40 = scmp.ne.s32.totalorder %s26, %s27
    %p41 = scmp.eq.s32.totalorder %s19, 1
    %p42 = por %p40, %p41
    %p44 = scmp.ne.s32.totalorder %s27, %s43
    %p45 = scmp.eq.s32.totalorder %s19, 0
    %p46 = por %p44, %p45
    %s47 = ssub.s32 %s13, %s20
    %p48 = scmp.eq.s32.totalorder %s47, 0
    %s50 = sadd.s32 %s49, 1
    %s51 = scalar_select %p48, %s49, %s50
    %p54 = pneg %p48
    %p55 = scmp.eq.s32.totalorder %s13, 1
    %p56 = por %p54, %p55
    %p57 = scmp.ne.s32.totalorder %s49, %s52
    %p58 = scmp.eq.s32.totalorder %s13, 0
    %p59 = por %p57, %p58
    %p60 = scmp.ne.s32.totalorder %s49, %s52
    %p61 = scmp.eq.s32.totalorder %s18, 1
    %p62 = por %p60, %p61
    %p63 = scmp.ne.s32.totalorder %s52, %s53
    %p64 = scmp.eq.s32.totalorder %s18, 0
    %p65 = por %p63, %p64
    %p66 = scmp.ne.s32.totalorder %s52, %s53
    %p67 = scmp.eq.s32.totalorder %s19, 1
    %p68 = por %p66, %p67
    %p70 = scmp.ne.s32.totalorder %s53, %s69
    %p71 = scmp.eq.s32.totalorder %s19, 0
    %p72 = por %p70, %p71
    %s73 = ssub.s32 %s13, %s20
    %p74 = scmp.eq.s32.totalorder %s73, 0
    %s76 = sadd.s32 %s75, 1
    %s77 = scalar_select %p74, %s75, %s76
    %p80 = pneg %p74
    %p81 = scmp.eq.s32.totalorder %s13, 1
    %p82 = por %p80, %p81
    %p83 = scmp.ne.s32.totalorder %s75, %s78
    %p84 = scmp.eq.s32.totalorder %s13, 0
    %p85 = por %p83, %p84
    %p86 = scmp.ne.s32.totalorder %s75, %s78
    %p87 = scmp.eq.s32.totalorder %s18, 1
    %p88 = por %p86, %p87
    %p89 = scmp.ne.s32.totalorder %s78, %s79
    %p90 = scmp.eq.s32.totalorder %s18, 0
    %p91 = por %p89, %p90
    %p92 = scmp.ne.s32.totalorder %s78, %s79
    %p93 = scmp.eq.s32.totalorder %s19, 1
    %p94 = por %p92, %p93
    %p96 = scmp.ne.s32.totalorder %s79, %s95
    %p97 = scmp.eq.s32.totalorder %s19, 0
    %p98 = por %p96, %p97
    %s99 = ssub.s32 %s13, %s20
    %p100 = scmp.eq.s32.totalorder %s99, 0
    %s102 = sadd.s32 %s101, 1
    %s103 = scalar_select %p100, %s101, %s102
    %p106 = pneg %p100
    %p107 = scmp.eq.s32.totalorder %s13, 1
    %p108 = por %p106, %p107
    %p109 = scmp.ne.s32.totalorder %s101, %s104
    %p110 = scmp.eq.s32.totalorder %s13, 0
    %p111 = por %p109, %p110
    %p112 = scmp.ne.s32.totalorder %s101, %s104
    %p113 = scmp.eq.s32.totalorder %s18, 1
    %p114 = por %p112, %p113
    %p115 = scmp.ne.s32.totalorder %s104, %s105
    %p116 = scmp.eq.s32.totalorder %s18, 0
    %p117 = por %p115, %p116
    %p118 = scmp.ne.s32.totalorder %s104, %s105
    %p119 = scmp.eq.s32.totalorder %s19, 1
    %p120 = por %p118, %p119
    %p122 = scmp.ne.s32.totalorder %s105, %s121
    %p123 = scmp.eq.s32.totalorder %s19, 0
    %p124 = por %p122, %p123
    %s125 = ssub.s32 %s13, %s20
    %p126 = scmp.eq.s32.totalorder %s125, 0
    %s128 = sadd.s32 %s127, 1
    %s129 = scalar_select %p126, %s127, %s128
    %p132 = pneg %p126
    %p133 = scmp.eq.s32.totalorder %s13, 1
    %p134 = por %p132, %p133
    %p135 = scmp.ne.s32.totalorder %s127, %s130
    %p136 = scmp.eq.s32.totalorder %s13, 0
    %p137 = por %p135, %p136
    %p138 = scmp.ne.s32.totalorder %s127, %s130
    %p139 = scmp.eq.s32.totalorder %s18, 1
    %p140 = por %p138, %p139
    %p141 = scmp.ne.s32.totalorder %s130, %s131
    %p142 = scmp.eq.s32.totalorder %s18, 0
    %p143 = por %p141, %p142
    %p144 = scmp.ne.s32.totalorder %s130, %s131
    %p145 = scmp.eq.s32.totalorder %s19, 1
    %p146 = por %p144, %p145
    %p148 = scmp.ne.s32.totalorder %s131, %s147
    %p149 = scmp.eq.s32.totalorder %s19, 0
    %p150 = por %p148, %p149
    %s151 = ssub.s32 %s13, %s20
    %p152 = scmp.eq.s32.totalorder %s151, 0
    %s154 = sadd.s32 %s153, 1
    %s155 = scalar_select %p152, %s153, %s154
    %p158 = pneg %p152
    %p159 = scmp.eq.s32.totalorder %s13, 1
    %p160 = por %p158, %p159
    %p161 = scmp.ne.s32.totalorder %s153, %s156
    %p162 = scmp.eq.s32.totalorder %s13, 0
    %p163 = por %p161, %p162
    %p164 = scmp.ne.s32.totalorder %s153, %s156
    %p165 = scmp.eq.s32.totalorder %s18, 1
    %p166 = por %p164, %p165
    %p167 = scmp.ne.s32.totalorder %s156, %s157
    %p168 = scmp.eq.s32.totalorder %s18, 0
    %p169 = por %p167, %p168
    %p170 = scmp.ne.s32.totalorder %s156, %s157
    %p171 = scmp.eq.s32.totalorder %s19, 1
    %p172 = por %p170, %p171
    %p174 = scmp.ne.s32.totalorder %s157, %s173
    %p175 = scmp.eq.s32.totalorder %s19, 0
    %p176 = por %p174, %p175
    %s177 = ssub.s32 %s13, %s20
    %p178 = scmp.eq.s32.totalorder %s177, 0
    %s180 = sadd.s32 %s179, 1
    %s181 = scalar_select %p178, %s179, %s180
    %p184 = pneg %p178
    %p185 = scmp.eq.s32.totalorder %s13, 1
    %p186 = por %p184, %p185
    %p187 = scmp.ne.s32.totalorder %s179, %s182
    %p188 = scmp.eq.s32.totalorder %s13, 0
    %p189 = por %p187, %p188
    %p190 = scmp.ne.s32.totalorder %s179, %s182
    %p191 = scmp.eq.s32.totalorder %s18, 1
    %p192 = por %p190, %p191
    %p193 = scmp.ne.s32.totalorder %s182, %s183
    %p194 = scmp.eq.s32.totalorder %s18, 0
    %p195 = por %p193, %p194
    %p196 = scmp.ne.s32.totalorder %s182, %s183
    %p197 = scmp.eq.s32.totalorder %s19, 1
    %p198 = por %p196, %p197
    %p200 = scmp.ne.s32.totalorder %s183, %s199
    %p201 = scmp.eq.s32.totalorder %s19, 0
    %p202 = por %p200, %p201
    %s203 = ssub.s32 %s13, %s20
    %p204 = scmp.eq.s32.totalorder %s203, 0
    %s206 = sadd.s32 %s205, 1
    %s207 = scalar_select %p204, %s205, %s206
    %p210 = pneg %p204
    %p211 = scmp.eq.s32.totalorder %s13, 1
    %p212 = por %p210, %p211
    %p213 = scmp.ne.s32.totalorder %s205, %s208
    %p214 = scmp.eq.s32.totalorder %s13, 0
    %p215 = por %p213, %p214
    %p216 = scmp.ne.s32.totalorder %s205, %s208
    %p217 = scmp.eq.s32.totalorder %s18, 1
    %p218 = por %p216, %p217
    %p219 = scmp.ne.s32.totalorder %s208, %s209
    %p220 = scmp.eq.s32.totalorder %s18, 0
    %p221 = por %p219, %p220
    %p222 = scmp.ne.s32.totalorder %s208, %s209
    %p223 = scmp.eq.s32.totalorder %s19, 1
    %p224 = por %p222, %p223
    %p226 = scmp.ne.s32.totalorder %s209, %s225
    %p227 = scmp.eq.s32.totalorder %s19, 0
    %p228 = por %p226, %p227
    %p229 = scmp.le.s32.totalorder 1, %s13
    %p230 = scmp.lt.s32.totalorder %s13, 3
    %p231 = pnand %p229, %p230
    %p232 = pneg %p231
    // Predicated region
    $region9: #{eq_motion_forward.5} parent=5 // pred_check
      _
    $region10: #{eq_motion_forward.5} parent=5 // pred_check_branch
      %234 = sbr.rel (%p231) target = $region12
    $region11: #{eq_motion_forward.5} parent=5 // pred_region
      %s235 = ssub.s32 %s13, 1
    $region12: #{eq_motion_forward.5} parent=5 // pred_fallthru
      _
    %p236 = scmp.lt.s32.totalorder %s13, 2
    // Predicated region
    $region13: #{eq_motion_forward.5} parent=5 // pred_check
      %p237 = pneg %p236
    $region14: #{eq_motion_forward.5} parent=5 // pred_check_branch
      %239 = sbr.rel (%p237) target = $region16
    $region15: #{eq_motion_forward.5} parent=5 // pred_region
      // Predicated region
      $region17: #{eq_motion_forward.5} parent=15 // pred_check
        %p240 = pneg %p33
      $region18: #{eq_motion_forward.5} parent=15 // pred_check_branch
        %242 = sbr.rel (%p240) target = $region20
      $region19: #{eq_motion_forward.5} parent=15 // pred_region
        %p243 = scmp.lt.s32.totalorder %s13, 1
        %s244 = scalar_select %p243, %s13, 1
        %s245 = smul.addr %s244, 8
        %s246 = smul.addr %s245, 8
        %s247 = scalar_lea.vmem %s0, %s246
      $region20: #{eq_motion_forward.5} parent=15 // pred_fallthru
        _
      // Predicated region
      $region21: #{eq_motion_forward.5} parent=15 // pred_check
        %p248 = pneg %p59
      $region22: #{eq_motion_forward.5} parent=15 // pred_check_branch
        %250 = sbr.rel (%p248) target = $region24
      $region23: #{eq_motion_forward.5} parent=15 // pred_region
        %p251 = scmp.lt.s32.totalorder %s13, 1
        %s252 = scalar_select %p251, %s13, 1
        %s253 = smul.addr %s252, 512
        %s254 = smul.addr %s253, 4
        %s255 = scalar_lea.vmem %s1, %s254
      $region24: #{eq_motion_forward.5} parent=15 // pred_fallthru
        _
      // Predicated region
      $region25: #{eq_motion_forward.5} parent=15 // pred_check
        %p256 = pneg %p85
      $region26: #{eq_motion_forward.5} parent=15 // pred_check_branch
        %258 = sbr.rel (%p256) target = $region28
      $region27: #{eq_motion_forward.5} parent=15 // pred_region
        %p259 = scmp.lt.s32.totalorder %s13, 1
        %s260 = scalar_select %p259, %s13, 1
        %s261 = smul.addr %s260, 4
        %s262 = scalar_lea.vmem %s2, %s261
      $region28: #{eq_motion_forward.5} parent=15 // pred_fallthru
        _
      // Predicated region
      $region29: #{eq_motion_forward.5} parent=15 // pred_check
        %p263 = pneg %p111
      $region30: #{eq_motion_forward.5} parent=15 // pred_check_branch
        %265 = sbr.rel (%p263) target = $region32
      $region31: #{eq_motion_forward.5} parent=15 // pred_region
        %p266 = scmp.lt.s32.totalorder %s13, 1
        %s267 = scalar_select %p266, %s13, 1
        %s268 = smul.addr %s267, 256
        %s269 = smul.addr %s268, 4
        %s270 = scalar_lea.vmem %s3, %s269
      $region32: #{eq_motion_forward.5} parent=15 // pred_fallthru
        _
      // Predicated region
      $region33: #{eq_motion_forward.5} parent=15 // pred_check
        %p271 = pneg %p137
      $region34: #{eq_motion_forward.5} parent=15 // pred_check_branch
        %273 = sbr.rel (%p271) target = $region36
      $region35: #{eq_motion_forward.5} parent=15 // pred_region
        %p274 = scmp.lt.s32.totalorder %s13, 1
        %s275 = scalar_select %p274, %s13, 1
        %s276 = smul.addr %s275, 4
        %s277 = scalar_lea.vmem %s4, %s276
      $region36: #{eq_motion_forward.5} parent=15 // pred_fallthru
        _
      // Predicated region
      $region37: #{eq_motion_forward.5} parent=15 // pred_check
        %p278 = pneg %p163
      $region38: #{eq_motion_forward.5} parent=15 // pred_check_branch
        %280 = sbr.rel (%p278) target = $region40
      $region39: #{eq_motion_forward.5} parent=15 // pred_region
        %p281 = scmp.lt.s32.totalorder %s13, 1
        %s282 = scalar_select %p281, %s13, 1
        %s283 = smul.addr %s282, 64
        %s284 = smul.addr %s283, 4
        %s285 = scalar_lea.vmem %s5, %s284
      $region40: #{eq_motion_forward.5} parent=15 // pred_fallthru
        _
      // Predicated region
      $region41: #{eq_motion_forward.5} parent=15 // pred_check
        %p286 = pneg %p189
      $region42: #{eq_motion_forward.5} parent=15 // pred_check_branch
        %288 = sbr.rel (%p286) target = $region44
      $region43: #{eq_motion_forward.5} parent=15 // pred_region
        %p289 = scmp.lt.s32.totalorder %s13, 1
        %s290 = scalar_select %p289, %s13, 1
        %s291 = scalar_lea.vmem %s6, %s290
      $region44: #{eq_motion_forward.5} parent=15 // pred_fallthru
        _
    $region16: #{eq_motion_forward.5} parent=5 // pred_fallthru
      _
    %p292 = scmp.le.s32.totalorder 1, %s13
    %p293 = scmp.lt.s32.totalorder %s13, 3
    %p294 = pnand %p292, %p293
    %p295 = pneg %p294
    // Predicated region
    $region45: #{eq_motion_forward.5} parent=5 // pred_check
      _
    $region46: #{eq_motion_forward.5} parent=5 // pred_check_branch
      %297 = sbr.rel (%p294) target = $region48
    $region47: #{eq_motion_forward.5} parent=5 // pred_region
      %s298 = ssub.s32 %s13, 1
      %p299 = scmp.lt.s32.totalorder %s18, 1
      %s300 = scalar_select %p299, %s18, 1
      %s301 = smul.addr %s300, 8
      %s302 = smul.addr %s301, 8
      %s303 = scalar_lea.vmem %s0, %s302
      %p304 = pneg %p39
      %p305 = pneg %p36
      %p306 = scmp.lt.s32.totalorder %s18, 1
      %s307 = scalar_select %p306, %s18, 1
      %s308 = smul.addr %s307, 512
      %s309 = smul.addr %s308, 4
      %s310 = scalar_lea.vmem %s1, %s309
      %p311 = pneg %p65
      %p312 = pneg %p62
      %p313 = scmp.lt.s32.totalorder %s18, 1
      %s314 = scalar_select %p313, %s18, 1
      %s315 = smul.addr %s314, 4
      %s316 = scalar_lea.vmem %s2, %s315
      %p317 = pneg %p91
      %p318 = pneg %p88
      %p319 = scmp.lt.s32.totalorder %s18, 1
      %s320 = scalar_select %p319, %s18, 1
      %s321 = smul.addr %s320, 256
      %s322 = smul.addr %s321, 4
      %s323 = scalar_lea.vmem %s3, %s322
      %p324 = pneg %p117
      %p325 = pneg %p114
      %p326 = scmp.lt.s32.totalorder %s18, 1
      %s327 = scalar_select %p326, %s18, 1
      %s328 = smul.addr %s327, 4
      %s329 = scalar_lea.vmem %s4, %s328
      %p330 = pneg %p143
      %p331 = pneg %p140
      %p332 = scmp.lt.s32.totalorder %s18, 1
      %s333 = scalar_select %p332, %s18, 1
      %s334 = smul.addr %s333, 64
      %s335 = smul.addr %s334, 4
      %s336 = scalar_lea.vmem %s5, %s335
      %p337 = pneg %p169
      %p338 = pneg %p166
      %p339 = scmp.lt.s32.totalorder %s18, 1
      %s340 = scalar_select %p339, %s18, 1
      %s341 = scalar_lea.vmem %s6, %s340
      %p342 = pneg %p195
      %p343 = pneg %p192
      %p344 = pneg %p221
      %p345 = pneg %p218
      %p346 = scmp.lt.s32.totalorder %s18, 1
      %s347 = scalar_select %p346, %s18, 1
      %s348 = smul.addr %s347, 8
      %s349 = scalar_lea.vmem %s7, %s348
      %p350 = scmp.lt.s32.totalorder %s18, 1
      %s351 = scalar_select %p350, %s18, 1
      %s352 = smul.addr %s351, 8
      %s353 = smul.addr %s352, 8
      %s354 = scalar_lea.vmem %s0, %s353
      %p355 = scmp.lt.s32.totalorder %s18, 1
      %s356 = scalar_select %p355, %s18, 1
      %s357 = smul.addr %s356, 512
      %s358 = smul.addr %s357, 4
      %s359 = scalar_lea.vmem %s1, %s358
      %p360 = scmp.lt.s32.totalorder %s18, 1
      %s361 = scalar_select %p360, %s18, 1
      %s362 = smul.addr %s361, 4
      %s363 = scalar_lea.vmem %s2, %s362
      %p364 = scmp.lt.s32.totalorder %s18, 1
      %s365 = scalar_select %p364, %s18, 1
      %s366 = smul.addr %s365, 256
      %s367 = smul.addr %s366, 4
      %s368 = scalar_lea.vmem %s3, %s367
      %p369 = scmp.lt.s32.totalorder %s18, 1
      %s370 = scalar_select %p369, %s18, 1
      %s371 = smul.addr %s370, 4
      %s372 = scalar_lea.vmem %s4, %s371
      %p373 = scmp.lt.s32.totalorder %s18, 1
      %s374 = scalar_select %p373, %s18, 1
      %s375 = smul.addr %s374, 64
      %s376 = smul.addr %s375, 4
      %s377 = scalar_lea.vmem %s5, %s376
      %p378 = scmp.lt.s32.totalorder %s18, 1
      %s379 = scalar_select %p378, %s18, 1
      %s380 = scalar_lea.vmem %s6, %s379
      %p381 = scmp.lt.s32.totalorder %s18, 1
      %s382 = scalar_select %p381, %s18, 1
      %s383 = smul.addr %s382, 8
      %s384 = scalar_lea.vmem %s7, %s383
      %v386 = vld [vmem:[%s354] sm:$0xff]
      %v387 = vld [vmem:[%s354 + $0x8] sm:$0xff]
      %v388 = vld [vmem:[%s354 + $0x10] sm:$0xff]
      %v389 = vld [vmem:[%s354 + $0x18] sm:$0xff]
      %v390 = vld [vmem:[%s354 + $0x20] sm:$0xff]
      %v391 = vld [vmem:[%s354 + $0x28] sm:$0xff]
      %v392 = vld [vmem:[%s354 + $0x30] sm:$0xff]
      %v393 = vld [vmem:[%s354 + $0x38] sm:$0xff]
      %v394 = vpack.c.bf16 %v386, %v386
      %v395 = vpack.c.bf16 %v387, %v387
      %v396 = vpack.c.bf16 %v388, %v388
      %v397 = vpack.c.bf16 %v389, %v389
      %v398 = vpack.c.bf16 %v390, %v390
      %v399 = vpack.c.bf16 %v391, %v391
      %v400 = vpack.c.bf16 %v392, %v392
      %v401 = vpack.c.bf16 %v393, %v393
      %v402 = vld [vmem:[%s359] sm:$0xff]
      %v403 = vld [vmem:[%s359 + $0x8] sm:$0xff]
      %v404 = vld [vmem:[%s359 + $0x10] sm:$0xff]
      %v405 = vld [vmem:[%s359 + $0x18] sm:$0xff]
      %v406 = vld [vmem:[%s359 + $0x20] sm:$0xff]
      %v407 = vld [vmem:[%s359 + $0x28] sm:$0xff]
      %v408 = vld [vmem:[%s359 + $0x30] sm:$0xff]
      %v409 = vld [vmem:[%s359 + $0x38] sm:$0xff]
      %v410 = vld [vmem:[%s359 + $0x40] sm:$0xff]
      %v411 = vld [vmem:[%s359 + $0x48] sm:$0xff]
      %v412 = vld [vmem:[%s359 + $0x50] sm:$0xff]
      %v413 = vld [vmem:[%s359 + $0x58] sm:$0xff]
      %v414 = vld [vmem:[%s359 + $0x60] sm:$0xff]
      %v415 = vld [vmem:[%s359 + $0x68] sm:$0xff]
      %v416 = vld [vmem:[%s359 + $0x70] sm:$0xff]
      %v417 = vld [vmem:[%s359 + $0x78] sm:$0xff]
      %v418 = vld [vmem:[%s359 + $0x80] sm:$0xff]
      %v419 = vld [vmem:[%s359 + $0x88] sm:$0xff]
      %v420 = vld [vmem:[%s359 + $0x90] sm:$0xff]
      %v421 = vld [vmem:[%s359 + $0x98] sm:$0xff]
      %v422 = vld [vmem:[%s359 + $0xa0] sm:$0xff]
      %v423 = vld [vmem:[%s359 + $0xa8] sm:$0xff]
      %v424 = vld [vmem:[%s359 + $0xb0] sm:$0xff]
      %v425 = vld [vmem:[%s359 + $0xb8] sm:$0xff]
      %v426 = vld [vmem:[%s359 + $0xc0] sm:$0xff]
      %v427 = vld [vmem:[%s359 + $0xc8] sm:$0xff]
      %v428 = vld [vmem:[%s359 + $0xd0] sm:$0xff]
      %v429 = vld [vmem:[%s359 + $0xd8] sm:$0xff]
      %v430 = vld [vmem:[%s359 + $0xe0] sm:$0xff]
      %v431 = vld [vmem:[%s359 + $0xe8] sm:$0xff]
      %v432 = vld [vmem:[%s359 + $0xf0] sm:$0xff]
      %v433 = vld [vmem:[%s359 + $0xf8] sm:$0xff]
      %v434 = vld [vmem:[%s359 + $0x100] sm:$0xff]
      %v435 = vld [vmem:[%s359 + $0x108] sm:$0xff]
      %v436 = vld [vmem:[%s359 + $0x110] sm:$0xff]
      %v437 = vld [vmem:[%s359 + $0x118] sm:$0xff]
      %v438 = vld [vmem:[%s359 + $0x120] sm:$0xff]
      %v439 = vld [vmem:[%s359 + $0x128] sm:$0xff]
      %v440 = vld [vmem:[%s359 + $0x130] sm:$0xff]
      %v441 = vld [vmem:[%s359 + $0x138] sm:$0xff]
      %v442 = vld [vmem:[%s359 + $0x140] sm:$0xff]
      %v443 = vld [vmem:[%s359 + $0x148] sm:$0xff]
      %v444 = vld [vmem:[%s359 + $0x150] sm:$0xff]
      %v445 = vld [vmem:[%s359 + $0x158] sm:$0xff]
      %v446 = vld [vmem:[%s359 + $0x160] sm:$0xff]
      %v447 = vld [vmem:[%s359 + $0x168] sm:$0xff]
      %v448 = vld [vmem:[%s359 + $0x170] sm:$0xff]
      %v449 = vld [vmem:[%s359 + $0x178] sm:$0xff]
      %v450 = vld [vmem:[%s359 + $0x180] sm:$0xff]
      %v451 = vld [vmem:[%s359 + $0x188] sm:$0xff]
      %v452 = vld [vmem:[%s359 + $0x190] sm:$0xff]
      %v453 = vld [vmem:[%s359 + $0x198] sm:$0xff]
      %v454 = vld [vmem:[%s359 + $0x1a0] sm:$0xff]
      %v455 = vld [vmem:[%s359 + $0x1a8] sm:$0xff]
      %v456 = vld [vmem:[%s359 + $0x1b0] sm:$0xff]
      %v457 = vld [vmem:[%s359 + $0x1b8] sm:$0xff]
      %v458 = vld [vmem:[%s359 + $0x1c0] sm:$0xff]
      %v459 = vld [vmem:[%s359 + $0x1c8] sm:$0xff]
      %v460 = vld [vmem:[%s359 + $0x1d0] sm:$0xff]
      %v461 = vld [vmem:[%s359 + $0x1d8] sm:$0xff]
      %v462 = vld [vmem:[%s359 + $0x1e0] sm:$0xff]
      %v463 = vld [vmem:[%s359 + $0x1e8] sm:$0xff]
      %v464 = vld [vmem:[%s359 + $0x1f0] sm:$0xff]
      %v465 = vld [vmem:[%s359 + $0x1f8] sm:$0xff]
      %v466 = vld [vmem:[%s359 + $0x200] sm:$0xff]
      %v467 = vld [vmem:[%s359 + $0x208] sm:$0xff]
      %v468 = vld [vmem:[%s359 + $0x210] sm:$0xff]
      %v469 = vld [vmem:[%s359 + $0x218] sm:$0xff]
      %v470 = vld [vmem:[%s359 + $0x220] sm:$0xff]
      %v471 = vld [vmem:[%s359 + $0x228] sm:$0xff]
      %v472 = vld [vmem:[%s359 + $0x230] sm:$0xff]
      %v473 = vld [vmem:[%s359 + $0x238] sm:$0xff]
      %v474 = vld [vmem:[%s359 + $0x240] sm:$0xff]
      %v475 = vld [vmem:[%s359 + $0x248] sm:$0xff]
      %v476 = vld [vmem:[%s359 + $0x250] sm:$0xff]
      %v477 = vld [vmem:[%s359 + $0x258] sm:$0xff]
      %v478 = vld [vmem:[%s359 + $0x260] sm:$0xff]
      %v479 = vld [vmem:[%s359 + $0x268] sm:$0xff]
      %v480 = vld [vmem:[%s359 + $0x270] sm:$0xff]
      %v481 = vld [vmem:[%s359 + $0x278] sm:$0xff]
      %v482 = vld [vmem:[%s359 + $0x280] sm:$0xff]
      %v483 = vld [vmem:[%s359 + $0x288] sm:$0xff]
      %v484 = vld [vmem:[%s359 + $0x290] sm:$0xff]
      %v485 = vld [vmem:[%s359 + $0x298] sm:$0xff]
      %v486 = vld [vmem:[%s359 + $0x2a0] sm:$0xff]
      %v487 = vld [vmem:[%s359 + $0x2a8] sm:$0xff]
      %v488 = vld [vmem:[%s359 + $0x2b0] sm:$0xff]
      %v489 = vld [vmem:[%s359 + $0x2b8] sm:$0xff]
      %v490 = vld [vmem:[%s359 + $0x2c0] sm:$0xff]
      %v491 = vld [vmem:[%s359 + $0x2c8] sm:$0xff]
      %v492 = vld [vmem:[%s359 + $0x2d0] sm:$0xff]
      %v493 = vld [vmem:[%s359 + $0x2d8] sm:$0xff]
      %v494 = vld [vmem:[%s359 + $0x2e0] sm:$0xff]
      %v495 = vld [vmem:[%s359 + $0x2e8] sm:$0xff]
      %v496 = vld [vmem:[%s359 + $0x2f0] sm:$0xff]
      %v497 = vld [vmem:[%s359 + $0x2f8] sm:$0xff]
      %v498 = vld [vmem:[%s359 + $0x300] sm:$0xff]
      %v499 = vld [vmem:[%s359 + $0x308] sm:$0xff]
      %v500 = vld [vmem:[%s359 + $0x310] sm:$0xff]
      %v501 = vld [vmem:[%s359 + $0x318] sm:$0xff]
      %v502 = vld [vmem:[%s359 + $0x320] sm:$0xff]
      %v503 = vld [vmem:[%s359 + $0x328] sm:$0xff]
      %v504 = vld [vmem:[%s359 + $0x330] sm:$0xff]
      %v505 = vld [vmem:[%s359 + $0x338] sm:$0xff]
      %v506 = vld [vmem:[%s359 + $0x340] sm:$0xff]
      %v507 = vld [vmem:[%s359 + $0x348] sm:$0xff]
      %v508 = vld [vmem:[%s359 + $0x350] sm:$0xff]
      %v509 = vld [vmem:[%s359 + $0x358] sm:$0xff]
      %v510 = vld [vmem:[%s359 + $0x360] sm:$0xff]
      %v511 = vld [vmem:[%s359 + $0x368] sm:$0xff]
      %v512 = vld [vmem:[%s359 + $0x370] sm:$0xff]
      %v513 = vld [vmem:[%s359 + $0x378] sm:$0xff]
      %v514 = vld [vmem:[%s359 + $0x380] sm:$0xff]
      %v515 = vld [vmem:[%s359 + $0x388] sm:$0xff]
      %v516 = vld [vmem:[%s359 + $0x390] sm:$0xff]
      %v517 = vld [vmem:[%s359 + $0x398] sm:$0xff]
      %v518 = vld [vmem:[%s359 + $0x3a0] sm:$0xff]
      %v519 = vld [vmem:[%s359 + $0x3a8] sm:$0xff]
      %v520 = vld [vmem:[%s359 + $0x3b0] sm:$0xff]
      %v521 = vld [vmem:[%s359 + $0x3b8] sm:$0xff]
      %v522 = vld [vmem:[%s359 + $0x3c0] sm:$0xff]
      %v523 = vld [vmem:[%s359 + $0x3c8] sm:$0xff]
      %v524 = vld [vmem:[%s359 + $0x3d0] sm:$0xff]
      %v525 = vld [vmem:[%s359 + $0x3d8] sm:$0xff]
      %v526 = vld [vmem:[%s359 + $0x3e0] sm:$0xff]
      %v527 = vld [vmem:[%s359 + $0x3e8] sm:$0xff]
      %v528 = vld [vmem:[%s359 + $0x3f0] sm:$0xff]
      %v529 = vld [vmem:[%s359 + $0x3f8] sm:$0xff]
      %v530 = vld [vmem:[%s359 + $0x400] sm:$0xff]
      %v531 = vld [vmem:[%s359 + $0x408] sm:$0xff]
      %v532 = vld [vmem:[%s359 + $0x410] sm:$0xff]
      %v533 = vld [vmem:[%s359 + $0x418] sm:$0xff]
      %v534 = vld [vmem:[%s359 + $0x420] sm:$0xff]
      %v535 = vld [vmem:[%s359 + $0x428] sm:$0xff]
      %v536 = vld [vmem:[%s359 + $0x430] sm:$0xff]
      %v537 = vld [vmem:[%s359 + $0x438] sm:$0xff]
      %v538 = vld [vmem:[%s359 + $0x440] sm:$0xff]
      %v539 = vld [vmem:[%s359 + $0x448] sm:$0xff]
      %v540 = vld [vmem:[%s359 + $0x450] sm:$0xff]
      %v541 = vld [vmem:[%s359 + $0x458] sm:$0xff]
      %v542 = vld [vmem:[%s359 + $0x460] sm:$0xff]
      %v543 = vld [vmem:[%s359 + $0x468] sm:$0xff]
      %v544 = vld [vmem:[%s359 + $0x470] sm:$0xff]
      %v545 = vld [vmem:[%s359 + $0x478] sm:$0xff]
      %v546 = vld [vmem:[%s359 + $0x480] sm:$0xff]
      %v547 = vld [vmem:[%s359 + $0x488] sm:$0xff]
      %v548 = vld [vmem:[%s359 + $0x490] sm:$0xff]
      %v549 = vld [vmem:[%s359 + $0x498] sm:$0xff]
      %v550 = vld [vmem:[%s359 + $0x4a0] sm:$0xff]
      %v551 = vld [vmem:[%s359 + $0x4a8] sm:$0xff]
      %v552 = vld [vmem:[%s359 + $0x4b0] sm:$0xff]
      %v553 = vld [vmem:[%s359 + $0x4b8] sm:$0xff]
      %v554 = vld [vmem:[%s359 + $0x4c0] sm:$0xff]
      %v555 = vld [vmem:[%s359 + $0x4c8] sm:$0xff]
      %v556 = vld [vmem:[%s359 + $0x4d0] sm:$0xff]
      %v557 = vld [vmem:[%s359 + $0x4d8] sm:$0xff]
      %v558 = vld [vmem:[%s359 + $0x4e0] sm:$0xff]
      %v559 = vld [vmem:[%s359 + $0x4e8] sm:$0xff]
      %v560 = vld [vmem:[%s359 + $0x4f0] sm:$0xff]
      %v561 = vld [vmem:[%s359 + $0x4f8] sm:$0xff]
      %v562 = vld [vmem:[%s359 + $0x500] sm:$0xff]
      %v563 = vld [vmem:[%s359 + $0x508] sm:$0xff]
      %v564 = vld [vmem:[%s359 + $0x510] sm:$0xff]
      %v565 = vld [vmem:[%s359 + $0x518] sm:$0xff]
      %v566 = vld [vmem:[%s359 + $0x520] sm:$0xff]
      %v567 = vld [vmem:[%s359 + $0x528] sm:$0xff]
      %v568 = vld [vmem:[%s359 + $0x530] sm:$0xff]
      %v569 = vld [vmem:[%s359 + $0x538] sm:$0xff]
      %v570 = vld [vmem:[%s359 + $0x540] sm:$0xff]
      %v571 = vld [vmem:[%s359 + $0x548] sm:$0xff]
      %v572 = vld [vmem:[%s359 + $0x550] sm:$0xff]
      %v573 = vld [vmem:[%s359 + $0x558] sm:$0xff]
      %v574 = vld [vmem:[%s359 + $0x560] sm:$0xff]
      %v575 = vld [vmem:[%s359 + $0x568] sm:$0xff]
      %v576 = vld [vmem:[%s359 + $0x570] sm:$0xff]
      %v577 = vld [vmem:[%s359 + $0x578] sm:$0xff]
      %v578 = vld [vmem:[%s359 + $0x580] sm:$0xff]
      %v579 = vld [vmem:[%s359 + $0x588] sm:$0xff]
      %v580 = vld [vmem:[%s359 + $0x590] sm:$0xff]
      %v581 = vld [vmem:[%s359 + $0x598] sm:$0xff]
      %v582 = vld [vmem:[%s359 + $0x5a0] sm:$0xff]
      %v583 = vld [vmem:[%s359 + $0x5a8] sm:$0xff]
      %v584 = vld [vmem:[%s359 + $0x5b0] sm:$0xff]
      %v585 = vld [vmem:[%s359 + $0x5b8] sm:$0xff]
      %v586 = vld [vmem:[%s359 + $0x5c0] sm:$0xff]
      %v587 = vld [vmem:[%s359 + $0x5c8] sm:$0xff]
      %v588 = vld [vmem:[%s359 + $0x5d0] sm:$0xff]
      %v589 = vld [vmem:[%s359 + $0x5d8] sm:$0xff]
      %v590 = vld [vmem:[%s359 + $0x5e0] sm:$0xff]
      %v591 = vld [vmem:[%s359 + $0x5e8] sm:$0xff]
      %v592 = vld [vmem:[%s359 + $0x5f0] sm:$0xff]
      %v593 = vld [vmem:[%s359 + $0x5f8] sm:$0xff]
      %v594 = vld [vmem:[%s359 + $0x600] sm:$0xff]
      %v595 = vld [vmem:[%s359 + $0x608] sm:$0xff]
      %v596 = vld [vmem:[%s359 + $0x610] sm:$0xff]
      %v597 = vld [vmem:[%s359 + $0x618] sm:$0xff]
      %v598 = vld [vmem:[%s359 + $0x620] sm:$0xff]
      %v599 = vld [vmem:[%s359 + $0x628] sm:$0xff]
      %v600 = vld [vmem:[%s359 + $0x630] sm:$0xff]
      %v601 = vld [vmem:[%s359 + $0x638] sm:$0xff]
      %v602 = vld [vmem:[%s359 + $0x640] sm:$0xff]
      %v603 = vld [vmem:[%s359 + $0x648] sm:$0xff]
      %v604 = vld [vmem:[%s359 + $0x650] sm:$0xff]
      %v605 = vld [vmem:[%s359 + $0x658] sm:$0xff]
      %v606 = vld [vmem:[%s359 + $0x660] sm:$0xff]
      %v607 = vld [vmem:[%s359 + $0x668] sm:$0xff]
      %v608 = vld [vmem:[%s359 + $0x670] sm:$0xff]
      %v609 = vld [vmem:[%s359 + $0x678] sm:$0xff]
      %v610 = vld [vmem:[%s359 + $0x680] sm:$0xff]
      %v611 = vld [vmem:[%s359 + $0x688] sm:$0xff]
      %v612 = vld [vmem:[%s359 + $0x690] sm:$0xff]
      %v613 = vld [vmem:[%s359 + $0x698] sm:$0xff]
      %v614 = vld [vmem:[%s359 + $0x6a0] sm:$0xff]
      %v615 = vld [vmem:[%s359 + $0x6a8] sm:$0xff]
      %v616 = vld [vmem:[%s359 + $0x6b0] sm:$0xff]
      %v617 = vld [vmem:[%s359 + $0x6b8] sm:$0xff]
      %v618 = vld [vmem:[%s359 + $0x6c0] sm:$0xff]
      %v619 = vld [vmem:[%s359 + $0x6c8] sm:$0xff]
      %v620 = vld [vmem:[%s359 + $0x6d0] sm:$0xff]
      %v621 = vld [vmem:[%s359 + $0x6d8] sm:$0xff]
      %v622 = vld [vmem:[%s359 + $0x6e0] sm:$0xff]
      %v623 = vld [vmem:[%s359 + $0x6e8] sm:$0xff]
      %v624 = vld [vmem:[%s359 + $0x6f0] sm:$0xff]
      %v625 = vld [vmem:[%s359 + $0x6f8] sm:$0xff]
      %v626 = vld [vmem:[%s359 + $0x700] sm:$0xff]
      %v627 = vld [vmem:[%s359 + $0x708] sm:$0xff]
      %v628 = vld [vmem:[%s359 + $0x710] sm:$0xff]
      %v629 = vld [vmem:[%s359 + $0x718] sm:$0xff]
      %v630 = vld [vmem:[%s359 + $0x720] sm:$0xff]
      %v631 = vld [vmem:[%s359 + $0x728] sm:$0xff]
      %v632 = vld [vmem:[%s359 + $0x730] sm:$0xff]
      %v633 = vld [vmem:[%s359 + $0x738] sm:$0xff]
      %v634 = vld [vmem:[%s359 + $0x740] sm:$0xff]
      %v635 = vld [vmem:[%s359 + $0x748] sm:$0xff]
      %v636 = vld [vmem:[%s359 + $0x750] sm:$0xff]
      %v637 = vld [vmem:[%s359 + $0x758] sm:$0xff]
      %v638 = vld [vmem:[%s359 + $0x760] sm:$0xff]
      %v639 = vld [vmem:[%s359 + $0x768] sm:$0xff]
      %v640 = vld [vmem:[%s359 + $0x770] sm:$0xff]
      %v641 = vld [vmem:[%s359 + $0x778] sm:$0xff]
      %v642 = vld [vmem:[%s359 + $0x780] sm:$0xff]
      %v643 = vld [vmem:[%s359 + $0x788] sm:$0xff]
      %v644 = vld [vmem:[%s359 + $0x790] sm:$0xff]
      %v645 = vld [vmem:[%s359 + $0x798] sm:$0xff]
      %v646 = vld [vmem:[%s359 + $0x7a0] sm:$0xff]
      %v647 = vld [vmem:[%s359 + $0x7a8] sm:$0xff]
      %v648 = vld [vmem:[%s359 + $0x7b0] sm:$0xff]
      %v649 = vld [vmem:[%s359 + $0x7b8] sm:$0xff]
      %v650 = vld [vmem:[%s359 + $0x7c0] sm:$0xff]
      %v651 = vld [vmem:[%s359 + $0x7c8] sm:$0xff]
      %v652 = vld [vmem:[%s359 + $0x7d0] sm:$0xff]
      %v653 = vld [vmem:[%s359 + $0x7d8] sm:$0xff]
      %v654 = vld [vmem:[%s359 + $0x7e0] sm:$0xff]
      %v655 = vld [vmem:[%s359 + $0x7e8] sm:$0xff]
      %v656 = vld [vmem:[%s359 + $0x7f0] sm:$0xff]
      %v657 = vld [vmem:[%s359 + $0x7f8] sm:$0xff]
      %v658 = vld [vmem:[%s363] sm:$0xf]
      %v660 = vlaneseq
      %v661 = vshrl.u32 %v660, 7
      %v662 = vsub.s32 0, %v661
      %v663 = vrot.slane %v658, %v662
      %v664 = vlaneseq
      %v665 = vshrl.u32 %v664, 7
      %v666 = vsub.s32 1, %v665
      %v667 = vrot.slane %v658, %v666
      %v668 = vlaneseq
      %v669 = vshrl.u32 %v668, 7
      %v670 = vsub.s32 2, %v669
      %v671 = vrot.slane %v658, %v670
      %v672 = vlaneseq
      %v673 = vshrl.u32 %v672, 7
      %v674 = vsub.s32 3, %v673
      %v675 = vrot.slane %v658, %v674
      %v936 = vunpack.c.l.b16 %v402
      %v937 = vunpack.c.h.b16 %v402
      %v938 = vunpack.c.l.b16 %v403
      %v939 = vunpack.c.h.b16 %v403
      %v940 = vunpack.c.l.b16 %v404
      %v941 = vunpack.c.h.b16 %v404
      %v942 = vunpack.c.l.b16 %v405
      %v943 = vunpack.c.h.b16 %v405
      %v944 = vunpack.c.l.b16 %v406
      %v945 = vunpack.c.h.b16 %v406
      %v946 = vunpack.c.l.b16 %v407
      %v947 = vunpack.c.h.b16 %v407
      %v948 = vunpack.c.l.b16 %v408
      %v949 = vunpack.c.h.b16 %v408
      %v950 = vunpack.c.l.b16 %v409
      %v951 = vunpack.c.h.b16 %v409
      %v952 = vunpack.c.l.b16 %v410
      %v953 = vunpack.c.h.b16 %v410
      %v954 = vunpack.c.l.b16 %v411
      %v955 = vunpack.c.h.b16 %v411
      %v956 = vunpack.c.l.b16 %v412
      %v957 = vunpack.c.h.b16 %v412
      %v958 = vunpack.c.l.b16 %v413
      %v959 = vunpack.c.h.b16 %v413
      %v960 = vunpack.c.l.b16 %v414
      %v961 = vunpack.c.h.b16 %v414
      %v962 = vunpack.c.l.b16 %v415
      %v963 = vunpack.c.h.b16 %v415
      %v964 = vunpack.c.l.b16 %v416
      %v965 = vunpack.c.h.b16 %v416
      %v966 = vunpack.c.l.b16 %v417
      %v967 = vunpack.c.h.b16 %v417
      %v968 = vunpack.c.l.b16 %v418
      %v969 = vunpack.c.h.b16 %v418
      %v970 = vunpack.c.l.b16 %v419
      %v971 = vunpack.c.h.b16 %v419
      %v972 = vunpack.c.l.b16 %v420
      %v973 = vunpack.c.h.b16 %v420
      %v974 = vunpack.c.l.b16 %v421
      %v975 = vunpack.c.h.b16 %v421
      %v976 = vunpack.c.l.b16 %v422
      %v977 = vunpack.c.h.b16 %v422
      %v978 = vunpack.c.l.b16 %v423
      %v979 = vunpack.c.h.b16 %v423
      %v980 = vunpack.c.l.b16 %v424
      %v981 = vunpack.c.h.b16 %v424
      %v982 = vunpack.c.l.b16 %v425
      %v983 = vunpack.c.h.b16 %v425
      %v984 = vunpack.c.l.b16 %v426
      %v985 = vunpack.c.h.b16 %v426
      %v986 = vunpack.c.l.b16 %v427
      %v987 = vunpack.c.h.b16 %v427
      %v988 = vunpack.c.l.b16 %v428
      %v989 = vunpack.c.h.b16 %v428
      %v990 = vunpack.c.l.b16 %v429
      %v991 = vunpack.c.h.b16 %v429
      %v992 = vunpack.c.l.b16 %v430
      %v993 = vunpack.c.h.b16 %v430
      %v994 = vunpack.c.l.b16 %v431
      %v995 = vunpack.c.h.b16 %v431
      %v996 = vunpack.c.l.b16 %v432
      %v997 = vunpack.c.h.b16 %v432
      %v998 = vunpack.c.l.b16 %v433
      %v999 = vunpack.c.h.b16 %v433
      %v1000 = vunpack.c.l.b16 %v434
      %v1001 = vunpack.c.h.b16 %v434
      %v1002 = vunpack.c.l.b16 %v435
      %v1003 = vunpack.c.h.b16 %v435
      %v1004 = vunpack.c.l.b16 %v436
      %v1005 = vunpack.c.h.b16 %v436
      %v1006 = vunpack.c.l.b16 %v437
      %v1007 = vunpack.c.h.b16 %v437
      %v1008 = vunpack.c.l.b16 %v438
      %v1009 = vunpack.c.h.b16 %v438
      %v1010 = vunpack.c.l.b16 %v439
      %v1011 = vunpack.c.h.b16 %v439
      %v1012 = vunpack.c.l.b16 %v440
      %v1013 = vunpack.c.h.b16 %v440
      %v1014 = vunpack.c.l.b16 %v441
      %v1015 = vunpack.c.h.b16 %v441
      %v1016 = vunpack.c.l.b16 %v442
      %v1017 = vunpack.c.h.b16 %v442
      %v1018 = vunpack.c.l.b16 %v443
      %v1019 = vunpack.c.h.b16 %v443
      %v1020 = vunpack.c.l.b16 %v444
      %v1021 = vunpack.c.h.b16 %v444
      %v1022 = vunpack.c.l.b16 %v445
      %v1023 = vunpack.c.h.b16 %v445
      %v1024 = vunpack.c.l.b16 %v446
      %v1025 = vunpack.c.h.b16 %v446
      %v1026 = vunpack.c.l.b16 %v447
      %v1027 = vunpack.c.h.b16 %v447
      %v1028 = vunpack.c.l.b16 %v448
      %v1029 = vunpack.c.h.b16 %v448
      %v1030 = vunpack.c.l.b16 %v449
      %v1031 = vunpack.c.h.b16 %v449
      %v1032 = vunpack.c.l.b16 %v450
      %v1033 = vunpack.c.h.b16 %v450
      %v1034 = vunpack.c.l.b16 %v451
      %v1035 = vunpack.c.h.b16 %v451
      %v1036 = vunpack.c.l.b16 %v452
      %v1037 = vunpack.c.h.b16 %v452
      %v1038 = vunpack.c.l.b16 %v453
      %v1039 = vunpack.c.h.b16 %v453
      %v1040 = vunpack.c.l.b16 %v454
      %v1041 = vunpack.c.h.b16 %v454
      %v1042 = vunpack.c.l.b16 %v455
      %v1043 = vunpack.c.h.b16 %v455
      %v1044 = vunpack.c.l.b16 %v456
      %v1045 = vunpack.c.h.b16 %v456
      %v1046 = vunpack.c.l.b16 %v457
      %v1047 = vunpack.c.h.b16 %v457
      %v1048 = vunpack.c.l.b16 %v458
      %v1049 = vunpack.c.h.b16 %v458
      %v1050 = vunpack.c.l.b16 %v459
      %v1051 = vunpack.c.h.b16 %v459
      %v1052 = vunpack.c.l.b16 %v460
      %v1053 = vunpack.c.h.b16 %v460
      %v1054 = vunpack.c.l.b16 %v461
      %v1055 = vunpack.c.h.b16 %v461
      %v1056 = vunpack.c.l.b16 %v462
      %v1057 = vunpack.c.h.b16 %v462
      %v1058 = vunpack.c.l.b16 %v463
      %v1059 = vunpack.c.h.b16 %v463
      %v1060 = vunpack.c.l.b16 %v464
      %v1061 = vunpack.c.h.b16 %v464
      %v1062 = vunpack.c.l.b16 %v465
      %v1063 = vunpack.c.h.b16 %v465
      %v1064 = vunpack.c.l.b16 %v466
      %v1065 = vunpack.c.h.b16 %v466
      %v1066 = vunpack.c.l.b16 %v467
      %v1067 = vunpack.c.h.b16 %v467
      %v1068 = vunpack.c.l.b16 %v468
      %v1069 = vunpack.c.h.b16 %v468
      %v1070 = vunpack.c.l.b16 %v469
      %v1071 = vunpack.c.h.b16 %v469
      %v1072 = vunpack.c.l.b16 %v470
      %v1073 = vunpack.c.h.b16 %v470
      %v1074 = vunpack.c.l.b16 %v471
      %v1075 = vunpack.c.h.b16 %v471
      %v1076 = vunpack.c.l.b16 %v472
      %v1077 = vunpack.c.h.b16 %v472
      %v1078 = vunpack.c.l.b16 %v473
      %v1079 = vunpack.c.h.b16 %v473
      %v1080 = vunpack.c.l.b16 %v474
      %v1081 = vunpack.c.h.b16 %v474
      %v1082 = vunpack.c.l.b16 %v475
      %v1083 = vunpack.c.h.b16 %v475
      %v1084 = vunpack.c.l.b16 %v476
      %v1085 = vunpack.c.h.b16 %v476
      %v1086 = vunpack.c.l.b16 %v477
      %v1087 = vunpack.c.h.b16 %v477
      %v1088 = vunpack.c.l.b16 %v478
      %v1089 = vunpack.c.h.b16 %v478
      %v1090 = vunpack.c.l.b16 %v479
      %v1091 = vunpack.c.h.b16 %v479
      %v1092 = vunpack.c.l.b16 %v480
      %v1093 = vunpack.c.h.b16 %v480
      %v1094 = vunpack.c.l.b16 %v481
      %v1095 = vunpack.c.h.b16 %v481
      %v1096 = vunpack.c.l.b16 %v482
      %v1097 = vunpack.c.h.b16 %v482
      %v1098 = vunpack.c.l.b16 %v483
      %v1099 = vunpack.c.h.b16 %v483
      %v1100 = vunpack.c.l.b16 %v484
      %v1101 = vunpack.c.h.b16 %v484
      %v1102 = vunpack.c.l.b16 %v485
      %v1103 = vunpack.c.h.b16 %v485
      %v1104 = vunpack.c.l.b16 %v486
      %v1105 = vunpack.c.h.b16 %v486
      %v1106 = vunpack.c.l.b16 %v487
      %v1107 = vunpack.c.h.b16 %v487
      %v1108 = vunpack.c.l.b16 %v488
      %v1109 = vunpack.c.h.b16 %v488
      %v1110 = vunpack.c.l.b16 %v489
      %v1111 = vunpack.c.h.b16 %v489
      %v1112 = vunpack.c.l.b16 %v490
      %v1113 = vunpack.c.h.b16 %v490
      %v1114 = vunpack.c.l.b16 %v491
      %v1115 = vunpack.c.h.b16 %v491
      %v1116 = vunpack.c.l.b16 %v492
      %v1117 = vunpack.c.h.b16 %v492
      %v1118 = vunpack.c.l.b16 %v493
      %v1119 = vunpack.c.h.b16 %v493
      %v1120 = vunpack.c.l.b16 %v494
      %v1121 = vunpack.c.h.b16 %v494
      %v1122 = vunpack.c.l.b16 %v495
      %v1123 = vunpack.c.h.b16 %v495
      %v1124 = vunpack.c.l.b16 %v496
      %v1125 = vunpack.c.h.b16 %v496
      %v1126 = vunpack.c.l.b16 %v497
      %v1127 = vunpack.c.h.b16 %v497
      %v1128 = vunpack.c.l.b16 %v498
      %v1129 = vunpack.c.h.b16 %v498
      %v1130 = vunpack.c.l.b16 %v499
      %v1131 = vunpack.c.h.b16 %v499
      %v1132 = vunpack.c.l.b16 %v500
      %v1133 = vunpack.c.h.b16 %v500
      %v1134 = vunpack.c.l.b16 %v501
      %v1135 = vunpack.c.h.b16 %v501
      %v1136 = vunpack.c.l.b16 %v502
      %v1137 = vunpack.c.h.b16 %v502
      %v1138 = vunpack.c.l.b16 %v503
      %v1139 = vunpack.c.h.b16 %v503
      %v1140 = vunpack.c.l.b16 %v504
      %v1141 = vunpack.c.h.b16 %v504
      %v1142 = vunpack.c.l.b16 %v505
      %v1143 = vunpack.c.h.b16 %v505
      %v1144 = vunpack.c.l.b16 %v506
      %v1145 = vunpack.c.h.b16 %v506
      %v1146 = vunpack.c.l.b16 %v507
      %v1147 = vunpack.c.h.b16 %v507
      %v1148 = vunpack.c.l.b16 %v508
      %v1149 = vunpack.c.h.b16 %v508
      %v1150 = vunpack.c.l.b16 %v509
      %v1151 = vunpack.c.h.b16 %v509
      %v1152 = vunpack.c.l.b16 %v510
      %v1153 = vunpack.c.h.b16 %v510
      %v1154 = vunpack.c.l.b16 %v511
      %v1155 = vunpack.c.h.b16 %v511
      %v1156 = vunpack.c.l.b16 %v512
      %v1157 = vunpack.c.h.b16 %v512
      %v1158 = vunpack.c.l.b16 %v513
      %v1159 = vunpack.c.h.b16 %v513
      %v1160 = vunpack.c.l.b16 %v514
      %v1161 = vunpack.c.h.b16 %v514
      %v1162 = vunpack.c.l.b16 %v515
      %v1163 = vunpack.c.h.b16 %v515
      %v1164 = vunpack.c.l.b16 %v516
      %v1165 = vunpack.c.h.b16 %v516
      %v1166 = vunpack.c.l.b16 %v517
      %v1167 = vunpack.c.h.b16 %v517
      %v1168 = vunpack.c.l.b16 %v518
      %v1169 = vunpack.c.h.b16 %v518
      %v1170 = vunpack.c.l.b16 %v519
      %v1171 = vunpack.c.h.b16 %v519
      %v1172 = vunpack.c.l.b16 %v520
      %v1173 = vunpack.c.h.b16 %v520
      %v1174 = vunpack.c.l.b16 %v521
      %v1175 = vunpack.c.h.b16 %v521
      %v1176 = vunpack.c.l.b16 %v522
      %v1177 = vunpack.c.h.b16 %v522
      %v1178 = vunpack.c.l.b16 %v523
      %v1179 = vunpack.c.h.b16 %v523
      %v1180 = vunpack.c.l.b16 %v524
      %v1181 = vunpack.c.h.b16 %v524
      %v1182 = vunpack.c.l.b16 %v525
      %v1183 = vunpack.c.h.b16 %v525
      %v1184 = vunpack.c.l.b16 %v526
      %v1185 = vunpack.c.h.b16 %v526
      %v1186 = vunpack.c.l.b16 %v527
      %v1187 = vunpack.c.h.b16 %v527
      %v1188 = vunpack.c.l.b16 %v528
      %v1189 = vunpack.c.h.b16 %v528
      %v1190 = vunpack.c.l.b16 %v529
      %v1191 = vunpack.c.h.b16 %v529
      %v1192 = vunpack.c.l.b16 %v530
      %v1193 = vunpack.c.h.b16 %v530
      %v1194 = vunpack.c.l.b16 %v531
      %v1195 = vunpack.c.h.b16 %v531
      %v1196 = vunpack.c.l.b16 %v532
      %v1197 = vunpack.c.h.b16 %v532
      %v1198 = vunpack.c.l.b16 %v533
      %v1199 = vunpack.c.h.b16 %v533
      %v1200 = vunpack.c.l.b16 %v534
      %v1201 = vunpack.c.h.b16 %v534
      %v1202 = vunpack.c.l.b16 %v535
      %v1203 = vunpack.c.h.b16 %v535
      %v1204 = vunpack.c.l.b16 %v536
      %v1205 = vunpack.c.h.b16 %v536
      %v1206 = vunpack.c.l.b16 %v537
      %v1207 = vunpack.c.h.b16 %v537
      %v1208 = vunpack.c.l.b16 %v538
      %v1209 = vunpack.c.h.b16 %v538
      %v1210 = vunpack.c.l.b16 %v539
      %v1211 = vunpack.c.h.b16 %v539
      %v1212 = vunpack.c.l.b16 %v540
      %v1213 = vunpack.c.h.b16 %v540
      %v1214 = vunpack.c.l.b16 %v541
      %v1215 = vunpack.c.h.b16 %v541
      %v1216 = vunpack.c.l.b16 %v542
      %v1217 = vunpack.c.h.b16 %v542
      %v1218 = vunpack.c.l.b16 %v543
      %v1219 = vunpack.c.h.b16 %v543
      %v1220 = vunpack.c.l.b16 %v544
      %v1221 = vunpack.c.h.b16 %v544
      %v1222 = vunpack.c.l.b16 %v545
      %v1223 = vunpack.c.h.b16 %v545
      %v1224 = vunpack.c.l.b16 %v546
      %v1225 = vunpack.c.h.b16 %v546
      %v1226 = vunpack.c.l.b16 %v547
      %v1227 = vunpack.c.h.b16 %v547
      %v1228 = vunpack.c.l.b16 %v548
      %v1229 = vunpack.c.h.b16 %v548
      %v1230 = vunpack.c.l.b16 %v549
      %v1231 = vunpack.c.h.b16 %v549
      %v1232 = vunpack.c.l.b16 %v550
      %v1233 = vunpack.c.h.b16 %v550
      %v1234 = vunpack.c.l.b16 %v551
      %v1235 = vunpack.c.h.b16 %v551
      %v1236 = vunpack.c.l.b16 %v552
      %v1237 = vunpack.c.h.b16 %v552
      %v1238 = vunpack.c.l.b16 %v553
      %v1239 = vunpack.c.h.b16 %v553
      %v1240 = vunpack.c.l.b16 %v554
      %v1241 = vunpack.c.h.b16 %v554
      %v1242 = vunpack.c.l.b16 %v555
      %v1243 = vunpack.c.h.b16 %v555
      %v1244 = vunpack.c.l.b16 %v556
      %v1245 = vunpack.c.h.b16 %v556
      %v1246 = vunpack.c.l.b16 %v557
      %v1247 = vunpack.c.h.b16 %v557
      %v1248 = vunpack.c.l.b16 %v558
      %v1249 = vunpack.c.h.b16 %v558
      %v1250 = vunpack.c.l.b16 %v559
      %v1251 = vunpack.c.h.b16 %v559
      %v1252 = vunpack.c.l.b16 %v560
      %v1253 = vunpack.c.h.b16 %v560
      %v1254 = vunpack.c.l.b16 %v561
      %v1255 = vunpack.c.h.b16 %v561
      %v1256 = vunpack.c.l.b16 %v562
      %v1257 = vunpack.c.h.b16 %v562
      %v1258 = vunpack.c.l.b16 %v563
      %v1259 = vunpack.c.h.b16 %v563
      %v1260 = vunpack.c.l.b16 %v564
      %v1261 = vunpack.c.h.b16 %v564
      %v1262 = vunpack.c.l.b16 %v565
      %v1263 = vunpack.c.h.b16 %v565
      %v1264 = vunpack.c.l.b16 %v566
      %v1265 = vunpack.c.h.b16 %v566
      %v1266 = vunpack.c.l.b16 %v567
      %v1267 = vunpack.c.h.b16 %v567
      %v1268 = vunpack.c.l.b16 %v568
      %v1269 = vunpack.c.h.b16 %v568
      %v1270 = vunpack.c.l.b16 %v569
      %v1271 = vunpack.c.h.b16 %v569
      %v1272 = vunpack.c.l.b16 %v570
      %v1273 = vunpack.c.h.b16 %v570
      %v1274 = vunpack.c.l.b16 %v571
      %v1275 = vunpack.c.h.b16 %v571
      %v1276 = vunpack.c.l.b16 %v572
      %v1277 = vunpack.c.h.b16 %v572
      %v1278 = vunpack.c.l.b16 %v573
      %v1279 = vunpack.c.h.b16 %v573
      %v1280 = vunpack.c.l.b16 %v574
      %v1281 = vunpack.c.h.b16 %v574
      %v1282 = vunpack.c.l.b16 %v575
      %v1283 = vunpack.c.h.b16 %v575
      %v1284 = vunpack.c.l.b16 %v576
      %v1285 = vunpack.c.h.b16 %v576
      %v1286 = vunpack.c.l.b16 %v577
      %v1287 = vunpack.c.h.b16 %v577
      %v1288 = vunpack.c.l.b16 %v578
      %v1289 = vunpack.c.h.b16 %v578
      %v1290 = vunpack.c.l.b16 %v579
      %v1291 = vunpack.c.h.b16 %v579
      %v1292 = vunpack.c.l.b16 %v580
      %v1293 = vunpack.c.h.b16 %v580
      %v1294 = vunpack.c.l.b16 %v581
      %v1295 = vunpack.c.h.b16 %v581
      %v1296 = vunpack.c.l.b16 %v582
      %v1297 = vunpack.c.h.b16 %v582
      %v1298 = vunpack.c.l.b16 %v583
      %v1299 = vunpack.c.h.b16 %v583
      %v1300 = vunpack.c.l.b16 %v584
      %v1301 = vunpack.c.h.b16 %v584
      %v1302 = vunpack.c.l.b16 %v585
      %v1303 = vunpack.c.h.b16 %v585
      %v1304 = vunpack.c.l.b16 %v586
      %v1305 = vunpack.c.h.b16 %v586
      %v1306 = vunpack.c.l.b16 %v587
      %v1307 = vunpack.c.h.b16 %v587
      %v1308 = vunpack.c.l.b16 %v588
      %v1309 = vunpack.c.h.b16 %v588
      %v1310 = vunpack.c.l.b16 %v589
      %v1311 = vunpack.c.h.b16 %v589
      %v1312 = vunpack.c.l.b16 %v590
      %v1313 = vunpack.c.h.b16 %v590
      %v1314 = vunpack.c.l.b16 %v591
      %v1315 = vunpack.c.h.b16 %v591
      %v1316 = vunpack.c.l.b16 %v592
      %v1317 = vunpack.c.h.b16 %v592
      %v1318 = vunpack.c.l.b16 %v593
      %v1319 = vunpack.c.h.b16 %v593
      %v1320 = vunpack.c.l.b16 %v594
      %v1321 = vunpack.c.h.b16 %v594
      %v1322 = vunpack.c.l.b16 %v595
      %v1323 = vunpack.c.h.b16 %v595
      %v1324 = vunpack.c.l.b16 %v596
      %v1325 = vunpack.c.h.b16 %v596
      %v1326 = vunpack.c.l.b16 %v597
      %v1327 = vunpack.c.h.b16 %v597
      %v1328 = vunpack.c.l.b16 %v598
      %v1329 = vunpack.c.h.b16 %v598
      %v1330 = vunpack.c.l.b16 %v599
      %v1331 = vunpack.c.h.b16 %v599
      %v1332 = vunpack.c.l.b16 %v600
      %v1333 = vunpack.c.h.b16 %v600
      %v1334 = vunpack.c.l.b16 %v601
      %v1335 = vunpack.c.h.b16 %v601
      %v1336 = vunpack.c.l.b16 %v602
      %v1337 = vunpack.c.h.b16 %v602
      %v1338 = vunpack.c.l.b16 %v603
      %v1339 = vunpack.c.h.b16 %v603
      %v1340 = vunpack.c.l.b16 %v604
      %v1341 = vunpack.c.h.b16 %v604
      %v1342 = vunpack.c.l.b16 %v605
      %v1343 = vunpack.c.h.b16 %v605
      %v1344 = vunpack.c.l.b16 %v606
      %v1345 = vunpack.c.h.b16 %v606
      %v1346 = vunpack.c.l.b16 %v607
      %v1347 = vunpack.c.h.b16 %v607
      %v1348 = vunpack.c.l.b16 %v608
      %v1349 = vunpack.c.h.b16 %v608
      %v1350 = vunpack.c.l.b16 %v609
      %v1351 = vunpack.c.h.b16 %v609
      %v1352 = vunpack.c.l.b16 %v610
      %v1353 = vunpack.c.h.b16 %v610
      %v1354 = vunpack.c.l.b16 %v611
      %v1355 = vunpack.c.h.b16 %v611
      %v1356 = vunpack.c.l.b16 %v612
      %v1357 = vunpack.c.h.b16 %v612
      %v1358 = vunpack.c.l.b16 %v613
      %v1359 = vunpack.c.h.b16 %v613
      %v1360 = vunpack.c.l.b16 %v614
      %v1361 = vunpack.c.h.b16 %v614
      %v1362 = vunpack.c.l.b16 %v615
      %v1363 = vunpack.c.h.b16 %v615
      %v1364 = vunpack.c.l.b16 %v616
      %v1365 = vunpack.c.h.b16 %v616
      %v1366 = vunpack.c.l.b16 %v617
      %v1367 = vunpack.c.h.b16 %v617
      %v1368 = vunpack.c.l.b16 %v618
      %v1369 = vunpack.c.h.b16 %v618
      %v1370 = vunpack.c.l.b16 %v619
      %v1371 = vunpack.c.h.b16 %v619
      %v1372 = vunpack.c.l.b16 %v620
      %v1373 = vunpack.c.h.b16 %v620
      %v1374 = vunpack.c.l.b16 %v621
      %v1375 = vunpack.c.h.b16 %v621
      %v1376 = vunpack.c.l.b16 %v622
      %v1377 = vunpack.c.h.b16 %v622
      %v1378 = vunpack.c.l.b16 %v623
      %v1379 = vunpack.c.h.b16 %v623
      %v1380 = vunpack.c.l.b16 %v624
      %v1381 = vunpack.c.h.b16 %v624
      %v1382 = vunpack.c.l.b16 %v625
      %v1383 = vunpack.c.h.b16 %v625
      %v1384 = vunpack.c.l.b16 %v626
      %v1385 = vunpack.c.h.b16 %v626
      %v1386 = vunpack.c.l.b16 %v627
      %v1387 = vunpack.c.h.b16 %v627
      %v1388 = vunpack.c.l.b16 %v628
      %v1389 = vunpack.c.h.b16 %v628
      %v1390 = vunpack.c.l.b16 %v629
      %v1391 = vunpack.c.h.b16 %v629
      %v1392 = vunpack.c.l.b16 %v630
      %v1393 = vunpack.c.h.b16 %v630
      %v1394 = vunpack.c.l.b16 %v631
      %v1395 = vunpack.c.h.b16 %v631
      %v1396 = vunpack.c.l.b16 %v632
      %v1397 = vunpack.c.h.b16 %v632
      %v1398 = vunpack.c.l.b16 %v633
      %v1399 = vunpack.c.h.b16 %v633
      %v1400 = vunpack.c.l.b16 %v634
      %v1401 = vunpack.c.h.b16 %v634
      %v1402 = vunpack.c.l.b16 %v635
      %v1403 = vunpack.c.h.b16 %v635
      %v1404 = vunpack.c.l.b16 %v636
      %v1405 = vunpack.c.h.b16 %v636
      %v1406 = vunpack.c.l.b16 %v637
      %v1407 = vunpack.c.h.b16 %v637
      %v1408 = vunpack.c.l.b16 %v638
      %v1409 = vunpack.c.h.b16 %v638
      %v1410 = vunpack.c.l.b16 %v639
      %v1411 = vunpack.c.h.b16 %v639
      %v1412 = vunpack.c.l.b16 %v640
      %v1413 = vunpack.c.h.b16 %v640
      %v1414 = vunpack.c.l.b16 %v641
      %v1415 = vunpack.c.h.b16 %v641
      %v1416 = vunpack.c.l.b16 %v642
      %v1417 = vunpack.c.h.b16 %v642
      %v1418 = vunpack.c.l.b16 %v643
      %v1419 = vunpack.c.h.b16 %v643
      %v1420 = vunpack.c.l.b16 %v644
      %v1421 = vunpack.c.h.b16 %v644
      %v1422 = vunpack.c.l.b16 %v645
      %v1423 = vunpack.c.h.b16 %v645
      %v1424 = vunpack.c.l.b16 %v646
      %v1425 = vunpack.c.h.b16 %v646
      %v1426 = vunpack.c.l.b16 %v647
      %v1427 = vunpack.c.h.b16 %v647
      %v1428 = vunpack.c.l.b16 %v648
      %v1429 = vunpack.c.h.b16 %v648
      %v1430 = vunpack.c.l.b16 %v649
      %v1431 = vunpack.c.h.b16 %v649
      %v1432 = vunpack.c.l.b16 %v650
      %v1433 = vunpack.c.h.b16 %v650
      %v1434 = vunpack.c.l.b16 %v651
      %v1435 = vunpack.c.h.b16 %v651
      %v1436 = vunpack.c.l.b16 %v652
      %v1437 = vunpack.c.h.b16 %v652
      %v1438 = vunpack.c.l.b16 %v653
      %v1439 = vunpack.c.h.b16 %v653
      %v1440 = vunpack.c.l.b16 %v654
      %v1441 = vunpack.c.h.b16 %v654
      %v1442 = vunpack.c.l.b16 %v655
      %v1443 = vunpack.c.h.b16 %v655
      %v1444 = vunpack.c.l.b16 %v656
      %v1445 = vunpack.c.h.b16 %v656
      %v1446 = vunpack.c.l.b16 %v657
      %v1447 = vunpack.c.h.b16 %v657
      %v1448 = vpack.c.b16 %v940, %v936
      %v1449 = vpack.c.b16 %v941, %v937
      %v1450 = vpack.c.b16 %v942, %v938
      %v1451 = vpack.c.b16 %v943, %v939
      %v1452 = vpack.c.b16 %v948, %v944
      %v1453 = vpack.c.b16 %v949, %v945
      %v1454 = vpack.c.b16 %v950, %v946
      %v1455 = vpack.c.b16 %v951, %v947
      %v1456 = vpack.c.b16 %v956, %v952
      %v1457 = vpack.c.b16 %v957, %v953
      %v1458 = vpack.c.b16 %v958, %v954
      %v1459 = vpack.c.b16 %v959, %v955
      %v1460 = vpack.c.b16 %v964, %v960
      %v1461 = vpack.c.b16 %v965, %v961
      %v1462 = vpack.c.b16 %v966, %v962
      %v1463 = vpack.c.b16 %v967, %v963
      %v1464 = vpack.c.b16 %v972, %v968
      %v1465 = vpack.c.b16 %v973, %v969
      %v1466 = vpack.c.b16 %v974, %v970
      %v1467 = vpack.c.b16 %v975, %v971
      %v1468 = vpack.c.b16 %v980, %v976
      %v1469 = vpack.c.b16 %v981, %v977
      %v1470 = vpack.c.b16 %v982, %v978
      %v1471 = vpack.c.b16 %v983, %v979
      %v1472 = vpack.c.b16 %v988, %v984
      %v1473 = vpack.c.b16 %v989, %v985
      %v1474 = vpack.c.b16 %v990, %v986
      %v1475 = vpack.c.b16 %v991, %v987
      %v1476 = vpack.c.b16 %v996, %v992
      %v1477 = vpack.c.b16 %v997, %v993
      %v1478 = vpack.c.b16 %v998, %v994
      %v1479 = vpack.c.b16 %v999, %v995
      %v1480 = vpack.c.b16 %v1004, %v1000
      %v1481 = vpack.c.b16 %v1005, %v1001
      %v1482 = vpack.c.b16 %v1006, %v1002
      %v1483 = vpack.c.b16 %v1007, %v1003
      %v1484 = vpack.c.b16 %v1012, %v1008
      %v1485 = vpack.c.b16 %v1013, %v1009
      %v1486 = vpack.c.b16 %v1014, %v1010
      %v1487 = vpack.c.b16 %v1015, %v1011
      %v1488 = vpack.c.b16 %v1020, %v1016
      %v1489 = vpack.c.b16 %v1021, %v1017
      %v1490 = vpack.c.b16 %v1022, %v1018
      %v1491 = vpack.c.b16 %v1023, %v1019
      %v1492 = vpack.c.b16 %v1028, %v1024
      %v1493 = vpack.c.b16 %v1029, %v1025
      %v1494 = vpack.c.b16 %v1030, %v1026
      %v1495 = vpack.c.b16 %v1031, %v1027
      %v1496 = vpack.c.b16 %v1036, %v1032
      %v1497 = vpack.c.b16 %v1037, %v1033
      %v1498 = vpack.c.b16 %v1038, %v1034
      %v1499 = vpack.c.b16 %v1039, %v1035
      %v1500 = vpack.c.b16 %v1044, %v1040
      %v1501 = vpack.c.b16 %v1045, %v1041
      %v1502 = vpack.c.b16 %v1046, %v1042
      %v1503 = vpack.c.b16 %v1047, %v1043
      %v1504 = vpack.c.b16 %v1052, %v1048
      %v1505 = vpack.c.b16 %v1053, %v1049
      %v1506 = vpack.c.b16 %v1054, %v1050
      %v1507 = vpack.c.b16 %v1055, %v1051
      %v1508 = vpack.c.b16 %v1060, %v1056
      %v1509 = vpack.c.b16 %v1061, %v1057
      %v1510 = vpack.c.b16 %v1062, %v1058
      %v1511 = vpack.c.b16 %v1063, %v1059
      %v1512 = vpack.c.b16 %v1068, %v1064
      %v1513 = vpack.c.b16 %v1069, %v1065
      %v1514 = vpack.c.b16 %v1070, %v1066
      %v1515 = vpack.c.b16 %v1071, %v1067
      %v1516 = vpack.c.b16 %v1076, %v1072
      %v1517 = vpack.c.b16 %v1077, %v1073
      %v1518 = vpack.c.b16 %v1078, %v1074
      %v1519 = vpack.c.b16 %v1079, %v1075
      %v1520 = vpack.c.b16 %v1084, %v1080
      %v1521 = vpack.c.b16 %v1085, %v1081
      %v1522 = vpack.c.b16 %v1086, %v1082
      %v1523 = vpack.c.b16 %v1087, %v1083
      %v1524 = vpack.c.b16 %v1092, %v1088
      %v1525 = vpack.c.b16 %v1093, %v1089
      %v1526 = vpack.c.b16 %v1094, %v1090
      %v1527 = vpack.c.b16 %v1095, %v1091
      %v1528 = vpack.c.b16 %v1100, %v1096
      %v1529 = vpack.c.b16 %v1101, %v1097
      %v1530 = vpack.c.b16 %v1102, %v1098
      %v1531 = vpack.c.b16 %v1103, %v1099
      %v1532 = vpack.c.b16 %v1108, %v1104
      %v1533 = vpack.c.b16 %v1109, %v1105
      %v1534 = vpack.c.b16 %v1110, %v1106
      %v1535 = vpack.c.b16 %v1111, %v1107
      %v1536 = vpack.c.b16 %v1116, %v1112
      %v1537 = vpack.c.b16 %v1117, %v1113
      %v1538 = vpack.c.b16 %v1118, %v1114
      %v1539 = vpack.c.b16 %v1119, %v1115
      %v1540 = vpack.c.b16 %v1124, %v1120
      %v1541 = vpack.c.b16 %v1125, %v1121
      %v1542 = vpack.c.b16 %v1126, %v1122
      %v1543 = vpack.c.b16 %v1127, %v1123
      %v1544 = vpack.c.b16 %v1132, %v1128
      %v1545 = vpack.c.b16 %v1133, %v1129
      %v1546 = vpack.c.b16 %v1134, %v1130
      %v1547 = vpack.c.b16 %v1135, %v1131
      %v1548 = vpack.c.b16 %v1140, %v1136
      %v1549 = vpack.c.b16 %v1141, %v1137
      %v1550 = vpack.c.b16 %v1142, %v1138
      %v1551 = vpack.c.b16 %v1143, %v1139
      %v1552 = vpack.c.b16 %v1148, %v1144
      %v1553 = vpack.c.b16 %v1149, %v1145
      %v1554 = vpack.c.b16 %v1150, %v1146
      %v1555 = vpack.c.b16 %v1151, %v1147
      %v1556 = vpack.c.b16 %v1156, %v1152
      %v1557 = vpack.c.b16 %v1157, %v1153
      %v1558 = vpack.c.b16 %v1158, %v1154
      %v1559 = vpack.c.b16 %v1159, %v1155
      %v1560 = vpack.c.b16 %v1164, %v1160
      %v1561 = vpack.c.b16 %v1165, %v1161
      %v1562 = vpack.c.b16 %v1166, %v1162
      %v1563 = vpack.c.b16 %v1167, %v1163
      %v1564 = vpack.c.b16 %v1172, %v1168
      %v1565 = vpack.c.b16 %v1173, %v1169
      %v1566 = vpack.c.b16 %v1174, %v1170
      %v1567 = vpack.c.b16 %v1175, %v1171
      %v1568 = vpack.c.b16 %v1180, %v1176
      %v1569 = vpack.c.b16 %v1181, %v1177
      %v1570 = vpack.c.b16 %v1182, %v1178
      %v1571 = vpack.c.b16 %v1183, %v1179
      %v1572 = vpack.c.b16 %v1188, %v1184
      %v1573 = vpack.c.b16 %v1189, %v1185
      %v1574 = vpack.c.b16 %v1190, %v1186
      %v1575 = vpack.c.b16 %v1191, %v1187
      %v1576 = vpack.c.b16 %v1196, %v1192
      %v1577 = vpack.c.b16 %v1197, %v1193
      %v1578 = vpack.c.b16 %v1198, %v1194
      %v1579 = vpack.c.b16 %v1199, %v1195
      %v1580 = vpack.c.b16 %v1204, %v1200
      %v1581 = vpack.c.b16 %v1205, %v1201
      %v1582 = vpack.c.b16 %v1206, %v1202
      %v1583 = vpack.c.b16 %v1207, %v1203
      %v1584 = vpack.c.b16 %v1212, %v1208
      %v1585 = vpack.c.b16 %v1213, %v1209
      %v1586 = vpack.c.b16 %v1214, %v1210
      %v1587 = vpack.c.b16 %v1215, %v1211
      %v1588 = vpack.c.b16 %v1220, %v1216
      %v1589 = vpack.c.b16 %v1221, %v1217
      %v1590 = vpack.c.b16 %v1222, %v1218
      %v1591 = vpack.c.b16 %v1223, %v1219
      %v1592 = vpack.c.b16 %v1228, %v1224
      %v1593 = vpack.c.b16 %v1229, %v1225
      %v1594 = vpack.c.b16 %v1230, %v1226
      %v1595 = vpack.c.b16 %v1231, %v1227
      %v1596 = vpack.c.b16 %v1236, %v1232
      %v1597 = vpack.c.b16 %v1237, %v1233
      %v1598 = vpack.c.b16 %v1238, %v1234
      %v1599 = vpack.c.b16 %v1239, %v1235
      %v1600 = vpack.c.b16 %v1244, %v1240
      %v1601 = vpack.c.b16 %v1245, %v1241
      %v1602 = vpack.c.b16 %v1246, %v1242
      %v1603 = vpack.c.b16 %v1247, %v1243
      %v1604 = vpack.c.b16 %v1252, %v1248
      %v1605 = vpack.c.b16 %v1253, %v1249
      %v1606 = vpack.c.b16 %v1254, %v1250
      %v1607 = vpack.c.b16 %v1255, %v1251
      %v1608 = vpack.c.b16 %v1260, %v1256
      %v1609 = vpack.c.b16 %v1261, %v1257
      %v1610 = vpack.c.b16 %v1262, %v1258
      %v1611 = vpack.c.b16 %v1263, %v1259
      %v1612 = vpack.c.b16 %v1268, %v1264
      %v1613 = vpack.c.b16 %v1269, %v1265
      %v1614 = vpack.c.b16 %v1270, %v1266
      %v1615 = vpack.c.b16 %v1271, %v1267
      %v1616 = vpack.c.b16 %v1276, %v1272
      %v1617 = vpack.c.b16 %v1277, %v1273
      %v1618 = vpack.c.b16 %v1278, %v1274
      %v1619 = vpack.c.b16 %v1279, %v1275
      %v1620 = vpack.c.b16 %v1284, %v1280
      %v1621 = vpack.c.b16 %v1285, %v1281
      %v1622 = vpack.c.b16 %v1286, %v1282
      %v1623 = vpack.c.b16 %v1287, %v1283
      %v1624 = vpack.c.b16 %v1292, %v1288
      %v1625 = vpack.c.b16 %v1293, %v1289
      %v1626 = vpack.c.b16 %v1294, %v1290
      %v1627 = vpack.c.b16 %v1295, %v1291
      %v1628 = vpack.c.b16 %v1300, %v1296
      %v1629 = vpack.c.b16 %v1301, %v1297
      %v1630 = vpack.c.b16 %v1302, %v1298
      %v1631 = vpack.c.b16 %v1303, %v1299
      %v1632 = vpack.c.b16 %v1308, %v1304
      %v1633 = vpack.c.b16 %v1309, %v1305
      %v1634 = vpack.c.b16 %v1310, %v1306
      %v1635 = vpack.c.b16 %v1311, %v1307
      %v1636 = vpack.c.b16 %v1316, %v1312
      %v1637 = vpack.c.b16 %v1317, %v1313
      %v1638 = vpack.c.b16 %v1318, %v1314
      %v1639 = vpack.c.b16 %v1319, %v1315
      %v1640 = vpack.c.b16 %v1324, %v1320
      %v1641 = vpack.c.b16 %v1325, %v1321
      %v1642 = vpack.c.b16 %v1326, %v1322
      %v1643 = vpack.c.b16 %v1327, %v1323
      %v1644 = vpack.c.b16 %v1332, %v1328
      %v1645 = vpack.c.b16 %v1333, %v1329
      %v1646 = vpack.c.b16 %v1334, %v1330
      %v1647 = vpack.c.b16 %v1335, %v1331
      %v1648 = vpack.c.b16 %v1340, %v1336
      %v1649 = vpack.c.b16 %v1341, %v1337
      %v1650 = vpack.c.b16 %v1342, %v1338
      %v1651 = vpack.c.b16 %v1343, %v1339
      %v1652 = vpack.c.b16 %v1348, %v1344
      %v1653 = vpack.c.b16 %v1349, %v1345
      %v1654 = vpack.c.b16 %v1350, %v1346
      %v1655 = vpack.c.b16 %v1351, %v1347
      %v1656 = vpack.c.b16 %v1356, %v1352
      %v1657 = vpack.c.b16 %v1357, %v1353
      %v1658 = vpack.c.b16 %v1358, %v1354
      %v1659 = vpack.c.b16 %v1359, %v1355
      %v1660 = vpack.c.b16 %v1364, %v1360
      %v1661 = vpack.c.b16 %v1365, %v1361
      %v1662 = vpack.c.b16 %v1366, %v1362
      %v1663 = vpack.c.b16 %v1367, %v1363
      %v1664 = vpack.c.b16 %v1372, %v1368
      %v1665 = vpack.c.b16 %v1373, %v1369
      %v1666 = vpack.c.b16 %v1374, %v1370
      %v1667 = vpack.c.b16 %v1375, %v1371
      %v1668 = vpack.c.b16 %v1380, %v1376
      %v1669 = vpack.c.b16 %v1381, %v1377
      %v1670 = vpack.c.b16 %v1382, %v1378
      %v1671 = vpack.c.b16 %v1383, %v1379
      %v1672 = vpack.c.b16 %v1388, %v1384
      %v1673 = vpack.c.b16 %v1389, %v1385
      %v1674 = vpack.c.b16 %v1390, %v1386
      %v1675 = vpack.c.b16 %v1391, %v1387
      %v1676 = vpack.c.b16 %v1396, %v1392
      %v1677 = vpack.c.b16 %v1397, %v1393
      %v1678 = vpack.c.b16 %v1398, %v1394
      %v1679 = vpack.c.b16 %v1399, %v1395
      %v1680 = vpack.c.b16 %v1404, %v1400
      %v1681 = vpack.c.b16 %v1405, %v1401
      %v1682 = vpack.c.b16 %v1406, %v1402
      %v1683 = vpack.c.b16 %v1407, %v1403
      %v1684 = vpack.c.b16 %v1412, %v1408
      %v1685 = vpack.c.b16 %v1413, %v1409
      %v1686 = vpack.c.b16 %v1414, %v1410
      %v1687 = vpack.c.b16 %v1415, %v1411
      %v1688 = vpack.c.b16 %v1420, %v1416
      %v1689 = vpack.c.b16 %v1421, %v1417
      %v1690 = vpack.c.b16 %v1422, %v1418
      %v1691 = vpack.c.b16 %v1423, %v1419
      %v1692 = vpack.c.b16 %v1428, %v1424
      %v1693 = vpack.c.b16 %v1429, %v1425
      %v1694 = vpack.c.b16 %v1430, %v1426
      %v1695 = vpack.c.b16 %v1431, %v1427
      %v1696 = vpack.c.b16 %v1436, %v1432
      %v1697 = vpack.c.b16 %v1437, %v1433
      %v1698 = vpack.c.b16 %v1438, %v1434
      %v1699 = vpack.c.b16 %v1439, %v1435
      %v1700 = vpack.c.b16 %v1444, %v1440
      %v1701 = vpack.c.b16 %v1445, %v1441
      %v1702 = vpack.c.b16 %v1446, %v1442
      %v1703 = vpack.c.b16 %v1447, %v1443
      %1960 = vmatprep.subr.bf16.mxu0 %v1449
      %1961 = vmatpush1.bf16.msra.mxu0 %v1448
      %1962 = vmatprep.subr.bf16.mxu0 %v1453
      %1963 = vmatpush1.bf16.msra.mxu0 %v1452
      %1964 = vmatprep.subr.bf16.mxu0 %v1457
      %1965 = vmatpush1.bf16.msra.mxu0 %v1456
      %1966 = vmatprep.subr.bf16.mxu0 %v1461
      %1967 = vmatpush1.bf16.msra.mxu0 %v1460
      %1968 = vmatprep.subr.bf16.mxu0 %v1465
      %1969 = vmatpush1.bf16.msra.mxu0 %v1464
      %1970 = vmatprep.subr.bf16.mxu0 %v1469
      %1971 = vmatpush1.bf16.msra.mxu0 %v1468
      %1972 = vmatprep.subr.bf16.mxu0 %v1473
      %1973 = vmatpush1.bf16.msra.mxu0 %v1472
      %1974 = vmatprep.subr.bf16.mxu0 %v1477
      %1975 = vmatpush1.bf16.msra.mxu0 %v1476
      %1976 = vmatprep.subr.bf16.mxu0 %v1481
      %1977 = vmatpush1.bf16.msra.mxu0 %v1480
      %1978 = vmatprep.subr.bf16.mxu0 %v1485
      %1979 = vmatpush1.bf16.msra.mxu0 %v1484
      %1980 = vmatprep.subr.bf16.mxu0 %v1489
      %1981 = vmatpush1.bf16.msra.mxu0 %v1488
      %1982 = vmatprep.subr.bf16.mxu0 %v1493
      %1983 = vmatpush1.bf16.msra.mxu0 %v1492
      %1984 = vmatprep.subr.bf16.mxu0 %v1497
      %1985 = vmatpush1.bf16.msra.mxu0 %v1496
      %1986 = vmatprep.subr.bf16.mxu0 %v1501
      %1987 = vmatpush1.bf16.msra.mxu0 %v1500
      %1988 = vmatprep.subr.bf16.mxu0 %v1505
      %1989 = vmatpush1.bf16.msra.mxu0 %v1504
      %1990 = vmatprep.subr.bf16.mxu0 %v1509
      %1991 = vmatpush1.bf16.msra.mxu0 %v1508
      %1992 = vmatprep.mubr.bf16.mxu0 %v395
      %1993 = vmatmul.mubr.bf16.gmra.mrb[0].mxu0 %v394
      %v1994 = vpop.f32.mrb[0].mxu0
      %v1995 = vadd.f32 %v663, %v1994
      %v1996 = vpop.f32.mrb[0].mxu0
      %v1997 = vadd.f32 %v667, %v1996
      %v1998 = vpop.f32.mrb[0].mxu0
      %v1999 = vpop.f32.mrb[0].mxu0
      %2000 = vdwg.mxu0
      %2001 = vmatprep.subr.bf16.mxu0 %v1513
      %2002 = vmatpush1.bf16.msra.mxu0 %v1512
      %2003 = vmatprep.subr.bf16.mxu0 %v1517
      %2004 = vmatpush1.bf16.msra.mxu0 %v1516
      %2005 = vmatprep.subr.bf16.mxu0 %v1521
      %2006 = vmatpush1.bf16.msra.mxu0 %v1520
      %2007 = vmatprep.subr.bf16.mxu0 %v1525
      %2008 = vmatpush1.bf16.msra.mxu0 %v1524
      %2009 = vmatprep.subr.bf16.mxu0 %v1529
      %2010 = vmatpush1.bf16.msra.mxu0 %v1528
      %2011 = vmatprep.subr.bf16.mxu0 %v1533
      %2012 = vmatpush1.bf16.msra.mxu0 %v1532
      %2013 = vmatprep.subr.bf16.mxu0 %v1537
      %2014 = vmatpush1.bf16.msra.mxu0 %v1536
      %2015 = vmatprep.subr.bf16.mxu0 %v1541
      %2016 = vmatpush1.bf16.msra.mxu0 %v1540
      %2017 = vmatprep.subr.bf16.mxu0 %v1545
      %2018 = vmatpush1.bf16.msra.mxu0 %v1544
      %2019 = vmatprep.subr.bf16.mxu0 %v1549
      %2020 = vmatpush1.bf16.msra.mxu0 %v1548
      %2021 = vmatprep.subr.bf16.mxu0 %v1553
      %2022 = vmatpush1.bf16.msra.mxu0 %v1552
      %2023 = vmatprep.subr.bf16.mxu0 %v1557
      %2024 = vmatpush1.bf16.msra.mxu0 %v1556
      %2025 = vmatprep.subr.bf16.mxu0 %v1561
      %2026 = vmatpush1.bf16.msra.mxu0 %v1560
      %2027 = vmatprep.subr.bf16.mxu0 %v1565
      %2028 = vmatpush1.bf16.msra.mxu0 %v1564
      %2029 = vmatprep.subr.bf16.mxu0 %v1569
      %2030 = vmatpush1.bf16.msra.mxu0 %v1568
      %2031 = vmatprep.subr.bf16.mxu0 %v1573
      %2032 = vmatpush1.bf16.msra.mxu0 %v1572
      %2033 = vmatprep.mubr.bf16.mxu0 %v397
      %2034 = vmatmul.mubr.bf16.gmra.mrb[0].mxu0 %v396
      %v2035 = vpop.f32.mrb[0].mxu0
      %v2036 = vadd.f32 %v1995, %v2035
      %v2037 = vpop.f32.mrb[0].mxu0
      %v2038 = vadd.f32 %v1997, %v2037
      %v2039 = vpop.f32.mrb[0].mxu0
      %v2040 = vpop.f32.mrb[0].mxu0
      %2041 = vdwg.mxu0
      %2042 = vmatprep.subr.bf16.mxu0 %v1577
      %2043 = vmatpush1.bf16.msra.mxu0 %v1576
      %2044 = vmatprep.subr.bf16.mxu0 %v1581
      %2045 = vmatpush1.bf16.msra.mxu0 %v1580
      %2046 = vmatprep.subr.bf16.mxu0 %v1585
      %2047 = vmatpush1.bf16.msra.mxu0 %v1584
      %2048 = vmatprep.subr.bf16.mxu0 %v1589
      %2049 = vmatpush1.bf16.msra.mxu0 %v1588
      %2050 = vmatprep.subr.bf16.mxu0 %v1593
      %2051 = vmatpush1.bf16.msra.mxu0 %v1592
      %2052 = vmatprep.subr.bf16.mxu0 %v1597
      %2053 = vmatpush1.bf16.msra.mxu0 %v1596
      %2054 = vmatprep.subr.bf16.mxu0 %v1601
      %2055 = vmatpush1.bf16.msra.mxu0 %v1600
      %2056 = vmatprep.subr.bf16.mxu0 %v1605
      %2057 = vmatpush1.bf16.msra.mxu0 %v1604
      %2058 = vmatprep.subr.bf16.mxu0 %v1609
      %2059 = vmatpush1.bf16.msra.mxu0 %v1608
      %2060 = vmatprep.subr.bf16.mxu0 %v1613
      %2061 = vmatpush1.bf16.msra.mxu0 %v1612
      %2062 = vmatprep.subr.bf16.mxu0 %v1617
      %2063 = vmatpush1.bf16.msra.mxu0 %v1616
      %2064 = vmatprep.subr.bf16.mxu0 %v1621
      %2065 = vmatpush1.bf16.msra.mxu0 %v1620
      %2066 = vmatprep.subr.bf16.mxu0 %v1625
      %2067 = vmatpush1.bf16.msra.mxu0 %v1624
      %2068 = vmatprep.subr.bf16.mxu0 %v1629
      %2069 = vmatpush1.bf16.msra.mxu0 %v1628
      %2070 = vmatprep.subr.bf16.mxu0 %v1633
      %2071 = vmatpush1.bf16.msra.mxu0 %v1632
      %2072 = vmatprep.subr.bf16.mxu0 %v1637
      %2073 = vmatpush1.bf16.msra.mxu0 %v1636
      %2074 = vmatprep.mubr.bf16.mxu0 %v399
      %2075 = vmatmul.mubr.bf16.gmra.mrb[0].mxu0 %v398
      %v2076 = vpop.f32.mrb[0].mxu0
      %v2077 = vadd.f32 %v2036, %v2076
      %v2078 = vpop.f32.mrb[0].mxu0
      %v2079 = vadd.f32 %v2038, %v2078
      %v2080 = vpop.f32.mrb[0].mxu0
      %v2081 = vpop.f32.mrb[0].mxu0
      %2082 = vdwg.mxu0
      %2083 = vmatprep.subr.bf16.mxu0 %v1641
      %2084 = vmatpush1.bf16.msra.mxu0 %v1640
      %2085 = vmatprep.subr.bf16.mxu0 %v1645
      %2086 = vmatpush1.bf16.msra.mxu0 %v1644
      %2087 = vmatprep.subr.bf16.mxu0 %v1649
      %2088 = vmatpush1.bf16.msra.mxu0 %v1648
      %2089 = vmatprep.subr.bf16.mxu0 %v1653
      %2090 = vmatpush1.bf16.msra.mxu0 %v1652
      %2091 = vmatprep.subr.bf16.mxu0 %v1657
      %2092 = vmatpush1.bf16.msra.mxu0 %v1656
      %2093 = vmatprep.subr.bf16.mxu0 %v1661
      %2094 = vmatpush1.bf16.msra.mxu0 %v1660
      %2095 = vmatprep.subr.bf16.mxu0 %v1665
      %2096 = vmatpush1.bf16.msra.mxu0 %v1664
      %2097 = vmatprep.subr.bf16.mxu0 %v1669
      %2098 = vmatpush1.bf16.msra.mxu0 %v1668
      %2099 = vmatprep.subr.bf16.mxu0 %v1673
      %2100 = vmatpush1.bf16.msra.mxu0 %v1672
      %2101 = vmatprep.subr.bf16.mxu0 %v1677
      %2102 = vmatpush1.bf16.msra.mxu0 %v1676
      %2103 = vmatprep.subr.bf16.mxu0 %v1681
      %2104 = vmatpush1.bf16.msra.mxu0 %v1680
      %2105 = vmatprep.subr.bf16.mxu0 %v1685
      %2106 = vmatpush1.bf16.msra.mxu0 %v1684
      %2107 = vmatprep.subr.bf16.mxu0 %v1689
      %2108 = vmatpush1.bf16.msra.mxu0 %v1688
      %2109 = vmatprep.subr.bf16.mxu0 %v1693
      %2110 = vmatpush1.bf16.msra.mxu0 %v1692
      %2111 = vmatprep.subr.bf16.mxu0 %v1697
      %2112 = vmatpush1.bf16.msra.mxu0 %v1696
      %2113 = vmatprep.subr.bf16.mxu0 %v1701
      %2114 = vmatpush1.bf16.msra.mxu0 %v1700
      %2115 = vmatprep.mubr.bf16.mxu0 %v401
      %2116 = vmatmul.mubr.bf16.gmra.mrb[0].mxu0 %v400
      %v2117 = vpop.f32.mrb[0].mxu0
      %v2118 = vadd.f32 %v2077, %v2117
      %v2119 = vpop.f32.mrb[0].mxu0
      %v2120 = vadd.f32 %v2079, %v2119
      %v2121 = vpop.f32.mrb[0].mxu0
      %v2122 = vpop.f32.mrb[0].mxu0
      %2123 = vdwg.mxu0
      %2124 = vmatprep.subr.bf16.mxu0 %v1451
      %2125 = vmatpush1.bf16.msra.mxu0 %v1450
      %2126 = vmatprep.subr.bf16.mxu0 %v1455
      %2127 = vmatpush1.bf16.msra.mxu0 %v1454
      %2128 = vmatprep.subr.bf16.mxu0 %v1459
      %2129 = vmatpush1.bf16.msra.mxu0 %v1458
      %2130 = vmatprep.subr.bf16.mxu0 %v1463
      %2131 = vmatpush1.bf16.msra.mxu0 %v1462
      %2132 = vmatprep.subr.bf16.mxu0 %v1467
      %2133 = vmatpush1.bf16.msra.mxu0 %v1466
      %2134 = vmatprep.subr.bf16.mxu0 %v1471
      %2135 = vmatpush1.bf16.msra.mxu0 %v1470
      %2136 = vmatprep.subr.bf16.mxu0 %v1475
      %2137 = vmatpush1.bf16.msra.mxu0 %v1474
      %2138 = vmatprep.subr.bf16.mxu0 %v1479
      %2139 = vmatpush1.bf16.msra.mxu0 %v1478
      %2140 = vmatprep.subr.bf16.mxu0 %v1483
      %2141 = vmatpush1.bf16.msra.mxu0 %v1482
      %2142 = vmatprep.subr.bf16.mxu0 %v1487
      %2143 = vmatpush1.bf16.msra.mxu0 %v1486
      %2144 = vmatprep.subr.bf16.mxu0 %v1491
      %2145 = vmatpush1.bf16.msra.mxu0 %v1490
      %2146 = vmatprep.subr.bf16.mxu0 %v1495
      %2147 = vmatpush1.bf16.msra.mxu0 %v1494
      %2148 = vmatprep.subr.bf16.mxu0 %v1499
      %2149 = vmatpush1.bf16.msra.mxu0 %v1498
      %2150 = vmatprep.subr.bf16.mxu0 %v1503
      %2151 = vmatpush1.bf16.msra.mxu0 %v1502
      %2152 = vmatprep.subr.bf16.mxu0 %v1507
      %2153 = vmatpush1.bf16.msra.mxu0 %v1506
      %2154 = vmatprep.subr.bf16.mxu0 %v1511
      %2155 = vmatpush1.bf16.msra.mxu0 %v1510
      %2156 = vmatprep.mubr.bf16.mxu0 %v395
      %2157 = vmatmul.mubr.bf16.gmra.mrb[0].mxu0 %v394
      %v2158 = vpop.f32.mrb[0].mxu0
      %v2159 = vadd.f32 %v671, %v2158
      %v2160 = vpop.f32.mrb[0].mxu0
      %v2161 = vadd.f32 %v675, %v2160
      %v2162 = vpop.f32.mrb[0].mxu0
      %v2163 = vpop.f32.mrb[0].mxu0
      %2164 = vdwg.mxu0
      %2165 = vmatprep.subr.bf16.mxu0 %v1515
      %2166 = vmatpush1.bf16.msra.mxu0 %v1514
      %2167 = vmatprep.subr.bf16.mxu0 %v1519
      %2168 = vmatpush1.bf16.msra.mxu0 %v1518
      %2169 = vmatprep.subr.bf16.mxu0 %v1523
      %2170 = vmatpush1.bf16.msra.mxu0 %v1522
      %2171 = vmatprep.subr.bf16.mxu0 %v1527
      %2172 = vmatpush1.bf16.msra.mxu0 %v1526
      %2173 = vmatprep.subr.bf16.mxu0 %v1531
      %2174 = vmatpush1.bf16.msra.mxu0 %v1530
      %2175 = vmatprep.subr.bf16.mxu0 %v1535
      %2176 = vmatpush1.bf16.msra.mxu0 %v1534
      %2177 = vmatprep.subr.bf16.mxu0 %v1539
      %2178 = vmatpush1.bf16.msra.mxu0 %v1538
      %2179 = vmatprep.subr.bf16.mxu0 %v1543
      %2180 = vmatpush1.bf16.msra.mxu0 %v1542
      %2181 = vmatprep.subr.bf16.mxu0 %v1547
      %2182 = vmatpush1.bf16.msra.mxu0 %v1546
      %2183 = vmatprep.subr.bf16.mxu0 %v1551
      %2184 = vmatpush1.bf16.msra.mxu0 %v1550
      %2185 = vmatprep.subr.bf16.mxu0 %v1555
      %2186 = vmatpush1.bf16.msra.mxu0 %v1554
      %2187 = vmatprep.subr.bf16.mxu0 %v1559
      %2188 = vmatpush1.bf16.msra.mxu0 %v1558
      %2189 = vmatprep.subr.bf16.mxu0 %v1563
      %2190 = vmatpush1.bf16.msra.mxu0 %v1562
      %2191 = vmatprep.subr.bf16.mxu0 %v1567
      %2192 = vmatpush1.bf16.msra.mxu0 %v1566
      %2193 = vmatprep.subr.bf16.mxu0 %v1571
      %2194 = vmatpush1.bf16.msra.mxu0 %v1570
      %2195 = vmatprep.subr.bf16.mxu0 %v1575
      %2196 = vmatpush1.bf16.msra.mxu0 %v1574
      %2197 = vmatprep.mubr.bf16.mxu0 %v397
      %2198 = vmatmul.mubr.bf16.gmra.mrb[0].mxu0 %v396
      %v2199 = vpop.f32.mrb[0].mxu0
      %v2200 = vadd.f32 %v2159, %v2199
      %v2201 = vpop.f32.mrb[0].mxu0
      %v2202 = vadd.f32 %v2161, %v2201
      %v2203 = vpop.f32.mrb[0].mxu0
      %v2204 = vpop.f32.mrb[0].mxu0
      %2205 = vdwg.mxu0
      %2206 = vmatprep.subr.bf16.mxu0 %v1579
      %2207 = vmatpush1.bf16.msra.mxu0 %v1578
      %2208 = vmatprep.subr.bf16.mxu0 %v1583
      %2209 = vmatpush1.bf16.msra.mxu0 %v1582
      %2210 = vmatprep.subr.bf16.mxu0 %v1587
      %2211 = vmatpush1.bf16.msra.mxu0 %v1586
      %2212 = vmatprep.subr.bf16.mxu0 %v1591
      %2213 = vmatpush1.bf16.msra.mxu0 %v1590
      %2214 = vmatprep.subr.bf16.mxu0 %v1595
      %2215 = vmatpush1.bf16.msra.mxu0 %v1594
      %2216 = vmatprep.subr.bf16.mxu0 %v1599
      %2217 = vmatpush1.bf16.msra.mxu0 %v1598
      %2218 = vmatprep.subr.bf16.mxu0 %v1603
      %2219 = vmatpush1.bf16.msra.mxu0 %v1602
      %2220 = vmatprep.subr.bf16.mxu0 %v1607
      %2221 = vmatpush1.bf16.msra.mxu0 %v1606
      %2222 = vmatprep.subr.bf16.mxu0 %v1611
      %2223 = vmatpush1.bf16.msra.mxu0 %v1610
      %2224 = vmatprep.subr.bf16.mxu0 %v1615
      %2225 = vmatpush1.bf16.msra.mxu0 %v1614
      %2226 = vmatprep.subr.bf16.mxu0 %v1619
      %2227 = vmatpush1.bf16.msra.mxu0 %v1618
      %2228 = vmatprep.subr.bf16.mxu0 %v1623
      %2229 = vmatpush1.bf16.msra.mxu0 %v1622
      %2230 = vmatprep.subr.bf16.mxu0 %v1627
      %2231 = vmatpush1.bf16.msra.mxu0 %v1626
      %2232 = vmatprep.subr.bf16.mxu0 %v1631
      %2233 = vmatpush1.bf16.msra.mxu0 %v1630
      %2234 = vmatprep.subr.bf16.mxu0 %v1635
      %2235 = vmatpush1.bf16.msra.mxu0 %v1634
      %2236 = vmatprep.subr.bf16.mxu0 %v1639
      %2237 = vmatpush1.bf16.msra.mxu0 %v1638
      %2238 = vmatprep.mubr.bf16.mxu0 %v399
      %2239 = vmatmul.mubr.bf16.gmra.mrb[0].mxu0 %v398
      %v2240 = vpop.f32.mrb[0].mxu0
      %v2241 = vadd.f32 %v2200, %v2240
      %v2242 = vpop.f32.mrb[0].mxu0
      %v2243 = vadd.f32 %v2202, %v2242
      %v2244 = vpop.f32.mrb[0].mxu0
      %v2245 = vpop.f32.mrb[0].mxu0
      %2246 = vdwg.mxu0
      %2247 = vmatprep.subr.bf16.mxu0 %v1643
      %2248 = vmatpush1.bf16.msra.mxu0 %v1642
      %2249 = vmatprep.subr.bf16.mxu0 %v1647
      %2250 = vmatpush1.bf16.msra.mxu0 %v1646
      %2251 = vmatprep.subr.bf16.mxu0 %v1651
      %2252 = vmatpush1.bf16.msra.mxu0 %v1650
      %2253 = vmatprep.subr.bf16.mxu0 %v1655
      %2254 = vmatpush1.bf16.msra.mxu0 %v1654
      %2255 = vmatprep.subr.bf16.mxu0 %v1659
      %2256 = vmatpush1.bf16.msra.mxu0 %v1658
      %2257 = vmatprep.subr.bf16.mxu0 %v1663
      %2258 = vmatpush1.bf16.msra.mxu0 %v1662
      %2259 = vmatprep.subr.bf16.mxu0 %v1667
      %2260 = vmatpush1.bf16.msra.mxu0 %v1666
      %2261 = vmatprep.subr.bf16.mxu0 %v1671
      %2262 = vmatpush1.bf16.msra.mxu0 %v1670
      %2263 = vmatprep.subr.bf16.mxu0 %v1675
      %2264 = vmatpush1.bf16.msra.mxu0 %v1674
      %2265 = vmatprep.subr.bf16.mxu0 %v1679
      %2266 = vmatpush1.bf16.msra.mxu0 %v1678
      %2267 = vmatprep.subr.bf16.mxu0 %v1683
      %2268 = vmatpush1.bf16.msra.mxu0 %v1682
      %2269 = vmatprep.subr.bf16.mxu0 %v1687
      %2270 = vmatpush1.bf16.msra.mxu0 %v1686
      %2271 = vmatprep.subr.bf16.mxu0 %v1691
      %2272 = vmatpush1.bf16.msra.mxu0 %v1690
      %2273 = vmatprep.subr.bf16.mxu0 %v1695
      %2274 = vmatpush1.bf16.msra.mxu0 %v1694
      %2275 = vmatprep.subr.bf16.mxu0 %v1699
      %2276 = vmatpush1.bf16.msra.mxu0 %v1698
      %2277 = vmatprep.subr.bf16.mxu0 %v1703
      %2278 = vmatpush1.bf16.msra.mxu0 %v1702
      %2279 = vmatprep.mubr.bf16.mxu0 %v401
      %2280 = vmatmul.mubr.bf16.gmra.mrb[0].mxu0 %v400
      %v2281 = vpop.f32.mrb[0].mxu0
      %v2282 = vadd.f32 %v2241, %v2281
      %v2283 = vpop.f32.mrb[0].mxu0
      %v2284 = vadd.f32 %v2243, %v2283
      %v2285 = vpop.f32.mrb[0].mxu0
      %v2286 = vpop.f32.mrb[0].mxu0
      %2287 = vdwg.mxu0
      %v2288 = vmax.f32 %v2118, 0.0
      %v2289 = vmax.f32 %v2120, 0.0
      %v2290 = vmax.f32 %v2282, 0.0
      %v2291 = vmax.f32 %v2284, 0.0
      %v2292 = vpack.c.bf16 %v2288, %v2288
      %v2293 = vpack.c.bf16 %v2289, %v2289
      %v2294 = vpack.c.bf16 %v2290, %v2290
      %v2295 = vpack.c.bf16 %v2291, %v2291
      %v2296 = vld [vmem:[%s368] sm:$0xff]
      %v2297 = vld [vmem:[%s368 + $0x8] sm:$0xff]
      %v2298 = vld [vmem:[%s368 + $0x10] sm:$0xff]
      %v2299 = vld [vmem:[%s368 + $0x18] sm:$0xff]
      %v2300 = vld [vmem:[%s368 + $0x20] sm:$0xff]
      %v2301 = vld [vmem:[%s368 + $0x28] sm:$0xff]
      %v2302 = vld [vmem:[%s368 + $0x30] sm:$0xff]
      %v2303 = vld [vmem:[%s368 + $0x38] sm:$0xff]
      %v2304 = vld [vmem:[%s368 + $0x40] sm:$0xff]
      %v2305 = vld [vmem:[%s368 + $0x48] sm:$0xff]
      %v2306 = vld [vmem:[%s368 + $0x50] sm:$0xff]
      %v2307 = vld [vmem:[%s368 + $0x58] sm:$0xff]
      %v2308 = vld [vmem:[%s368 + $0x60] sm:$0xff]
      %v2309 = vld [vmem:[%s368 + $0x68] sm:$0xff]
      %v2310 = vld [vmem:[%s368 + $0x70] sm:$0xff]
      %v2311 = vld [vmem:[%s368 + $0x78] sm:$0xff]
      %v2312 = vld [vmem:[%s368 + $0x80] sm:$0xff]
      %v2313 = vld [vmem:[%s368 + $0x88] sm:$0xff]
      %v2314 = vld [vmem:[%s368 + $0x90] sm:$0xff]
      %v2315 = vld [vmem:[%s368 + $0x98] sm:$0xff]
      %v2316 = vld [vmem:[%s368 + $0xa0] sm:$0xff]
      %v2317 = vld [vmem:[%s368 + $0xa8] sm:$0xff]
      %v2318 = vld [vmem:[%s368 + $0xb0] sm:$0xff]
      %v2319 = vld [vmem:[%s368 + $0xb8] sm:$0xff]
      %v2320 = vld [vmem:[%s368 + $0xc0] sm:$0xff]
      %v2321 = vld [vmem:[%s368 + $0xc8] sm:$0xff]
      %v2322 = vld [vmem:[%s368 + $0xd0] sm:$0xff]
      %v2323 = vld [vmem:[%s368 + $0xd8] sm:$0xff]
      %v2324 = vld [vmem:[%s368 + $0xe0] sm:$0xff]
      %v2325 = vld [vmem:[%s368 + $0xe8] sm:$0xff]
      %v2326 = vld [vmem:[%s368 + $0xf0] sm:$0xff]
      %v2327 = vld [vmem:[%s368 + $0xf8] sm:$0xff]
      %v2328 = vld [vmem:[%s368 + $0x100] sm:$0xff]
      %v2329 = vld [vmem:[%s368 + $0x108] sm:$0xff]
      %v2330 = vld [vmem:[%s368 + $0x110] sm:$0xff]
      %v2331 = vld [vmem:[%s368 + $0x118] sm:$0xff]
      %v2332 = vld [vmem:[%s368 + $0x120] sm:$0xff]
      %v2333 = vld [vmem:[%s368 + $0x128] sm:$0xff]
      %v2334 = vld [vmem:[%s368 + $0x130] sm:$0xff]
      %v2335 = vld [vmem:[%s368 + $0x138] sm:$0xff]
      %v2336 = vld [vmem:[%s368 + $0x140] sm:$0xff]
      %v2337 = vld [vmem:[%s368 + $0x148] sm:$0xff]
      %v2338 = vld [vmem:[%s368 + $0x150] sm:$0xff]
      %v2339 = vld [vmem:[%s368 + $0x158] sm:$0xff]
      %v2340 = vld [vmem:[%s368 + $0x160] sm:$0xff]
      %v2341 = vld [vmem:[%s368 + $0x168] sm:$0xff]
      %v2342 = vld [vmem:[%s368 + $0x170] sm:$0xff]
      %v2343 = vld [vmem:[%s368 + $0x178] sm:$0xff]
      %v2344 = vld [vmem:[%s368 + $0x180] sm:$0xff]
      %v2345 = vld [vmem:[%s368 + $0x188] sm:$0xff]
      %v2346 = vld [vmem:[%s368 + $0x190] sm:$0xff]
      %v2347 = vld [vmem:[%s368 + $0x198] sm:$0xff]
      %v2348 = vld [vmem:[%s368 + $0x1a0] sm:$0xff]
      %v2349 = vld [vmem:[%s368 + $0x1a8] sm:$0xff]
      %v2350 = vld [vmem:[%s368 + $0x1b0] sm:$0xff]
      %v2351 = vld [vmem:[%s368 + $0x1b8] sm:$0xff]
      %v2352 = vld [vmem:[%s368 + $0x1c0] sm:$0xff]
      %v2353 = vld [vmem:[%s368 + $0x1c8] sm:$0xff]
      %v2354 = vld [vmem:[%s368 + $0x1d0] sm:$0xff]
      %v2355 = vld [vmem:[%s368 + $0x1d8] sm:$0xff]
      %v2356 = vld [vmem:[%s368 + $0x1e0] sm:$0xff]
      %v2357 = vld [vmem:[%s368 + $0x1e8] sm:$0xff]
      %v2358 = vld [vmem:[%s368 + $0x1f0] sm:$0xff]
      %v2359 = vld [vmem:[%s368 + $0x1f8] sm:$0xff]
      %v2360 = vld [vmem:[%s368 + $0x200] sm:$0xff]
      %v2361 = vld [vmem:[%s368 + $0x208] sm:$0xff]
      %v2362 = vld [vmem:[%s368 + $0x210] sm:$0xff]
      %v2363 = vld [vmem:[%s368 + $0x218] sm:$0xff]
      %v2364 = vld [vmem:[%s368 + $0x220] sm:$0xff]
      %v2365 = vld [vmem:[%s368 + $0x228] sm:$0xff]
      %v2366 = vld [vmem:[%s368 + $0x230] sm:$0xff]
      %v2367 = vld [vmem:[%s368 + $0x238] sm:$0xff]
      %v2368 = vld [vmem:[%s368 + $0x240] sm:$0xff]
      %v2369 = vld [vmem:[%s368 + $0x248] sm:$0xff]
      %v2370 = vld [vmem:[%s368 + $0x250] sm:$0xff]
      %v2371 = vld [vmem:[%s368 + $0x258] sm:$0xff]
      %v2372 = vld [vmem:[%s368 + $0x260] sm:$0xff]
      %v2373 = vld [vmem:[%s368 + $0x268] sm:$0xff]
      %v2374 = vld [vmem:[%s368 + $0x270] sm:$0xff]
      %v2375 = vld [vmem:[%s368 + $0x278] sm:$0xff]
      %v2376 = vld [vmem:[%s368 + $0x280] sm:$0xff]
      %v2377 = vld [vmem:[%s368 + $0x288] sm:$0xff]
      %v2378 = vld [vmem:[%s368 + $0x290] sm:$0xff]
      %v2379 = vld [vmem:[%s368 + $0x298] sm:$0xff]
      %v2380 = vld [vmem:[%s368 + $0x2a0] sm:$0xff]
      %v2381 = vld [vmem:[%s368 + $0x2a8] sm:$0xff]
      %v2382 = vld [vmem:[%s368 + $0x2b0] sm:$0xff]
      %v2383 = vld [vmem:[%s368 + $0x2b8] sm:$0xff]
      %v2384 = vld [vmem:[%s368 + $0x2c0] sm:$0xff]
      %v2385 = vld [vmem:[%s368 + $0x2c8] sm:$0xff]
      %v2386 = vld [vmem:[%s368 + $0x2d0] sm:$0xff]
      %v2387 = vld [vmem:[%s368 + $0x2d8] sm:$0xff]
      %v2388 = vld [vmem:[%s368 + $0x2e0] sm:$0xff]
      %v2389 = vld [vmem:[%s368 + $0x2e8] sm:$0xff]
      %v2390 = vld [vmem:[%s368 + $0x2f0] sm:$0xff]
      %v2391 = vld [vmem:[%s368 + $0x2f8] sm:$0xff]
      %v2392 = vld [vmem:[%s368 + $0x300] sm:$0xff]
      %v2393 = vld [vmem:[%s368 + $0x308] sm:$0xff]
      %v2394 = vld [vmem:[%s368 + $0x310] sm:$0xff]
      %v2395 = vld [vmem:[%s368 + $0x318] sm:$0xff]
      %v2396 = vld [vmem:[%s368 + $0x320] sm:$0xff]
      %v2397 = vld [vmem:[%s368 + $0x328] sm:$0xff]
      %v2398 = vld [vmem:[%s368 + $0x330] sm:$0xff]
      %v2399 = vld [vmem:[%s368 + $0x338] sm:$0xff]
      %v2400 = vld [vmem:[%s368 + $0x340] sm:$0xff]
      %v2401 = vld [vmem:[%s368 + $0x348] sm:$0xff]
      %v2402 = vld [vmem:[%s368 + $0x350] sm:$0xff]
      %v2403 = vld [vmem:[%s368 + $0x358] sm:$0xff]
      %v2404 = vld [vmem:[%s368 + $0x360] sm:$0xff]
      %v2405 = vld [vmem:[%s368 + $0x368] sm:$0xff]
      %v2406 = vld [vmem:[%s368 + $0x370] sm:$0xff]
      %v2407 = vld [vmem:[%s368 + $0x378] sm:$0xff]
      %v2408 = vld [vmem:[%s368 + $0x380] sm:$0xff]
      %v2409 = vld [vmem:[%s368 + $0x388] sm:$0xff]
      %v2410 = vld [vmem:[%s368 + $0x390] sm:$0xff]
      %v2411 = vld [vmem:[%s368 + $0x398] sm:$0xff]
      %v2412 = vld [vmem:[%s368 + $0x3a0] sm:$0xff]
      %v2413 = vld [vmem:[%s368 + $0x3a8] sm:$0xff]
      %v2414 = vld [vmem:[%s368 + $0x3b0] sm:$0xff]
      %v2415 = vld [vmem:[%s368 + $0x3b8] sm:$0xff]
      %v2416 = vld [vmem:[%s368 + $0x3c0] sm:$0xff]
      %v2417 = vld [vmem:[%s368 + $0x3c8] sm:$0xff]
      %v2418 = vld [vmem:[%s368 + $0x3d0] sm:$0xff]
      %v2419 = vld [vmem:[%s368 + $0x3d8] sm:$0xff]
      %v2420 = vld [vmem:[%s368 + $0x3e0] sm:$0xff]
      %v2421 = vld [vmem:[%s368 + $0x3e8] sm:$0xff]
      %v2422 = vld [vmem:[%s368 + $0x3f0] sm:$0xff]
      %v2423 = vld [vmem:[%s368 + $0x3f8] sm:$0xff]
      %v2424 = vld [vmem:[%s372] sm:$0xf]
      %v2426 = vlaneseq
      %v2427 = vshrl.u32 %v2426, 7
      %v2428 = vsub.s32 0, %v2427
      %v2429 = vrot.slane %v2424, %v2428
      %v2430 = vlaneseq
      %v2431 = vshrl.u32 %v2430, 7
      %v2432 = vsub.s32 1, %v2431
      %v2433 = vrot.slane %v2424, %v2432
      %v2434 = vlaneseq
      %v2435 = vshrl.u32 %v2434, 7
      %v2436 = vsub.s32 2, %v2435
      %v2437 = vrot.slane %v2424, %v2436
      %v2438 = vlaneseq
      %v2439 = vshrl.u32 %v2438, 7
      %v2440 = vsub.s32 3, %v2439
      %v2441 = vrot.slane %v2424, %v2440
      %v2574 = vunpack.c.l.b16 %v2296
      %v2575 = vunpack.c.h.b16 %v2296
      %v2576 = vunpack.c.l.b16 %v2297
      %v2577 = vunpack.c.h.b16 %v2297
      %v2578 = vunpack.c.l.b16 %v2298
      %v2579 = vunpack.c.h.b16 %v2298
      %v2580 = vunpack.c.l.b16 %v2299
      %v2581 = vunpack.c.h.b16 %v2299
      %v2582 = vunpack.c.l.b16 %v2300
      %v2583 = vunpack.c.h.b16 %v2300
      %v2584 = vunpack.c.l.b16 %v2301
      %v2585 = vunpack.c.h.b16 %v2301
      %v2586 = vunpack.c.l.b16 %v2302
      %v2587 = vunpack.c.h.b16 %v2302
      %v2588 = vunpack.c.l.b16 %v2303
      %v2589 = vunpack.c.h.b16 %v2303
      %v2590 = vunpack.c.l.b16 %v2304
      %v2591 = vunpack.c.h.b16 %v2304
      %v2592 = vunpack.c.l.b16 %v2305
      %v2593 = vunpack.c.h.b16 %v2305
      %v2594 = vunpack.c.l.b16 %v2306
      %v2595 = vunpack.c.h.b16 %v2306
      %v2596 = vunpack.c.l.b16 %v2307
      %v2597 = vunpack.c.h.b16 %v2307
      %v2598 = vunpack.c.l.b16 %v2308
      %v2599 = vunpack.c.h.b16 %v2308
      %v2600 = vunpack.c.l.b16 %v2309
      %v2601 = vunpack.c.h.b16 %v2309
      %v2602 = vunpack.c.l.b16 %v2310
      %v2603 = vunpack.c.h.b16 %v2310
      %v2604 = vunpack.c.l.b16 %v2311
      %v2605 = vunpack.c.h.b16 %v2311
      %v2606 = vunpack.c.l.b16 %v2312
      %v2607 = vunpack.c.h.b16 %v2312
      %v2608 = vunpack.c.l.b16 %v2313
      %v2609 = vunpack.c.h.b16 %v2313
      %v2610 = vunpack.c.l.b16 %v2314
      %v2611 = vunpack.c.h.b16 %v2314
      %v2612 = vunpack.c.l.b16 %v2315
      %v2613 = vunpack.c.h.b16 %v2315
      %v2614 = vunpack.c.l.b16 %v2316
      %v2615 = vunpack.c.h.b16 %v2316
      %v2616 = vunpack.c.l.b16 %v2317
      %v2617 = vunpack.c.h.b16 %v2317
      %v2618 = vunpack.c.l.b16 %v2318
      %v2619 = vunpack.c.h.b16 %v2318
      %v2620 = vunpack.c.l.b16 %v2319
      %v2621 = vunpack.c.h.b16 %v2319
      %v2622 = vunpack.c.l.b16 %v2320
      %v2623 = vunpack.c.h.b16 %v2320
      %v2624 = vunpack.c.l.b16 %v2321
      %v2625 = vunpack.c.h.b16 %v2321
      %v2626 = vunpack.c.l.b16 %v2322
      %v2627 = vunpack.c.h.b16 %v2322
      %v2628 = vunpack.c.l.b16 %v2323
      %v2629 = vunpack.c.h.b16 %v2323
      %v2630 = vunpack.c.l.b16 %v2324
      %v2631 = vunpack.c.h.b16 %v2324
      %v2632 = vunpack.c.l.b16 %v2325
      %v2633 = vunpack.c.h.b16 %v2325
      %v2634 = vunpack.c.l.b16 %v2326
      %v2635 = vunpack.c.h.b16 %v2326
      %v2636 = vunpack.c.l.b16 %v2327
      %v2637 = vunpack.c.h.b16 %v2327
      %v2638 = vunpack.c.l.b16 %v2328
      %v2639 = vunpack.c.h.b16 %v2328
      %v2640 = vunpack.c.l.b16 %v2329
      %v2641 = vunpack.c.h.b16 %v2329
      %v2642 = vunpack.c.l.b16 %v2330
      %v2643 = vunpack.c.h.b16 %v2330
      %v2644 = vunpack.c.l.b16 %v2331
      %v2645 = vunpack.c.h.b16 %v2331
      %v2646 = vunpack.c.l.b16 %v2332
      %v2647 = vunpack.c.h.b16 %v2332
      %v2648 = vunpack.c.l.b16 %v2333
      %v2649 = vunpack.c.h.b16 %v2333
      %v2650 = vunpack.c.l.b16 %v2334
      %v2651 = vunpack.c.h.b16 %v2334
      %v2652 = vunpack.c.l.b16 %v2335
      %v2653 = vunpack.c.h.b16 %v2335
      %v2654 = vunpack.c.l.b16 %v2336
      %v2655 = vunpack.c.h.b16 %v2336
      %v2656 = vunpack.c.l.b16 %v2337
      %v2657 = vunpack.c.h.b16 %v2337
      %v2658 = vunpack.c.l.b16 %v2338
      %v2659 = vunpack.c.h.b16 %v2338
      %v2660 = vunpack.c.l.b16 %v2339
      %v2661 = vunpack.c.h.b16 %v2339
      %v2662 = vunpack.c.l.b16 %v2340
      %v2663 = vunpack.c.h.b16 %v2340
      %v2664 = vunpack.c.l.b16 %v2341
      %v2665 = vunpack.c.h.b16 %v2341
      %v2666 = vunpack.c.l.b16 %v2342
      %v2667 = vunpack.c.h.b16 %v2342
      %v2668 = vunpack.c.l.b16 %v2343
      %v2669 = vunpack.c.h.b16 %v2343
      %v2670 = vunpack.c.l.b16 %v2344
      %v2671 = vunpack.c.h.b16 %v2344
      %v2672 = vunpack.c.l.b16 %v2345
      %v2673 = vunpack.c.h.b16 %v2345
      %v2674 = vunpack.c.l.b16 %v2346
      %v2675 = vunpack.c.h.b16 %v2346
      %v2676 = vunpack.c.l.b16 %v2347
      %v2677 = vunpack.c.h.b16 %v2347
      %v2678 = vunpack.c.l.b16 %v2348
      %v2679 = vunpack.c.h.b16 %v2348
      %v2680 = vunpack.c.l.b16 %v2349
      %v2681 = vunpack.c.h.b16 %v2349
      %v2682 = vunpack.c.l.b16 %v2350
      %v2683 = vunpack.c.h.b16 %v2350
      %v2684 = vunpack.c.l.b16 %v2351
      %v2685 = vunpack.c.h.b16 %v2351
      %v2686 = vunpack.c.l.b16 %v2352
      %v2687 = vunpack.c.h.b16 %v2352
      %v2688 = vunpack.c.l.b16 %v2353
      %v2689 = vunpack.c.h.b16 %v2353
      %v2690 = vunpack.c.l.b16 %v2354
      %v2691 = vunpack.c.h.b16 %v2354
      %v2692 = vunpack.c.l.b16 %v2355
      %v2693 = vunpack.c.h.b16 %v2355
      %v2694 = vunpack.c.l.b16 %v2356
      %v2695 = vunpack.c.h.b16 %v2356
      %v2696 = vunpack.c.l.b16 %v2357
      %v2697 = vunpack.c.h.b16 %v2357
      %v2698 = vunpack.c.l.b16 %v2358
      %v2699 = vunpack.c.h.b16 %v2358
      %v2700 = vunpack.c.l.b16 %v2359
      %v2701 = vunpack.c.h.b16 %v2359
      %v2702 = vunpack.c.l.b16 %v2360
      %v2703 = vunpack.c.h.b16 %v2360
      %v2704 = vunpack.c.l.b16 %v2361
      %v2705 = vunpack.c.h.b16 %v2361
      %v2706 = vunpack.c.l.b16 %v2362
      %v2707 = vunpack.c.h.b16 %v2362
      %v2708 = vunpack.c.l.b16 %v2363
      %v2709 = vunpack.c.h.b16 %v2363
      %v2710 = vunpack.c.l.b16 %v2364
      %v2711 = vunpack.c.h.b16 %v2364
      %v2712 = vunpack.c.l.b16 %v2365
      %v2713 = vunpack.c.h.b16 %v2365
      %v2714 = vunpack.c.l.b16 %v2366
      %v2715 = vunpack.c.h.b16 %v2366
      %v2716 = vunpack.c.l.b16 %v2367
      %v2717 = vunpack.c.h.b16 %v2367
      %v2718 = vunpack.c.l.b16 %v2368
      %v2719 = vunpack.c.h.b16 %v2368
      %v2720 = vunpack.c.l.b16 %v2369
      %v2721 = vunpack.c.h.b16 %v2369
      %v2722 = vunpack.c.l.b16 %v2370
      %v2723 = vunpack.c.h.b16 %v2370
      %v2724 = vunpack.c.l.b16 %v2371
      %v2725 = vunpack.c.h.b16 %v2371
      %v2726 = vunpack.c.l.b16 %v2372
      %v2727 = vunpack.c.h.b16 %v2372
      %v2728 = vunpack.c.l.b16 %v2373
      %v2729 = vunpack.c.h.b16 %v2373
      %v2730 = vunpack.c.l.b16 %v2374
      %v2731 = vunpack.c.h.b16 %v2374
      %v2732 = vunpack.c.l.b16 %v2375
      %v2733 = vunpack.c.h.b16 %v2375
      %v2734 = vunpack.c.l.b16 %v2376
      %v2735 = vunpack.c.h.b16 %v2376
      %v2736 = vunpack.c.l.b16 %v2377
      %v2737 = vunpack.c.h.b16 %v2377
      %v2738 = vunpack.c.l.b16 %v2378
      %v2739 = vunpack.c.h.b16 %v2378
      %v2740 = vunpack.c.l.b16 %v2379
      %v2741 = vunpack.c.h.b16 %v2379
      %v2742 = vunpack.c.l.b16 %v2380
      %v2743 = vunpack.c.h.b16 %v2380
      %v2744 = vunpack.c.l.b16 %v2381
      %v2745 = vunpack.c.h.b16 %v2381
      %v2746 = vunpack.c.l.b16 %v2382
      %v2747 = vunpack.c.h.b16 %v2382
      %v2748 = vunpack.c.l.b16 %v2383
      %v2749 = vunpack.c.h.b16 %v2383
      %v2750 = vunpack.c.l.b16 %v2384
      %v2751 = vunpack.c.h.b16 %v2384
      %v2752 = vunpack.c.l.b16 %v2385
      %v2753 = vunpack.c.h.b16 %v2385
      %v2754 = vunpack.c.l.b16 %v2386
      %v2755 = vunpack.c.h.b16 %v2386
      %v2756 = vunpack.c.l.b16 %v2387
      %v2757 = vunpack.c.h.b16 %v2387
      %v2758 = vunpack.c.l.b16 %v2388
      %v2759 = vunpack.c.h.b16 %v2388
      %v2760 = vunpack.c.l.b16 %v2389
      %v2761 = vunpack.c.h.b16 %v2389
      %v2762 = vunpack.c.l.b16 %v2390
      %v2763 = vunpack.c.h.b16 %v2390
      %v2764 = vunpack.c.l.b16 %v2391
      %v2765 = vunpack.c.h.b16 %v2391
      %v2766 = vunpack.c.l.b16 %v2392
      %v2767 = vunpack.c.h.b16 %v2392
      %v2768 = vunpack.c.l.b16 %v2393
      %v2769 = vunpack.c.h.b16 %v2393
      %v2770 = vunpack.c.l.b16 %v2394
      %v2771 = vunpack.c.h.b16 %v2394
      %v2772 = vunpack.c.l.b16 %v2395
      %v2773 = vunpack.c.h.b16 %v2395
      %v2774 = vunpack.c.l.b16 %v2396
      %v2775 = vunpack.c.h.b16 %v2396
      %v2776 = vunpack.c.l.b16 %v2397
      %v2777 = vunpack.c.h.b16 %v2397
      %v2778 = vunpack.c.l.b16 %v2398
      %v2779 = vunpack.c.h.b16 %v2398
      %v2780 = vunpack.c.l.b16 %v2399
      %v2781 = vunpack.c.h.b16 %v2399
      %v2782 = vunpack.c.l.b16 %v2400
      %v2783 = vunpack.c.h.b16 %v2400
      %v2784 = vunpack.c.l.b16 %v2401
      %v2785 = vunpack.c.h.b16 %v2401
      %v2786 = vunpack.c.l.b16 %v2402
      %v2787 = vunpack.c.h.b16 %v2402
      %v2788 = vunpack.c.l.b16 %v2403
      %v2789 = vunpack.c.h.b16 %v2403
      %v2790 = vunpack.c.l.b16 %v2404
      %v2791 = vunpack.c.h.b16 %v2404
      %v2792 = vunpack.c.l.b16 %v2405
      %v2793 = vunpack.c.h.b16 %v2405
      %v2794 = vunpack.c.l.b16 %v2406
      %v2795 = vunpack.c.h.b16 %v2406
      %v2796 = vunpack.c.l.b16 %v2407
      %v2797 = vunpack.c.h.b16 %v2407
      %v2798 = vunpack.c.l.b16 %v2408
      %v2799 = vunpack.c.h.b16 %v2408
      %v2800 = vunpack.c.l.b16 %v2409
      %v2801 = vunpack.c.h.b16 %v2409
      %v2802 = vunpack.c.l.b16 %v2410
      %v2803 = vunpack.c.h.b16 %v2410
      %v2804 = vunpack.c.l.b16 %v2411
      %v2805 = vunpack.c.h.b16 %v2411
      %v2806 = vunpack.c.l.b16 %v2412
      %v2807 = vunpack.c.h.b16 %v2412
      %v2808 = vunpack.c.l.b16 %v2413
      %v2809 = vunpack.c.h.b16 %v2413
      %v2810 = vunpack.c.l.b16 %v2414
      %v2811 = vunpack.c.h.b16 %v2414
      %v2812 = vunpack.c.l.b16 %v2415
      %v2813 = vunpack.c.h.b16 %v2415
      %v2814 = vunpack.c.l.b16 %v2416
      %v2815 = vunpack.c.h.b16 %v2416
      %v2816 = vunpack.c.l.b16 %v2417
      %v2817 = vunpack.c.h.b16 %v2417
      %v2818 = vunpack.c.l.b16 %v2418
      %v2819 = vunpack.c.h.b16 %v2418
      %v2820 = vunpack.c.l.b16 %v2419
      %v2821 = vunpack.c.h.b16 %v2419
      %v2822 = vunpack.c.l.b16 %v2420
      %v2823 = vunpack.c.h.b16 %v2420
      %v2824 = vunpack.c.l.b16 %v2421
      %v2825 = vunpack.c.h.b16 %v2421
      %v2826 = vunpack.c.l.b16 %v2422
      %v2827 = vunpack.c.h.b16 %v2422
      %v2828 = vunpack.c.l.b16 %v2423
      %v2829 = vunpack.c.h.b16 %v2423
      %v2830 = vpack.c.b16 %v2578, %v2574
      %v2831 = vpack.c.b16 %v2579, %v2575
      %v2832 = vpack.c.b16 %v2580, %v2576
      %v2833 = vpack.c.b16 %v2581, %v2577
      %v2834 = vpack.c.b16 %v2586, %v2582
      %v2835 = vpack.c.b16 %v2587, %v2583
      %v2836 = vpack.c.b16 %v2588, %v2584
      %v2837 = vpack.c.b16 %v2589, %v2585
      %v2838 = vpack.c.b16 %v2594, %v2590
      %v2839 = vpack.c.b16 %v2595, %v2591
      %v2840 = vpack.c.b16 %v2596, %v2592
      %v2841 = vpack.c.b16 %v2597, %v2593
      %v2842 = vpack.c.b16 %v2602, %v2598
      %v2843 = vpack.c.b16 %v2603, %v2599
      %v2844 = vpack.c.b16 %v2604, %v2600
      %v2845 = vpack.c.b16 %v2605, %v2601
      %v2846 = vpack.c.b16 %v2610, %v2606
      %v2847 = vpack.c.b16 %v2611, %v2607
      %v2848 = vpack.c.b16 %v2612, %v2608
      %v2849 = vpack.c.b16 %v2613, %v2609
      %v2850 = vpack.c.b16 %v2618, %v2614
      %v2851 = vpack.c.b16 %v2619, %v2615
      %v2852 = vpack.c.b16 %v2620, %v2616
      %v2853 = vpack.c.b16 %v2621, %v2617
      %v2854 = vpack.c.b16 %v2626, %v2622
      %v2855 = vpack.c.b16 %v2627, %v2623
      %v2856 = vpack.c.b16 %v2628, %v2624
      %v2857 = vpack.c.b16 %v2629, %v2625
      %v2858 = vpack.c.b16 %v2634, %v2630
      %v2859 = vpack.c.b16 %v2635, %v2631
      %v2860 = vpack.c.b16 %v2636, %v2632
      %v2861 = vpack.c.b16 %v2637, %v2633
      %v2862 = vpack.c.b16 %v2642, %v2638
      %v2863 = vpack.c.b16 %v2643, %v2639
      %v2864 = vpack.c.b16 %v2644, %v2640
      %v2865 = vpack.c.b16 %v2645, %v2641
      %v2866 = vpack.c.b16 %v2650, %v2646
      %v2867 = vpack.c.b16 %v2651, %v2647
      %v2868 = vpack.c.b16 %v2652, %v2648
      %v2869 = vpack.c.b16 %v2653, %v2649
      %v2870 = vpack.c.b16 %v2658, %v2654
      %v2871 = vpack.c.b16 %v2659, %v2655
      %v2872 = vpack.c.b16 %v2660, %v2656
      %v2873 = vpack.c.b16 %v2661, %v2657
      %v2874 = vpack.c.b16 %v2666, %v2662
      %v2875 = vpack.c.b16 %v2667, %v2663
      %v2876 = vpack.c.b16 %v2668, %v2664
      %v2877 = vpack.c.b16 %v2669, %v2665
      %v2878 = vpack.c.b16 %v2674, %v2670
      %v2879 = vpack.c.b16 %v2675, %v2671
      %v2880 = vpack.c.b16 %v2676, %v2672
      %v2881 = vpack.c.b16 %v2677, %v2673
      %v2882 = vpack.c.b16 %v2682, %v2678
      %v2883 = vpack.c.b16 %v2683, %v2679
      %v2884 = vpack.c.b16 %v2684, %v2680
      %v2885 = vpack.c.b16 %v2685, %v2681
      %v2886 = vpack.c.b16 %v2690, %v2686
      %v2887 = vpack.c.b16 %v2691, %v2687
      %v2888 = vpack.c.b16 %v2692, %v2688
      %v2889 = vpack.c.b16 %v2693, %v2689
      %v2890 = vpack.c.b16 %v2698, %v2694
      %v2891 = vpack.c.b16 %v2699, %v2695
      %v2892 = vpack.c.b16 %v2700, %v2696
      %v2893 = vpack.c.b16 %v2701, %v2697
      %v2894 = vpack.c.b16 %v2706, %v2702
      %v2895 = vpack.c.b16 %v2707, %v2703
      %v2896 = vpack.c.b16 %v2708, %v2704
      %v2897 = vpack.c.b16 %v2709, %v2705
      %v2898 = vpack.c.b16 %v2714, %v2710
      %v2899 = vpack.c.b16 %v2715, %v2711
      %v2900 = vpack.c.b16 %v2716, %v2712
      %v2901 = vpack.c.b16 %v2717, %v2713
      %v2902 = vpack.c.b16 %v2722, %v2718
      %v2903 = vpack.c.b16 %v2723, %v2719
      %v2904 = vpack.c.b16 %v2724, %v2720
      %v2905 = vpack.c.b16 %v2725, %v2721
      %v2906 = vpack.c.b16 %v2730, %v2726
      %v2907 = vpack.c.b16 %v2731, %v2727
      %v2908 = vpack.c.b16 %v2732, %v2728
      %v2909 = vpack.c.b16 %v2733, %v2729
      %v2910 = vpack.c.b16 %v2738, %v2734
      %v2911 = vpack.c.b16 %v2739, %v2735
      %v2912 = vpack.c.b16 %v2740, %v2736
      %v2913 = vpack.c.b16 %v2741, %v2737
      %v2914 = vpack.c.b16 %v2746, %v2742
      %v2915 = vpack.c.b16 %v2747, %v2743
      %v2916 = vpack.c.b16 %v2748, %v2744
      %v2917 = vpack.c.b16 %v2749, %v2745
      %v2918 = vpack.c.b16 %v2754, %v2750
      %v2919 = vpack.c.b16 %v2755, %v2751
      %v2920 = vpack.c.b16 %v2756, %v2752
      %v2921 = vpack.c.b16 %v2757, %v2753
      %v2922 = vpack.c.b16 %v2762, %v2758
      %v2923 = vpack.c.b16 %v2763, %v2759
      %v2924 = vpack.c.b16 %v2764, %v2760
      %v2925 = vpack.c.b16 %v2765, %v2761
      %v2926 = vpack.c.b16 %v2770, %v2766
      %v2927 = vpack.c.b16 %v2771, %v2767
      %v2928 = vpack.c.b16 %v2772, %v2768
      %v2929 = vpack.c.b16 %v2773, %v2769
      %v2930 = vpack.c.b16 %v2778, %v2774
      %v2931 = vpack.c.b16 %v2779, %v2775
      %v2932 = vpack.c.b16 %v2780, %v2776
      %v2933 = vpack.c.b16 %v2781, %v2777
      %v2934 = vpack.c.b16 %v2786, %v2782
      %v2935 = vpack.c.b16 %v2787, %v2783
      %v2936 = vpack.c.b16 %v2788, %v2784
      %v2937 = vpack.c.b16 %v2789, %v2785
      %v2938 = vpack.c.b16 %v2794, %v2790
      %v2939 = vpack.c.b16 %v2795, %v2791
      %v2940 = vpack.c.b16 %v2796, %v2792
      %v2941 = vpack.c.b16 %v2797, %v2793
      %v2942 = vpack.c.b16 %v2802, %v2798
      %v2943 = vpack.c.b16 %v2803, %v2799
      %v2944 = vpack.c.b16 %v2804, %v2800
      %v2945 = vpack.c.b16 %v2805, %v2801
      %v2946 = vpack.c.b16 %v2810, %v2806
      %v2947 = vpack.c.b16 %v2811, %v2807
      %v2948 = vpack.c.b16 %v2812, %v2808
      %v2949 = vpack.c.b16 %v2813, %v2809
      %v2950 = vpack.c.b16 %v2818, %v2814
      %v2951 = vpack.c.b16 %v2819, %v2815
      %v2952 = vpack.c.b16 %v2820, %v2816
      %v2953 = vpack.c.b16 %v2821, %v2817
      %v2954 = vpack.c.b16 %v2826, %v2822
      %v2955 = vpack.c.b16 %v2827, %v2823
      %v2956 = vpack.c.b16 %v2828, %v2824
      %v2957 = vpack.c.b16 %v2829, %v2825
      %3086 = vmatprep.subr.bf16.mxu0 %v2831
      %3087 = vmatpush1.bf16.msra.mxu0 %v2830
      %3088 = vmatprep.subr.bf16.mxu0 %v2835
      %3089 = vmatpush1.bf16.msra.mxu0 %v2834
      %3090 = vmatprep.subr.bf16.mxu0 %v2839
      %3091 = vmatpush1.bf16.msra.mxu0 %v2838
      %3092 = vmatprep.subr.bf16.mxu0 %v2843
      %3093 = vmatpush1.bf16.msra.mxu0 %v2842
      %3094 = vmatprep.subr.bf16.mxu0 %v2847
      %3095 = vmatpush1.bf16.msra.mxu0 %v2846
      %3096 = vmatprep.subr.bf16.mxu0 %v2851
      %3097 = vmatpush1.bf16.msra.mxu0 %v2850
      %3098 = vmatprep.subr.bf16.mxu0 %v2855
      %3099 = vmatpush1.bf16.msra.mxu0 %v2854
      %3100 = vmatprep.subr.bf16.mxu0 %v2859
      %3101 = vmatpush1.bf16.msra.mxu0 %v2858
      %3102 = vmatprep.subr.bf16.mxu0 %v2863
      %3103 = vmatpush1.bf16.msra.mxu0 %v2862
      %3104 = vmatprep.subr.bf16.mxu0 %v2867
      %3105 = vmatpush1.bf16.msra.mxu0 %v2866
      %3106 = vmatprep.subr.bf16.mxu0 %v2871
      %3107 = vmatpush1.bf16.msra.mxu0 %v2870
      %3108 = vmatprep.subr.bf16.mxu0 %v2875
      %3109 = vmatpush1.bf16.msra.mxu0 %v2874
      %3110 = vmatprep.subr.bf16.mxu0 %v2879
      %3111 = vmatpush1.bf16.msra.mxu0 %v2878
      %3112 = vmatprep.subr.bf16.mxu0 %v2883
      %3113 = vmatpush1.bf16.msra.mxu0 %v2882
      %3114 = vmatprep.subr.bf16.mxu0 %v2887
      %3115 = vmatpush1.bf16.msra.mxu0 %v2886
      %3116 = vmatprep.subr.bf16.mxu0 %v2891
      %3117 = vmatpush1.bf16.msra.mxu0 %v2890
      %3118 = vmatprep.mubr.bf16.mxu0 %v2293
      %3119 = vmatmul.mubr.bf16.gmra.mrb[0].mxu0 %v2292
      %v3120 = vpop.f32.mrb[0].mxu0
      %v3121 = vadd.f32 %v2429, %v3120
      %v3122 = vpop.f32.mrb[0].mxu0
      %v3123 = vadd.f32 %v2433, %v3122
      %v3124 = vpop.f32.mrb[0].mxu0
      %v3125 = vpop.f32.mrb[0].mxu0
      %3126 = vdwg.mxu0
      %3127 = vmatprep.subr.bf16.mxu0 %v2895
      %3128 = vmatpush1.bf16.msra.mxu0 %v2894
      %3129 = vmatprep.subr.bf16.mxu0 %v2899
      %3130 = vmatpush1.bf16.msra.mxu0 %v2898
      %3131 = vmatprep.subr.bf16.mxu0 %v2903
      %3132 = vmatpush1.bf16.msra.mxu0 %v2902
      %3133 = vmatprep.subr.bf16.mxu0 %v2907
      %3134 = vmatpush1.bf16.msra.mxu0 %v2906
      %3135 = vmatprep.subr.bf16.mxu0 %v2911
      %3136 = vmatpush1.bf16.msra.mxu0 %v2910
      %3137 = vmatprep.subr.bf16.mxu0 %v2915
      %3138 = vmatpush1.bf16.msra.mxu0 %v2914
      %3139 = vmatprep.subr.bf16.mxu0 %v2919
      %3140 = vmatpush1.bf16.msra.mxu0 %v2918
      %3141 = vmatprep.subr.bf16.mxu0 %v2923
      %3142 = vmatpush1.bf16.msra.mxu0 %v2922
      %3143 = vmatprep.subr.bf16.mxu0 %v2927
      %3144 = vmatpush1.bf16.msra.mxu0 %v2926
      %3145 = vmatprep.subr.bf16.mxu0 %v2931
      %3146 = vmatpush1.bf16.msra.mxu0 %v2930
      %3147 = vmatprep.subr.bf16.mxu0 %v2935
      %3148 = vmatpush1.bf16.msra.mxu0 %v2934
      %3149 = vmatprep.subr.bf16.mxu0 %v2939
      %3150 = vmatpush1.bf16.msra.mxu0 %v2938
      %3151 = vmatprep.subr.bf16.mxu0 %v2943
      %3152 = vmatpush1.bf16.msra.mxu0 %v2942
      %3153 = vmatprep.subr.bf16.mxu0 %v2947
      %3154 = vmatpush1.bf16.msra.mxu0 %v2946
      %3155 = vmatprep.subr.bf16.mxu0 %v2951
      %3156 = vmatpush1.bf16.msra.mxu0 %v2950
      %3157 = vmatprep.subr.bf16.mxu0 %v2955
      %3158 = vmatpush1.bf16.msra.mxu0 %v2954
      %3159 = vmatprep.mubr.bf16.mxu0 %v2295
      %3160 = vmatmul.mubr.bf16.gmra.mrb[0].mxu0 %v2294
      %v3161 = vpop.f32.mrb[0].mxu0
      %v3162 = vadd.f32 %v3121, %v3161
      %v3163 = vpop.f32.mrb[0].mxu0
      %v3164 = vadd.f32 %v3123, %v3163
      %v3165 = vpop.f32.mrb[0].mxu0
      %v3166 = vpop.f32.mrb[0].mxu0
      %3167 = vdwg.mxu0
      %3168 = vmatprep.subr.bf16.mxu0 %v2833
      %3169 = vmatpush1.bf16.msra.mxu0 %v2832
      %3170 = vmatprep.subr.bf16.mxu0 %v2837
      %3171 = vmatpush1.bf16.msra.mxu0 %v2836
      %3172 = vmatprep.subr.bf16.mxu0 %v2841
      %3173 = vmatpush1.bf16.msra.mxu0 %v2840
      %3174 = vmatprep.subr.bf16.mxu0 %v2845
      %3175 = vmatpush1.bf16.msra.mxu0 %v2844
      %3176 = vmatprep.subr.bf16.mxu0 %v2849
      %3177 = vmatpush1.bf16.msra.mxu0 %v2848
      %3178 = vmatprep.subr.bf16.mxu0 %v2853
      %3179 = vmatpush1.bf16.msra.mxu0 %v2852
      %3180 = vmatprep.subr.bf16.mxu0 %v2857
      %3181 = vmatpush1.bf16.msra.mxu0 %v2856
      %3182 = vmatprep.subr.bf16.mxu0 %v2861
      %3183 = vmatpush1.bf16.msra.mxu0 %v2860
      %3184 = vmatprep.subr.bf16.mxu0 %v2865
      %3185 = vmatpush1.bf16.msra.mxu0 %v2864
      %3186 = vmatprep.subr.bf16.mxu0 %v2869
      %3187 = vmatpush1.bf16.msra.mxu0 %v2868
      %3188 = vmatprep.subr.bf16.mxu0 %v2873
      %3189 = vmatpush1.bf16.msra.mxu0 %v2872
      %3190 = vmatprep.subr.bf16.mxu0 %v2877
      %3191 = vmatpush1.bf16.msra.mxu0 %v2876
      %3192 = vmatprep.subr.bf16.mxu0 %v2881
      %3193 = vmatpush1.bf16.msra.mxu0 %v2880
      %3194 = vmatprep.subr.bf16.mxu0 %v2885
      %3195 = vmatpush1.bf16.msra.mxu0 %v2884
      %3196 = vmatprep.subr.bf16.mxu0 %v2889
      %3197 = vmatpush1.bf16.msra.mxu0 %v2888
      %3198 = vmatprep.subr.bf16.mxu0 %v2893
      %3199 = vmatpush1.bf16.msra.mxu0 %v2892
      %3200 = vmatprep.mubr.bf16.mxu0 %v2293
      %3201 = vmatmul.mubr.bf16.gmra.mrb[0].mxu0 %v2292
      %v3202 = vpop.f32.mrb[0].mxu0
      %v3203 = vadd.f32 %v2437, %v3202
      %v3204 = vpop.f32.mrb[0].mxu0
      %v3205 = vadd.f32 %v2441, %v3204
      %v3206 = vpop.f32.mrb[0].mxu0
      %v3207 = vpop.f32.mrb[0].mxu0
      %3208 = vdwg.mxu0
      %3209 = vmatprep.subr.bf16.mxu0 %v2897
      %3210 = vmatpush1.bf16.msra.mxu0 %v2896
      %3211 = vmatprep.subr.bf16.mxu0 %v2901
      %3212 = vmatpush1.bf16.msra.mxu0 %v2900
      %3213 = vmatprep.subr.bf16.mxu0 %v2905
      %3214 = vmatpush1.bf16.msra.mxu0 %v2904
      %3215 = vmatprep.subr.bf16.mxu0 %v2909
      %3216 = vmatpush1.bf16.msra.mxu0 %v2908
      %3217 = vmatprep.subr.bf16.mxu0 %v2913
      %3218 = vmatpush1.bf16.msra.mxu0 %v2912
      %3219 = vmatprep.subr.bf16.mxu0 %v2917
      %3220 = vmatpush1.bf16.msra.mxu0 %v2916
      %3221 = vmatprep.subr.bf16.mxu0 %v2921
      %3222 = vmatpush1.bf16.msra.mxu0 %v2920
      %3223 = vmatprep.subr.bf16.mxu0 %v2925
      %3224 = vmatpush1.bf16.msra.mxu0 %v2924
      %3225 = vmatprep.subr.bf16.mxu0 %v2929
      %3226 = vmatpush1.bf16.msra.mxu0 %v2928
      %3227 = vmatprep.subr.bf16.mxu0 %v2933
      %3228 = vmatpush1.bf16.msra.mxu0 %v2932
      %3229 = vmatprep.subr.bf16.mxu0 %v2937
      %3230 = vmatpush1.bf16.msra.mxu0 %v2936
      %3231 = vmatprep.subr.bf16.mxu0 %v2941
      %3232 = vmatpush1.bf16.msra.mxu0 %v2940
      %3233 = vmatprep.subr.bf16.mxu0 %v2945
      %3234 = vmatpush1.bf16.msra.mxu0 %v2944
      %3235 = vmatprep.subr.bf16.mxu0 %v2949
      %3236 = vmatpush1.bf16.msra.mxu0 %v2948
      %3237 = vmatprep.subr.bf16.mxu0 %v2953
      %3238 = vmatpush1.bf16.msra.mxu0 %v2952
      %3239 = vmatprep.subr.bf16.mxu0 %v2957
      %3240 = vmatpush1.bf16.msra.mxu0 %v2956
      %3241 = vmatprep.mubr.bf16.mxu0 %v2295
      %3242 = vmatmul.mubr.bf16.gmra.mrb[0].mxu0 %v2294
      %v3243 = vpop.f32.mrb[0].mxu0
      %v3244 = vadd.f32 %v3203, %v3243
      %v3245 = vpop.f32.mrb[0].mxu0
      %v3246 = vadd.f32 %v3205, %v3245
      %v3247 = vpop.f32.mrb[0].mxu0
      %v3248 = vpop.f32.mrb[0].mxu0
      %3249 = vdwg.mxu0
      %v3250 = vmax.f32 %v3162, 0.0
      %v3251 = vmax.f32 %v3164, 0.0
      %v3252 = vmax.f32 %v3244, 0.0
      %v3253 = vmax.f32 %v3246, 0.0
      %v3254 = vpack.c.bf16 %v3250, %v3250
      %v3255 = vpack.c.bf16 %v3251, %v3251
      %v3256 = vpack.c.bf16 %v3252, %v3252
      %v3257 = vpack.c.bf16 %v3253, %v3253
      %v3258 = vld [vmem:[%s377] sm:$0xf]
      %v3259 = vld [vmem:[%s377 + $0x4] sm:$0xf]
      %v3260 = vld [vmem:[%s377 + $0x8] sm:$0xf]
      %v3261 = vld [vmem:[%s377 + $0xc] sm:$0xf]
      %v3262 = vld [vmem:[%s377 + $0x10] sm:$0xf]
      %v3263 = vld [vmem:[%s377 + $0x14] sm:$0xf]
      %v3264 = vld [vmem:[%s377 + $0x18] sm:$0xf]
      %v3265 = vld [vmem:[%s377 + $0x1c] sm:$0xf]
      %v3266 = vld [vmem:[%s377 + $0x20] sm:$0xf]
      %v3267 = vld [vmem:[%s377 + $0x24] sm:$0xf]
      %v3268 = vld [vmem:[%s377 + $0x28] sm:$0xf]
      %v3269 = vld [vmem:[%s377 + $0x2c] sm:$0xf]
      %v3270 = vld [vmem:[%s377 + $0x30] sm:$0xf]
      %v3271 = vld [vmem:[%s377 + $0x34] sm:$0xf]
      %v3272 = vld [vmem:[%s377 + $0x38] sm:$0xf]
      %v3273 = vld [vmem:[%s377 + $0x3c] sm:$0xf]
      %v3274 = vld [vmem:[%s377 + $0x40] sm:$0xf]
      %v3275 = vld [vmem:[%s377 + $0x44] sm:$0xf]
      %v3276 = vld [vmem:[%s377 + $0x48] sm:$0xf]
      %v3277 = vld [vmem:[%s377 + $0x4c] sm:$0xf]
      %v3278 = vld [vmem:[%s377 + $0x50] sm:$0xf]
      %v3279 = vld [vmem:[%s377 + $0x54] sm:$0xf]
      %v3280 = vld [vmem:[%s377 + $0x58] sm:$0xf]
      %v3281 = vld [vmem:[%s377 + $0x5c] sm:$0xf]
      %v3282 = vld [vmem:[%s377 + $0x60] sm:$0xf]
      %v3283 = vld [vmem:[%s377 + $0x64] sm:$0xf]
      %v3284 = vld [vmem:[%s377 + $0x68] sm:$0xf]
      %v3285 = vld [vmem:[%s377 + $0x6c] sm:$0xf]
      %v3286 = vld [vmem:[%s377 + $0x70] sm:$0xf]
      %v3287 = vld [vmem:[%s377 + $0x74] sm:$0xf]
      %v3288 = vld [vmem:[%s377 + $0x78] sm:$0xf]
      %v3289 = vld [vmem:[%s377 + $0x7c] sm:$0xf]
      %v3290 = vld [vmem:[%s377 + $0x80] sm:$0xf]
      %v3291 = vld [vmem:[%s377 + $0x84] sm:$0xf]
      %v3292 = vld [vmem:[%s377 + $0x88] sm:$0xf]
      %v3293 = vld [vmem:[%s377 + $0x8c] sm:$0xf]
      %v3294 = vld [vmem:[%s377 + $0x90] sm:$0xf]
      %v3295 = vld [vmem:[%s377 + $0x94] sm:$0xf]
      %v3296 = vld [vmem:[%s377 + $0x98] sm:$0xf]
      %v3297 = vld [vmem:[%s377 + $0x9c] sm:$0xf]
      %v3298 = vld [vmem:[%s377 + $0xa0] sm:$0xf]
      %v3299 = vld [vmem:[%s377 + $0xa4] sm:$0xf]
      %v3300 = vld [vmem:[%s377 + $0xa8] sm:$0xf]
      %v3301 = vld [vmem:[%s377 + $0xac] sm:$0xf]
      %v3302 = vld [vmem:[%s377 + $0xb0] sm:$0xf]
      %v3303 = vld [vmem:[%s377 + $0xb4] sm:$0xf]
      %v3304 = vld [vmem:[%s377 + $0xb8] sm:$0xf]
      %v3305 = vld [vmem:[%s377 + $0xbc] sm:$0xf]
      %v3306 = vld [vmem:[%s377 + $0xc0] sm:$0xf]
      %v3307 = vld [vmem:[%s377 + $0xc4] sm:$0xf]
      %v3308 = vld [vmem:[%s377 + $0xc8] sm:$0xf]
      %v3309 = vld [vmem:[%s377 + $0xcc] sm:$0xf]
      %v3310 = vld [vmem:[%s377 + $0xd0] sm:$0xf]
      %v3311 = vld [vmem:[%s377 + $0xd4] sm:$0xf]
      %v3312 = vld [vmem:[%s377 + $0xd8] sm:$0xf]
      %v3313 = vld [vmem:[%s377 + $0xdc] sm:$0xf]
      %v3314 = vld [vmem:[%s377 + $0xe0] sm:$0xf]
      %v3315 = vld [vmem:[%s377 + $0xe4] sm:$0xf]
      %v3316 = vld [vmem:[%s377 + $0xe8] sm:$0xf]
      %v3317 = vld [vmem:[%s377 + $0xec] sm:$0xf]
      %v3318 = vld [vmem:[%s377 + $0xf0] sm:$0xf]
      %v3319 = vld [vmem:[%s377 + $0xf4] sm:$0xf]
      %v3320 = vld [vmem:[%s377 + $0xf8] sm:$0xf]
      %v3321 = vld [vmem:[%s377 + $0xfc] sm:$0xf]
      %v3322 = vld [vmem:[%s380] sm:$0x1]
      %v3324 = vlaneseq
      %v3325 = vshrl.u32 %v3324, 7
      %v3326 = vsub.s32 0, %v3325
      %v3327 = vrot.slane %v3322, %v3326
      %v3393 = vunpack.c.l.b16 %v3258
      %v3394 = vunpack.c.l.b16 %v3259
      %v3395 = vunpack.c.l.b16 %v3260
      %v3396 = vunpack.c.l.b16 %v3261
      %v3397 = vunpack.c.l.b16 %v3262
      %v3398 = vunpack.c.l.b16 %v3263
      %v3399 = vunpack.c.l.b16 %v3264
      %v3400 = vunpack.c.l.b16 %v3265
      %v3401 = vunpack.c.l.b16 %v3266
      %v3402 = vunpack.c.l.b16 %v3267
      %v3403 = vunpack.c.l.b16 %v3268
      %v3404 = vunpack.c.l.b16 %v3269
      %v3405 = vunpack.c.l.b16 %v3270
      %v3406 = vunpack.c.l.b16 %v3271
      %v3407 = vunpack.c.l.b16 %v3272
      %v3408 = vunpack.c.l.b16 %v3273
      %v3409 = vunpack.c.l.b16 %v3274
      %v3410 = vunpack.c.l.b16 %v3275
      %v3411 = vunpack.c.l.b16 %v3276
      %v3412 = vunpack.c.l.b16 %v3277
      %v3413 = vunpack.c.l.b16 %v3278
      %v3414 = vunpack.c.l.b16 %v3279
      %v3415 = vunpack.c.l.b16 %v3280
      %v3416 = vunpack.c.l.b16 %v3281
      %v3417 = vunpack.c.l.b16 %v3282
      %v3418 = vunpack.c.l.b16 %v3283
      %v3419 = vunpack.c.l.b16 %v3284
      %v3420 = vunpack.c.l.b16 %v3285
      %v3421 = vunpack.c.l.b16 %v3286
      %v3422 = vunpack.c.l.b16 %v3287
      %v3423 = vunpack.c.l.b16 %v3288
      %v3424 = vunpack.c.l.b16 %v3289
      %v3425 = vunpack.c.l.b16 %v3290
      %v3426 = vunpack.c.l.b16 %v3291
      %v3427 = vunpack.c.l.b16 %v3292
      %v3428 = vunpack.c.l.b16 %v3293
      %v3429 = vunpack.c.l.b16 %v3294
      %v3430 = vunpack.c.l.b16 %v3295
      %v3431 = vunpack.c.l.b16 %v3296
      %v3432 = vunpack.c.l.b16 %v3297
      %v3433 = vunpack.c.l.b16 %v3298
      %v3434 = vunpack.c.l.b16 %v3299
      %v3435 = vunpack.c.l.b16 %v3300
      %v3436 = vunpack.c.l.b16 %v3301
      %v3437 = vunpack.c.l.b16 %v3302
      %v3438 = vunpack.c.l.b16 %v3303
      %v3439 = vunpack.c.l.b16 %v3304
      %v3440 = vunpack.c.l.b16 %v3305
      %v3441 = vunpack.c.l.b16 %v3306
      %v3442 = vunpack.c.l.b16 %v3307
      %v3443 = vunpack.c.l.b16 %v3308
      %v3444 = vunpack.c.l.b16 %v3309
      %v3445 = vunpack.c.l.b16 %v3310
      %v3446 = vunpack.c.l.b16 %v3311
      %v3447 = vunpack.c.l.b16 %v3312
      %v3448 = vunpack.c.l.b16 %v3313
      %v3449 = vunpack.c.l.b16 %v3314
      %v3450 = vunpack.c.l.b16 %v3315
      %v3451 = vunpack.c.l.b16 %v3316
      %v3452 = vunpack.c.l.b16 %v3317
      %v3453 = vunpack.c.l.b16 %v3318
      %v3454 = vunpack.c.l.b16 %v3319
      %v3455 = vunpack.c.l.b16 %v3320
      %v3456 = vunpack.c.l.b16 %v3321
      %v3457 = vpack.c.b16 %v3394, %v3393
      %v3458 = vpack.c.b16 %v3396, %v3395
      %v3459 = vpack.c.b16 %v3398, %v3397
      %v3460 = vpack.c.b16 %v3400, %v3399
      %v3461 = vpack.c.b16 %v3402, %v3401
      %v3462 = vpack.c.b16 %v3404, %v3403
      %v3463 = vpack.c.b16 %v3406, %v3405
      %v3464 = vpack.c.b16 %v3408, %v3407
      %v3465 = vpack.c.b16 %v3410, %v3409
      %v3466 = vpack.c.b16 %v3412, %v3411
      %v3467 = vpack.c.b16 %v3414, %v3413
      %v3468 = vpack.c.b16 %v3416, %v3415
      %v3469 = vpack.c.b16 %v3418, %v3417
      %v3470 = vpack.c.b16 %v3420, %v3419
      %v3471 = vpack.c.b16 %v3422, %v3421
      %v3472 = vpack.c.b16 %v3424, %v3423
      %v3473 = vpack.c.b16 %v3426, %v3425
      %v3474 = vpack.c.b16 %v3428, %v3427
      %v3475 = vpack.c.b16 %v3430, %v3429
      %v3476 = vpack.c.b16 %v3432, %v3431
      %v3477 = vpack.c.b16 %v3434, %v3433
      %v3478 = vpack.c.b16 %v3436, %v3435
      %v3479 = vpack.c.b16 %v3438, %v3437
      %v3480 = vpack.c.b16 %v3440, %v3439
      %v3481 = vpack.c.b16 %v3442, %v3441
      %v3482 = vpack.c.b16 %v3444, %v3443
      %v3483 = vpack.c.b16 %v3446, %v3445
      %v3484 = vpack.c.b16 %v3448, %v3447
      %v3485 = vpack.c.b16 %v3450, %v3449
      %v3486 = vpack.c.b16 %v3452, %v3451
      %v3487 = vpack.c.b16 %v3454, %v3453
      %v3488 = vpack.c.b16 %v3456, %v3455
      %3521 = vmatprep.subr.bf16.mxu0 0
      %3522 = vmatpush1.bf16.msra.mxu0 %v3457
      %3523 = vmatprep.subr.bf16.mxu0 0
      %3524 = vmatpush1.bf16.msra.mxu0 %v3458
      %3525 = vmatprep.subr.bf16.mxu0 0
      %3526 = vmatpush1.bf16.msra.mxu0 %v3459
      %3527 = vmatprep.subr.bf16.mxu0 0
      %3528 = vmatpush1.bf16.msra.mxu0 %v3460
      %3529 = vmatprep.subr.bf16.mxu0 0
      %3530 = vmatpush1.bf16.msra.mxu0 %v3461
      %3531 = vmatprep.subr.bf16.mxu0 0
      %3532 = vmatpush1.bf16.msra.mxu0 %v3462
      %3533 = vmatprep.subr.bf16.mxu0 0
      %3534 = vmatpush1.bf16.msra.mxu0 %v3463
      %3535 = vmatprep.subr.bf16.mxu0 0
      %3536 = vmatpush1.bf16.msra.mxu0 %v3464
      %3537 = vmatprep.subr.bf16.mxu0 0
      %3538 = vmatpush1.bf16.msra.mxu0 %v3465
      %3539 = vmatprep.subr.bf16.mxu0 0
      %3540 = vmatpush1.bf16.msra.mxu0 %v3466
      %3541 = vmatprep.subr.bf16.mxu0 0
      %3542 = vmatpush1.bf16.msra.mxu0 %v3467
      %3543 = vmatprep.subr.bf16.mxu0 0
      %3544 = vmatpush1.bf16.msra.mxu0 %v3468
      %3545 = vmatprep.subr.bf16.mxu0 0
      %3546 = vmatpush1.bf16.msra.mxu0 %v3469
      %3547 = vmatprep.subr.bf16.mxu0 0
      %3548 = vmatpush1.bf16.msra.mxu0 %v3470
      %3549 = vmatprep.subr.bf16.mxu0 0
      %3550 = vmatpush1.bf16.msra.mxu0 %v3471
      %3551 = vmatprep.subr.bf16.mxu0 0
      %3552 = vmatpush1.bf16.msra.mxu0 %v3472
      %3553 = vmatprep.mubr.bf16.mxu0 %v3255
      %3554 = vmatmul.mubr.bf16.gmra.mrb[0].mxu0 %v3254
      %v3555 = vpop.f32.mrb[0].mxu0
      %v3556 = vadd.f32 %v3327, %v3555
      %v3557 = vpop.f32.mrb[0].mxu0
      %v3558 = vpop.f32.mrb[0].mxu0
      %v3559 = vpop.f32.mrb[0].mxu0
      %3560 = vdwg.mxu0
      %3561 = vmatprep.subr.bf16.mxu0 0
      %3562 = vmatpush1.bf16.msra.mxu0 %v3473
      %3563 = vmatprep.subr.bf16.mxu0 0
      %3564 = vmatpush1.bf16.msra.mxu0 %v3474
      %3565 = vmatprep.subr.bf16.mxu0 0
      %3566 = vmatpush1.bf16.msra.mxu0 %v3475
      %3567 = vmatprep.subr.bf16.mxu0 0
      %3568 = vmatpush1.bf16.msra.mxu0 %v3476
      %3569 = vmatprep.subr.bf16.mxu0 0
      %3570 = vmatpush1.bf16.msra.mxu0 %v3477
      %3571 = vmatprep.subr.bf16.mxu0 0
      %3572 = vmatpush1.bf16.msra.mxu0 %v3478
      %3573 = vmatprep.subr.bf16.mxu0 0
      %3574 = vmatpush1.bf16.msra.mxu0 %v3479
      %3575 = vmatprep.subr.bf16.mxu0 0
      %3576 = vmatpush1.bf16.msra.mxu0 %v3480
      %3577 = vmatprep.subr.bf16.mxu0 0
      %3578 = vmatpush1.bf16.msra.mxu0 %v3481
      %3579 = vmatprep.subr.bf16.mxu0 0
      %3580 = vmatpush1.bf16.msra.mxu0 %v3482
      %3581 = vmatprep.subr.bf16.mxu0 0
      %3582 = vmatpush1.bf16.msra.mxu0 %v3483
      %3583 = vmatprep.subr.bf16.mxu0 0
      %3584 = vmatpush1.bf16.msra.mxu0 %v3484
      %3585 = vmatprep.subr.bf16.mxu0 0
      %3586 = vmatpush1.bf16.msra.mxu0 %v3485
      %3587 = vmatprep.subr.bf16.mxu0 0
      %3588 = vmatpush1.bf16.msra.mxu0 %v3486
      %3589 = vmatprep.subr.bf16.mxu0 0
      %3590 = vmatpush1.bf16.msra.mxu0 %v3487
      %3591 = vmatprep.subr.bf16.mxu0 0
      %3592 = vmatpush1.bf16.msra.mxu0 %v3488
      %3593 = vmatprep.mubr.bf16.mxu0 %v3257
      %3594 = vmatmul.mubr.bf16.gmra.mrb[0].mxu0 %v3256
      %v3595 = vpop.f32.mrb[0].mxu0
      %v3596 = vadd.f32 %v3556, %v3595
      %v3597 = vpop.f32.mrb[0].mxu0
      %v3598 = vpop.f32.mrb[0].mxu0
      %v3599 = vpop.f32.mrb[0].mxu0
      %3600 = vdwg.mxu0
      %vm3601 = vcmask 64512
      %3602 = vst.msk [vmem:[%s384] sm:$0xff] %vm3601, %v3596
      %p3603 = scmp.lt.s32.totalorder %s18, 1
      %s3604 = scalar_select %p3603, %s18, 1
      %s3605 = smul.addr %s3604, 8
      %s3606 = scalar_lea.vmem %s7, %s3605
      // Predicated region
      $region49: #{eq_motion_forward.5} parent=47 // pred_check
        %p3607 = pneg %p218
      $region50: #{eq_motion_forward.5} parent=47 // pred_check_branch
        %3609 = sbr.rel (%p3607) target = $region52
      $region51: #{eq_motion_forward.5} parent=47 // pred_region
        _
      $region52: #{eq_motion_forward.5} parent=47 // pred_fallthru
        _
    $region48: #{eq_motion_forward.5} parent=5 // pred_fallthru
      _
    %p3610 = scmp.le.s32.totalorder 2, %s13
    // Predicated region
    $region53: #{eq_motion_forward.5} parent=5 // pred_check
      %p3611 = pneg %p3610
    $region54: #{eq_motion_forward.5} parent=5 // pred_check_branch
      %3613 = sbr.rel (%p3611) target = $region56
    $region55: #{eq_motion_forward.5} parent=5 // pred_region
      %s3614 = ssub.s32 %s13, 2
      // Predicated region
      $region57: #{eq_motion_forward.5} parent=55 // pred_check
        %p3615 = pneg %p224
      $region58: #{eq_motion_forward.5} parent=55 // pred_check_branch
        %3617 = sbr.rel (%p3615) target = $region60
      $region59: #{eq_motion_forward.5} parent=55 // pred_region
        %p3618 = scmp.lt.s32.totalorder %s19, 1
        %s3619 = scalar_select %p3618, %s19, 1
        %s3620 = smul.addr %s3619, 8
        %s3621 = scalar_lea.vmem %s7, %s3620
      $region60: #{eq_motion_forward.5} parent=55 // pred_fallthru
        _
    $region56: #{eq_motion_forward.5} parent=5 // pred_fallthru
      _
  $region6: #{eq_motion_forward.5} parent=0 // loop_footer
    %s17 = sadd.s32 1, %s13
  $region7: #{eq_motion_forward.5} parent=0 // loop_footer_branch
    %12 = sbr.rel target = $region3
  $region8: #{eq_motion_forward.5} parent=0 // loop_exit
    _

</llo_original>
